<compile_context>
chip_gen: v5e
topology: v5e:2x2
jax: 0.10.0
libtpu: 0.0.40
codegen_flags: <defaults>
</compile_context>

<pallas_src>
import functools
import math

import jax
import jax.numpy as jnp
from jax.experimental import pallas as pl
from jax.experimental.pallas import tpu as pltpu

_VMEM = pl.BlockSpec(memory_space=pltpu.MemorySpace.VMEM)
_LAYER_STRIDES = (1, 2, 2, 2)  # ResNet layer1..layer4 strides

# Tile caps chosen so (2 double-buffered bf16 inputs + f32 out + f32 acc +
# optional bf16 residual) stays ~1-2 MiB per step -- comfortably inside v7x's
# 64 MiB physical / 32 MiB scoped-default VMEM as well as v5e/v6e's 128 MiB.
_TM_MAX = 256
_TK_MAX = 512
_TN = 128
_VMEM_LIMIT = 32 * 1024 * 1024


# ------------------------------ small helpers -------------------------------

def _round_up(x, m):
    return ((x + m - 1) // m) * m


def _cdiv(a, b):
    return -(-a // b)


def _pad_to(a, shape):
    pads = [(0, s - d) for d, s in zip(a.shape, shape)]
    if all(p == (0, 0) for p in pads):
        return a
    return jnp.pad(a, pads)


def _m_tiles(m):
    nm = max(1, _cdiv(m, _TM_MAX))
    tm = _round_up(_cdiv(m, nm), 16)
    return nm, tm, nm * tm


def _k_tiles(k):
    nk = max(1, _cdiv(k, _TK_MAX))
    if nk == 1:
        tk = _round_up(k, 16)          # single K tile: just sublane-align
    else:
        tk = _round_up(_cdiv(k, nk), 128)  # multi-tile: lane-aligned K blocks
    return nk, tk, nk * tk


def _n_tiles(n):
    n_pad = _round_up(n, _TN)          # lane-dense output columns
    return n_pad // _TN, _TN, n_pad


# ----------------------------- Pallas kernels ------------------------------

def _mm_kernel(a_ref, b_ref, scale_ref, shift_ref, *rest, relu, has_res):
    """acc += a @ b over the K grid axis; at the last K step apply the fused
    epilogue out = maybe_relu(acc * scale + shift [+ resid]) in f32."""
    if has_res:
        res_ref, o_ref, acc_ref = rest
    else:
        res_ref = None
        o_ref, acc_ref = rest

    @pl.when(pl.program_id(2) == 0)
    def _():
        acc_ref[...] = jnp.zeros_like(acc_ref)

    acc_ref[...] += jnp.dot(a_ref[...], b_ref[...],
                            preferred_element_type=jnp.float32)

    @pl.when(pl.program_id(2) == pl.num_programs(2) - 1)
    def _():
        out = acc_ref[...] * scale_ref[...] + shift_ref[...]
        if has_res:
            out = out + res_ref[...].astype(jnp.float32)
        if relu:
            out = jnp.maximum(out, 0.0)
        o_ref[...] = out.astype(o_ref.dtype)


def _maxpool_kernel(ph_ref, o_ref, *, k, stride):
    """ph: (stride*stride, N, Hp/stride, Wp/stride, C) polyphase decomposition
    of the spatially padded input.  Reduce the k*k taps with static slices."""
    oh, ow = o_ref.shape[1], o_ref.shape[2]
    ph = ph_ref[...]
    acc = None
    for i in range(k):
        for j in range(k):
            p = (i % stride) * stride + (j % stride)
            di, dj = i // stride, j // stride
            win = ph[p, :, di:di + oh, dj:dj + ow, :]
            acc = win if acc is None else jnp.maximum(acc, win)
    o_ref[...] = acc


def _spatial_mean_kernel(x_ref, o_ref, *, inv_hw):
    """x: (N, HW, C) -> mean over HW (global average pool), f32 accumulate."""
    o_ref[...] = (jnp.sum(x_ref[...].astype(jnp.float32), axis=1)
                  * inv_hw).astype(o_ref.dtype)


def _mlp_kernel(x_ref, w1_ref, b1_ref, w2_ref, b2_ref, o_ref):
    """Fused 2-layer MLP: relu(x @ w1 + b1) @ w2 + b2 in one kernel."""
    h = jnp.dot(x_ref[...], w1_ref[...], preferred_element_type=jnp.float32)
    h = jnp.maximum(h + b1_ref[...], 0.0)
    o = jnp.dot(h.astype(w2_ref.dtype), w2_ref[...],
                preferred_element_type=jnp.float32) + b2_ref[...]
    o_ref[...] = o.astype(o_ref.dtype)


# ----------------------------- kernel wrappers ------------------------------

def fused_matmul(a, b, scale=None, shift=None, resid=None, relu=False,
                 out_dtype=jnp.float32):
    """(M,K) @ (K,N) with per-column scale/shift (folded BN or bias), optional
    residual add and ReLU.  Tiled grid with K-reduction + VMEM accumulator,
    bf16 MXU operands, f32 epilogue, lane-dense (128-padded) output columns."""
    m, k = a.shape
    k2, n = b.shape
    assert k == k2
    if scale is None:
        scale = jnp.ones((n,), jnp.float32)
    if shift is None:
        shift = jnp.zeros((n,), jnp.float32)

    nm, tm, m_pad = _m_tiles(m)
    nn, tn, n_pad = _n_tiles(n)
    nk, tk, k_pad = _k_tiles(k)

    a_p = _pad_to(a.astype(jnp.bfloat16), (m_pad, k_pad))
    b_p = _pad_to(b.astype(jnp.bfloat16), (k_pad, n_pad))
    scale_p = _pad_to(scale.reshape(1, n).astype(jnp.float32), (1, n_pad))
    shift_p = _pad_to(shift.reshape(1, n).astype(jnp.float32), (1, n_pad))

    has_res = resid is not None
    in_specs = [
        pl.BlockSpec((tm, tk), lambda i, j, kk: (i, kk)),
        pl.BlockSpec((tk, tn), lambda i, j, kk: (kk, j)),
        pl.BlockSpec((1, tn), lambda i, j, kk: (0, j)),
        pl.BlockSpec((1, tn), lambda i, j, kk: (0, j)),
    ]
    operands = [a_p, b_p, scale_p, shift_p]
    res_bytes = 0
    if has_res:
        res_p = _pad_to(resid.astype(jnp.bfloat16), (m_pad, n_pad))
        in_specs.append(pl.BlockSpec((tm, tn), lambda i, j, kk: (i, j)))
        operands.append(res_p)
        res_bytes = 2 * m_pad * n_pad

    kern = functools.partial(_mm_kernel, relu=relu, has_res=has_res)
    out = pl.pallas_call(
        kern,
        out_shape=jax.ShapeDtypeStruct((m_pad, n_pad), out_dtype),
        grid=(nm, nn, nk),
        in_specs=in_specs,
        out_specs=pl.BlockSpec((tm, tn), lambda i, j, kk: (i, j)),
        scratch_shapes=[pltpu.VMEM((tm, tn), jnp.float32)],
        compiler_params=pltpu.CompilerParams(
            dimension_semantics=("parallel", "parallel", "arbitrary"),
            vmem_limit_bytes=_VMEM_LIMIT),
        cost_estimate=pl.CostEstimate(
            flops=2 * m * k * n,
            transcendentals=0,
            bytes_accessed=2 * (m_pad * k_pad + k_pad * n_pad) + res_bytes
            + m_pad * n_pad * jnp.dtype(out_dtype).itemsize),
    )(*operands)
    return out[:m, :n]


def _im2col(x, kh, kw, stride, pad):
    """NHWC -> (N*OH*OW, KH*KW*C) patches in bf16 (XLA glue)."""
    # TODO(synk): fully fusing im2col into the conv kernel (strided in-kernel
    # windows over a (kh,kw) reduction grid axis) is not implemented; the
    # patch tensor is still materialized, but in bf16 (half the HBM traffic).
    n, h, w, c = x.shape
    xp = jnp.pad(x, ((0, 0), (pad, pad), (pad, pad), (0, 0)))
    oh = (h + 2 * pad - kh) // stride + 1
    ow = (w + 2 * pad - kw) // stride + 1
    cols = []
    for i in range(kh):
        for j in range(kw):
            cols.append(xp[:, i:i + stride * oh:stride,
                           j:j + stride * ow:stride, :])
    patches = jnp.stack(cols, axis=3)                 # (N, OH, OW, KH*KW, C)
    return patches.reshape(n * oh * ow, kh * kw * c), (n, oh, ow)


def conv2d_bn(x, w, scale, shift, *, stride, pad, relu, resid=None):
    """Conv (no bias) + folded BatchNorm (+ optional residual) + optional ReLU.
    x is NHWC bf16; output is NHWC bf16."""
    kh, kw, cin, cout = w.shape
    patches, (n, oh, ow) = _im2col(x.astype(jnp.bfloat16), kh, kw, stride, pad)
    r = None if resid is None else resid.reshape(n * oh * ow, cout)
    out = fused_matmul(patches, w.reshape(kh * kw * cin, cout),
                       scale=scale, shift=shift, resid=r, relu=relu,
                       out_dtype=jnp.bfloat16)
    return out.reshape(n, oh, ow, cout)


def maxpool2d(x, k=3, stride=2, pad=1):
    n, h, w, c = x.shape
    oh = (h + 2 * pad - k) // stride + 1
    ow = (w + 2 * pad - k) // stride + 1
    hp = _round_up(h + 2 * pad, stride)
    wp = _round_up(w + 2 * pad, stride)
    xp = jnp.pad(x, ((0, 0), (pad, hp - h - pad), (pad, wp - w - pad), (0, 0)),
                 constant_values=float("-inf"))
    # 1x polyphase rearrangement: ph[p*stride+q] == xp[:, p::stride, q::stride, :]
    ph = xp.reshape(n, hp // stride, stride, wp // stride, stride, c)
    ph = ph.transpose(2, 4, 0, 1, 3, 5).reshape(
        stride * stride, n, hp // stride, wp // stride, c)
    kern = functools.partial(_maxpool_kernel, k=k, stride=stride)
    return pl.pallas_call(
        kern,
        out_shape=jax.ShapeDtypeStruct((n, oh, ow, c), x.dtype),
        in_specs=[_VMEM],
        out_specs=_VMEM,
    )(ph)


def global_avgpool(x):
    n, h, w, c = x.shape
    xr = x.reshape(n, h * w, c)
    kern = functools.partial(_spatial_mean_kernel, inv_hw=1.0 / (h * w))
    return pl.pallas_call(
        kern,
        out_shape=jax.ShapeDtypeStruct((n, c), jnp.float32),
        in_specs=[_VMEM],
        out_specs=_VMEM,
    )(xr)


def predictor_mlp(flat, w1, b1, w2, b2):
    """Frozen 2-layer neural_predictor fused into a single Pallas kernel."""
    m, kin = flat.shape
    hid, out = w1.shape[1], w2.shape[1]
    nm, tm, m_pad = _m_tiles(m)
    k_pad = _round_up(kin, 128)
    h_pad = _round_up(hid, 128)
    o_pad = _round_up(out, 128)
    x_p = _pad_to(flat.astype(jnp.bfloat16), (m_pad, k_pad))
    w1_p = _pad_to(w1.astype(jnp.bfloat16), (k_pad, h_pad))
    b1_p = _pad_to(b1.reshape(1, hid).astype(jnp.float32), (1, h_pad))
    w2_p = _pad_to(w2.astype(jnp.bfloat16), (h_pad, o_pad))
    b2_p = _pad_to(b2.reshape(1, out).astype(jnp.float32), (1, o_pad))
    y = pl.pallas_call(
        _mlp_kernel,
        out_shape=jax.ShapeDtypeStruct((m_pad, o_pad), jnp.float32),
        grid=(nm,),
        in_specs=[
            pl.BlockSpec((tm, k_pad), lambda i: (i, 0)),
            pl.BlockSpec((k_pad, h_pad), lambda i: (0, 0)),
            pl.BlockSpec((1, h_pad), lambda i: (0, 0)),
            pl.BlockSpec((h_pad, o_pad), lambda i: (0, 0)),
            pl.BlockSpec((1, o_pad), lambda i: (0, 0)),
        ],
        out_specs=pl.BlockSpec((tm, o_pad), lambda i: (i, 0)),
        compiler_params=pltpu.CompilerParams(
            dimension_semantics=("parallel",),
            vmem_limit_bytes=_VMEM_LIMIT),
        cost_estimate=pl.CostEstimate(
            flops=2 * m * kin * hid + 2 * m * hid * out,
            transcendentals=0,
            bytes_accessed=2 * (m_pad * k_pad + k_pad * h_pad + h_pad * o_pad)
            + 4 * m_pad * o_pad),
    )(x_p, w1_p, b1_p, w2_p, b2_p)
    return y[:m, :out]


# ----------------------------- parameter init -------------------------------

def _init_conv(key, kh, kw, cin, cout):
    fan_in = kh * kw * cin
    return jax.random.normal(key, (kh, kw, cin, cout), jnp.float32) / math.sqrt(fan_in)


def _init_bn(key, c, eps=1e-5):
    # eval-mode BatchNorm folded into per-channel scale/shift
    kg, kb, km, kv = jax.random.split(key, 4)
    gamma = jax.random.uniform(kg, (c,), jnp.float32, 0.5, 1.5)
    beta = 0.1 * jax.random.normal(kb, (c,), jnp.float32)
    mean = 0.1 * jax.random.normal(km, (c,), jnp.float32)
    var = jax.random.uniform(kv, (c,), jnp.float32, 0.5, 1.5)
    scale = gamma * jax.lax.rsqrt(var + eps)
    shift = beta - mean * scale
    return scale, shift


def _init_linear(key, fin, fout):
    kw, kb = jax.random.split(key)
    bound = 1.0 / math.sqrt(fin)
    w = jax.random.uniform(kw, (fin, fout), jnp.float32, -bound, bound)
    b = jax.random.uniform(kb, (fout,), jnp.float32, -bound, bound)
    return w, b


def _init_block(key, cin, cout, stride):
    keys = jax.random.split(key, 6)
    p = {'w1': _init_conv(keys[0], 3, 3, cin, cout),
         'w2': _init_conv(keys[1], 3, 3, cout, cout)}
    p['s1'], p['sh1'] = _init_bn(keys[2], cout)
    p['s2'], p['sh2'] = _init_bn(keys[3], cout)
    if stride != 1 or cin != cout:
        p['wd'] = _init_conv(keys[4], 1, 1, cin, cout)
        p['sd'], p['shd'] = _init_bn(keys[5], cout)
    return p


def init_params(key, *, in_ch=3, num_classes=10, num_voxels=32, img_hw=32,
                widths=(16, 16, 32, 64, 128), predictor_hidden=64):
    keys = jax.random.split(key, 10)
    params = {'conv1_w': _init_conv(keys[0], 7, 7, in_ch, widths[0])}
    params['bn1_s'], params['bn1_sh'] = _init_bn(keys[1], widths[0])
    cin = widths[0]
    for idx, (cout, s) in enumerate(zip(widths[1:], _LAYER_STRIDES), start=1):
        params[f'layer{idx}'] = _init_block(keys[1 + idx], cin, cout, s)
        cin = cout
    params['fc_w'], params['fc_b'] = _init_linear(keys[6], widths[-1], num_classes)
    params['nh_w'], params['nh_b'] = _init_linear(keys[7], widths[-1], num_voxels)
    np_in = in_ch * img_hw * img_hw
    params['np_w1'], params['np_b1'] = _init_linear(keys[8], np_in, predictor_hidden)
    params['np_w2'], params['np_b2'] = _init_linear(keys[9], predictor_hidden, num_voxels)
    return params


# ------------------------------- forward pass -------------------------------

def basic_block(x, p, stride):
    # TODO(synk): fusing the whole block (conv1+conv2+downsample+residual) into
    # one pallas_call via pltpu.emit_pipeline is not implemented; kept per-conv.
    cin = x.shape[-1]
    cout = p['w1'].shape[-1]
    if stride != 1 or cin != cout:
        identity = conv2d_bn(x, p['wd'], p['sd'], p['shd'],
                             stride=stride, pad=0, relu=False)
    else:
        identity = x
    out = conv2d_bn(x, p['w1'], p['s1'], p['sh1'], stride=stride, pad=1, relu=True)
    # relu(bn(conv(out)) + identity) fused in the matmul epilogue
    out = conv2d_bn(out, p['w2'], p['s2'], p['sh2'], stride=1, pad=1,
                    relu=True, resid=identity)
    return out


def cotrain_forward(params, x_nchw, shuffled_img=None, classify_only=False):
    # shared_layer: conv1 -> bn1 -> relu -> maxpool -> layer1..4 -> avgpool
    x = jnp.transpose(x_nchw, (0, 2, 3, 1)).astype(jnp.bfloat16)  # NCHW -> NHWC
    out = conv2d_bn(x, params['conv1_w'], params['bn1_s'], params['bn1_sh'],
                    stride=2, pad=3, relu=True)
    out = maxpool2d(out, k=3, stride=2, pad=1)
    for idx, stride in enumerate(_LAYER_STRIDES, start=1):
        out = basic_block(out, params[f'layer{idx}'], stride)
    feat = global_avgpool(out)   # == torch.flatten(avgpool(out), 1): (N, C) f32

    num_classes = params['fc_w'].shape[1]
    if classify_only:
        return fused_matmul(feat, params['fc_w'], shift=params['fc_b'])

    # classification head + neural head merged into one lane-dense matmul
    w_heads = jnp.concatenate([params['fc_w'], params['nh_w']], axis=1)
    b_heads = jnp.concatenate([params['fc_b'], params['nh_b']], axis=0)
    heads = fused_matmul(feat, w_heads, shift=b_heads)
    classification_out = heads[:, :num_classes]
    neural_out = heads[:, num_classes:]

    # frozen neural_predictor: fused 2-layer MLP on the flattened NCHW image
    # TODO(synk): requires_grad=False freezing is a training-time detail only.
    img = x_nchw if shuffled_img is None else shuffled_img
    flat = img.reshape(img.shape[0], -1)
    neural_predict = predictor_mlp(flat, params['np_w1'], params['np_b1'],
                                   params['np_w2'], params['np_b2'])
    return neural_predict, neural_out, classification_out


# ---------------------------------- main ------------------------------------

if __name__ == "__main__":
    key = jax.random.PRNGKey(0)
    pkey, xkey, skey = jax.random.split(key, 3)

    params = init_params(pkey, num_classes=10, num_voxels=32, img_hw=32)
    x = jax.random.normal(xkey, (2, 3, 32, 32), jnp.float32)          # NCHW
    shuffled = jax.random.normal(skey, (2, 3, 32, 32), jnp.float32)   # NCHW

    forward = jax.jit(cotrain_forward, static_argnames=("classify_only",))
    neural_predict, neural_out, classification_out = forward(
        params, x, shuffled_img=shuffled)
    jax.block_until_ready((neural_predict, neural_out, classification_out))

    assert classification_out.shape == (2, 10)
    assert neural_out.shape == (2, 32)
    assert neural_predict.shape == (2, 32)
    print("KERNEL_OK")
</pallas_src>

<mosaic_0001>
module attributes {stable_mosaic.version = 11 : i64} {
  func.func @_mm_kernel(%arg0: i32, %arg1: i32, %arg2: i32, %arg3: memref<256x160xbf16, #tpu.memory_space<vmem>>, %arg4: memref<160x128xbf16, #tpu.memory_space<vmem>>, %arg5: memref<1x128xf32, #tpu.memory_space<vmem>>, %arg6: memref<1x128xf32, #tpu.memory_space<vmem>>, %arg7: memref<256x128xbf16, #tpu.memory_space<vmem>>, %arg8: memref<256x128xf32, #tpu.memory_space<vmem>>) attributes {dimension_semantics = [#tpu.dimension_semantics<parallel>, #tpu.dimension_semantics<parallel>, #tpu.dimension_semantics<arbitrary>], iteration_bounds = array<i64: 2, 1, 1>, scalar_prefetch = 0 : i64, scratch_operands = 1 : i64, tpu.core_type = #tpu.core_type<tc>, window_params = [{transform_indices = @transform_0, window_bounds = array<i64: 256, 160>}, {transform_indices = @transform_1, window_bounds = array<i64: 160, 128>}, {transform_indices = @transform_2, window_bounds = array<i64: 1, 128>}, {transform_indices = @transform_3, window_bounds = array<i64: 1, 128>}, {transform_indices = @transform_4, window_bounds = array<i64: 256, 128>}]} {
    %c0_i32 = arith.constant 0 : i32
    %0 = arith.cmpi eq, %arg2, %c0_i32 : i32
    %1 = arith.extui %0 : i1 to i32
    %c0_i32_0 = arith.constant 0 : i32
    %2 = arith.cmpi ne, %1, %c0_i32_0 : i32
    scf.if %2 {
      %cst_10 = arith.constant 0.000000e+00 : f32
      %12 = vector.broadcast %cst_10 : f32 to vector<256x128xf32>
      %c0_11 = arith.constant 0 : index
      %c0_12 = arith.constant 0 : index
      %13 = vector.load %arg8[%c0_11, %c0_12] : memref<256x128xf32, #tpu.memory_space<vmem>>, vector<256x128xf32>
      tpu.vector_store %arg8[%c0_11, %c0_12], %12 {strides = array<i32>} : memref<256x128xf32, #tpu.memory_space<vmem>>, vector<256x128xf32>,
    } else {
    }
    %c0 = arith.constant 0 : index
    %c0_1 = arith.constant 0 : index
    %3 = vector.load %arg8[%c0, %c0_1] : memref<256x128xf32, #tpu.memory_space<vmem>>, vector<256x128xf32>
    %c0_2 = arith.constant 0 : index
    %c0_3 = arith.constant 0 : index
    %4 = vector.load %arg3[%c0_2, %c0_3] : memref<256x160xbf16, #tpu.memory_space<vmem>>, vector<256x160xbf16>
    %c0_4 = arith.constant 0 : index
    %c0_5 = arith.constant 0 : index
    %5 = vector.load %arg4[%c0_4, %c0_5] : memref<160x128xbf16, #tpu.memory_space<vmem>>, vector<160x128xbf16>
    %cst = arith.constant dense<0.000000e+00> : vector<256x128xf32>
    %6 = tpu.matmul %4, %5, %cst {dimension_numbers = #tpu.dot_dimension_numbers<[1], [0], [0], [1], [0, 0, 1, 1], [], []>} : vector<256x160xbf16>, vector<160x128xbf16>, vector<256x128xf32> -> vector<256x128xf32>
    %7 = arith.addf %3, %6 : vector<256x128xf32>
    %c0_6 = arith.constant 0 : index
    %c0_7 = arith.constant 0 : index
    %8 = vector.load %arg8[%c0_6, %c0_7] : memref<256x128xf32, #tpu.memory_space<vmem>>, vector<256x128xf32>
    tpu.vector_store %arg8[%c0_6, %c0_7], %7 {strides = array<i32>} : memref<256x128xf32, #tpu.memory_space<vmem>>, vector<256x128xf32>,
    %c0_i32_8 = arith.constant 0 : i32
    %9 = arith.cmpi eq, %arg2, %c0_i32_8 : i32
    %10 = arith.extui %9 : i1 to i32
    %c0_i32_9 = arith.constant 0 : i32
    %11 = arith.cmpi ne, %10, %c0_i32_9 : i32
    scf.if %11 {
      %c0_10 = arith.constant 0 : index
      %c0_11 = arith.constant 0 : index
      %12 = vector.load %arg8[%c0_10, %c0_11] : memref<256x128xf32, #tpu.memory_space<vmem>>, vector<256x128xf32>
      %c0_12 = arith.constant 0 : index
      %c0_13 = arith.constant 0 : index
      %13 = vector.load %arg5[%c0_12, %c0_13] : memref<1x128xf32, #tpu.memory_space<vmem>>, vector<1x128xf32>
      %14 = vector.broadcast %13 : vector<1x128xf32> to vector<256x128xf32>
      %15 = arith.mulf %12, %14 : vector<256x128xf32>
      %c0_14 = arith.constant 0 : index
      %c0_15 = arith.constant 0 : index
      %16 = vector.load %arg6[%c0_14, %c0_15] : memref<1x128xf32, #tpu.memory_space<vmem>>, vector<1x128xf32>
      %17 = vector.broadcast %16 : vector<1x128xf32> to vector<256x128xf32>
      %18 = arith.addf %15, %17 : vector<256x128xf32>
      %cst_16 = arith.constant 0.000000e+00 : f32
      %19 = vector.broadcast %cst_16 : f32 to vector<256x128xf32>
      %20 = arith.maximumf %18, %19 : vector<256x128xf32>
      %21 = arith.truncf %20 : vector<256x128xf32> to vector<256x128xbf16>
      %c0_17 = arith.constant 0 : index
      %c0_18 = arith.constant 0 : index
      %22 = vector.load %arg7[%c0_17, %c0_18] : memref<256x128xbf16, #tpu.memory_space<vmem>>, vector<256x128xbf16>
      tpu.vector_store %arg7[%c0_17, %c0_18], %21 {strides = array<i32>} : memref<256x128xbf16, #tpu.memory_space<vmem>>, vector<256x128xbf16>,
    } else {
    }
    return
  }
  func.func @transform_0(%arg0: i32, %arg1: i32, %arg2: i32) -> (i32, i32) {
    %c0_i32 = arith.constant 0 : i32
    return %arg0, %arg2 : i32, i32
  }
  func.func @transform_1(%arg0: i32, %arg1: i32, %arg2: i32) -> (i32, i32) {
    %c0_i32 = arith.constant 0 : i32
    return %arg2, %arg1 : i32, i32
  }
  func.func @transform_2(%arg0: i32, %arg1: i32, %arg2: i32) -> (i32, i32) {
    %c0_i32 = arith.constant 0 : i32
    %c0_i32_0 = arith.constant 0 : i32
    return %c0_i32, %arg1 : i32, i32
  }
  func.func @transform_3(%arg0: i32, %arg1: i32, %arg2: i32) -> (i32, i32) {
    %c0_i32 = arith.constant 0 : i32
    %c0_i32_0 = arith.constant 0 : i32
    return %c0_i32, %arg1 : i32, i32
  }
  func.func @transform_4(%arg0: i32, %arg1: i32, %arg2: i32) -> (i32, i32) {
    %c0_i32 = arith.constant 0 : i32
    return %arg0, %arg1 : i32, i32
  }
}

module attributes {stable_mosaic.version = 11 : i64} {
  func.func @_maxpool_kernel(%arg0: memref<4x2x9x9x16xbf16, #tpu.memory_space<vmem>>, %arg1: memref<2x8x8x16xbf16, #tpu.memory_space<vmem>>) attributes {dimension_semantics = [], scalar_prefetch = 0 : i64, scratch_operands = 0 : i64, tpu.core_type = #tpu.core_type<tc>} {
    %c0 = arith.constant 0 : index
    %c0_0 = arith.constant 0 : index
    %c0_1 = arith.constant 0 : index
    %c0_2 = arith.constant 0 : index
    %c0_3 = arith.constant 0 : index
    %0 = vector.load %arg0[%c0, %c0_0, %c0_1, %c0_2, %c0_3] : memref<4x2x9x9x16xbf16, #tpu.memory_space<vmem>>, vector<4x2x9x9x16xbf16>
    %1 = vector.extract_strided_slice %0 {offsets = [0, 0, 0, 0, 0], sizes = [1, 2, 8, 8, 16], strides = [1, 1, 1, 1, 1]} : vector<4x2x9x9x16xbf16> to vector<1x2x8x8x16xbf16>
    %2 = vector.shape_cast %1 : vector<1x2x8x8x16xbf16> to vector<2x8x8x16xbf16>
    %3 = vector.extract_strided_slice %0 {offsets = [1, 0, 0, 0, 0], sizes = [1, 2, 8, 8, 16], strides = [1, 1, 1, 1, 1]} : vector<4x2x9x9x16xbf16> to vector<1x2x8x8x16xbf16>
    %4 = vector.shape_cast %3 : vector<1x2x8x8x16xbf16> to vector<2x8x8x16xbf16>
    %5 = arith.maximumf %2, %4 : vector<2x8x8x16xbf16>
    %6 = vector.extract_strided_slice %0 {offsets = [0, 0, 0, 1, 0], sizes = [1, 2, 8, 8, 16], strides = [1, 1, 1, 1, 1]} : vector<4x2x9x9x16xbf16> to vector<1x2x8x8x16xbf16>
    %7 = vector.shape_cast %6 : vector<1x2x8x8x16xbf16> to vector<2x8x8x16xbf16>
    %8 = arith.maximumf %5, %7 : vector<2x8x8x16xbf16>
    %9 = vector.extract_strided_slice %0 {offsets = [2, 0, 0, 0, 0], sizes = [1, 2, 8, 8, 16], strides = [1, 1, 1, 1, 1]} : vector<4x2x9x9x16xbf16> to vector<1x2x8x8x16xbf16>
    %10 = vector.shape_cast %9 : vector<1x2x8x8x16xbf16> to vector<2x8x8x16xbf16>
    %11 = arith.maximumf %8, %10 : vector<2x8x8x16xbf16>
    %12 = vector.extract_strided_slice %0 {offsets = [3, 0, 0, 0, 0], sizes = [1, 2, 8, 8, 16], strides = [1, 1, 1, 1, 1]} : vector<4x2x9x9x16xbf16> to vector<1x2x8x8x16xbf16>
    %13 = vector.shape_cast %12 : vector<1x2x8x8x16xbf16> to vector<2x8x8x16xbf16>
    %14 = arith.maximumf %11, %13 : vector<2x8x8x16xbf16>
    %15 = vector.extract_strided_slice %0 {offsets = [2, 0, 0, 1, 0], sizes = [1, 2, 8, 8, 16], strides = [1, 1, 1, 1, 1]} : vector<4x2x9x9x16xbf16> to vector<1x2x8x8x16xbf16>
    %16 = vector.shape_cast %15 : vector<1x2x8x8x16xbf16> to vector<2x8x8x16xbf16>
    %17 = arith.maximumf %14, %16 : vector<2x8x8x16xbf16>
    %18 = vector.extract_strided_slice %0 {offsets = [0, 0, 1, 0, 0], sizes = [1, 2, 8, 8, 16], strides = [1, 1, 1, 1, 1]} : vector<4x2x9x9x16xbf16> to vector<1x2x8x8x16xbf16>
    %19 = vector.shape_cast %18 : vector<1x2x8x8x16xbf16> to vector<2x8x8x16xbf16>
    %20 = arith.maximumf %17, %19 : vector<2x8x8x16xbf16>
    %21 = vector.extract_strided_slice %0 {offsets = [1, 0, 1, 0, 0], sizes = [1, 2, 8, 8, 16], strides = [1, 1, 1, 1, 1]} : vector<4x2x9x9x16xbf16> to vector<1x2x8x8x16xbf16>
    %22 = vector.shape_cast %21 : vector<1x2x8x8x16xbf16> to vector<2x8x8x16xbf16>
    %23 = arith.maximumf %20, %22 : vector<2x8x8x16xbf16>
    %24 = vector.extract_strided_slice %0 {offsets = [0, 0, 1, 1, 0], sizes = [1, 2, 8, 8, 16], strides = [1, 1, 1, 1, 1]} : vector<4x2x9x9x16xbf16> to vector<1x2x8x8x16xbf16>
    %25 = vector.shape_cast %24 : vector<1x2x8x8x16xbf16> to vector<2x8x8x16xbf16>
    %26 = arith.maximumf %23, %25 : vector<2x8x8x16xbf16>
    %c0_4 = arith.constant 0 : index
    %c0_5 = arith.constant 0 : index
    %c0_6 = arith.constant 0 : index
    %c0_7 = arith.constant 0 : index
    %27 = vector.load %arg1[%c0_4, %c0_5, %c0_6, %c0_7] : memref<2x8x8x16xbf16, #tpu.memory_space<vmem>>, vector<2x8x8x16xbf16>
    tpu.vector_store %arg1[%c0_4, %c0_5, %c0_6, %c0_7], %26 {strides = array<i32>} : memref<2x8x8x16xbf16, #tpu.memory_space<vmem>>, vector<2x8x8x16xbf16>,
    return
  }
}

module attributes {stable_mosaic.version = 11 : i64} {
  func.func @_mm_kernel(%arg0: i32, %arg1: i32, %arg2: i32, %arg3: memref<128x144xbf16, #tpu.memory_space<vmem>>, %arg4: memref<144x128xbf16, #tpu.memory_space<vmem>>, %arg5: memref<1x128xf32, #tpu.memory_space<vmem>>, %arg6: memref<1x128xf32, #tpu.memory_space<vmem>>, %arg7: memref<128x128xbf16, #tpu.memory_space<vmem>>, %arg8: memref<128x128xf32, #tpu.memory_space<vmem>>) attributes {dimension_semantics = [#tpu.dimension_semantics<parallel>, #tpu.dimension_semantics<parallel>, #tpu.dimension_semantics<arbitrary>], iteration_bounds = array<i64: 1, 1, 1>, scalar_prefetch = 0 : i64, scratch_operands = 1 : i64, tpu.core_type = #tpu.core_type<tc>, window_params = [{transform_indices = @transform_0, window_bounds = array<i64: 128, 144>}, {transform_indices = @transform_1, window_bounds = array<i64: 144, 128>}, {transform_indices = @transform_2, window_bounds = array<i64: 1, 128>}, {transform_indices = @transform_3, window_bounds = array<i64: 1, 128>}, {transform_indices = @transform_4, window_bounds = array<i64: 128, 128>}]} {
    %c0_i32 = arith.constant 0 : i32
    %0 = arith.cmpi eq, %arg2, %c0_i32 : i32
    %1 = arith.extui %0 : i1 to i32
    %c0_i32_0 = arith.constant 0 : i32
    %2 = arith.cmpi ne, %1, %c0_i32_0 : i32
    scf.if %2 {
      %cst_10 = arith.constant 0.000000e+00 : f32
      %12 = vector.broadcast %cst_10 : f32 to vector<128x128xf32>
      %c0_11 = arith.constant 0 : index
      %c0_12 = arith.constant 0 : index
      %13 = vector.load %arg8[%c0_11, %c0_12] : memref<128x128xf32, #tpu.memory_space<vmem>>, vector<128x128xf32>
      tpu.vector_store %arg8[%c0_11, %c0_12], %12 {strides = array<i32>} : memref<128x128xf32, #tpu.memory_space<vmem>>, vector<128x128xf32>,
    } else {
    }
    %c0 = arith.constant 0 : index
    %c0_1 = arith.constant 0 : index
    %3 = vector.load %arg8[%c0, %c0_1] : memref<128x128xf32, #tpu.memory_space<vmem>>, vector<128x128xf32>
    %c0_2 = arith.constant 0 : index
    %c0_3 = arith.constant 0 : index
    %4 = vector.load %arg3[%c0_2, %c0_3] : memref<128x144xbf16, #tpu.memory_space<vmem>>, vector<128x144xbf16>
    %c0_4 = arith.constant 0 : index
    %c0_5 = arith.constant 0 : index
    %5 = vector.load %arg4[%c0_4, %c0_5] : memref<144x128xbf16, #tpu.memory_space<vmem>>, vector<144x128xbf16>
    %cst = arith.constant dense<0.000000e+00> : vector<128x128xf32>
    %6 = tpu.matmul %4, %5, %cst {dimension_numbers = #tpu.dot_dimension_numbers<[1], [0], [0], [1], [0, 0, 1, 1], [], []>} : vector<128x144xbf16>, vector<144x128xbf16>, vector<128x128xf32> -> vector<128x128xf32>
    %7 = arith.addf %3, %6 : vector<128x128xf32>
    %c0_6 = arith.constant 0 : index
    %c0_7 = arith.constant 0 : index
    %8 = vector.load %arg8[%c0_6, %c0_7] : memref<128x128xf32, #tpu.memory_space<vmem>>, vector<128x128xf32>
    tpu.vector_store %arg8[%c0_6, %c0_7], %7 {strides = array<i32>} : memref<128x128xf32, #tpu.memory_space<vmem>>, vector<128x128xf32>,
    %c0_i32_8 = arith.constant 0 : i32
    %9 = arith.cmpi eq, %arg2, %c0_i32_8 : i32
    %10 = arith.extui %9 : i1 to i32
    %c0_i32_9 = arith.constant 0 : i32
    %11 = arith.cmpi ne, %10, %c0_i32_9 : i32
    scf.if %11 {
      %c0_10 = arith.constant 0 : index
      %c0_11 = arith.constant 0 : index
      %12 = vector.load %arg8[%c0_10, %c0_11] : memref<128x128xf32, #tpu.memory_space<vmem>>, vector<128x128xf32>
      %c0_12 = arith.constant 0 : index
      %c0_13 = arith.constant 0 : index
      %13 = vector.load %arg5[%c0_12, %c0_13] : memref<1x128xf32, #tpu.memory_space<vmem>>, vector<1x128xf32>
      %14 = vector.broadcast %13 : vector<1x128xf32> to vector<128x128xf32>
      %15 = arith.mulf %12, %14 : vector<128x128xf32>
      %c0_14 = arith.constant 0 : index
      %c0_15 = arith.constant 0 : index
      %16 = vector.load %arg6[%c0_14, %c0_15] : memref<1x128xf32, #tpu.memory_space<vmem>>, vector<1x128xf32>
      %17 = vector.broadcast %16 : vector<1x128xf32> to vector<128x128xf32>
      %18 = arith.addf %15, %17 : vector<128x128xf32>
      %cst_16 = arith.constant 0.000000e+00 : f32
      %19 = vector.broadcast %cst_16 : f32 to vector<128x128xf32>
      %20 = arith.maximumf %18, %19 : vector<128x128xf32>
      %21 = arith.truncf %20 : vector<128x128xf32> to vector<128x128xbf16>
      %c0_17 = arith.constant 0 : index
      %c0_18 = arith.constant 0 : index
      %22 = vector.load %arg7[%c0_17, %c0_18] : memref<128x128xbf16, #tpu.memory_space<vmem>>, vector<128x128xbf16>
      tpu.vector_store %arg7[%c0_17, %c0_18], %21 {strides = array<i32>} : memref<128x128xbf16, #tpu.memory_space<vmem>>, vector<128x128xbf16>,
    } else {
    }
    return
  }
  func.func @transform_0(%arg0: i32, %arg1: i32, %arg2: i32) -> (i32, i32) {
    %c0_i32 = arith.constant 0 : i32
    return %arg0, %arg2 : i32, i32
  }
  func.func @transform_1(%arg0: i32, %arg1: i32, %arg2: i32) -> (i32, i32) {
    %c0_i32 = arith.constant 0 : i32
    return %arg2, %arg1 : i32, i32
  }
  func.func @transform_2(%arg0: i32, %arg1: i32, %arg2: i32) -> (i32, i32) {
    %c0_i32 = arith.constant 0 : i32
    %c0_i32_0 = arith.constant 0 : i32
    return %c0_i32, %arg1 : i32, i32
  }
  func.func @transform_3(%arg0: i32, %arg1: i32, %arg2: i32) -> (i32, i32) {
    %c0_i32 = arith.constant 0 : i32
    %c0_i32_0 = arith.constant 0 : i32
    return %c0_i32, %arg1 : i32, i32
  }
  func.func @transform_4(%arg0: i32, %arg1: i32, %arg2: i32) -> (i32, i32) {
    %c0_i32 = arith.constant 0 : i32
    return %arg0, %arg1 : i32, i32
  }
}

module attributes {stable_mosaic.version = 11 : i64} {
  func.func @_mm_kernel(%arg0: i32, %arg1: i32, %arg2: i32, %arg3: memref<128x144xbf16, #tpu.memory_space<vmem>>, %arg4: memref<144x128xbf16, #tpu.memory_space<vmem>>, %arg5: memref<1x128xf32, #tpu.memory_space<vmem>>, %arg6: memref<1x128xf32, #tpu.memory_space<vmem>>, %arg7: memref<128x128xbf16, #tpu.memory_space<vmem>>, %arg8: memref<128x128xbf16, #tpu.memory_space<vmem>>, %arg9: memref<128x128xf32, #tpu.memory_space<vmem>>) attributes {dimension_semantics = [#tpu.dimension_semantics<parallel>, #tpu.dimension_semantics<parallel>, #tpu.dimension_semantics<arbitrary>], iteration_bounds = array<i64: 1, 1, 1>, scalar_prefetch = 0 : i64, scratch_operands = 1 : i64, tpu.core_type = #tpu.core_type<tc>, window_params = [{transform_indices = @transform_0, window_bounds = array<i64: 128, 144>}, {transform_indices = @transform_1, window_bounds = array<i64: 144, 128>}, {transform_indices = @transform_2, window_bounds = array<i64: 1, 128>}, {transform_indices = @transform_3, window_bounds = array<i64: 1, 128>}, {transform_indices = @transform_4, window_bounds = array<i64: 128, 128>}, {transform_indices = @transform_5, window_bounds = array<i64: 128, 128>}]} {
    %c0_i32 = arith.constant 0 : i32
    %0 = arith.cmpi eq, %arg2, %c0_i32 : i32
    %1 = arith.extui %0 : i1 to i32
    %c0_i32_0 = arith.constant 0 : i32
    %2 = arith.cmpi ne, %1, %c0_i32_0 : i32
    scf.if %2 {
      %cst_10 = arith.constant 0.000000e+00 : f32
      %12 = vector.broadcast %cst_10 : f32 to vector<128x128xf32>
      %c0_11 = arith.constant 0 : index
      %c0_12 = arith.constant 0 : index
      %13 = vector.load %arg9[%c0_11, %c0_12] : memref<128x128xf32, #tpu.memory_space<vmem>>, vector<128x128xf32>
      tpu.vector_store %arg9[%c0_11, %c0_12], %12 {strides = array<i32>} : memref<128x128xf32, #tpu.memory_space<vmem>>, vector<128x128xf32>,
    } else {
    }
    %c0 = arith.constant 0 : index
    %c0_1 = arith.constant 0 : index
    %3 = vector.load %arg9[%c0, %c0_1] : memref<128x128xf32, #tpu.memory_space<vmem>>, vector<128x128xf32>
    %c0_2 = arith.constant 0 : index
    %c0_3 = arith.constant 0 : index
    %4 = vector.load %arg3[%c0_2, %c0_3] : memref<128x144xbf16, #tpu.memory_space<vmem>>, vector<128x144xbf16>
    %c0_4 = arith.constant 0 : index
    %c0_5 = arith.constant 0 : index
    %5 = vector.load %arg4[%c0_4, %c0_5] : memref<144x128xbf16, #tpu.memory_space<vmem>>, vector<144x128xbf16>
    %cst = arith.constant dense<0.000000e+00> : vector<128x128xf32>
    %6 = tpu.matmul %4, %5, %cst {dimension_numbers = #tpu.dot_dimension_numbers<[1], [0], [0], [1], [0, 0, 1, 1], [], []>} : vector<128x144xbf16>, vector<144x128xbf16>, vector<128x128xf32> -> vector<128x128xf32>
    %7 = arith.addf %3, %6 : vector<128x128xf32>
    %c0_6 = arith.constant 0 : index
    %c0_7 = arith.constant 0 : index
    %8 = vector.load %arg9[%c0_6, %c0_7] : memref<128x128xf32, #tpu.memory_space<vmem>>, vector<128x128xf32>
    tpu.vector_store %arg9[%c0_6, %c0_7], %7 {strides = array<i32>} : memref<128x128xf32, #tpu.memory_space<vmem>>, vector<128x128xf32>,
    %c0_i32_8 = arith.constant 0 : i32
    %9 = arith.cmpi eq, %arg2, %c0_i32_8 : i32
    %10 = arith.extui %9 : i1 to i32
    %c0_i32_9 = arith.constant 0 : i32
    %11 = arith.cmpi ne, %10, %c0_i32_9 : i32
    scf.if %11 {
      %c0_10 = arith.constant 0 : index
      %c0_11 = arith.constant 0 : index
      %12 = vector.load %arg9[%c0_10, %c0_11] : memref<128x128xf32, #tpu.memory_space<vmem>>, vector<128x128xf32>
      %c0_12 = arith.constant 0 : index
      %c0_13 = arith.constant 0 : index
      %13 = vector.load %arg5[%c0_12, %c0_13] : memref<1x128xf32, #tpu.memory_space<vmem>>, vector<1x128xf32>
      %14 = vector.broadcast %13 : vector<1x128xf32> to vector<128x128xf32>
      %15 = arith.mulf %12, %14 : vector<128x128xf32>
      %c0_14 = arith.constant 0 : index
      %c0_15 = arith.constant 0 : index
      %16 = vector.load %arg6[%c0_14, %c0_15] : memref<1x128xf32, #tpu.memory_space<vmem>>, vector<1x128xf32>
      %17 = vector.broadcast %16 : vector<1x128xf32> to vector<128x128xf32>
      %18 = arith.addf %15, %17 : vector<128x128xf32>
      %c0_16 = arith.constant 0 : index
      %c0_17 = arith.constant 0 : index
      %19 = vector.load %arg7[%c0_16, %c0_17] : memref<128x128xbf16, #tpu.memory_space<vmem>>, vector<128x128xbf16>
      %20 = arith.extf %19 : vector<128x128xbf16> to vector<128x128xf32>
      %21 = arith.addf %18, %20 : vector<128x128xf32>
      %cst_18 = arith.constant 0.000000e+00 : f32
      %22 = vector.broadcast %cst_18 : f32 to vector<128x128xf32>
      %23 = arith.maximumf %21, %22 : vector<128x128xf32>
      %24 = arith.truncf %23 : vector<128x128xf32> to vector<128x128xbf16>
      %c0_19 = arith.constant 0 : index
      %c0_20 = arith.constant 0 : index
      %25 = vector.load %arg8[%c0_19, %c0_20] : memref<128x128xbf16, #tpu.memory_space<vmem>>, vector<128x128xbf16>
      tpu.vector_store %arg8[%c0_19, %c0_20], %24 {strides = array<i32>} : memref<128x128xbf16, #tpu.memory_space<vmem>>, vector<128x128xbf16>,
    } else {
    }
    return
  }
  func.func @transform_0(%arg0: i32, %arg1: i32, %arg2: i32) -> (i32, i32) {
    %c0_i32 = arith.constant 0 : i32
    return %arg0, %arg2 : i32, i32
  }
  func.func @transform_1(%arg0: i32, %arg1: i32, %arg2: i32) -> (i32, i32) {
    %c0_i32 = arith.constant 0 : i32
    return %arg2, %arg1 : i32, i32
  }
  func.func @transform_2(%arg0: i32, %arg1: i32, %arg2: i32) -> (i32, i32) {
    %c0_i32 = arith.constant 0 : i32
    %c0_i32_0 = arith.constant 0 : i32
    return %c0_i32, %arg1 : i32, i32
  }
  func.func @transform_3(%arg0: i32, %arg1: i32, %arg2: i32) -> (i32, i32) {
    %c0_i32 = arith.constant 0 : i32
    %c0_i32_0 = arith.constant 0 : i32
    return %c0_i32, %arg1 : i32, i32
  }
  func.func @transform_4(%arg0: i32, %arg1: i32, %arg2: i32) -> (i32, i32) {
    %c0_i32 = arith.constant 0 : i32
    return %arg0, %arg1 : i32, i32
  }
  func.func @transform_5(%arg0: i32, %arg1: i32, %arg2: i32) -> (i32, i32) {
    %c0_i32 = arith.constant 0 : i32
    return %arg0, %arg1 : i32, i32
  }
}

module attributes {stable_mosaic.version = 11 : i64} {
  func.func @_mm_kernel(%arg0: i32, %arg1: i32, %arg2: i32, %arg3: memref<32x144xbf16, #tpu.memory_space<vmem>>, %arg4: memref<144x128xbf16, #tpu.memory_space<vmem>>, %arg5: memref<1x128xf32, #tpu.memory_space<vmem>>, %arg6: memref<1x128xf32, #tpu.memory_space<vmem>>, %arg7: memref<32x128xbf16, #tpu.memory_space<vmem>>, %arg8: memref<32x128xf32, #tpu.memory_space<vmem>>) attributes {dimension_semantics = [#tpu.dimension_semantics<parallel>, #tpu.dimension_semantics<parallel>, #tpu.dimension_semantics<arbitrary>], iteration_bounds = array<i64: 1, 1, 1>, scalar_prefetch = 0 : i64, scratch_operands = 1 : i64, tpu.core_type = #tpu.core_type<tc>, window_params = [{transform_indices = @transform_0, window_bounds = array<i64: 32, 144>}, {transform_indices = @transform_1, window_bounds = array<i64: 144, 128>}, {transform_indices = @transform_2, window_bounds = array<i64: 1, 128>}, {transform_indices = @transform_3, window_bounds = array<i64: 1, 128>}, {transform_indices = @transform_4, window_bounds = array<i64: 32, 128>}]} {
    %c0_i32 = arith.constant 0 : i32
    %0 = arith.cmpi eq, %arg2, %c0_i32 : i32
    %1 = arith.extui %0 : i1 to i32
    %c0_i32_0 = arith.constant 0 : i32
    %2 = arith.cmpi ne, %1, %c0_i32_0 : i32
    scf.if %2 {
      %cst_10 = arith.constant 0.000000e+00 : f32
      %12 = vector.broadcast %cst_10 : f32 to vector<32x128xf32>
      %c0_11 = arith.constant 0 : index
      %c0_12 = arith.constant 0 : index
      %13 = vector.load %arg8[%c0_11, %c0_12] : memref<32x128xf32, #tpu.memory_space<vmem>>, vector<32x128xf32>
      tpu.vector_store %arg8[%c0_11, %c0_12], %12 {strides = array<i32>} : memref<32x128xf32, #tpu.memory_space<vmem>>, vector<32x128xf32>,
    } else {
    }
    %c0 = arith.constant 0 : index
    %c0_1 = arith.constant 0 : index
    %3 = vector.load %arg8[%c0, %c0_1] : memref<32x128xf32, #tpu.memory_space<vmem>>, vector<32x128xf32>
    %c0_2 = arith.constant 0 : index
    %c0_3 = arith.constant 0 : index
    %4 = vector.load %arg3[%c0_2, %c0_3] : memref<32x144xbf16, #tpu.memory_space<vmem>>, vector<32x144xbf16>
    %c0_4 = arith.constant 0 : index
    %c0_5 = arith.constant 0 : index
    %5 = vector.load %arg4[%c0_4, %c0_5] : memref<144x128xbf16, #tpu.memory_space<vmem>>, vector<144x128xbf16>
    %cst = arith.constant dense<0.000000e+00> : vector<32x128xf32>
    %6 = tpu.matmul %4, %5, %cst {dimension_numbers = #tpu.dot_dimension_numbers<[1], [0], [0], [1], [0, 0, 1, 1], [], []>} : vector<32x144xbf16>, vector<144x128xbf16>, vector<32x128xf32> -> vector<32x128xf32>
    %7 = arith.addf %3, %6 : vector<32x128xf32>
    %c0_6 = arith.constant 0 : index
    %c0_7 = arith.constant 0 : index
    %8 = vector.load %arg8[%c0_6, %c0_7] : memref<32x128xf32, #tpu.memory_space<vmem>>, vector<32x128xf32>
    tpu.vector_store %arg8[%c0_6, %c0_7], %7 {strides = array<i32>} : memref<32x128xf32, #tpu.memory_space<vmem>>, vector<32x128xf32>,
    %c0_i32_8 = arith.constant 0 : i32
    %9 = arith.cmpi eq, %arg2, %c0_i32_8 : i32
    %10 = arith.extui %9 : i1 to i32
    %c0_i32_9 = arith.constant 0 : i32
    %11 = arith.cmpi ne, %10, %c0_i32_9 : i32
    scf.if %11 {
      %c0_10 = arith.constant 0 : index
      %c0_11 = arith.constant 0 : index
      %12 = vector.load %arg8[%c0_10, %c0_11] : memref<32x128xf32, #tpu.memory_space<vmem>>, vector<32x128xf32>
      %c0_12 = arith.constant 0 : index
      %c0_13 = arith.constant 0 : index
      %13 = vector.load %arg5[%c0_12, %c0_13] : memref<1x128xf32, #tpu.memory_space<vmem>>, vector<1x128xf32>
      %14 = vector.broadcast %13 : vector<1x128xf32> to vector<32x128xf32>
      %15 = arith.mulf %12, %14 : vector<32x128xf32>
      %c0_14 = arith.constant 0 : index
      %c0_15 = arith.constant 0 : index
      %16 = vector.load %arg6[%c0_14, %c0_15] : memref<1x128xf32, #tpu.memory_space<vmem>>, vector<1x128xf32>
      %17 = vector.broadcast %16 : vector<1x128xf32> to vector<32x128xf32>
      %18 = arith.addf %15, %17 : vector<32x128xf32>
      %cst_16 = arith.constant 0.000000e+00 : f32
      %19 = vector.broadcast %cst_16 : f32 to vector<32x128xf32>
      %20 = arith.maximumf %18, %19 : vector<32x128xf32>
      %21 = arith.truncf %20 : vector<32x128xf32> to vector<32x128xbf16>
      %c0_17 = arith.constant 0 : index
      %c0_18 = arith.constant 0 : index
      %22 = vector.load %arg7[%c0_17, %c0_18] : memref<32x128xbf16, #tpu.memory_space<vmem>>, vector<32x128xbf16>
      tpu.vector_store %arg7[%c0_17, %c0_18], %21 {strides = array<i32>} : memref<32x128xbf16, #tpu.memory_space<vmem>>, vector<32x128xbf16>,
    } else {
    }
    return
  }
  func.func @transform_0(%arg0: i32, %arg1: i32, %arg2: i32) -> (i32, i32) {
    %c0_i32 = arith.constant 0 : i32
    return %arg0, %arg2 : i32, i32
  }
  func.func @transform_1(%arg0: i32, %arg1: i32, %arg2: i32) -> (i32, i32) {
    %c0_i32 = arith.constant 0 : i32
    return %arg2, %arg1 : i32, i32
  }
  func.func @transform_2(%arg0: i32, %arg1: i32, %arg2: i32) -> (i32, i32) {
    %c0_i32 = arith.constant 0 : i32
    %c0_i32_0 = arith.constant 0 : i32
    return %c0_i32, %arg1 : i32, i32
  }
  func.func @transform_3(%arg0: i32, %arg1: i32, %arg2: i32) -> (i32, i32) {
    %c0_i32 = arith.constant 0 : i32
    %c0_i32_0 = arith.constant 0 : i32
    return %c0_i32, %arg1 : i32, i32
  }
  func.func @transform_4(%arg0: i32, %arg1: i32, %arg2: i32) -> (i32, i32) {
    %c0_i32 = arith.constant 0 : i32
    return %arg0, %arg1 : i32, i32
  }
}

module attributes {stable_mosaic.version = 11 : i64} {
  func.func @_mm_kernel(%arg0: i32, %arg1: i32, %arg2: i32, %arg3: memref<32x16xbf16, #tpu.memory_space<vmem>>, %arg4: memref<16x128xbf16, #tpu.memory_space<vmem>>, %arg5: memref<1x128xf32, #tpu.memory_space<vmem>>, %arg6: memref<1x128xf32, #tpu.memory_space<vmem>>, %arg7: memref<32x128xbf16, #tpu.memory_space<vmem>>, %arg8: memref<32x128xf32, #tpu.memory_space<vmem>>) attributes {dimension_semantics = [#tpu.dimension_semantics<parallel>, #tpu.dimension_semantics<parallel>, #tpu.dimension_semantics<arbitrary>], iteration_bounds = array<i64: 1, 1, 1>, scalar_prefetch = 0 : i64, scratch_operands = 1 : i64, tpu.core_type = #tpu.core_type<tc>, window_params = [{transform_indices = @transform_0, window_bounds = array<i64: 32, 16>}, {transform_indices = @transform_1, window_bounds = array<i64: 16, 128>}, {transform_indices = @transform_2, window_bounds = array<i64: 1, 128>}, {transform_indices = @transform_3, window_bounds = array<i64: 1, 128>}, {transform_indices = @transform_4, window_bounds = array<i64: 32, 128>}]} {
    %c0_i32 = arith.constant 0 : i32
    %0 = arith.cmpi eq, %arg2, %c0_i32 : i32
    %1 = arith.extui %0 : i1 to i32
    %c0_i32_0 = arith.constant 0 : i32
    %2 = arith.cmpi ne, %1, %c0_i32_0 : i32
    scf.if %2 {
      %cst_10 = arith.constant 0.000000e+00 : f32
      %12 = vector.broadcast %cst_10 : f32 to vector<32x128xf32>
      %c0_11 = arith.constant 0 : index
      %c0_12 = arith.constant 0 : index
      %13 = vector.load %arg8[%c0_11, %c0_12] : memref<32x128xf32, #tpu.memory_space<vmem>>, vector<32x128xf32>
      tpu.vector_store %arg8[%c0_11, %c0_12], %12 {strides = array<i32>} : memref<32x128xf32, #tpu.memory_space<vmem>>, vector<32x128xf32>,
    } else {
    }
    %c0 = arith.constant 0 : index
    %c0_1 = arith.constant 0 : index
    %3 = vector.load %arg8[%c0, %c0_1] : memref<32x128xf32, #tpu.memory_space<vmem>>, vector<32x128xf32>
    %c0_2 = arith.constant 0 : index
    %c0_3 = arith.constant 0 : index
    %4 = vector.load %arg3[%c0_2, %c0_3] : memref<32x16xbf16, #tpu.memory_space<vmem>>, vector<32x16xbf16>
    %c0_4 = arith.constant 0 : index
    %c0_5 = arith.constant 0 : index
    %5 = vector.load %arg4[%c0_4, %c0_5] : memref<16x128xbf16, #tpu.memory_space<vmem>>, vector<16x128xbf16>
    %cst = arith.constant dense<0.000000e+00> : vector<32x128xf32>
    %6 = tpu.matmul %4, %5, %cst {dimension_numbers = #tpu.dot_dimension_numbers<[1], [0], [0], [1], [0, 0, 1, 1], [], []>} : vector<32x16xbf16>, vector<16x128xbf16>, vector<32x128xf32> -> vector<32x128xf32>
    %7 = arith.addf %3, %6 : vector<32x128xf32>
    %c0_6 = arith.constant 0 : index
    %c0_7 = arith.constant 0 : index
    %8 = vector.load %arg8[%c0_6, %c0_7] : memref<32x128xf32, #tpu.memory_space<vmem>>, vector<32x128xf32>
    tpu.vector_store %arg8[%c0_6, %c0_7], %7 {strides = array<i32>} : memref<32x128xf32, #tpu.memory_space<vmem>>, vector<32x128xf32>,
    %c0_i32_8 = arith.constant 0 : i32
    %9 = arith.cmpi eq, %arg2, %c0_i32_8 : i32
    %10 = arith.extui %9 : i1 to i32
    %c0_i32_9 = arith.constant 0 : i32
    %11 = arith.cmpi ne, %10, %c0_i32_9 : i32
    scf.if %11 {
      %c0_10 = arith.constant 0 : index
      %c0_11 = arith.constant 0 : index
      %12 = vector.load %arg8[%c0_10, %c0_11] : memref<32x128xf32, #tpu.memory_space<vmem>>, vector<32x128xf32>
      %c0_12 = arith.constant 0 : index
      %c0_13 = arith.constant 0 : index
      %13 = vector.load %arg5[%c0_12, %c0_13] : memref<1x128xf32, #tpu.memory_space<vmem>>, vector<1x128xf32>
      %14 = vector.broadcast %13 : vector<1x128xf32> to vector<32x128xf32>
      %15 = arith.mulf %12, %14 : vector<32x128xf32>
      %c0_14 = arith.constant 0 : index
      %c0_15 = arith.constant 0 : index
      %16 = vector.load %arg6[%c0_14, %c0_15] : memref<1x128xf32, #tpu.memory_space<vmem>>, vector<1x128xf32>
      %17 = vector.broadcast %16 : vector<1x128xf32> to vector<32x128xf32>
      %18 = arith.addf %15, %17 : vector<32x128xf32>
      %19 = arith.truncf %18 : vector<32x128xf32> to vector<32x128xbf16>
      %c0_16 = arith.constant 0 : index
      %c0_17 = arith.constant 0 : index
      %20 = vector.load %arg7[%c0_16, %c0_17] : memref<32x128xbf16, #tpu.memory_space<vmem>>, vector<32x128xbf16>
      tpu.vector_store %arg7[%c0_16, %c0_17], %19 {strides = array<i32>} : memref<32x128xbf16, #tpu.memory_space<vmem>>, vector<32x128xbf16>,
    } else {
    }
    return
  }
  func.func @transform_0(%arg0: i32, %arg1: i32, %arg2: i32) -> (i32, i32) {
    %c0_i32 = arith.constant 0 : i32
    return %arg0, %arg2 : i32, i32
  }
  func.func @transform_1(%arg0: i32, %arg1: i32, %arg2: i32) -> (i32, i32) {
    %c0_i32 = arith.constant 0 : i32
    return %arg2, %arg1 : i32, i32
  }
  func.func @transform_2(%arg0: i32, %arg1: i32, %arg2: i32) -> (i32, i32) {
    %c0_i32 = arith.constant 0 : i32
    %c0_i32_0 = arith.constant 0 : i32
    return %c0_i32, %arg1 : i32, i32
  }
  func.func @transform_3(%arg0: i32, %arg1: i32, %arg2: i32) -> (i32, i32) {
    %c0_i32 = arith.constant 0 : i32
    %c0_i32_0 = arith.constant 0 : i32
    return %c0_i32, %arg1 : i32, i32
  }
  func.func @transform_4(%arg0: i32, %arg1: i32, %arg2: i32) -> (i32, i32) {
    %c0_i32 = arith.constant 0 : i32
    return %arg0, %arg1 : i32, i32
  }
}

module attributes {stable_mosaic.version = 11 : i64} {
  func.func @_mm_kernel(%arg0: i32, %arg1: i32, %arg2: i32, %arg3: memref<32x288xbf16, #tpu.memory_space<vmem>>, %arg4: memref<288x128xbf16, #tpu.memory_space<vmem>>, %arg5: memref<1x128xf32, #tpu.memory_space<vmem>>, %arg6: memref<1x128xf32, #tpu.memory_space<vmem>>, %arg7: memref<32x128xbf16, #tpu.memory_space<vmem>>, %arg8: memref<32x128xbf16, #tpu.memory_space<vmem>>, %arg9: memref<32x128xf32, #tpu.memory_space<vmem>>) attributes {dimension_semantics = [#tpu.dimension_semantics<parallel>, #tpu.dimension_semantics<parallel>, #tpu.dimension_semantics<arbitrary>], iteration_bounds = array<i64: 1, 1, 1>, scalar_prefetch = 0 : i64, scratch_operands = 1 : i64, tpu.core_type = #tpu.core_type<tc>, window_params = [{transform_indices = @transform_0, window_bounds = array<i64: 32, 288>}, {transform_indices = @transform_1, window_bounds = array<i64: 288, 128>}, {transform_indices = @transform_2, window_bounds = array<i64: 1, 128>}, {transform_indices = @transform_3, window_bounds = array<i64: 1, 128>}, {transform_indices = @transform_4, window_bounds = array<i64: 32, 128>}, {transform_indices = @transform_5, window_bounds = array<i64: 32, 128>}]} {
    %c0_i32 = arith.constant 0 : i32
    %0 = arith.cmpi eq, %arg2, %c0_i32 : i32
    %1 = arith.extui %0 : i1 to i32
    %c0_i32_0 = arith.constant 0 : i32
    %2 = arith.cmpi ne, %1, %c0_i32_0 : i32
    scf.if %2 {
      %cst_10 = arith.constant 0.000000e+00 : f32
      %12 = vector.broadcast %cst_10 : f32 to vector<32x128xf32>
      %c0_11 = arith.constant 0 : index
      %c0_12 = arith.constant 0 : index
      %13 = vector.load %arg9[%c0_11, %c0_12] : memref<32x128xf32, #tpu.memory_space<vmem>>, vector<32x128xf32>
      tpu.vector_store %arg9[%c0_11, %c0_12], %12 {strides = array<i32>} : memref<32x128xf32, #tpu.memory_space<vmem>>, vector<32x128xf32>,
    } else {
    }
    %c0 = arith.constant 0 : index
    %c0_1 = arith.constant 0 : index
    %3 = vector.load %arg9[%c0, %c0_1] : memref<32x128xf32, #tpu.memory_space<vmem>>, vector<32x128xf32>
    %c0_2 = arith.constant 0 : index
    %c0_3 = arith.constant 0 : index
    %4 = vector.load %arg3[%c0_2, %c0_3] : memref<32x288xbf16, #tpu.memory_space<vmem>>, vector<32x288xbf16>
    %c0_4 = arith.constant 0 : index
    %c0_5 = arith.constant 0 : index
    %5 = vector.load %arg4[%c0_4, %c0_5] : memref<288x128xbf16, #tpu.memory_space<vmem>>, vector<288x128xbf16>
    %cst = arith.constant dense<0.000000e+00> : vector<32x128xf32>
    %6 = tpu.matmul %4, %5, %cst {dimension_numbers = #tpu.dot_dimension_numbers<[1], [0], [0], [1], [0, 0, 1, 1], [], []>} : vector<32x288xbf16>, vector<288x128xbf16>, vector<32x128xf32> -> vector<32x128xf32>
    %7 = arith.addf %3, %6 : vector<32x128xf32>
    %c0_6 = arith.constant 0 : index
    %c0_7 = arith.constant 0 : index
    %8 = vector.load %arg9[%c0_6, %c0_7] : memref<32x128xf32, #tpu.memory_space<vmem>>, vector<32x128xf32>
    tpu.vector_store %arg9[%c0_6, %c0_7], %7 {strides = array<i32>} : memref<32x128xf32, #tpu.memory_space<vmem>>, vector<32x128xf32>,
    %c0_i32_8 = arith.constant 0 : i32
    %9 = arith.cmpi eq, %arg2, %c0_i32_8 : i32
    %10 = arith.extui %9 : i1 to i32
    %c0_i32_9 = arith.constant 0 : i32
    %11 = arith.cmpi ne, %10, %c0_i32_9 : i32
    scf.if %11 {
      %c0_10 = arith.constant 0 : index
      %c0_11 = arith.constant 0 : index
      %12 = vector.load %arg9[%c0_10, %c0_11] : memref<32x128xf32, #tpu.memory_space<vmem>>, vector<32x128xf32>
      %c0_12 = arith.constant 0 : index
      %c0_13 = arith.constant 0 : index
      %13 = vector.load %arg5[%c0_12, %c0_13] : memref<1x128xf32, #tpu.memory_space<vmem>>, vector<1x128xf32>
      %14 = vector.broadcast %13 : vector<1x128xf32> to vector<32x128xf32>
      %15 = arith.mulf %12, %14 : vector<32x128xf32>
      %c0_14 = arith.constant 0 : index
      %c0_15 = arith.constant 0 : index
      %16 = vector.load %arg6[%c0_14, %c0_15] : memref<1x128xf32, #tpu.memory_space<vmem>>, vector<1x128xf32>
      %17 = vector.broadcast %16 : vector<1x128xf32> to vector<32x128xf32>
      %18 = arith.addf %15, %17 : vector<32x128xf32>
      %c0_16 = arith.constant 0 : index
      %c0_17 = arith.constant 0 : index
      %19 = vector.load %arg7[%c0_16, %c0_17] : memref<32x128xbf16, #tpu.memory_space<vmem>>, vector<32x128xbf16>
      %20 = arith.extf %19 : vector<32x128xbf16> to vector<32x128xf32>
      %21 = arith.addf %18, %20 : vector<32x128xf32>
      %cst_18 = arith.constant 0.000000e+00 : f32
      %22 = vector.broadcast %cst_18 : f32 to vector<32x128xf32>
      %23 = arith.maximumf %21, %22 : vector<32x128xf32>
      %24 = arith.truncf %23 : vector<32x128xf32> to vector<32x128xbf16>
      %c0_19 = arith.constant 0 : index
      %c0_20 = arith.constant 0 : index
      %25 = vector.load %arg8[%c0_19, %c0_20] : memref<32x128xbf16, #tpu.memory_space<vmem>>, vector<32x128xbf16>
      tpu.vector_store %arg8[%c0_19, %c0_20], %24 {strides = array<i32>} : memref<32x128xbf16, #tpu.memory_space<vmem>>, vector<32x128xbf16>,
    } else {
    }
    return
  }
  func.func @transform_0(%arg0: i32, %arg1: i32, %arg2: i32) -> (i32, i32) {
    %c0_i32 = arith.constant 0 : i32
    return %arg0, %arg2 : i32, i32
  }
  func.func @transform_1(%arg0: i32, %arg1: i32, %arg2: i32) -> (i32, i32) {
    %c0_i32 = arith.constant 0 : i32
    return %arg2, %arg1 : i32, i32
  }
  func.func @transform_2(%arg0: i32, %arg1: i32, %arg2: i32) -> (i32, i32) {
    %c0_i32 = arith.constant 0 : i32
    %c0_i32_0 = arith.constant 0 : i32
    return %c0_i32, %arg1 : i32, i32
  }
  func.func @transform_3(%arg0: i32, %arg1: i32, %arg2: i32) -> (i32, i32) {
    %c0_i32 = arith.constant 0 : i32
    %c0_i32_0 = arith.constant 0 : i32
    return %c0_i32, %arg1 : i32, i32
  }
  func.func @transform_4(%arg0: i32, %arg1: i32, %arg2: i32) -> (i32, i32) {
    %c0_i32 = arith.constant 0 : i32
    return %arg0, %arg1 : i32, i32
  }
  func.func @transform_5(%arg0: i32, %arg1: i32, %arg2: i32) -> (i32, i32) {
    %c0_i32 = arith.constant 0 : i32
    return %arg0, %arg1 : i32, i32
  }
}

module attributes {stable_mosaic.version = 11 : i64} {
  func.func @_mm_kernel(%arg0: i32, %arg1: i32, %arg2: i32, %arg3: memref<16x288xbf16, #tpu.memory_space<vmem>>, %arg4: memref<288x128xbf16, #tpu.memory_space<vmem>>, %arg5: memref<1x128xf32, #tpu.memory_space<vmem>>, %arg6: memref<1x128xf32, #tpu.memory_space<vmem>>, %arg7: memref<16x128xbf16, #tpu.memory_space<vmem>>, %arg8: memref<16x128xf32, #tpu.memory_space<vmem>>) attributes {dimension_semantics = [#tpu.dimension_semantics<parallel>, #tpu.dimension_semantics<parallel>, #tpu.dimension_semantics<arbitrary>], iteration_bounds = array<i64: 1, 1, 1>, scalar_prefetch = 0 : i64, scratch_operands = 1 : i64, tpu.core_type = #tpu.core_type<tc>, window_params = [{transform_indices = @transform_0, window_bounds = array<i64: 16, 288>}, {transform_indices = @transform_1, window_bounds = array<i64: 288, 128>}, {transform_indices = @transform_2, window_bounds = array<i64: 1, 128>}, {transform_indices = @transform_3, window_bounds = array<i64: 1, 128>}, {transform_indices = @transform_4, window_bounds = array<i64: 16, 128>}]} {
    %c0_i32 = arith.constant 0 : i32
    %0 = arith.cmpi eq, %arg2, %c0_i32 : i32
    %1 = arith.extui %0 : i1 to i32
    %c0_i32_0 = arith.constant 0 : i32
    %2 = arith.cmpi ne, %1, %c0_i32_0 : i32
    scf.if %2 {
      %cst_10 = arith.constant 0.000000e+00 : f32
      %12 = vector.broadcast %cst_10 : f32 to vector<16x128xf32>
      %c0_11 = arith.constant 0 : index
      %c0_12 = arith.constant 0 : index
      %13 = vector.load %arg8[%c0_11, %c0_12] : memref<16x128xf32, #tpu.memory_space<vmem>>, vector<16x128xf32>
      tpu.vector_store %arg8[%c0_11, %c0_12], %12 {strides = array<i32>} : memref<16x128xf32, #tpu.memory_space<vmem>>, vector<16x128xf32>,
    } else {
    }
    %c0 = arith.constant 0 : index
    %c0_1 = arith.constant 0 : index
    %3 = vector.load %arg8[%c0, %c0_1] : memref<16x128xf32, #tpu.memory_space<vmem>>, vector<16x128xf32>
    %c0_2 = arith.constant 0 : index
    %c0_3 = arith.constant 0 : index
    %4 = vector.load %arg3[%c0_2, %c0_3] : memref<16x288xbf16, #tpu.memory_space<vmem>>, vector<16x288xbf16>
    %c0_4 = arith.constant 0 : index
    %c0_5 = arith.constant 0 : index
    %5 = vector.load %arg4[%c0_4, %c0_5] : memref<288x128xbf16, #tpu.memory_space<vmem>>, vector<288x128xbf16>
    %cst = arith.constant dense<0.000000e+00> : vector<16x128xf32>
    %6 = tpu.matmul %4, %5, %cst {dimension_numbers = #tpu.dot_dimension_numbers<[1], [0], [0], [1], [0, 0, 1, 1], [], []>} : vector<16x288xbf16>, vector<288x128xbf16>, vector<16x128xf32> -> vector<16x128xf32>
    %7 = arith.addf %3, %6 : vector<16x128xf32>
    %c0_6 = arith.constant 0 : index
    %c0_7 = arith.constant 0 : index
    %8 = vector.load %arg8[%c0_6, %c0_7] : memref<16x128xf32, #tpu.memory_space<vmem>>, vector<16x128xf32>
    tpu.vector_store %arg8[%c0_6, %c0_7], %7 {strides = array<i32>} : memref<16x128xf32, #tpu.memory_space<vmem>>, vector<16x128xf32>,
    %c0_i32_8 = arith.constant 0 : i32
    %9 = arith.cmpi eq, %arg2, %c0_i32_8 : i32
    %10 = arith.extui %9 : i1 to i32
    %c0_i32_9 = arith.constant 0 : i32
    %11 = arith.cmpi ne, %10, %c0_i32_9 : i32
    scf.if %11 {
      %c0_10 = arith.constant 0 : index
      %c0_11 = arith.constant 0 : index
      %12 = vector.load %arg8[%c0_10, %c0_11] : memref<16x128xf32, #tpu.memory_space<vmem>>, vector<16x128xf32>
      %c0_12 = arith.constant 0 : index
      %c0_13 = arith.constant 0 : index
      %13 = vector.load %arg5[%c0_12, %c0_13] : memref<1x128xf32, #tpu.memory_space<vmem>>, vector<1x128xf32>
      %14 = vector.broadcast %13 : vector<1x128xf32> to vector<16x128xf32>
      %15 = arith.mulf %12, %14 : vector<16x128xf32>
      %c0_14 = arith.constant 0 : index
      %c0_15 = arith.constant 0 : index
      %16 = vector.load %arg6[%c0_14, %c0_15] : memref<1x128xf32, #tpu.memory_space<vmem>>, vector<1x128xf32>
      %17 = vector.broadcast %16 : vector<1x128xf32> to vector<16x128xf32>
      %18 = arith.addf %15, %17 : vector<16x128xf32>
      %cst_16 = arith.constant 0.000000e+00 : f32
      %19 = vector.broadcast %cst_16 : f32 to vector<16x128xf32>
      %20 = arith.maximumf %18, %19 : vector<16x128xf32>
      %21 = arith.truncf %20 : vector<16x128xf32> to vector<16x128xbf16>
      %c0_17 = arith.constant 0 : index
      %c0_18 = arith.constant 0 : index
      %22 = vector.load %arg7[%c0_17, %c0_18] : memref<16x128xbf16, #tpu.memory_space<vmem>>, vector<16x128xbf16>
      tpu.vector_store %arg7[%c0_17, %c0_18], %21 {strides = array<i32>} : memref<16x128xbf16, #tpu.memory_space<vmem>>, vector<16x128xbf16>,
    } else {
    }
    return
  }
  func.func @transform_0(%arg0: i32, %arg1: i32, %arg2: i32) -> (i32, i32) {
    %c0_i32 = arith.constant 0 : i32
    return %arg0, %arg2 : i32, i32
  }
  func.func @transform_1(%arg0: i32, %arg1: i32, %arg2: i32) -> (i32, i32) {
    %c0_i32 = arith.constant 0 : i32
    return %arg2, %arg1 : i32, i32
  }
  func.func @transform_2(%arg0: i32, %arg1: i32, %arg2: i32) -> (i32, i32) {
    %c0_i32 = arith.constant 0 : i32
    %c0_i32_0 = arith.constant 0 : i32
    return %c0_i32, %arg1 : i32, i32
  }
  func.func @transform_3(%arg0: i32, %arg1: i32, %arg2: i32) -> (i32, i32) {
    %c0_i32 = arith.constant 0 : i32
    %c0_i32_0 = arith.constant 0 : i32
    return %c0_i32, %arg1 : i32, i32
  }
  func.func @transform_4(%arg0: i32, %arg1: i32, %arg2: i32) -> (i32, i32) {
    %c0_i32 = arith.constant 0 : i32
    return %arg0, %arg1 : i32, i32
  }
}

module attributes {stable_mosaic.version = 11 : i64} {
  func.func @_mm_kernel(%arg0: i32, %arg1: i32, %arg2: i32, %arg3: memref<16x32xbf16, #tpu.memory_space<vmem>>, %arg4: memref<32x128xbf16, #tpu.memory_space<vmem>>, %arg5: memref<1x128xf32, #tpu.memory_space<vmem>>, %arg6: memref<1x128xf32, #tpu.memory_space<vmem>>, %arg7: memref<16x128xbf16, #tpu.memory_space<vmem>>, %arg8: memref<16x128xf32, #tpu.memory_space<vmem>>) attributes {dimension_semantics = [#tpu.dimension_semantics<parallel>, #tpu.dimension_semantics<parallel>, #tpu.dimension_semantics<arbitrary>], iteration_bounds = array<i64: 1, 1, 1>, scalar_prefetch = 0 : i64, scratch_operands = 1 : i64, tpu.core_type = #tpu.core_type<tc>, window_params = [{transform_indices = @transform_0, window_bounds = array<i64: 16, 32>}, {transform_indices = @transform_1, window_bounds = array<i64: 32, 128>}, {transform_indices = @transform_2, window_bounds = array<i64: 1, 128>}, {transform_indices = @transform_3, window_bounds = array<i64: 1, 128>}, {transform_indices = @transform_4, window_bounds = array<i64: 16, 128>}]} {
    %c0_i32 = arith.constant 0 : i32
    %0 = arith.cmpi eq, %arg2, %c0_i32 : i32
    %1 = arith.extui %0 : i1 to i32
    %c0_i32_0 = arith.constant 0 : i32
    %2 = arith.cmpi ne, %1, %c0_i32_0 : i32
    scf.if %2 {
      %cst_10 = arith.constant 0.000000e+00 : f32
      %12 = vector.broadcast %cst_10 : f32 to vector<16x128xf32>
      %c0_11 = arith.constant 0 : index
      %c0_12 = arith.constant 0 : index
      %13 = vector.load %arg8[%c0_11, %c0_12] : memref<16x128xf32, #tpu.memory_space<vmem>>, vector<16x128xf32>
      tpu.vector_store %arg8[%c0_11, %c0_12], %12 {strides = array<i32>} : memref<16x128xf32, #tpu.memory_space<vmem>>, vector<16x128xf32>,
    } else {
    }
    %c0 = arith.constant 0 : index
    %c0_1 = arith.constant 0 : index
    %3 = vector.load %arg8[%c0, %c0_1] : memref<16x128xf32, #tpu.memory_space<vmem>>, vector<16x128xf32>
    %c0_2 = arith.constant 0 : index
    %c0_3 = arith.constant 0 : index
    %4 = vector.load %arg3[%c0_2, %c0_3] : memref<16x32xbf16, #tpu.memory_space<vmem>>, vector<16x32xbf16>
    %c0_4 = arith.constant 0 : index
    %c0_5 = arith.constant 0 : index
    %5 = vector.load %arg4[%c0_4, %c0_5] : memref<32x128xbf16, #tpu.memory_space<vmem>>, vector<32x128xbf16>
    %cst = arith.constant dense<0.000000e+00> : vector<16x128xf32>
    %6 = tpu.matmul %4, %5, %cst {dimension_numbers = #tpu.dot_dimension_numbers<[1], [0], [0], [1], [0, 0, 1, 1], [], []>} : vector<16x32xbf16>, vector<32x128xbf16>, vector<16x128xf32> -> vector<16x128xf32>
    %7 = arith.addf %3, %6 : vector<16x128xf32>
    %c0_6 = arith.constant 0 : index
    %c0_7 = arith.constant 0 : index
    %8 = vector.load %arg8[%c0_6, %c0_7] : memref<16x128xf32, #tpu.memory_space<vmem>>, vector<16x128xf32>
    tpu.vector_store %arg8[%c0_6, %c0_7], %7 {strides = array<i32>} : memref<16x128xf32, #tpu.memory_space<vmem>>, vector<16x128xf32>,
    %c0_i32_8 = arith.constant 0 : i32
    %9 = arith.cmpi eq, %arg2, %c0_i32_8 : i32
    %10 = arith.extui %9 : i1 to i32
    %c0_i32_9 = arith.constant 0 : i32
    %11 = arith.cmpi ne, %10, %c0_i32_9 : i32
    scf.if %11 {
      %c0_10 = arith.constant 0 : index
      %c0_11 = arith.constant 0 : index
      %12 = vector.load %arg8[%c0_10, %c0_11] : memref<16x128xf32, #tpu.memory_space<vmem>>, vector<16x128xf32>
      %c0_12 = arith.constant 0 : index
      %c0_13 = arith.constant 0 : index
      %13 = vector.load %arg5[%c0_12, %c0_13] : memref<1x128xf32, #tpu.memory_space<vmem>>, vector<1x128xf32>
      %14 = vector.broadcast %13 : vector<1x128xf32> to vector<16x128xf32>
      %15 = arith.mulf %12, %14 : vector<16x128xf32>
      %c0_14 = arith.constant 0 : index
      %c0_15 = arith.constant 0 : index
      %16 = vector.load %arg6[%c0_14, %c0_15] : memref<1x128xf32, #tpu.memory_space<vmem>>, vector<1x128xf32>
      %17 = vector.broadcast %16 : vector<1x128xf32> to vector<16x128xf32>
      %18 = arith.addf %15, %17 : vector<16x128xf32>
      %19 = arith.truncf %18 : vector<16x128xf32> to vector<16x128xbf16>
      %c0_16 = arith.constant 0 : index
      %c0_17 = arith.constant 0 : index
      %20 = vector.load %arg7[%c0_16, %c0_17] : memref<16x128xbf16, #tpu.memory_space<vmem>>, vector<16x128xbf16>
      tpu.vector_store %arg7[%c0_16, %c0_17], %19 {strides = array<i32>} : memref<16x128xbf16, #tpu.memory_space<vmem>>, vector<16x128xbf16>,
    } else {
    }
    return
  }
  func.func @transform_0(%arg0: i32, %arg1: i32, %arg2: i32) -> (i32, i32) {
    %c0_i32 = arith.constant 0 : i32
    return %arg0, %arg2 : i32, i32
  }
  func.func @transform_1(%arg0: i32, %arg1: i32, %arg2: i32) -> (i32, i32) {
    %c0_i32 = arith.constant 0 : i32
    return %arg2, %arg1 : i32, i32
  }
  func.func @transform_2(%arg0: i32, %arg1: i32, %arg2: i32) -> (i32, i32) {
    %c0_i32 = arith.constant 0 : i32
    %c0_i32_0 = arith.constant 0 : i32
    return %c0_i32, %arg1 : i32, i32
  }
  func.func @transform_3(%arg0: i32, %arg1: i32, %arg2: i32) -> (i32, i32) {
    %c0_i32 = arith.constant 0 : i32
    %c0_i32_0 = arith.constant 0 : i32
    return %c0_i32, %arg1 : i32, i32
  }
  func.func @transform_4(%arg0: i32, %arg1: i32, %arg2: i32) -> (i32, i32) {
    %c0_i32 = arith.constant 0 : i32
    return %arg0, %arg1 : i32, i32
  }
}

module attributes {stable_mosaic.version = 11 : i64} {
  func.func @_mm_kernel(%arg0: i32, %arg1: i32, %arg2: i32, %arg3: memref<16x384xbf16, #tpu.memory_space<vmem>>, %arg4: memref<384x128xbf16, #tpu.memory_space<vmem>>, %arg5: memref<1x128xf32, #tpu.memory_space<vmem>>, %arg6: memref<1x128xf32, #tpu.memory_space<vmem>>, %arg7: memref<16x128xbf16, #tpu.memory_space<vmem>>, %arg8: memref<16x128xbf16, #tpu.memory_space<vmem>>, %arg9: memref<16x128xf32, #tpu.memory_space<vmem>>) attributes {dimension_semantics = [#tpu.dimension_semantics<parallel>, #tpu.dimension_semantics<parallel>, #tpu.dimension_semantics<arbitrary>], iteration_bounds = array<i64: 1, 1, 2>, scalar_prefetch = 0 : i64, scratch_operands = 1 : i64, tpu.core_type = #tpu.core_type<tc>, window_params = [{transform_indices = @transform_0, window_bounds = array<i64: 16, 384>}, {transform_indices = @transform_1, window_bounds = array<i64: 384, 128>}, {transform_indices = @transform_2, window_bounds = array<i64: 1, 128>}, {transform_indices = @transform_3, window_bounds = array<i64: 1, 128>}, {transform_indices = @transform_4, window_bounds = array<i64: 16, 128>}, {transform_indices = @transform_5, window_bounds = array<i64: 16, 128>}]} {
    %c0_i32 = arith.constant 0 : i32
    %0 = arith.cmpi eq, %arg2, %c0_i32 : i32
    %1 = arith.extui %0 : i1 to i32
    %c0_i32_0 = arith.constant 0 : i32
    %2 = arith.cmpi ne, %1, %c0_i32_0 : i32
    scf.if %2 {
      %cst_9 = arith.constant 0.000000e+00 : f32
      %12 = vector.broadcast %cst_9 : f32 to vector<16x128xf32>
      %c0_10 = arith.constant 0 : index
      %c0_11 = arith.constant 0 : index
      %13 = vector.load %arg9[%c0_10, %c0_11] : memref<16x128xf32, #tpu.memory_space<vmem>>, vector<16x128xf32>
      tpu.vector_store %arg9[%c0_10, %c0_11], %12 {strides = array<i32>} : memref<16x128xf32, #tpu.memory_space<vmem>>, vector<16x128xf32>,
    } else {
    }
    %c0 = arith.constant 0 : index
    %c0_1 = arith.constant 0 : index
    %3 = vector.load %arg9[%c0, %c0_1] : memref<16x128xf32, #tpu.memory_space<vmem>>, vector<16x128xf32>
    %c0_2 = arith.constant 0 : index
    %c0_3 = arith.constant 0 : index
    %4 = vector.load %arg3[%c0_2, %c0_3] : memref<16x384xbf16, #tpu.memory_space<vmem>>, vector<16x384xbf16>
    %c0_4 = arith.constant 0 : index
    %c0_5 = arith.constant 0 : index
    %5 = vector.load %arg4[%c0_4, %c0_5] : memref<384x128xbf16, #tpu.memory_space<vmem>>, vector<384x128xbf16>
    %cst = arith.constant dense<0.000000e+00> : vector<16x128xf32>
    %6 = tpu.matmul %4, %5, %cst {dimension_numbers = #tpu.dot_dimension_numbers<[1], [0], [0], [1], [0, 0, 1, 1], [], []>} : vector<16x384xbf16>, vector<384x128xbf16>, vector<16x128xf32> -> vector<16x128xf32>
    %7 = arith.addf %3, %6 : vector<16x128xf32>
    %c0_6 = arith.constant 0 : index
    %c0_7 = arith.constant 0 : index
    %8 = vector.load %arg9[%c0_6, %c0_7] : memref<16x128xf32, #tpu.memory_space<vmem>>, vector<16x128xf32>
    tpu.vector_store %arg9[%c0_6, %c0_7], %7 {strides = array<i32>} : memref<16x128xf32, #tpu.memory_space<vmem>>, vector<16x128xf32>,
    %c1_i32 = arith.constant 1 : i32
    %9 = arith.cmpi eq, %arg2, %c1_i32 : i32
    %10 = arith.extui %9 : i1 to i32
    %c0_i32_8 = arith.constant 0 : i32
    %11 = arith.cmpi ne, %10, %c0_i32_8 : i32
    scf.if %11 {
      %c0_9 = arith.constant 0 : index
      %c0_10 = arith.constant 0 : index
      %12 = vector.load %arg9[%c0_9, %c0_10] : memref<16x128xf32, #tpu.memory_space<vmem>>, vector<16x128xf32>
      %c0_11 = arith.constant 0 : index
      %c0_12 = arith.constant 0 : index
      %13 = vector.load %arg5[%c0_11, %c0_12] : memref<1x128xf32, #tpu.memory_space<vmem>>, vector<1x128xf32>
      %14 = vector.broadcast %13 : vector<1x128xf32> to vector<16x128xf32>
      %15 = arith.mulf %12, %14 : vector<16x128xf32>
      %c0_13 = arith.constant 0 : index
      %c0_14 = arith.constant 0 : index
      %16 = vector.load %arg6[%c0_13, %c0_14] : memref<1x128xf32, #tpu.memory_space<vmem>>, vector<1x128xf32>
      %17 = vector.broadcast %16 : vector<1x128xf32> to vector<16x128xf32>
      %18 = arith.addf %15, %17 : vector<16x128xf32>
      %c0_15 = arith.constant 0 : index
      %c0_16 = arith.constant 0 : index
      %19 = vector.load %arg7[%c0_15, %c0_16] : memref<16x128xbf16, #tpu.memory_space<vmem>>, vector<16x128xbf16>
      %20 = arith.extf %19 : vector<16x128xbf16> to vector<16x128xf32>
      %21 = arith.addf %18, %20 : vector<16x128xf32>
      %cst_17 = arith.constant 0.000000e+00 : f32
      %22 = vector.broadcast %cst_17 : f32 to vector<16x128xf32>
      %23 = arith.maximumf %21, %22 : vector<16x128xf32>
      %24 = arith.truncf %23 : vector<16x128xf32> to vector<16x128xbf16>
      %c0_18 = arith.constant 0 : index
      %c0_19 = arith.constant 0 : index
      %25 = vector.load %arg8[%c0_18, %c0_19] : memref<16x128xbf16, #tpu.memory_space<vmem>>, vector<16x128xbf16>
      tpu.vector_store %arg8[%c0_18, %c0_19], %24 {strides = array<i32>} : memref<16x128xbf16, #tpu.memory_space<vmem>>, vector<16x128xbf16>,
    } else {
    }
    return
  }
  func.func @transform_0(%arg0: i32, %arg1: i32, %arg2: i32) -> (i32, i32) {
    %c0_i32 = arith.constant 0 : i32
    return %arg0, %arg2 : i32, i32
  }
  func.func @transform_1(%arg0: i32, %arg1: i32, %arg2: i32) -> (i32, i32) {
    %c0_i32 = arith.constant 0 : i32
    return %arg2, %arg1 : i32, i32
  }
  func.func @transform_2(%arg0: i32, %arg1: i32, %arg2: i32) -> (i32, i32) {
    %c0_i32 = arith.constant 0 : i32
    %c0_i32_0 = arith.constant 0 : i32
    return %c0_i32, %arg1 : i32, i32
  }
  func.func @transform_3(%arg0: i32, %arg1: i32, %arg2: i32) -> (i32, i32) {
    %c0_i32 = arith.constant 0 : i32
    %c0_i32_0 = arith.constant 0 : i32
    return %c0_i32, %arg1 : i32, i32
  }
  func.func @transform_4(%arg0: i32, %arg1: i32, %arg2: i32) -> (i32, i32) {
    %c0_i32 = arith.constant 0 : i32
    return %arg0, %arg1 : i32, i32
  }
  func.func @transform_5(%arg0: i32, %arg1: i32, %arg2: i32) -> (i32, i32) {
    %c0_i32 = arith.constant 0 : i32
    return %arg0, %arg1 : i32, i32
  }
}

module attributes {stable_mosaic.version = 11 : i64} {
  func.func @_mm_kernel(%arg0: i32, %arg1: i32, %arg2: i32, %arg3: memref<16x384xbf16, #tpu.memory_space<vmem>>, %arg4: memref<384x128xbf16, #tpu.memory_space<vmem>>, %arg5: memref<1x128xf32, #tpu.memory_space<vmem>>, %arg6: memref<1x128xf32, #tpu.memory_space<vmem>>, %arg7: memref<16x128xbf16, #tpu.memory_space<vmem>>, %arg8: memref<16x128xf32, #tpu.memory_space<vmem>>) attributes {dimension_semantics = [#tpu.dimension_semantics<parallel>, #tpu.dimension_semantics<parallel>, #tpu.dimension_semantics<arbitrary>], iteration_bounds = array<i64: 1, 1, 2>, scalar_prefetch = 0 : i64, scratch_operands = 1 : i64, tpu.core_type = #tpu.core_type<tc>, window_params = [{transform_indices = @transform_0, window_bounds = array<i64: 16, 384>}, {transform_indices = @transform_1, window_bounds = array<i64: 384, 128>}, {transform_indices = @transform_2, window_bounds = array<i64: 1, 128>}, {transform_indices = @transform_3, window_bounds = array<i64: 1, 128>}, {transform_indices = @transform_4, window_bounds = array<i64: 16, 128>}]} {
    %c0_i32 = arith.constant 0 : i32
    %0 = arith.cmpi eq, %arg2, %c0_i32 : i32
    %1 = arith.extui %0 : i1 to i32
    %c0_i32_0 = arith.constant 0 : i32
    %2 = arith.cmpi ne, %1, %c0_i32_0 : i32
    scf.if %2 {
      %cst_9 = arith.constant 0.000000e+00 : f32
      %12 = vector.broadcast %cst_9 : f32 to vector<16x128xf32>
      %c0_10 = arith.constant 0 : index
      %c0_11 = arith.constant 0 : index
      %13 = vector.load %arg8[%c0_10, %c0_11] : memref<16x128xf32, #tpu.memory_space<vmem>>, vector<16x128xf32>
      tpu.vector_store %arg8[%c0_10, %c0_11], %12 {strides = array<i32>} : memref<16x128xf32, #tpu.memory_space<vmem>>, vector<16x128xf32>,
    } else {
    }
    %c0 = arith.constant 0 : index
    %c0_1 = arith.constant 0 : index
    %3 = vector.load %arg8[%c0, %c0_1] : memref<16x128xf32, #tpu.memory_space<vmem>>, vector<16x128xf32>
    %c0_2 = arith.constant 0 : index
    %c0_3 = arith.constant 0 : index
    %4 = vector.load %arg3[%c0_2, %c0_3] : memref<16x384xbf16, #tpu.memory_space<vmem>>, vector<16x384xbf16>
    %c0_4 = arith.constant 0 : index
    %c0_5 = arith.constant 0 : index
    %5 = vector.load %arg4[%c0_4, %c0_5] : memref<384x128xbf16, #tpu.memory_space<vmem>>, vector<384x128xbf16>
    %cst = arith.constant dense<0.000000e+00> : vector<16x128xf32>
    %6 = tpu.matmul %4, %5, %cst {dimension_numbers = #tpu.dot_dimension_numbers<[1], [0], [0], [1], [0, 0, 1, 1], [], []>} : vector<16x384xbf16>, vector<384x128xbf16>, vector<16x128xf32> -> vector<16x128xf32>
    %7 = arith.addf %3, %6 : vector<16x128xf32>
    %c0_6 = arith.constant 0 : index
    %c0_7 = arith.constant 0 : index
    %8 = vector.load %arg8[%c0_6, %c0_7] : memref<16x128xf32, #tpu.memory_space<vmem>>, vector<16x128xf32>
    tpu.vector_store %arg8[%c0_6, %c0_7], %7 {strides = array<i32>} : memref<16x128xf32, #tpu.memory_space<vmem>>, vector<16x128xf32>,
    %c1_i32 = arith.constant 1 : i32
    %9 = arith.cmpi eq, %arg2, %c1_i32 : i32
    %10 = arith.extui %9 : i1 to i32
    %c0_i32_8 = arith.constant 0 : i32
    %11 = arith.cmpi ne, %10, %c0_i32_8 : i32
    scf.if %11 {
      %c0_9 = arith.constant 0 : index
      %c0_10 = arith.constant 0 : index
      %12 = vector.load %arg8[%c0_9, %c0_10] : memref<16x128xf32, #tpu.memory_space<vmem>>, vector<16x128xf32>
      %c0_11 = arith.constant 0 : index
      %c0_12 = arith.constant 0 : index
      %13 = vector.load %arg5[%c0_11, %c0_12] : memref<1x128xf32, #tpu.memory_space<vmem>>, vector<1x128xf32>
      %14 = vector.broadcast %13 : vector<1x128xf32> to vector<16x128xf32>
      %15 = arith.mulf %12, %14 : vector<16x128xf32>
      %c0_13 = arith.constant 0 : index
      %c0_14 = arith.constant 0 : index
      %16 = vector.load %arg6[%c0_13, %c0_14] : memref<1x128xf32, #tpu.memory_space<vmem>>, vector<1x128xf32>
      %17 = vector.broadcast %16 : vector<1x128xf32> to vector<16x128xf32>
      %18 = arith.addf %15, %17 : vector<16x128xf32>
      %cst_15 = arith.constant 0.000000e+00 : f32
      %19 = vector.broadcast %cst_15 : f32 to vector<16x128xf32>
      %20 = arith.maximumf %18, %19 : vector<16x128xf32>
      %21 = arith.truncf %20 : vector<16x128xf32> to vector<16x128xbf16>
      %c0_16 = arith.constant 0 : index
      %c0_17 = arith.constant 0 : index
      %22 = vector.load %arg7[%c0_16, %c0_17] : memref<16x128xbf16, #tpu.memory_space<vmem>>, vector<16x128xbf16>
      tpu.vector_store %arg7[%c0_16, %c0_17], %21 {strides = array<i32>} : memref<16x128xbf16, #tpu.memory_space<vmem>>, vector<16x128xbf16>,
    } else {
    }
    return
  }
  func.func @transform_0(%arg0: i32, %arg1: i32, %arg2: i32) -> (i32, i32) {
    %c0_i32 = arith.constant 0 : i32
    return %arg0, %arg2 : i32, i32
  }
  func.func @transform_1(%arg0: i32, %arg1: i32, %arg2: i32) -> (i32, i32) {
    %c0_i32 = arith.constant 0 : i32
    return %arg2, %arg1 : i32, i32
  }
  func.func @transform_2(%arg0: i32, %arg1: i32, %arg2: i32) -> (i32, i32) {
    %c0_i32 = arith.constant 0 : i32
    %c0_i32_0 = arith.constant 0 : i32
    return %c0_i32, %arg1 : i32, i32
  }
  func.func @transform_3(%arg0: i32, %arg1: i32, %arg2: i32) -> (i32, i32) {
    %c0_i32 = arith.constant 0 : i32
    %c0_i32_0 = arith.constant 0 : i32
    return %c0_i32, %arg1 : i32, i32
  }
  func.func @transform_4(%arg0: i32, %arg1: i32, %arg2: i32) -> (i32, i32) {
    %c0_i32 = arith.constant 0 : i32
    return %arg0, %arg1 : i32, i32
  }
}

module attributes {stable_mosaic.version = 11 : i64} {
  func.func @_mm_kernel(%arg0: i32, %arg1: i32, %arg2: i32, %arg3: memref<16x64xbf16, #tpu.memory_space<vmem>>, %arg4: memref<64x128xbf16, #tpu.memory_space<vmem>>, %arg5: memref<1x128xf32, #tpu.memory_space<vmem>>, %arg6: memref<1x128xf32, #tpu.memory_space<vmem>>, %arg7: memref<16x128xbf16, #tpu.memory_space<vmem>>, %arg8: memref<16x128xf32, #tpu.memory_space<vmem>>) attributes {dimension_semantics = [#tpu.dimension_semantics<parallel>, #tpu.dimension_semantics<parallel>, #tpu.dimension_semantics<arbitrary>], iteration_bounds = array<i64: 1, 1, 1>, scalar_prefetch = 0 : i64, scratch_operands = 1 : i64, tpu.core_type = #tpu.core_type<tc>, window_params = [{transform_indices = @transform_0, window_bounds = array<i64: 16, 64>}, {transform_indices = @transform_1, window_bounds = array<i64: 64, 128>}, {transform_indices = @transform_2, window_bounds = array<i64: 1, 128>}, {transform_indices = @transform_3, window_bounds = array<i64: 1, 128>}, {transform_indices = @transform_4, window_bounds = array<i64: 16, 128>}]} {
    %c0_i32 = arith.constant 0 : i32
    %0 = arith.cmpi eq, %arg2, %c0_i32 : i32
    %1 = arith.extui %0 : i1 to i32
    %c0_i32_0 = arith.constant 0 : i32
    %2 = arith.cmpi ne, %1, %c0_i32_0 : i32
    scf.if %2 {
      %cst_10 = arith.constant 0.000000e+00 : f32
      %12 = vector.broadcast %cst_10 : f32 to vector<16x128xf32>
      %c0_11 = arith.constant 0 : index
      %c0_12 = arith.constant 0 : index
      %13 = vector.load %arg8[%c0_11, %c0_12] : memref<16x128xf32, #tpu.memory_space<vmem>>, vector<16x128xf32>
      tpu.vector_store %arg8[%c0_11, %c0_12], %12 {strides = array<i32>} : memref<16x128xf32, #tpu.memory_space<vmem>>, vector<16x128xf32>,
    } else {
    }
    %c0 = arith.constant 0 : index
    %c0_1 = arith.constant 0 : index
    %3 = vector.load %arg8[%c0, %c0_1] : memref<16x128xf32, #tpu.memory_space<vmem>>, vector<16x128xf32>
    %c0_2 = arith.constant 0 : index
    %c0_3 = arith.constant 0 : index
    %4 = vector.load %arg3[%c0_2, %c0_3] : memref<16x64xbf16, #tpu.memory_space<vmem>>, vector<16x64xbf16>
    %c0_4 = arith.constant 0 : index
    %c0_5 = arith.constant 0 : index
    %5 = vector.load %arg4[%c0_4, %c0_5] : memref<64x128xbf16, #tpu.memory_space<vmem>>, vector<64x128xbf16>
    %cst = arith.constant dense<0.000000e+00> : vector<16x128xf32>
    %6 = tpu.matmul %4, %5, %cst {dimension_numbers = #tpu.dot_dimension_numbers<[1], [0], [0], [1], [0, 0, 1, 1], [], []>} : vector<16x64xbf16>, vector<64x128xbf16>, vector<16x128xf32> -> vector<16x128xf32>
    %7 = arith.addf %3, %6 : vector<16x128xf32>
    %c0_6 = arith.constant 0 : index
    %c0_7 = arith.constant 0 : index
    %8 = vector.load %arg8[%c0_6, %c0_7] : memref<16x128xf32, #tpu.memory_space<vmem>>, vector<16x128xf32>
    tpu.vector_store %arg8[%c0_6, %c0_7], %7 {strides = array<i32>} : memref<16x128xf32, #tpu.memory_space<vmem>>, vector<16x128xf32>,
    %c0_i32_8 = arith.constant 0 : i32
    %9 = arith.cmpi eq, %arg2, %c0_i32_8 : i32
    %10 = arith.extui %9 : i1 to i32
    %c0_i32_9 = arith.constant 0 : i32
    %11 = arith.cmpi ne, %10, %c0_i32_9 : i32
    scf.if %11 {
      %c0_10 = arith.constant 0 : index
      %c0_11 = arith.constant 0 : index
      %12 = vector.load %arg8[%c0_10, %c0_11] : memref<16x128xf32, #tpu.memory_space<vmem>>, vector<16x128xf32>
      %c0_12 = arith.constant 0 : index
      %c0_13 = arith.constant 0 : index
      %13 = vector.load %arg5[%c0_12, %c0_13] : memref<1x128xf32, #tpu.memory_space<vmem>>, vector<1x128xf32>
      %14 = vector.broadcast %13 : vector<1x128xf32> to vector<16x128xf32>
      %15 = arith.mulf %12, %14 : vector<16x128xf32>
      %c0_14 = arith.constant 0 : index
      %c0_15 = arith.constant 0 : index
      %16 = vector.load %arg6[%c0_14, %c0_15] : memref<1x128xf32, #tpu.memory_space<vmem>>, vector<1x128xf32>
      %17 = vector.broadcast %16 : vector<1x128xf32> to vector<16x128xf32>
      %18 = arith.addf %15, %17 : vector<16x128xf32>
      %19 = arith.truncf %18 : vector<16x128xf32> to vector<16x128xbf16>
      %c0_16 = arith.constant 0 : index
      %c0_17 = arith.constant 0 : index
      %20 = vector.load %arg7[%c0_16, %c0_17] : memref<16x128xbf16, #tpu.memory_space<vmem>>, vector<16x128xbf16>
      tpu.vector_store %arg7[%c0_16, %c0_17], %19 {strides = array<i32>} : memref<16x128xbf16, #tpu.memory_space<vmem>>, vector<16x128xbf16>,
    } else {
    }
    return
  }
  func.func @transform_0(%arg0: i32, %arg1: i32, %arg2: i32) -> (i32, i32) {
    %c0_i32 = arith.constant 0 : i32
    return %arg0, %arg2 : i32, i32
  }
  func.func @transform_1(%arg0: i32, %arg1: i32, %arg2: i32) -> (i32, i32) {
    %c0_i32 = arith.constant 0 : i32
    return %arg2, %arg1 : i32, i32
  }
  func.func @transform_2(%arg0: i32, %arg1: i32, %arg2: i32) -> (i32, i32) {
    %c0_i32 = arith.constant 0 : i32
    %c0_i32_0 = arith.constant 0 : i32
    return %c0_i32, %arg1 : i32, i32
  }
  func.func @transform_3(%arg0: i32, %arg1: i32, %arg2: i32) -> (i32, i32) {
    %c0_i32 = arith.constant 0 : i32
    %c0_i32_0 = arith.constant 0 : i32
    return %c0_i32, %arg1 : i32, i32
  }
  func.func @transform_4(%arg0: i32, %arg1: i32, %arg2: i32) -> (i32, i32) {
    %c0_i32 = arith.constant 0 : i32
    return %arg0, %arg1 : i32, i32
  }
}

module attributes {stable_mosaic.version = 11 : i64} {
  func.func @_mm_kernel(%arg0: i32, %arg1: i32, %arg2: i32, %arg3: memref<16x384xbf16, #tpu.memory_space<vmem>>, %arg4: memref<384x128xbf16, #tpu.memory_space<vmem>>, %arg5: memref<1x128xf32, #tpu.memory_space<vmem>>, %arg6: memref<1x128xf32, #tpu.memory_space<vmem>>, %arg7: memref<16x128xbf16, #tpu.memory_space<vmem>>, %arg8: memref<16x128xbf16, #tpu.memory_space<vmem>>, %arg9: memref<16x128xf32, #tpu.memory_space<vmem>>) attributes {dimension_semantics = [#tpu.dimension_semantics<parallel>, #tpu.dimension_semantics<parallel>, #tpu.dimension_semantics<arbitrary>], iteration_bounds = array<i64: 1, 1, 3>, scalar_prefetch = 0 : i64, scratch_operands = 1 : i64, tpu.core_type = #tpu.core_type<tc>, window_params = [{transform_indices = @transform_0, window_bounds = array<i64: 16, 384>}, {transform_indices = @transform_1, window_bounds = array<i64: 384, 128>}, {transform_indices = @transform_2, window_bounds = array<i64: 1, 128>}, {transform_indices = @transform_3, window_bounds = array<i64: 1, 128>}, {transform_indices = @transform_4, window_bounds = array<i64: 16, 128>}, {transform_indices = @transform_5, window_bounds = array<i64: 16, 128>}]} {
    %c0_i32 = arith.constant 0 : i32
    %0 = arith.cmpi eq, %arg2, %c0_i32 : i32
    %1 = arith.extui %0 : i1 to i32
    %c0_i32_0 = arith.constant 0 : i32
    %2 = arith.cmpi ne, %1, %c0_i32_0 : i32
    scf.if %2 {
      %cst_9 = arith.constant 0.000000e+00 : f32
      %12 = vector.broadcast %cst_9 : f32 to vector<16x128xf32>
      %c0_10 = arith.constant 0 : index
      %c0_11 = arith.constant 0 : index
      %13 = vector.load %arg9[%c0_10, %c0_11] : memref<16x128xf32, #tpu.memory_space<vmem>>, vector<16x128xf32>
      tpu.vector_store %arg9[%c0_10, %c0_11], %12 {strides = array<i32>} : memref<16x128xf32, #tpu.memory_space<vmem>>, vector<16x128xf32>,
    } else {
    }
    %c0 = arith.constant 0 : index
    %c0_1 = arith.constant 0 : index
    %3 = vector.load %arg9[%c0, %c0_1] : memref<16x128xf32, #tpu.memory_space<vmem>>, vector<16x128xf32>
    %c0_2 = arith.constant 0 : index
    %c0_3 = arith.constant 0 : index
    %4 = vector.load %arg3[%c0_2, %c0_3] : memref<16x384xbf16, #tpu.memory_space<vmem>>, vector<16x384xbf16>
    %c0_4 = arith.constant 0 : index
    %c0_5 = arith.constant 0 : index
    %5 = vector.load %arg4[%c0_4, %c0_5] : memref<384x128xbf16, #tpu.memory_space<vmem>>, vector<384x128xbf16>
    %cst = arith.constant dense<0.000000e+00> : vector<16x128xf32>
    %6 = tpu.matmul %4, %5, %cst {dimension_numbers = #tpu.dot_dimension_numbers<[1], [0], [0], [1], [0, 0, 1, 1], [], []>} : vector<16x384xbf16>, vector<384x128xbf16>, vector<16x128xf32> -> vector<16x128xf32>
    %7 = arith.addf %3, %6 : vector<16x128xf32>
    %c0_6 = arith.constant 0 : index
    %c0_7 = arith.constant 0 : index
    %8 = vector.load %arg9[%c0_6, %c0_7] : memref<16x128xf32, #tpu.memory_space<vmem>>, vector<16x128xf32>
    tpu.vector_store %arg9[%c0_6, %c0_7], %7 {strides = array<i32>} : memref<16x128xf32, #tpu.memory_space<vmem>>, vector<16x128xf32>,
    %c2_i32 = arith.constant 2 : i32
    %9 = arith.cmpi eq, %arg2, %c2_i32 : i32
    %10 = arith.extui %9 : i1 to i32
    %c0_i32_8 = arith.constant 0 : i32
    %11 = arith.cmpi ne, %10, %c0_i32_8 : i32
    scf.if %11 {
      %c0_9 = arith.constant 0 : index
      %c0_10 = arith.constant 0 : index
      %12 = vector.load %arg9[%c0_9, %c0_10] : memref<16x128xf32, #tpu.memory_space<vmem>>, vector<16x128xf32>
      %c0_11 = arith.constant 0 : index
      %c0_12 = arith.constant 0 : index
      %13 = vector.load %arg5[%c0_11, %c0_12] : memref<1x128xf32, #tpu.memory_space<vmem>>, vector<1x128xf32>
      %14 = vector.broadcast %13 : vector<1x128xf32> to vector<16x128xf32>
      %15 = arith.mulf %12, %14 : vector<16x128xf32>
      %c0_13 = arith.constant 0 : index
      %c0_14 = arith.constant 0 : index
      %16 = vector.load %arg6[%c0_13, %c0_14] : memref<1x128xf32, #tpu.memory_space<vmem>>, vector<1x128xf32>
      %17 = vector.broadcast %16 : vector<1x128xf32> to vector<16x128xf32>
      %18 = arith.addf %15, %17 : vector<16x128xf32>
      %c0_15 = arith.constant 0 : index
      %c0_16 = arith.constant 0 : index
      %19 = vector.load %arg7[%c0_15, %c0_16] : memref<16x128xbf16, #tpu.memory_space<vmem>>, vector<16x128xbf16>
      %20 = arith.extf %19 : vector<16x128xbf16> to vector<16x128xf32>
      %21 = arith.addf %18, %20 : vector<16x128xf32>
      %cst_17 = arith.constant 0.000000e+00 : f32
      %22 = vector.broadcast %cst_17 : f32 to vector<16x128xf32>
      %23 = arith.maximumf %21, %22 : vector<16x128xf32>
      %24 = arith.truncf %23 : vector<16x128xf32> to vector<16x128xbf16>
      %c0_18 = arith.constant 0 : index
      %c0_19 = arith.constant 0 : index
      %25 = vector.load %arg8[%c0_18, %c0_19] : memref<16x128xbf16, #tpu.memory_space<vmem>>, vector<16x128xbf16>
      tpu.vector_store %arg8[%c0_18, %c0_19], %24 {strides = array<i32>} : memref<16x128xbf16, #tpu.memory_space<vmem>>, vector<16x128xbf16>,
    } else {
    }
    return
  }
  func.func @transform_0(%arg0: i32, %arg1: i32, %arg2: i32) -> (i32, i32) {
    %c0_i32 = arith.constant 0 : i32
    return %arg0, %arg2 : i32, i32
  }
  func.func @transform_1(%arg0: i32, %arg1: i32, %arg2: i32) -> (i32, i32) {
    %c0_i32 = arith.constant 0 : i32
    return %arg2, %arg1 : i32, i32
  }
  func.func @transform_2(%arg0: i32, %arg1: i32, %arg2: i32) -> (i32, i32) {
    %c0_i32 = arith.constant 0 : i32
    %c0_i32_0 = arith.constant 0 : i32
    return %c0_i32, %arg1 : i32, i32
  }
  func.func @transform_3(%arg0: i32, %arg1: i32, %arg2: i32) -> (i32, i32) {
    %c0_i32 = arith.constant 0 : i32
    %c0_i32_0 = arith.constant 0 : i32
    return %c0_i32, %arg1 : i32, i32
  }
  func.func @transform_4(%arg0: i32, %arg1: i32, %arg2: i32) -> (i32, i32) {
    %c0_i32 = arith.constant 0 : i32
    return %arg0, %arg1 : i32, i32
  }
  func.func @transform_5(%arg0: i32, %arg1: i32, %arg2: i32) -> (i32, i32) {
    %c0_i32 = arith.constant 0 : i32
    return %arg0, %arg1 : i32, i32
  }
}

module attributes {stable_mosaic.version = 11 : i64} {
  func.func @_spatial_mean_kernel(%arg0: memref<2x1x128xbf16, #tpu.memory_space<vmem>>, %arg1: memref<2x128xf32, #tpu.memory_space<vmem>>) attributes {dimension_semantics = [], scalar_prefetch = 0 : i64, scratch_operands = 0 : i64, tpu.core_type = #tpu.core_type<tc>} {
    %c0 = arith.constant 0 : index
    %c0_0 = arith.constant 0 : index
    %c0_1 = arith.constant 0 : index
    %0 = vector.load %arg0[%c0, %c0_0, %c0_1] : memref<2x1x128xbf16, #tpu.memory_space<vmem>>, vector<2x1x128xbf16>
    %1 = arith.extf %0 : vector<2x1x128xbf16> to vector<2x1x128xf32>
    %cst = arith.constant dense<0.000000e+00> : vector<2x128xf32>
    %2 = vector.multi_reduction <add>, %1, %cst [1] : vector<2x1x128xf32> to vector<2x128xf32>
    %cst_2 = arith.constant 1.000000e+00 : f32
    %3 = vector.broadcast %cst_2 : f32 to vector<2x128xf32>
    %4 = arith.mulf %2, %3 : vector<2x128xf32>
    %c0_3 = arith.constant 0 : index
    %c0_4 = arith.constant 0 : index
    %5 = vector.load %arg1[%c0_3, %c0_4] : memref<2x128xf32, #tpu.memory_space<vmem>>, vector<2x128xf32>
    tpu.vector_store %arg1[%c0_3, %c0_4], %4 {strides = array<i32>} : memref<2x128xf32, #tpu.memory_space<vmem>>, vector<2x128xf32>,
    return
  }
}

module attributes {stable_mosaic.version = 11 : i64} {
  func.func @_mm_kernel(%arg0: i32, %arg1: i32, %arg2: i32, %arg3: memref<16x128xbf16, #tpu.memory_space<vmem>>, %arg4: memref<128x128xbf16, #tpu.memory_space<vmem>>, %arg5: memref<1x128xf32, #tpu.memory_space<vmem>>, %arg6: memref<1x128xf32, #tpu.memory_space<vmem>>, %arg7: memref<16x128xf32, #tpu.memory_space<vmem>>, %arg8: memref<16x128xf32, #tpu.memory_space<vmem>>) attributes {dimension_semantics = [#tpu.dimension_semantics<parallel>, #tpu.dimension_semantics<parallel>, #tpu.dimension_semantics<arbitrary>], iteration_bounds = array<i64: 1, 1, 1>, scalar_prefetch = 0 : i64, scratch_operands = 1 : i64, tpu.core_type = #tpu.core_type<tc>, window_params = [{transform_indices = @transform_0, window_bounds = array<i64: 16, 128>}, {transform_indices = @transform_1, window_bounds = array<i64: 128, 128>}, {transform_indices = @transform_2, window_bounds = array<i64: 1, 128>}, {transform_indices = @transform_3, window_bounds = array<i64: 1, 128>}, {transform_indices = @transform_4, window_bounds = array<i64: 16, 128>}]} {
    %c0_i32 = arith.constant 0 : i32
    %0 = arith.cmpi eq, %arg2, %c0_i32 : i32
    %1 = arith.extui %0 : i1 to i32
    %c0_i32_0 = arith.constant 0 : i32
    %2 = arith.cmpi ne, %1, %c0_i32_0 : i32
    scf.if %2 {
      %cst_10 = arith.constant 0.000000e+00 : f32
      %12 = vector.broadcast %cst_10 : f32 to vector<16x128xf32>
      %c0_11 = arith.constant 0 : index
      %c0_12 = arith.constant 0 : index
      %13 = vector.load %arg8[%c0_11, %c0_12] : memref<16x128xf32, #tpu.memory_space<vmem>>, vector<16x128xf32>
      tpu.vector_store %arg8[%c0_11, %c0_12], %12 {strides = array<i32>} : memref<16x128xf32, #tpu.memory_space<vmem>>, vector<16x128xf32>,
    } else {
    }
    %c0 = arith.constant 0 : index
    %c0_1 = arith.constant 0 : index
    %3 = vector.load %arg8[%c0, %c0_1] : memref<16x128xf32, #tpu.memory_space<vmem>>, vector<16x128xf32>
    %c0_2 = arith.constant 0 : index
    %c0_3 = arith.constant 0 : index
    %4 = vector.load %arg3[%c0_2, %c0_3] : memref<16x128xbf16, #tpu.memory_space<vmem>>, vector<16x128xbf16>
    %c0_4 = arith.constant 0 : index
    %c0_5 = arith.constant 0 : index
    %5 = vector.load %arg4[%c0_4, %c0_5] : memref<128x128xbf16, #tpu.memory_space<vmem>>, vector<128x128xbf16>
    %cst = arith.constant dense<0.000000e+00> : vector<16x128xf32>
    %6 = tpu.matmul %4, %5, %cst {dimension_numbers = #tpu.dot_dimension_numbers<[1], [0], [0], [1], [0, 0, 1, 1], [], []>} : vector<16x128xbf16>, vector<128x128xbf16>, vector<16x128xf32> -> vector<16x128xf32>
    %7 = arith.addf %3, %6 : vector<16x128xf32>
    %c0_6 = arith.constant 0 : index
    %c0_7 = arith.constant 0 : index
    %8 = vector.load %arg8[%c0_6, %c0_7] : memref<16x128xf32, #tpu.memory_space<vmem>>, vector<16x128xf32>
    tpu.vector_store %arg8[%c0_6, %c0_7], %7 {strides = array<i32>} : memref<16x128xf32, #tpu.memory_space<vmem>>, vector<16x128xf32>,
    %c0_i32_8 = arith.constant 0 : i32
    %9 = arith.cmpi eq, %arg2, %c0_i32_8 : i32
    %10 = arith.extui %9 : i1 to i32
    %c0_i32_9 = arith.constant 0 : i32
    %11 = arith.cmpi ne, %10, %c0_i32_9 : i32
    scf.if %11 {
      %c0_10 = arith.constant 0 : index
      %c0_11 = arith.constant 0 : index
      %12 = vector.load %arg8[%c0_10, %c0_11] : memref<16x128xf32, #tpu.memory_space<vmem>>, vector<16x128xf32>
      %c0_12 = arith.constant 0 : index
      %c0_13 = arith.constant 0 : index
      %13 = vector.load %arg5[%c0_12, %c0_13] : memref<1x128xf32, #tpu.memory_space<vmem>>, vector<1x128xf32>
      %14 = vector.broadcast %13 : vector<1x128xf32> to vector<16x128xf32>
      %15 = arith.mulf %12, %14 : vector<16x128xf32>
      %c0_14 = arith.constant 0 : index
      %c0_15 = arith.constant 0 : index
      %16 = vector.load %arg6[%c0_14, %c0_15] : memref<1x128xf32, #tpu.memory_space<vmem>>, vector<1x128xf32>
      %17 = vector.broadcast %16 : vector<1x128xf32> to vector<16x128xf32>
      %18 = arith.addf %15, %17 : vector<16x128xf32>
      %c0_16 = arith.constant 0 : index
      %c0_17 = arith.constant 0 : index
      %19 = vector.load %arg7[%c0_16, %c0_17] : memref<16x128xf32, #tpu.memory_space<vmem>>, vector<16x128xf32>
      tpu.vector_store %arg7[%c0_16, %c0_17], %18 {strides = array<i32>} : memref<16x128xf32, #tpu.memory_space<vmem>>, vector<16x128xf32>,
    } else {
    }
    return
  }
  func.func @transform_0(%arg0: i32, %arg1: i32, %arg2: i32) -> (i32, i32) {
    %c0_i32 = arith.constant 0 : i32
    return %arg0, %arg2 : i32, i32
  }
  func.func @transform_1(%arg0: i32, %arg1: i32, %arg2: i32) -> (i32, i32) {
    %c0_i32 = arith.constant 0 : i32
    return %arg2, %arg1 : i32, i32
  }
  func.func @transform_2(%arg0: i32, %arg1: i32, %arg2: i32) -> (i32, i32) {
    %c0_i32 = arith.constant 0 : i32
    %c0_i32_0 = arith.constant 0 : i32
    return %c0_i32, %arg1 : i32, i32
  }
  func.func @transform_3(%arg0: i32, %arg1: i32, %arg2: i32) -> (i32, i32) {
    %c0_i32 = arith.constant 0 : i32
    %c0_i32_0 = arith.constant 0 : i32
    return %c0_i32, %arg1 : i32, i32
  }
  func.func @transform_4(%arg0: i32, %arg1: i32, %arg2: i32) -> (i32, i32) {
    %c0_i32 = arith.constant 0 : i32
    return %arg0, %arg1 : i32, i32
  }
}

module attributes {stable_mosaic.version = 11 : i64} {
  func.func @_mlp_kernel(%arg0: i32, %arg1: memref<16x3072xbf16, #tpu.memory_space<vmem>>, %arg2: memref<3072x128xbf16, #tpu.memory_space<vmem>>, %arg3: memref<1x128xf32, #tpu.memory_space<vmem>>, %arg4: memref<128x128xbf16, #tpu.memory_space<vmem>>, %arg5: memref<1x128xf32, #tpu.memory_space<vmem>>, %arg6: memref<16x128xf32, #tpu.memory_space<vmem>>) attributes {dimension_semantics = [#tpu.dimension_semantics<parallel>], iteration_bounds = array<i64: 1>, scalar_prefetch = 0 : i64, scratch_operands = 0 : i64, tpu.core_type = #tpu.core_type<tc>, window_params = [{transform_indices = @transform_0, window_bounds = array<i64: 16, 3072>}, {pipeline_mode = #tpu.pipeline_mode<synchronous>, transform_indices = @transform_1, window_bounds = array<i64: 3072, 128>}, {pipeline_mode = #tpu.pipeline_mode<synchronous>, transform_indices = @transform_2, window_bounds = array<i64: 1, 128>}, {pipeline_mode = #tpu.pipeline_mode<synchronous>, transform_indices = @transform_3, window_bounds = array<i64: 128, 128>}, {pipeline_mode = #tpu.pipeline_mode<synchronous>, transform_indices = @transform_4, window_bounds = array<i64: 1, 128>}, {transform_indices = @transform_5, window_bounds = array<i64: 16, 128>}]} {
    %c0 = arith.constant 0 : index
    %c0_0 = arith.constant 0 : index
    %0 = vector.load %arg1[%c0, %c0_0] : memref<16x3072xbf16, #tpu.memory_space<vmem>>, vector<16x3072xbf16>
    %c0_1 = arith.constant 0 : index
    %c0_2 = arith.constant 0 : index
    %1 = vector.load %arg2[%c0_1, %c0_2] : memref<3072x128xbf16, #tpu.memory_space<vmem>>, vector<3072x128xbf16>
    %cst = arith.constant dense<0.000000e+00> : vector<16x128xf32>
    %2 = tpu.matmul %0, %1, %cst {dimension_numbers = #tpu.dot_dimension_numbers<[1], [0], [0], [1], [0, 0, 1, 1], [], []>} : vector<16x3072xbf16>, vector<3072x128xbf16>, vector<16x128xf32> -> vector<16x128xf32>
    %c0_3 = arith.constant 0 : index
    %c0_4 = arith.constant 0 : index
    %3 = vector.load %arg3[%c0_3, %c0_4] : memref<1x128xf32, #tpu.memory_space<vmem>>, vector<1x128xf32>
    %4 = vector.broadcast %3 : vector<1x128xf32> to vector<16x128xf32>
    %5 = arith.addf %2, %4 : vector<16x128xf32>
    %cst_5 = arith.constant 0.000000e+00 : f32
    %6 = vector.broadcast %cst_5 : f32 to vector<16x128xf32>
    %7 = arith.maximumf %5, %6 : vector<16x128xf32>
    %8 = arith.truncf %7 : vector<16x128xf32> to vector<16x128xbf16>
    %c0_6 = arith.constant 0 : index
    %c0_7 = arith.constant 0 : index
    %9 = vector.load %arg4[%c0_6, %c0_7] : memref<128x128xbf16, #tpu.memory_space<vmem>>, vector<128x128xbf16>
    %cst_8 = arith.constant dense<0.000000e+00> : vector<16x128xf32>
    %10 = tpu.matmul %8, %9, %cst_8 {dimension_numbers = #tpu.dot_dimension_numbers<[1], [0], [0], [1], [0, 0, 1, 1], [], []>} : vector<16x128xbf16>, vector<128x128xbf16>, vector<16x128xf32> -> vector<16x128xf32>
    %c0_9 = arith.constant 0 : index
    %c0_10 = arith.constant 0 : index
    %11 = vector.load %arg5[%c0_9, %c0_10] : memref<1x128xf32, #tpu.memory_space<vmem>>, vector<1x128xf32>
    %12 = vector.broadcast %11 : vector<1x128xf32> to vector<16x128xf32>
    %13 = arith.addf %10, %12 : vector<16x128xf32>
    %c0_11 = arith.constant 0 : index
    %c0_12 = arith.constant 0 : index
    %14 = vector.load %arg6[%c0_11, %c0_12] : memref<16x128xf32, #tpu.memory_space<vmem>>, vector<16x128xf32>
    tpu.vector_store %arg6[%c0_11, %c0_12], %13 {strides = array<i32>} : memref<16x128xf32, #tpu.memory_space<vmem>>, vector<16x128xf32>,
    return
  }
  func.func @transform_0(%arg0: i32) -> (i32, i32) {
    %c0_i32 = arith.constant 0 : i32
    %c0_i32_0 = arith.constant 0 : i32
    return %arg0, %c0_i32 : i32, i32
  }
  func.func @transform_1(%arg0: i32) -> (i32, i32) {
    %c0_i32 = arith.constant 0 : i32
    %c0_i32_0 = arith.constant 0 : i32
    %c0_i32_1 = arith.constant 0 : i32
    return %c0_i32, %c0_i32_0 : i32, i32
  }
  func.func @transform_2(%arg0: i32) -> (i32, i32) {
    %c0_i32 = arith.constant 0 : i32
    %c0_i32_0 = arith.constant 0 : i32
    %c0_i32_1 = arith.constant 0 : i32
    return %c0_i32, %c0_i32_0 : i32, i32
  }
  func.func @transform_3(%arg0: i32) -> (i32, i32) {
    %c0_i32 = arith.constant 0 : i32
    %c0_i32_0 = arith.constant 0 : i32
    %c0_i32_1 = arith.constant 0 : i32
    return %c0_i32, %c0_i32_0 : i32, i32
  }
  func.func @transform_4(%arg0: i32) -> (i32, i32) {
    %c0_i32 = arith.constant 0 : i32
    %c0_i32_0 = arith.constant 0 : i32
    %c0_i32_1 = arith.constant 0 : i32
    return %c0_i32, %c0_i32_0 : i32, i32
  }
  func.func @transform_5(%arg0: i32) -> (i32, i32) {
    %c0_i32 = arith.constant 0 : i32
    %c0_i32_0 = arith.constant 0 : i32
    return %arg0, %c0_i32 : i32, i32
  }
}

</mosaic_0001>

<llo_original>
// kernel: cotrain_forward.16
$region0: #{cotrain_forward.16}
  #allocation0 [shape = 'u32[]', space=smem, size = 0x4, offset = 0x4, fixed_abs, tag = 'smem constant byte address 0x4 - core index']
  #allocation1 [shape = 'u32[72,128]{1,0:T(1,128)}', space=vmem, size = 0x9000, scoped, tag = 'internal scratch']
  #allocation2 [shape = 'f32[256,128]{1,0:T(8,128)}', space=vmem, size = 0x20000, scoped, tag = 'scratch operand']
  %s0 = inlined_call_operand.vmem [shape: bf16[512,160], index: 0, kind: input, shape index: {}]
  %s1 = inlined_call_operand.vmem [shape: bf16[160,128], index: 1, kind: input, shape index: {}]
  %s2 = inlined_call_operand.vmem [shape: f32[1,128], index: 2, kind: input, shape index: {}]
  %s3 = inlined_call_operand.vmem [shape: f32[1,128], index: 3, kind: input, shape index: {}]
  %s4 = inlined_call_operand.vmem [shape: bf16[512,128], index: 4, kind: output, shape index: {}]
  %s5 = sld [smem:[#allocation0]]
  $region57: #{cotrain_forward.16} parent=0
    _
  %s7 = ssub.s32 1, %s5
  %s8 = scalar_select 0, %s7, %s5
  loop: start=0, step=1, limit=4
  $region2: #{cotrain_forward.16} parent=0 // loop_pre_header
    _
  $region3: #{cotrain_forward.16} parent=0 // loop_header
    %s10 = sphi 0, %s14
    %p11 = scmp.ge.s32.totalorder %s10, 4
    %s17 = sphi 0, %s36
    %s18 = sphi 0, %s32
    %s19 = sphi 0, %s28
    %s20 = sphi 0, %s17
    %s21 = sphi 0, %s18
    %s22 = sphi 0, %s19
    %s23 = sphi 0, %s20
    %s24 = sphi 0, %s21
    %s25 = sphi 0, %s22
    %s41 = sphi 0, %s43
    %s44 = sphi 0, %s41
    %s45 = sphi 0, %s44
    %s61 = sphi 0, %s45
    %s69 = sphi 0, %s71
    %s72 = sphi 0, %s69
    %s73 = sphi 0, %s72
    %s89 = sphi 0, %s73
    %s95 = sphi 0, %s97
    %s98 = sphi 0, %s95
    %s99 = sphi 0, %s98
    %s115 = sphi 0, %s99
    %s121 = sphi 0, %s123
    %s124 = sphi 0, %s121
    %s125 = sphi 0, %s124
    %s141 = sphi 0, %s125
    %s149 = sphi 0, %s151
    %s152 = sphi 0, %s149
    %s153 = sphi 0, %s152
    %s169 = sphi 0, %s153
  $region4: #{cotrain_forward.16} parent=0 // loop_header_branch
    %13 = sbr.rel (%p11) target = $region8
  $region5: #{cotrain_forward.16} parent=0 // loop_body
    %s15 = ssub.s32 %s10, 1
    %s16 = ssub.s32 %s10, 2
    %s26 = sadd.s32 1, %s19
    %p27 = scmp.ge.s32.totalorder %s26, 1
    %s28 = scalar_select %p27, 0, %s26
    %s29 = sadd.s32 1, %s18
    %s30 = scalar_select %p27, %s29, %s18
    %p31 = scmp.ge.s32.totalorder %s30, 1
    %s32 = scalar_select %p31, 0, %s30
    %s33 = sadd.s32 1, %s17
    %s34 = scalar_select %p31, %s33, %s17
    %p35 = scmp.ge.s32.totalorder %s34, 2
    %s36 = scalar_select %p35, 0, %s34
    %s37 = ssub.s32 %s17, %s36
    %s38 = ssub.s32 %s19, %s28
    %s39 = sor.u32 %s37, %s38
    %p40 = scmp.eq.s32.totalorder %s39, 0
    %s42 = sadd.s32 %s41, 1
    %s43 = scalar_select %p40, %s41, %s42
    %p46 = pneg %p40
    %p47 = scmp.eq.s32.totalorder %s10, 1
    %p48 = por %p46, %p47
    %p49 = scmp.ne.s32.totalorder %s41, %s44
    %p50 = scmp.eq.s32.totalorder %s10, 0
    %p51 = por %p49, %p50
    %p52 = scmp.ne.s32.totalorder %s41, %s44
    %p53 = scmp.eq.s32.totalorder %s15, 1
    %p54 = por %p52, %p53
    %p55 = scmp.ne.s32.totalorder %s44, %s45
    %p56 = scmp.eq.s32.totalorder %s15, 0
    %p57 = por %p55, %p56
    %p58 = scmp.ne.s32.totalorder %s44, %s45
    %p59 = scmp.eq.s32.totalorder %s16, 1
    %p60 = por %p58, %p59
    %p62 = scmp.ne.s32.totalorder %s45, %s61
    %p63 = scmp.eq.s32.totalorder %s16, 0
    %p64 = por %p62, %p63
    %s65 = ssub.s32 %s19, %s28
    %s66 = ssub.s32 %s18, %s32
    %s67 = sor.u32 %s65, %s66
    %p68 = scmp.eq.s32.totalorder %s67, 0
    %s70 = sadd.s32 %s69, 1
    %s71 = scalar_select %p68, %s69, %s70
    %p74 = pneg %p68
    %p75 = scmp.eq.s32.totalorder %s10, 1
    %p76 = por %p74, %p75
    %p77 = scmp.ne.s32.totalorder %s69, %s72
    %p78 = scmp.eq.s32.totalorder %s10, 0
    %p79 = por %p77, %p78
    %p80 = scmp.ne.s32.totalorder %s69, %s72
    %p81 = scmp.eq.s32.totalorder %s15, 1
    %p82 = por %p80, %p81
    %p83 = scmp.ne.s32.totalorder %s72, %s73
    %p84 = scmp.eq.s32.totalorder %s15, 0
    %p85 = por %p83, %p84
    %p86 = scmp.ne.s32.totalorder %s72, %s73
    %p87 = scmp.eq.s32.totalorder %s16, 1
    %p88 = por %p86, %p87
    %p90 = scmp.ne.s32.totalorder %s73, %s89
    %p91 = scmp.eq.s32.totalorder %s16, 0
    %p92 = por %p90, %p91
    %s93 = ssub.s32 %s18, %s32
    %p94 = scmp.eq.s32.totalorder %s93, 0
    %s96 = sadd.s32 %s95, 1
    %s97 = scalar_select %p94, %s95, %s96
    %p100 = pneg %p94
    %p101 = scmp.eq.s32.totalorder %s10, 1
    %p102 = por %p100, %p101
    %p103 = scmp.ne.s32.totalorder %s95, %s98
    %p104 = scmp.eq.s32.totalorder %s10, 0
    %p105 = por %p103, %p104
    %p106 = scmp.ne.s32.totalorder %s95, %s98
    %p107 = scmp.eq.s32.totalorder %s15, 1
    %p108 = por %p106, %p107
    %p109 = scmp.ne.s32.totalorder %s98, %s99
    %p110 = scmp.eq.s32.totalorder %s15, 0
    %p111 = por %p109, %p110
    %p112 = scmp.ne.s32.totalorder %s98, %s99
    %p113 = scmp.eq.s32.totalorder %s16, 1
    %p114 = por %p112, %p113
    %p116 = scmp.ne.s32.totalorder %s99, %s115
    %p117 = scmp.eq.s32.totalorder %s16, 0
    %p118 = por %p116, %p117
    %s119 = ssub.s32 %s18, %s32
    %p120 = scmp.eq.s32.totalorder %s119, 0
    %s122 = sadd.s32 %s121, 1
    %s123 = scalar_select %p120, %s121, %s122
    %p126 = pneg %p120
    %p127 = scmp.eq.s32.totalorder %s10, 1
    %p128 = por %p126, %p127
    %p129 = scmp.ne.s32.totalorder %s121, %s124
    %p130 = scmp.eq.s32.totalorder %s10, 0
    %p131 = por %p129, %p130
    %p132 = scmp.ne.s32.totalorder %s121, %s124
    %p133 = scmp.eq.s32.totalorder %s15, 1
    %p134 = por %p132, %p133
    %p135 = scmp.ne.s32.totalorder %s124, %s125
    %p136 = scmp.eq.s32.totalorder %s15, 0
    %p137 = por %p135, %p136
    %p138 = scmp.ne.s32.totalorder %s124, %s125
    %p139 = scmp.eq.s32.totalorder %s16, 1
    %p140 = por %p138, %p139
    %p142 = scmp.ne.s32.totalorder %s125, %s141
    %p143 = scmp.eq.s32.totalorder %s16, 0
    %p144 = por %p142, %p143
    %s145 = ssub.s32 %s17, %s36
    %s146 = ssub.s32 %s18, %s32
    %s147 = sor.u32 %s145, %s146
    %p148 = scmp.eq.s32.totalorder %s147, 0
    %s150 = sadd.s32 %s149, 1
    %s151 = scalar_select %p148, %s149, %s150
    %p154 = pneg %p148
    %p155 = scmp.eq.s32.totalorder %s10, 1
    %p156 = por %p154, %p155
    %p157 = scmp.ne.s32.totalorder %s149, %s152
    %p158 = scmp.eq.s32.totalorder %s10, 0
    %p159 = por %p157, %p158
    %p160 = scmp.ne.s32.totalorder %s149, %s152
    %p161 = scmp.eq.s32.totalorder %s15, 1
    %p162 = por %p160, %p161
    %p163 = scmp.ne.s32.totalorder %s152, %s153
    %p164 = scmp.eq.s32.totalorder %s15, 0
    %p165 = por %p163, %p164
    %p166 = scmp.ne.s32.totalorder %s152, %s153
    %p167 = scmp.eq.s32.totalorder %s16, 1
    %p168 = por %p166, %p167
    %p170 = scmp.ne.s32.totalorder %s153, %s169
    %p171 = scmp.eq.s32.totalorder %s16, 0
    %p172 = por %p170, %p171
    %p173 = scmp.le.s32.totalorder 1, %s10
    %p174 = scmp.lt.s32.totalorder %s10, 3
    %p175 = pnand %p173, %p174
    %p176 = pneg %p175
    // Predicated region
    $region9: #{cotrain_forward.16} parent=5 // pred_check
      _
    $region10: #{cotrain_forward.16} parent=5 // pred_check_branch
      %178 = sbr.rel (%p175) target = $region12
    $region11: #{cotrain_forward.16} parent=5 // pred_region
      %s179 = ssub.s32 %s10, 1
      // Predicated region
      $region13: #{cotrain_forward.16} parent=11 // pred_check
        %p180 = pneg %p85
      $region14: #{cotrain_forward.16} parent=11 // pred_check_branch
        %182 = sbr.rel (%p180) target = $region16
      $region15: #{cotrain_forward.16} parent=11 // pred_region
        %s183 = smul.u32 20, %s22
        %p184 = scmp.lt.s32.totalorder %s183, 19
        %s185 = scalar_select %p184, %s183, 19
        %p186 = scmp.lt.s32.totalorder %s21, 0
        %s187 = scalar_select %p186, %s21, 0
        %s188 = sadd.s32 %s187, %s185
        %s189 = smul.addr %s188, 4
        %s190 = scalar_lea.vmem %s1, %s189
        %s191 = smul.u32 20, %s22
      $region16: #{cotrain_forward.16} parent=11 // pred_fallthru
        _
      // Predicated region
      $region17: #{cotrain_forward.16} parent=11 // pred_check
        %p192 = pneg %p111
      $region18: #{cotrain_forward.16} parent=11 // pred_check_branch
        %194 = sbr.rel (%p192) target = $region20
      $region19: #{cotrain_forward.16} parent=11 // pred_region
        %p195 = scmp.lt.s32.totalorder %s21, 0
        %s196 = scalar_select %p195, %s21, 0
        %s197 = scalar_lea.vmem %s2, %s196
      $region20: #{cotrain_forward.16} parent=11 // pred_fallthru
        _
      // Predicated region
      $region21: #{cotrain_forward.16} parent=11 // pred_check
        %p198 = pneg %p137
      $region22: #{cotrain_forward.16} parent=11 // pred_check_branch
        %200 = sbr.rel (%p198) target = $region24
      $region23: #{cotrain_forward.16} parent=11 // pred_region
        %p201 = scmp.lt.s32.totalorder %s21, 0
        %s202 = scalar_select %p201, %s21, 0
        %s203 = scalar_lea.vmem %s3, %s202
      $region24: #{cotrain_forward.16} parent=11 // pred_fallthru
        _
    $region12: #{cotrain_forward.16} parent=5 // pred_fallthru
      _
    %p204 = scmp.lt.s32.totalorder %s10, 2
    // Predicated region
    $region25: #{cotrain_forward.16} parent=5 // pred_check
      %p205 = pneg %p204
    $region26: #{cotrain_forward.16} parent=5 // pred_check_branch
      %207 = sbr.rel (%p205) target = $region28
    $region27: #{cotrain_forward.16} parent=5 // pred_region
      // Predicated region
      $region29: #{cotrain_forward.16} parent=27 // pred_check
        %p208 = pneg %p51
      $region30: #{cotrain_forward.16} parent=27 // pred_check_branch
        %210 = sbr.rel (%p208) target = $region32
      $region31: #{cotrain_forward.16} parent=27 // pred_region
        %s211 = smul.u32 32, %s17
        %s212 = smul.u32 2, %s19
        %p213 = scmp.lt.s32.totalorder %s211, 63
        %s214 = scalar_select %p213, %s211, 63
        %p215 = scmp.lt.s32.totalorder %s212, 1
        %s216 = scalar_select %p215, %s212, 1
        %s217 = smul.addr %s214, 2
        %s218 = sadd.s32 %s216, %s217
        %s219 = smul.addr %s218, 4
        %s220 = scalar_lea.vmem %s0, %s219
        %s221 = smul.u32 32, %s17
        %s222 = smul.u32 2, %s19
      $region32: #{cotrain_forward.16} parent=27 // pred_fallthru
        _
    $region28: #{cotrain_forward.16} parent=5 // pred_fallthru
      _
    %p223 = scmp.le.s32.totalorder 1, %s10
    %p224 = scmp.lt.s32.totalorder %s10, 3
    %p225 = pnand %p223, %p224
    %p226 = pneg %p225
    // Predicated region
    $region33: #{cotrain_forward.16} parent=5 // pred_check
      _
    $region34: #{cotrain_forward.16} parent=5 // pred_check_branch
      %228 = sbr.rel (%p225) target = $region36
    $region35: #{cotrain_forward.16} parent=5 // pred_region
      %s229 = ssub.s32 %s10, 1
      %s230 = smul.u32 32, %s20
      %s231 = smul.u32 2, %s22
      %p232 = scmp.lt.s32.totalorder %s230, 63
      %s233 = scalar_select %p232, %s230, 63
      %p234 = scmp.lt.s32.totalorder %s231, 1
      %s235 = scalar_select %p234, %s231, 1
      %s236 = smul.addr %s233, 2
      %s237 = sadd.s32 %s235, %s236
      %s238 = smul.addr %s237, 4
      %s239 = scalar_lea.vmem %s0, %s238
      %p240 = pneg %p57
      %p241 = pneg %p54
      %s242 = smul.u32 20, %s22
      %p243 = scmp.lt.s32.totalorder %s242, 19
      %s244 = scalar_select %p243, %s242, 19
      %p245 = scmp.lt.s32.totalorder %s21, 0
      %s246 = scalar_select %p245, %s21, 0
      %s247 = sadd.s32 %s246, %s244
      %s248 = smul.addr %s247, 4
      %s249 = scalar_lea.vmem %s1, %s248
      %p250 = pneg %p85
      %p251 = pneg %p82
      %p252 = scmp.lt.s32.totalorder %s21, 0
      %s253 = scalar_select %p252, %s21, 0
      %s254 = scalar_lea.vmem %s2, %s253
      %p255 = pneg %p111
      %p256 = pneg %p108
      %p257 = scmp.lt.s32.totalorder %s21, 0
      %s258 = scalar_select %p257, %s21, 0
      %s259 = scalar_lea.vmem %s3, %s258
      %p260 = pneg %p137
      %p261 = pneg %p134
      %p262 = pneg %p165
      %p263 = pneg %p162
      %s264 = smul.u32 32, %s20
      %p265 = scmp.lt.s32.totalorder %s264, 63
      %s266 = scalar_select %p265, %s264, 63
      %p267 = scmp.lt.s32.totalorder %s21, 0
      %s268 = scalar_select %p267, %s21, 0
      %s269 = sadd.s32 %s268, %s266
      %s270 = smul.addr %s269, 4
      %s271 = scalar_lea.vmem %s4, %s270
      %s272 = smul.u32 32, %s20
      %s273 = smul.u32 2, %s22
      %p274 = scmp.lt.s32.totalorder %s272, 63
      %s275 = scalar_select %p274, %s272, 63
      %p276 = scmp.lt.s32.totalorder %s273, 1
      %s277 = scalar_select %p276, %s273, 1
      %s278 = smul.addr %s275, 2
      %s279 = sadd.s32 %s277, %s278
      %s280 = smul.addr %s279, 4
      %s281 = scalar_lea.vmem %s0, %s280
      %s282 = smul.u32 32, %s20
      %s283 = smul.u32 2, %s22
      %s284 = smul.u32 20, %s22
      %p285 = scmp.lt.s32.totalorder %s284, 19
      %s286 = scalar_select %p285, %s284, 19
      %p287 = scmp.lt.s32.totalorder %s21, 0
      %s288 = scalar_select %p287, %s21, 0
      %s289 = sadd.s32 %s288, %s286
      %s290 = smul.addr %s289, 4
      %s291 = scalar_lea.vmem %s1, %s290
      %s292 = smul.u32 20, %s22
      %p293 = scmp.lt.s32.totalorder %s21, 0
      %s294 = scalar_select %p293, %s21, 0
      %s295 = scalar_lea.vmem %s2, %s294
      %p296 = scmp.lt.s32.totalorder %s21, 0
      %s297 = scalar_select %p296, %s21, 0
      %s298 = scalar_lea.vmem %s3, %s297
      %s299 = smul.u32 32, %s20
      %p300 = scmp.lt.s32.totalorder %s299, 63
      %s301 = scalar_select %p300, %s299, 63
      %p302 = scmp.lt.s32.totalorder %s21, 0
      %s303 = scalar_select %p302, %s21, 0
      %s304 = sadd.s32 %s303, %s301
      %s305 = smul.addr %s304, 4
      %s306 = scalar_lea.vmem %s4, %s305
      %s307 = smul.u32 32, %s20
      %p309 = scmp.eq.s32.totalorder %s22, 0
      // Predicated region
      $region37: #{cotrain_forward.16} parent=35 // pred_check
        %p310 = pneg %p309
      $region38: #{cotrain_forward.16} parent=35 // pred_check_branch
        %312 = sbr.rel (%p310) target = $region40
      $region39: #{cotrain_forward.16} parent=35 // pred_region
        %313 = vst [vmem:[#allocation2] sm:$0xff] 0.0
        %314 = vst [vmem:[#allocation2 + $0x8] sm:$0xff] 0.0
        %315 = vst [vmem:[#allocation2 + $0x10] sm:$0xff] 0.0
        %316 = vst [vmem:[#allocation2 + $0x18] sm:$0xff] 0.0
        %317 = vst [vmem:[#allocation2 + $0x20] sm:$0xff] 0.0
        %318 = vst [vmem:[#allocation2 + $0x28] sm:$0xff] 0.0
        %319 = vst [vmem:[#allocation2 + $0x30] sm:$0xff] 0.0
        %320 = vst [vmem:[#allocation2 + $0x38] sm:$0xff] 0.0
        %321 = vst [vmem:[#allocation2 + $0x40] sm:$0xff] 0.0
        %322 = vst [vmem:[#allocation2 + $0x48] sm:$0xff] 0.0
        %323 = vst [vmem:[#allocation2 + $0x50] sm:$0xff] 0.0
        %324 = vst [vmem:[#allocation2 + $0x58] sm:$0xff] 0.0
        %325 = vst [vmem:[#allocation2 + $0x60] sm:$0xff] 0.0
        %326 = vst [vmem:[#allocation2 + $0x68] sm:$0xff] 0.0
        %327 = vst [vmem:[#allocation2 + $0x70] sm:$0xff] 0.0
        %328 = vst [vmem:[#allocation2 + $0x78] sm:$0xff] 0.0
        %329 = vst [vmem:[#allocation2 + $0x80] sm:$0xff] 0.0
        %330 = vst [vmem:[#allocation2 + $0x88] sm:$0xff] 0.0
        %331 = vst [vmem:[#allocation2 + $0x90] sm:$0xff] 0.0
        %332 = vst [vmem:[#allocation2 + $0x98] sm:$0xff] 0.0
        %333 = vst [vmem:[#allocation2 + $0xa0] sm:$0xff] 0.0
        %334 = vst [vmem:[#allocation2 + $0xa8] sm:$0xff] 0.0
        %335 = vst [vmem:[#allocation2 + $0xb0] sm:$0xff] 0.0
        %336 = vst [vmem:[#allocation2 + $0xb8] sm:$0xff] 0.0
        %337 = vst [vmem:[#allocation2 + $0xc0] sm:$0xff] 0.0
        %338 = vst [vmem:[#allocation2 + $0xc8] sm:$0xff] 0.0
        %339 = vst [vmem:[#allocation2 + $0xd0] sm:$0xff] 0.0
        %340 = vst [vmem:[#allocation2 + $0xd8] sm:$0xff] 0.0
        %341 = vst [vmem:[#allocation2 + $0xe0] sm:$0xff] 0.0
        %342 = vst [vmem:[#allocation2 + $0xe8] sm:$0xff] 0.0
        %343 = vst [vmem:[#allocation2 + $0xf0] sm:$0xff] 0.0
        %344 = vst [vmem:[#allocation2 + $0xf8] sm:$0xff] 0.0
      $region40: #{cotrain_forward.16} parent=35 // pred_fallthru
        _
      %v345 = vld [vmem:[#allocation2] sm:$0xff]
      %v346 = vld [vmem:[#allocation2 + $0x8] sm:$0xff]
      %v347 = vld [vmem:[#allocation2 + $0x10] sm:$0xff]
      %v348 = vld [vmem:[#allocation2 + $0x18] sm:$0xff]
      %v349 = vld [vmem:[#allocation2 + $0x20] sm:$0xff]
      %v350 = vld [vmem:[#allocation2 + $0x28] sm:$0xff]
      %v351 = vld [vmem:[#allocation2 + $0x30] sm:$0xff]
      %v352 = vld [vmem:[#allocation2 + $0x38] sm:$0xff]
      %v353 = vld [vmem:[#allocation2 + $0x40] sm:$0xff]
      %v354 = vld [vmem:[#allocation2 + $0x48] sm:$0xff]
      %v355 = vld [vmem:[#allocation2 + $0x50] sm:$0xff]
      %v356 = vld [vmem:[#allocation2 + $0x58] sm:$0xff]
      %v357 = vld [vmem:[#allocation2 + $0x60] sm:$0xff]
      %v358 = vld [vmem:[#allocation2 + $0x68] sm:$0xff]
      %v359 = vld [vmem:[#allocation2 + $0x70] sm:$0xff]
      %v360 = vld [vmem:[#allocation2 + $0x78] sm:$0xff]
      %v361 = vld [vmem:[#allocation2 + $0x80] sm:$0xff]
      %v362 = vld [vmem:[#allocation2 + $0x88] sm:$0xff]
      %v363 = vld [vmem:[#allocation2 + $0x90] sm:$0xff]
      %v364 = vld [vmem:[#allocation2 + $0x98] sm:$0xff]
      %v365 = vld [vmem:[#allocation2 + $0xa0] sm:$0xff]
      %v366 = vld [vmem:[#allocation2 + $0xa8] sm:$0xff]
      %v367 = vld [vmem:[#allocation2 + $0xb0] sm:$0xff]
      %v368 = vld [vmem:[#allocation2 + $0xb8] sm:$0xff]
      %v369 = vld [vmem:[#allocation2 + $0xc0] sm:$0xff]
      %v370 = vld [vmem:[#allocation2 + $0xc8] sm:$0xff]
      %v371 = vld [vmem:[#allocation2 + $0xd0] sm:$0xff]
      %v372 = vld [vmem:[#allocation2 + $0xd8] sm:$0xff]
      %v373 = vld [vmem:[#allocation2 + $0xe0] sm:$0xff]
      %v374 = vld [vmem:[#allocation2 + $0xe8] sm:$0xff]
      %v375 = vld [vmem:[#allocation2 + $0xf0] sm:$0xff]
      %v376 = vld [vmem:[#allocation2 + $0xf8] sm:$0xff]
      %v377 = vld [vmem:[%s281] sm:$0xff]
      %v378 = vld [vmem:[%s281 + $0x8] sm:$0xff]
      %v379 = vld [vmem:[%s281 + $0x10] sm:$0xff]
      %v380 = vld [vmem:[%s281 + $0x18] sm:$0xff]
      %v381 = vld [vmem:[%s281 + $0x20] sm:$0xff]
      %v382 = vld [vmem:[%s281 + $0x28] sm:$0xff]
      %v383 = vld [vmem:[%s281 + $0x30] sm:$0xff]
      %v384 = vld [vmem:[%s281 + $0x38] sm:$0xff]
      %v385 = vld [vmem:[%s281 + $0x40] sm:$0xff]
      %v386 = vld [vmem:[%s281 + $0x48] sm:$0xff]
      %v387 = vld [vmem:[%s281 + $0x50] sm:$0xff]
      %v388 = vld [vmem:[%s281 + $0x58] sm:$0xff]
      %v389 = vld [vmem:[%s281 + $0x60] sm:$0xff]
      %v390 = vld [vmem:[%s281 + $0x68] sm:$0xff]
      %v391 = vld [vmem:[%s281 + $0x70] sm:$0xff]
      %v392 = vld [vmem:[%s281 + $0x78] sm:$0xff]
      %v393 = vld [vmem:[%s281 + $0x80] sm:$0xff]
      %v394 = vld [vmem:[%s281 + $0x88] sm:$0xff]
      %v395 = vld [vmem:[%s281 + $0x90] sm:$0xff]
      %v396 = vld [vmem:[%s281 + $0x98] sm:$0xff]
      %v397 = vld [vmem:[%s281 + $0xa0] sm:$0xff]
      %v398 = vld [vmem:[%s281 + $0xa8] sm:$0xff]
      %v399 = vld [vmem:[%s281 + $0xb0] sm:$0xff]
      %v400 = vld [vmem:[%s281 + $0xb8] sm:$0xff]
      %v401 = vld [vmem:[%s281 + $0xc0] sm:$0xff]
      %v402 = vld [vmem:[%s281 + $0xc8] sm:$0xff]
      %v403 = vld [vmem:[%s281 + $0xd0] sm:$0xff]
      %v404 = vld [vmem:[%s281 + $0xd8] sm:$0xff]
      %v405 = vld [vmem:[%s281 + $0xe0] sm:$0xff]
      %v406 = vld [vmem:[%s281 + $0xe8] sm:$0xff]
      %v407 = vld [vmem:[%s281 + $0xf0] sm:$0xff]
      %v408 = vld [vmem:[%s281 + $0xf8] sm:$0xff]
      %v409 = vld [vmem:[%s291] sm:$0xf]
      %v410 = vld [vmem:[%s291 + $0x4] sm:$0xf]
      %v411 = vld [vmem:[%s291 + $0x8] sm:$0xf]
      %v412 = vld [vmem:[%s291 + $0xc] sm:$0xf]
      %v413 = vld [vmem:[%s291 + $0x10] sm:$0xf]
      %v414 = vld [vmem:[%s291 + $0x14] sm:$0xf]
      %v415 = vld [vmem:[%s291 + $0x18] sm:$0xf]
      %v416 = vld [vmem:[%s291 + $0x1c] sm:$0xf]
      %v417 = vld [vmem:[%s291 + $0x20] sm:$0xf]
      %v418 = vld [vmem:[%s291 + $0x24] sm:$0xf]
      %v419 = vld [vmem:[%s291 + $0x28] sm:$0xf]
      %v420 = vld [vmem:[%s291 + $0x2c] sm:$0xf]
      %v421 = vld [vmem:[%s291 + $0x30] sm:$0xf]
      %v422 = vld [vmem:[%s291 + $0x34] sm:$0xf]
      %v423 = vld [vmem:[%s291 + $0x38] sm:$0xf]
      %v424 = vld [vmem:[%s291 + $0x3c] sm:$0xf]
      %v425 = vld [vmem:[%s291 + $0x40] sm:$0xf]
      %v426 = vld [vmem:[%s291 + $0x44] sm:$0xf]
      %v427 = vld [vmem:[%s291 + $0x48] sm:$0xf]
      %v428 = vld [vmem:[%s291 + $0x4c] sm:$0xf]
      %v461 = vunpack.c.l.b16 %v377
      %v462 = vunpack.c.h.b16 %v377
      %v463 = vunpack.c.l.b16 %v378
      %v464 = vunpack.c.h.b16 %v378
      %v465 = vunpack.c.l.b16 %v379
      %v466 = vunpack.c.h.b16 %v379
      %v467 = vunpack.c.l.b16 %v380
      %v468 = vunpack.c.h.b16 %v380
      %v469 = vunpack.c.l.b16 %v381
      %v470 = vunpack.c.h.b16 %v381
      %v471 = vunpack.c.l.b16 %v382
      %v472 = vunpack.c.h.b16 %v382
      %v473 = vunpack.c.l.b16 %v383
      %v474 = vunpack.c.h.b16 %v383
      %v475 = vunpack.c.l.b16 %v384
      %v476 = vunpack.c.h.b16 %v384
      %v477 = vunpack.c.l.b16 %v385
      %v478 = vunpack.c.h.b16 %v385
      %v479 = vunpack.c.l.b16 %v386
      %v480 = vunpack.c.h.b16 %v386
      %v481 = vunpack.c.l.b16 %v387
      %v482 = vunpack.c.h.b16 %v387
      %v483 = vunpack.c.l.b16 %v388
      %v484 = vunpack.c.h.b16 %v388
      %v485 = vunpack.c.l.b16 %v389
      %v486 = vunpack.c.h.b16 %v389
      %v487 = vunpack.c.l.b16 %v390
      %v488 = vunpack.c.h.b16 %v390
      %v489 = vunpack.c.l.b16 %v391
      %v490 = vunpack.c.h.b16 %v391
      %v491 = vunpack.c.l.b16 %v392
      %v492 = vunpack.c.h.b16 %v392
      %v493 = vunpack.c.l.b16 %v393
      %v494 = vunpack.c.h.b16 %v393
      %v495 = vunpack.c.l.b16 %v394
      %v496 = vunpack.c.h.b16 %v394
      %v497 = vunpack.c.l.b16 %v395
      %v498 = vunpack.c.h.b16 %v395
      %v499 = vunpack.c.l.b16 %v396
      %v500 = vunpack.c.h.b16 %v396
      %v501 = vunpack.c.l.b16 %v397
      %v502 = vunpack.c.h.b16 %v397
      %v503 = vunpack.c.l.b16 %v398
      %v504 = vunpack.c.h.b16 %v398
      %v505 = vunpack.c.l.b16 %v399
      %v506 = vunpack.c.h.b16 %v399
      %v507 = vunpack.c.l.b16 %v400
      %v508 = vunpack.c.h.b16 %v400
      %v509 = vunpack.c.l.b16 %v401
      %v510 = vunpack.c.h.b16 %v401
      %v511 = vunpack.c.l.b16 %v402
      %v512 = vunpack.c.h.b16 %v402
      %v513 = vunpack.c.l.b16 %v403
      %v514 = vunpack.c.h.b16 %v403
      %v515 = vunpack.c.l.b16 %v404
      %v516 = vunpack.c.h.b16 %v404
      %v517 = vunpack.c.l.b16 %v405
      %v518 = vunpack.c.h.b16 %v405
      %v519 = vunpack.c.l.b16 %v406
      %v520 = vunpack.c.h.b16 %v406
      %v521 = vunpack.c.l.b16 %v407
      %v522 = vunpack.c.h.b16 %v407
      %v523 = vunpack.c.l.b16 %v408
      %v524 = vunpack.c.h.b16 %v408
      %v525 = vpack.c.b16 %v463, %v461
      %v526 = vpack.c.b16 %v464, %v462
      %v527 = vpack.c.b16 %v467, %v465
      %v528 = vpack.c.b16 %v468, %v466
      %v529 = vpack.c.b16 %v471, %v469
      %v530 = vpack.c.b16 %v472, %v470
      %v531 = vpack.c.b16 %v475, %v473
      %v532 = vpack.c.b16 %v476, %v474
      %v533 = vpack.c.b16 %v479, %v477
      %v534 = vpack.c.b16 %v480, %v478
      %v535 = vpack.c.b16 %v483, %v481
      %v536 = vpack.c.b16 %v484, %v482
      %v537 = vpack.c.b16 %v487, %v485
      %v538 = vpack.c.b16 %v488, %v486
      %v539 = vpack.c.b16 %v491, %v489
      %v540 = vpack.c.b16 %v492, %v490
      %v541 = vpack.c.b16 %v495, %v493
      %v542 = vpack.c.b16 %v496, %v494
      %v543 = vpack.c.b16 %v499, %v497
      %v544 = vpack.c.b16 %v500, %v498
      %v545 = vpack.c.b16 %v503, %v501
      %v546 = vpack.c.b16 %v504, %v502
      %v547 = vpack.c.b16 %v507, %v505
      %v548 = vpack.c.b16 %v508, %v506
      %v549 = vpack.c.b16 %v511, %v509
      %v550 = vpack.c.b16 %v512, %v510
      %v551 = vpack.c.b16 %v515, %v513
      %v552 = vpack.c.b16 %v516, %v514
      %v553 = vpack.c.b16 %v519, %v517
      %v554 = vpack.c.b16 %v520, %v518
      %v555 = vpack.c.b16 %v523, %v521
      %v556 = vpack.c.b16 %v524, %v522
      %v593 = vunpack.c.l.b16 %v409
      %v594 = vunpack.c.l.b16 %v410
      %v595 = vunpack.c.l.b16 %v411
      %v596 = vunpack.c.l.b16 %v412
      %v597 = vunpack.c.l.b16 %v413
      %v598 = vunpack.c.l.b16 %v414
      %v599 = vunpack.c.l.b16 %v415
      %v600 = vunpack.c.l.b16 %v416
      %v601 = vunpack.c.l.b16 %v417
      %v602 = vunpack.c.l.b16 %v418
      %v603 = vunpack.c.l.b16 %v419
      %v604 = vunpack.c.l.b16 %v420
      %v605 = vunpack.c.l.b16 %v421
      %v606 = vunpack.c.l.b16 %v422
      %v607 = vunpack.c.l.b16 %v423
      %v608 = vunpack.c.l.b16 %v424
      %v609 = vunpack.c.l.b16 %v425
      %v610 = vunpack.c.l.b16 %v426
      %v611 = vunpack.c.l.b16 %v427
      %v612 = vunpack.c.l.b16 %v428
      %v613 = vpack.c.b16 %v594, %v593
      %v614 = vpack.c.b16 %v596, %v595
      %v615 = vpack.c.b16 %v598, %v597
      %v616 = vpack.c.b16 %v600, %v599
      %v617 = vpack.c.b16 %v602, %v601
      %v618 = vpack.c.b16 %v604, %v603
      %v619 = vpack.c.b16 %v606, %v605
      %v620 = vpack.c.b16 %v608, %v607
      %v621 = vpack.c.b16 %v610, %v609
      %v622 = vpack.c.b16 %v612, %v611
      %vm633 = vcmask 261120
      %v635 = vsel %vm633, %v526, 0
      %v638 = vsel %vm633, %v528, 0
      %v641 = vsel %vm633, %v530, 0
      %v644 = vsel %vm633, %v532, 0
      %v647 = vsel %vm633, %v534, 0
      %v650 = vsel %vm633, %v536, 0
      %v653 = vsel %vm633, %v538, 0
      %v656 = vsel %vm633, %v540, 0
      %v659 = vsel %vm633, %v542, 0
      %v662 = vsel %vm633, %v544, 0
      %v665 = vsel %vm633, %v546, 0
      %v668 = vsel %vm633, %v548, 0
      %v671 = vsel %vm633, %v550, 0
      %v674 = vsel %vm633, %v552, 0
      %v677 = vsel %vm633, %v554, 0
      %v680 = vsel %vm633, %v556, 0
      %682 = vmatpush.bf16.msra.mxu0 %v620
      %683 = vmatpush.bf16.msra.mxu0 %v619
      %684 = vmatpush.bf16.msra.mxu0 %v618
      %685 = vmatpush.bf16.msra.mxu0 %v617
      %686 = vmatpush.bf16.msra.mxu0 %v616
      %687 = vmatpush.bf16.msra.mxu0 %v615
      %688 = vmatpush.bf16.msra.mxu0 %v614
      %689 = vmatpush.bf16.msra.mxu0 %v613
      %690 = vmatmul.bf16.gmra.mxu0 %v525
      %v691 = vpop.f32.mrf.mxu0
      %v692 = vadd.f32 0.0, %v691
      %v693 = vpop.f32.mrf.mxu0
      %v694 = vadd.f32 0.0, %v693
      %695 = vmatmul.bf16.gmra.mxu0 %v527
      %v696 = vpop.f32.mrf.mxu0
      %v697 = vadd.f32 0.0, %v696
      %v698 = vpop.f32.mrf.mxu0
      %v699 = vadd.f32 0.0, %v698
      %700 = vmatmul.bf16.gmra.mxu0 %v529
      %v701 = vpop.f32.mrf.mxu0
      %v702 = vadd.f32 0.0, %v701
      %v703 = vpop.f32.mrf.mxu0
      %v704 = vadd.f32 0.0, %v703
      %705 = vmatmul.bf16.gmra.mxu0 %v531
      %v706 = vpop.f32.mrf.mxu0
      %v707 = vadd.f32 0.0, %v706
      %v708 = vpop.f32.mrf.mxu0
      %v709 = vadd.f32 0.0, %v708
      %710 = vmatmul.bf16.gmra.mxu0 %v533
      %v711 = vpop.f32.mrf.mxu0
      %v712 = vadd.f32 0.0, %v711
      %v713 = vpop.f32.mrf.mxu0
      %v714 = vadd.f32 0.0, %v713
      %715 = vmatmul.bf16.gmra.mxu0 %v535
      %v716 = vpop.f32.mrf.mxu0
      %v717 = vadd.f32 0.0, %v716
      %v718 = vpop.f32.mrf.mxu0
      %v719 = vadd.f32 0.0, %v718
      %720 = vmatmul.bf16.gmra.mxu0 %v537
      %v721 = vpop.f32.mrf.mxu0
      %v722 = vadd.f32 0.0, %v721
      %v723 = vpop.f32.mrf.mxu0
      %v724 = vadd.f32 0.0, %v723
      %725 = vmatmul.bf16.gmra.mxu0 %v539
      %v726 = vpop.f32.mrf.mxu0
      %v727 = vadd.f32 0.0, %v726
      %v728 = vpop.f32.mrf.mxu0
      %v729 = vadd.f32 0.0, %v728
      %730 = vmatmul.bf16.gmra.mxu0 %v541
      %v731 = vpop.f32.mrf.mxu0
      %v732 = vadd.f32 0.0, %v731
      %v733 = vpop.f32.mrf.mxu0
      %v734 = vadd.f32 0.0, %v733
      %735 = vmatmul.bf16.gmra.mxu0 %v543
      %v736 = vpop.f32.mrf.mxu0
      %v737 = vadd.f32 0.0, %v736
      %v738 = vpop.f32.mrf.mxu0
      %v739 = vadd.f32 0.0, %v738
      %740 = vmatmul.bf16.gmra.mxu0 %v545
      %v741 = vpop.f32.mrf.mxu0
      %v742 = vadd.f32 0.0, %v741
      %v743 = vpop.f32.mrf.mxu0
      %v744 = vadd.f32 0.0, %v743
      %745 = vmatmul.bf16.gmra.mxu0 %v547
      %v746 = vpop.f32.mrf.mxu0
      %v747 = vadd.f32 0.0, %v746
      %v748 = vpop.f32.mrf.mxu0
      %v749 = vadd.f32 0.0, %v748
      %750 = vmatmul.bf16.gmra.mxu0 %v549
      %v751 = vpop.f32.mrf.mxu0
      %v752 = vadd.f32 0.0, %v751
      %v753 = vpop.f32.mrf.mxu0
      %v754 = vadd.f32 0.0, %v753
      %755 = vmatmul.bf16.gmra.mxu0 %v551
      %v756 = vpop.f32.mrf.mxu0
      %v757 = vadd.f32 0.0, %v756
      %v758 = vpop.f32.mrf.mxu0
      %v759 = vadd.f32 0.0, %v758
      %760 = vmatmul.bf16.gmra.mxu0 %v553
      %v761 = vpop.f32.mrf.mxu0
      %v762 = vadd.f32 0.0, %v761
      %v763 = vpop.f32.mrf.mxu0
      %v764 = vadd.f32 0.0, %v763
      %765 = vmatmul.bf16.gmra.mxu0 %v555
      %v766 = vpop.f32.mrf.mxu0
      %v767 = vadd.f32 0.0, %v766
      %v768 = vpop.f32.mrf.mxu0
      %v769 = vadd.f32 0.0, %v768
      %770 = vdwg.mxu0
      %771 = vmatpush.bf16.msra.mxu0 0
      %772 = vmatpush.bf16.msra.mxu0 0
      %773 = vmatpush.bf16.msra.mxu0 0
      %774 = vmatpush.bf16.msra.mxu0 0
      %775 = vmatpush.bf16.msra.mxu0 0
      %776 = vmatpush.bf16.msra.mxu0 0
      %777 = vmatpush.bf16.msra.mxu0 %v622
      %778 = vmatpush.bf16.msra.mxu0 %v621
      %779 = vmatmul.bf16.gmra.mxu0 %v635
      %v780 = vpop.f32.mrf.mxu0
      %v781 = vadd.f32 %v692, %v780
      %v782 = vpop.f32.mrf.mxu0
      %v783 = vadd.f32 %v694, %v782
      %784 = vmatmul.bf16.gmra.mxu0 %v638
      %v785 = vpop.f32.mrf.mxu0
      %v786 = vadd.f32 %v697, %v785
      %v787 = vpop.f32.mrf.mxu0
      %v788 = vadd.f32 %v699, %v787
      %789 = vmatmul.bf16.gmra.mxu0 %v641
      %v790 = vpop.f32.mrf.mxu0
      %v791 = vadd.f32 %v702, %v790
      %v792 = vpop.f32.mrf.mxu0
      %v793 = vadd.f32 %v704, %v792
      %794 = vmatmul.bf16.gmra.mxu0 %v644
      %v795 = vpop.f32.mrf.mxu0
      %v796 = vadd.f32 %v707, %v795
      %v797 = vpop.f32.mrf.mxu0
      %v798 = vadd.f32 %v709, %v797
      %799 = vmatmul.bf16.gmra.mxu0 %v647
      %v800 = vpop.f32.mrf.mxu0
      %v801 = vadd.f32 %v712, %v800
      %v802 = vpop.f32.mrf.mxu0
      %v803 = vadd.f32 %v714, %v802
      %804 = vmatmul.bf16.gmra.mxu0 %v650
      %v805 = vpop.f32.mrf.mxu0
      %v806 = vadd.f32 %v717, %v805
      %v807 = vpop.f32.mrf.mxu0
      %v808 = vadd.f32 %v719, %v807
      %809 = vmatmul.bf16.gmra.mxu0 %v653
      %v810 = vpop.f32.mrf.mxu0
      %v811 = vadd.f32 %v722, %v810
      %v812 = vpop.f32.mrf.mxu0
      %v813 = vadd.f32 %v724, %v812
      %814 = vmatmul.bf16.gmra.mxu0 %v656
      %v815 = vpop.f32.mrf.mxu0
      %v816 = vadd.f32 %v727, %v815
      %v817 = vpop.f32.mrf.mxu0
      %v818 = vadd.f32 %v729, %v817
      %819 = vmatmul.bf16.gmra.mxu0 %v659
      %v820 = vpop.f32.mrf.mxu0
      %v821 = vadd.f32 %v732, %v820
      %v822 = vpop.f32.mrf.mxu0
      %v823 = vadd.f32 %v734, %v822
      %824 = vmatmul.bf16.gmra.mxu0 %v662
      %v825 = vpop.f32.mrf.mxu0
      %v826 = vadd.f32 %v737, %v825
      %v827 = vpop.f32.mrf.mxu0
      %v828 = vadd.f32 %v739, %v827
      %829 = vmatmul.bf16.gmra.mxu0 %v665
      %v830 = vpop.f32.mrf.mxu0
      %v831 = vadd.f32 %v742, %v830
      %v832 = vpop.f32.mrf.mxu0
      %v833 = vadd.f32 %v744, %v832
      %834 = vmatmul.bf16.gmra.mxu0 %v668
      %v835 = vpop.f32.mrf.mxu0
      %v836 = vadd.f32 %v747, %v835
      %v837 = vpop.f32.mrf.mxu0
      %v838 = vadd.f32 %v749, %v837
      %839 = vmatmul.bf16.gmra.mxu0 %v671
      %v840 = vpop.f32.mrf.mxu0
      %v841 = vadd.f32 %v752, %v840
      %v842 = vpop.f32.mrf.mxu0
      %v843 = vadd.f32 %v754, %v842
      %844 = vmatmul.bf16.gmra.mxu0 %v674
      %v845 = vpop.f32.mrf.mxu0
      %v846 = vadd.f32 %v757, %v845
      %v847 = vpop.f32.mrf.mxu0
      %v848 = vadd.f32 %v759, %v847
      %849 = vmatmul.bf16.gmra.mxu0 %v677
      %v850 = vpop.f32.mrf.mxu0
      %v851 = vadd.f32 %v762, %v850
      %v852 = vpop.f32.mrf.mxu0
      %v853 = vadd.f32 %v764, %v852
      %854 = vmatmul.bf16.gmra.mxu0 %v680
      %v855 = vpop.f32.mrf.mxu0
      %v856 = vadd.f32 %v767, %v855
      %v857 = vpop.f32.mrf.mxu0
      %v858 = vadd.f32 %v769, %v857
      %859 = vdwg.mxu0
      %v860 = vadd.f32 %v345, %v781
      %v861 = vadd.f32 %v346, %v783
      %v862 = vadd.f32 %v347, %v786
      %v863 = vadd.f32 %v348, %v788
      %v864 = vadd.f32 %v349, %v791
      %v865 = vadd.f32 %v350, %v793
      %v866 = vadd.f32 %v351, %v796
      %v867 = vadd.f32 %v352, %v798
      %v868 = vadd.f32 %v353, %v801
      %v869 = vadd.f32 %v354, %v803
      %v870 = vadd.f32 %v355, %v806
      %v871 = vadd.f32 %v356, %v808
      %v872 = vadd.f32 %v357, %v811
      %v873 = vadd.f32 %v358, %v813
      %v874 = vadd.f32 %v359, %v816
      %v875 = vadd.f32 %v360, %v818
      %v876 = vadd.f32 %v361, %v821
      %v877 = vadd.f32 %v362, %v823
      %v878 = vadd.f32 %v363, %v826
      %v879 = vadd.f32 %v364, %v828
      %v880 = vadd.f32 %v365, %v831
      %v881 = vadd.f32 %v366, %v833
      %v882 = vadd.f32 %v367, %v836
      %v883 = vadd.f32 %v368, %v838
      %v884 = vadd.f32 %v369, %v841
      %v885 = vadd.f32 %v370, %v843
      %v886 = vadd.f32 %v371, %v846
      %v887 = vadd.f32 %v372, %v848
      %v888 = vadd.f32 %v373, %v851
      %v889 = vadd.f32 %v374, %v853
      %v890 = vadd.f32 %v375, %v856
      %v891 = vadd.f32 %v376, %v858
      %892 = vst [vmem:[#allocation2] sm:$0xff] %v860
      %893 = vst [vmem:[#allocation2 + $0x8] sm:$0xff] %v861
      %894 = vst [vmem:[#allocation2 + $0x10] sm:$0xff] %v862
      %895 = vst [vmem:[#allocation2 + $0x18] sm:$0xff] %v863
      %896 = vst [vmem:[#allocation2 + $0x20] sm:$0xff] %v864
      %897 = vst [vmem:[#allocation2 + $0x28] sm:$0xff] %v865
      %898 = vst [vmem:[#allocation2 + $0x30] sm:$0xff] %v866
      %899 = vst [vmem:[#allocation2 + $0x38] sm:$0xff] %v867
      %900 = vst [vmem:[#allocation2 + $0x40] sm:$0xff] %v868
      %901 = vst [vmem:[#allocation2 + $0x48] sm:$0xff] %v869
      %902 = vst [vmem:[#allocation2 + $0x50] sm:$0xff] %v870
      %903 = vst [vmem:[#allocation2 + $0x58] sm:$0xff] %v871
      %904 = vst [vmem:[#allocation2 + $0x60] sm:$0xff] %v872
      %905 = vst [vmem:[#allocation2 + $0x68] sm:$0xff] %v873
      %906 = vst [vmem:[#allocation2 + $0x70] sm:$0xff] %v874
      %907 = vst [vmem:[#allocation2 + $0x78] sm:$0xff] %v875
      %908 = vst [vmem:[#allocation2 + $0x80] sm:$0xff] %v876
      %909 = vst [vmem:[#allocation2 + $0x88] sm:$0xff] %v877
      %910 = vst [vmem:[#allocation2 + $0x90] sm:$0xff] %v878
      %911 = vst [vmem:[#allocation2 + $0x98] sm:$0xff] %v879
      %912 = vst [vmem:[#allocation2 + $0xa0] sm:$0xff] %v880
      %913 = vst [vmem:[#allocation2 + $0xa8] sm:$0xff] %v881
      %914 = vst [vmem:[#allocation2 + $0xb0] sm:$0xff] %v882
      %915 = vst [vmem:[#allocation2 + $0xb8] sm:$0xff] %v883
      %916 = vst [vmem:[#allocation2 + $0xc0] sm:$0xff] %v884
      %917 = vst [vmem:[#allocation2 + $0xc8] sm:$0xff] %v885
      %918 = vst [vmem:[#allocation2 + $0xd0] sm:$0xff] %v886
      %919 = vst [vmem:[#allocation2 + $0xd8] sm:$0xff] %v887
      %920 = vst [vmem:[#allocation2 + $0xe0] sm:$0xff] %v888
      %921 = vst [vmem:[#allocation2 + $0xe8] sm:$0xff] %v889
      %922 = vst [vmem:[#allocation2 + $0xf0] sm:$0xff] %v890
      %923 = vst [vmem:[#allocation2 + $0xf8] sm:$0xff] %v891
      // Predicated region
      $region41: #{cotrain_forward.16} parent=35 // pred_check
        %p924 = pneg %p309
      $region42: #{cotrain_forward.16} parent=35 // pred_check_branch
        %926 = sbr.rel (%p924) target = $region44
      $region43: #{cotrain_forward.16} parent=35 // pred_region
        %v927 = vld [vmem:[#allocation2] sm:$0xff]
        %v928 = vld [vmem:[#allocation2 + $0x8] sm:$0xff]
        %v929 = vld [vmem:[#allocation2 + $0x10] sm:$0xff]
        %v930 = vld [vmem:[#allocation2 + $0x18] sm:$0xff]
        %v931 = vld [vmem:[#allocation2 + $0x20] sm:$0xff]
        %v932 = vld [vmem:[#allocation2 + $0x28] sm:$0xff]
        %v933 = vld [vmem:[#allocation2 + $0x30] sm:$0xff]
        %v934 = vld [vmem:[#allocation2 + $0x38] sm:$0xff]
        %v935 = vld [vmem:[#allocation2 + $0x40] sm:$0xff]
        %v936 = vld [vmem:[#allocation2 + $0x48] sm:$0xff]
        %v937 = vld [vmem:[#allocation2 + $0x50] sm:$0xff]
        %v938 = vld [vmem:[#allocation2 + $0x58] sm:$0xff]
        %v939 = vld [vmem:[#allocation2 + $0x60] sm:$0xff]
        %v940 = vld [vmem:[#allocation2 + $0x68] sm:$0xff]
        %v941 = vld [vmem:[#allocation2 + $0x70] sm:$0xff]
        %v942 = vld [vmem:[#allocation2 + $0x78] sm:$0xff]
        %v943 = vld [vmem:[#allocation2 + $0x80] sm:$0xff]
        %v944 = vld [vmem:[#allocation2 + $0x88] sm:$0xff]
        %v945 = vld [vmem:[#allocation2 + $0x90] sm:$0xff]
        %v946 = vld [vmem:[#allocation2 + $0x98] sm:$0xff]
        %v947 = vld [vmem:[#allocation2 + $0xa0] sm:$0xff]
        %v948 = vld [vmem:[#allocation2 + $0xa8] sm:$0xff]
        %v949 = vld [vmem:[#allocation2 + $0xb0] sm:$0xff]
        %v950 = vld [vmem:[#allocation2 + $0xb8] sm:$0xff]
        %v951 = vld [vmem:[#allocation2 + $0xc0] sm:$0xff]
        %v952 = vld [vmem:[#allocation2 + $0xc8] sm:$0xff]
        %v953 = vld [vmem:[#allocation2 + $0xd0] sm:$0xff]
        %v954 = vld [vmem:[#allocation2 + $0xd8] sm:$0xff]
        %v955 = vld [vmem:[#allocation2 + $0xe0] sm:$0xff]
        %v956 = vld [vmem:[#allocation2 + $0xe8] sm:$0xff]
        %v957 = vld [vmem:[#allocation2 + $0xf0] sm:$0xff]
        %v958 = vld [vmem:[#allocation2 + $0xf8] sm:$0xff]
        %v959 = vld [vmem:[%s295] sm:$0x1]
        %v961 = vperm.slane %v959, 0
        %v963 = vmul.f32 %v927, %v961
        %v964 = vmul.f32 %v928, %v961
        %v965 = vmul.f32 %v929, %v961
        %v966 = vmul.f32 %v930, %v961
        %v967 = vmul.f32 %v931, %v961
        %v968 = vmul.f32 %v932, %v961
        %v969 = vmul.f32 %v933, %v961
        %v970 = vmul.f32 %v934, %v961
        %v971 = vmul.f32 %v935, %v961
        %v972 = vmul.f32 %v936, %v961
        %v973 = vmul.f32 %v937, %v961
        %v974 = vmul.f32 %v938, %v961
        %v975 = vmul.f32 %v939, %v961
        %v976 = vmul.f32 %v940, %v961
        %v977 = vmul.f32 %v941, %v961
        %v978 = vmul.f32 %v942, %v961
        %v979 = vmul.f32 %v943, %v961
        %v980 = vmul.f32 %v944, %v961
        %v981 = vmul.f32 %v945, %v961
        %v982 = vmul.f32 %v946, %v961
        %v983 = vmul.f32 %v947, %v961
        %v984 = vmul.f32 %v948, %v961
        %v985 = vmul.f32 %v949, %v961
        %v986 = vmul.f32 %v950, %v961
        %v987 = vmul.f32 %v951, %v961
        %v988 = vmul.f32 %v952, %v961
        %v989 = vmul.f32 %v953, %v961
        %v990 = vmul.f32 %v954, %v961
        %v991 = vmul.f32 %v955, %v961
        %v992 = vmul.f32 %v956, %v961
        %v993 = vmul.f32 %v957, %v961
        %v994 = vmul.f32 %v958, %v961
        %v995 = vld [vmem:[%s298] sm:$0x1]
        %v997 = vperm.slane %v995, 0
        %v999 = vadd.f32 %v963, %v997
        %v1000 = vadd.f32 %v964, %v997
        %v1001 = vadd.f32 %v965, %v997
        %v1002 = vadd.f32 %v966, %v997
        %v1003 = vadd.f32 %v967, %v997
        %v1004 = vadd.f32 %v968, %v997
        %v1005 = vadd.f32 %v969, %v997
        %v1006 = vadd.f32 %v970, %v997
        %v1007 = vadd.f32 %v971, %v997
        %v1008 = vadd.f32 %v972, %v997
        %v1009 = vadd.f32 %v973, %v997
        %v1010 = vadd.f32 %v974, %v997
        %v1011 = vadd.f32 %v975, %v997
        %v1012 = vadd.f32 %v976, %v997
        %v1013 = vadd.f32 %v977, %v997
        %v1014 = vadd.f32 %v978, %v997
        %v1015 = vadd.f32 %v979, %v997
        %v1016 = vadd.f32 %v980, %v997
        %v1017 = vadd.f32 %v981, %v997
        %v1018 = vadd.f32 %v982, %v997
        %v1019 = vadd.f32 %v983, %v997
        %v1020 = vadd.f32 %v984, %v997
        %v1021 = vadd.f32 %v985, %v997
        %v1022 = vadd.f32 %v986, %v997
        %v1023 = vadd.f32 %v987, %v997
        %v1024 = vadd.f32 %v988, %v997
        %v1025 = vadd.f32 %v989, %v997
        %v1026 = vadd.f32 %v990, %v997
        %v1027 = vadd.f32 %v991, %v997
        %v1028 = vadd.f32 %v992, %v997
        %v1029 = vadd.f32 %v993, %v997
        %v1030 = vadd.f32 %v994, %v997
        %v1031 = vmax.f32 %v999, 0.0
        %v1032 = vmax.f32 %v1000, 0.0
        %v1033 = vmax.f32 %v1001, 0.0
        %v1034 = vmax.f32 %v1002, 0.0
        %v1035 = vmax.f32 %v1003, 0.0
        %v1036 = vmax.f32 %v1004, 0.0
        %v1037 = vmax.f32 %v1005, 0.0
        %v1038 = vmax.f32 %v1006, 0.0
        %v1039 = vmax.f32 %v1007, 0.0
        %v1040 = vmax.f32 %v1008, 0.0
        %v1041 = vmax.f32 %v1009, 0.0
        %v1042 = vmax.f32 %v1010, 0.0
        %v1043 = vmax.f32 %v1011, 0.0
        %v1044 = vmax.f32 %v1012, 0.0
        %v1045 = vmax.f32 %v1013, 0.0
        %v1046 = vmax.f32 %v1014, 0.0
        %v1047 = vmax.f32 %v1015, 0.0
        %v1048 = vmax.f32 %v1016, 0.0
        %v1049 = vmax.f32 %v1017, 0.0
        %v1050 = vmax.f32 %v1018, 0.0
        %v1051 = vmax.f32 %v1019, 0.0
        %v1052 = vmax.f32 %v1020, 0.0
        %v1053 = vmax.f32 %v1021, 0.0
        %v1054 = vmax.f32 %v1022, 0.0
        %v1055 = vmax.f32 %v1023, 0.0
        %v1056 = vmax.f32 %v1024, 0.0
        %v1057 = vmax.f32 %v1025, 0.0
        %v1058 = vmax.f32 %v1026, 0.0
        %v1059 = vmax.f32 %v1027, 0.0
        %v1060 = vmax.f32 %v1028, 0.0
        %v1061 = vmax.f32 %v1029, 0.0
        %v1062 = vmax.f32 %v1030, 0.0
        %v1063 = vpack.c.bf16 %v1031, %v1031
        %v1064 = vpack.c.bf16 %v1032, %v1032
        %v1065 = vpack.c.bf16 %v1033, %v1033
        %v1066 = vpack.c.bf16 %v1034, %v1034
        %v1067 = vpack.c.bf16 %v1035, %v1035
        %v1068 = vpack.c.bf16 %v1036, %v1036
        %v1069 = vpack.c.bf16 %v1037, %v1037
        %v1070 = vpack.c.bf16 %v1038, %v1038
        %v1071 = vpack.c.bf16 %v1039, %v1039
        %v1072 = vpack.c.bf16 %v1040, %v1040
        %v1073 = vpack.c.bf16 %v1041, %v1041
        %v1074 = vpack.c.bf16 %v1042, %v1042
        %v1075 = vpack.c.bf16 %v1043, %v1043
        %v1076 = vpack.c.bf16 %v1044, %v1044
        %v1077 = vpack.c.bf16 %v1045, %v1045
        %v1078 = vpack.c.bf16 %v1046, %v1046
        %v1079 = vpack.c.bf16 %v1047, %v1047
        %v1080 = vpack.c.bf16 %v1048, %v1048
        %v1081 = vpack.c.bf16 %v1049, %v1049
        %v1082 = vpack.c.bf16 %v1050, %v1050
        %v1083 = vpack.c.bf16 %v1051, %v1051
        %v1084 = vpack.c.bf16 %v1052, %v1052
        %v1085 = vpack.c.bf16 %v1053, %v1053
        %v1086 = vpack.c.bf16 %v1054, %v1054
        %v1087 = vpack.c.bf16 %v1055, %v1055
        %v1088 = vpack.c.bf16 %v1056, %v1056
        %v1089 = vpack.c.bf16 %v1057, %v1057
        %v1090 = vpack.c.bf16 %v1058, %v1058
        %v1091 = vpack.c.bf16 %v1059, %v1059
        %v1092 = vpack.c.bf16 %v1060, %v1060
        %v1093 = vpack.c.bf16 %v1061, %v1061
        %v1094 = vpack.c.bf16 %v1062, %v1062
        %1095 = vst [vmem:[%s306] sm:$0xf] %v1063
        %1096 = vst [vmem:[%s306 + $0x4] sm:$0xf] %v1064
        %1097 = vst [vmem:[%s306 + $0x8] sm:$0xf] %v1065
        %1098 = vst [vmem:[%s306 + $0xc] sm:$0xf] %v1066
        %1099 = vst [vmem:[%s306 + $0x10] sm:$0xf] %v1067
        %1100 = vst [vmem:[%s306 + $0x14] sm:$0xf] %v1068
        %1101 = vst [vmem:[%s306 + $0x18] sm:$0xf] %v1069
        %1102 = vst [vmem:[%s306 + $0x1c] sm:$0xf] %v1070
        %1103 = vst [vmem:[%s306 + $0x20] sm:$0xf] %v1071
        %1104 = vst [vmem:[%s306 + $0x24] sm:$0xf] %v1072
        %1105 = vst [vmem:[%s306 + $0x28] sm:$0xf] %v1073
        %1106 = vst [vmem:[%s306 + $0x2c] sm:$0xf] %v1074
        %1107 = vst [vmem:[%s306 + $0x30] sm:$0xf] %v1075
        %1108 = vst [vmem:[%s306 + $0x34] sm:$0xf] %v1076
        %1109 = vst [vmem:[%s306 + $0x38] sm:$0xf] %v1077
        %1110 = vst [vmem:[%s306 + $0x3c] sm:$0xf] %v1078
        %1111 = vst [vmem:[%s306 + $0x40] sm:$0xf] %v1079
        %1112 = vst [vmem:[%s306 + $0x44] sm:$0xf] %v1080
        %1113 = vst [vmem:[%s306 + $0x48] sm:$0xf] %v1081
        %1114 = vst [vmem:[%s306 + $0x4c] sm:$0xf] %v1082
        %1115 = vst [vmem:[%s306 + $0x50] sm:$0xf] %v1083
        %1116 = vst [vmem:[%s306 + $0x54] sm:$0xf] %v1084
        %1117 = vst [vmem:[%s306 + $0x58] sm:$0xf] %v1085
        %1118 = vst [vmem:[%s306 + $0x5c] sm:$0xf] %v1086
        %1119 = vst [vmem:[%s306 + $0x60] sm:$0xf] %v1087
        %1120 = vst [vmem:[%s306 + $0x64] sm:$0xf] %v1088
        %1121 = vst [vmem:[%s306 + $0x68] sm:$0xf] %v1089
        %1122 = vst [vmem:[%s306 + $0x6c] sm:$0xf] %v1090
        %1123 = vst [vmem:[%s306 + $0x70] sm:$0xf] %v1091
        %1124 = vst [vmem:[%s306 + $0x74] sm:$0xf] %v1092
        %1125 = vst [vmem:[%s306 + $0x78] sm:$0xf] %v1093
        %1126 = vst [vmem:[%s306 + $0x7c] sm:$0xf] %v1094
      $region44: #{cotrain_forward.16} parent=35 // pred_fallthru
        _
      %s1127 = smul.u32 32, %s20
      %p1128 = scmp.lt.s32.totalorder %s1127, 63
      %s1129 = scalar_select %p1128, %s1127, 63
      %p1130 = scmp.lt.s32.totalorder %s21, 0
      %s1131 = scalar_select %p1130, %s21, 0
      %s1132 = sadd.s32 %s1131, %s1129
      %s1133 = smul.addr %s1132, 4
      %s1134 = scalar_lea.vmem %s4, %s1133
      // Predicated region
      $region45: #{cotrain_forward.16} parent=35 // pred_check
        %p1135 = pneg %p162
      $region46: #{cotrain_forward.16} parent=35 // pred_check_branch
        %1137 = sbr.rel (%p1135) target = $region48
      $region47: #{cotrain_forward.16} parent=35 // pred_region
        %s1138 = smul.u32 32, %s20
      $region48: #{cotrain_forward.16} parent=35 // pred_fallthru
        _
    $region36: #{cotrain_forward.16} parent=5 // pred_fallthru
      _
    %p1139 = scmp.le.s32.totalorder 2, %s10
    // Predicated region
    $region49: #{cotrain_forward.16} parent=5 // pred_check
      %p1140 = pneg %p1139
    $region50: #{cotrain_forward.16} parent=5 // pred_check_branch
      %1142 = sbr.rel (%p1140) target = $region52
    $region51: #{cotrain_forward.16} parent=5 // pred_region
      %s1143 = ssub.s32 %s10, 2
      // Predicated region
      $region53: #{cotrain_forward.16} parent=51 // pred_check
        %p1144 = pneg %p168
      $region54: #{cotrain_forward.16} parent=51 // pred_check_branch
        %1146 = sbr.rel (%p1144) target = $region56
      $region55: #{cotrain_forward.16} parent=51 // pred_region
        %s1147 = smul.u32 32, %s23
        %p1148 = scmp.lt.s32.totalorder %s1147, 63
        %s1149 = scalar_select %p1148, %s1147, 63
        %p1150 = scmp.lt.s32.totalorder %s24, 0
        %s1151 = scalar_select %p1150, %s24, 0
        %s1152 = sadd.s32 %s1151, %s1149
        %s1153 = smul.addr %s1152, 4
        %s1154 = scalar_lea.vmem %s4, %s1153
      $region56: #{cotrain_forward.16} parent=51 // pred_fallthru
        _
    $region52: #{cotrain_forward.16} parent=5 // pred_fallthru
      _
  $region6: #{cotrain_forward.16} parent=0 // loop_footer
    %s14 = sadd.s32 1, %s10
  $region7: #{cotrain_forward.16} parent=0 // loop_footer_branch
    %9 = sbr.rel target = $region3
  $region8: #{cotrain_forward.16} parent=0 // loop_exit
    _

// kernel: cotrain_forward.17
$region0: #{cotrain_forward.17}
  #allocation0 [shape = 'u32[]', space=smem, size = 0x4, offset = 0x4, fixed_abs, tag = 'smem constant byte address 0x4 - core index']
  #allocation1 [shape = 'u32[72,128]{1,0:T(1,128)}', space=vmem, size = 0x9000, scoped, tag = 'internal scratch']
  %s0 = inlined_call_operand.vmem [shape: bf16[4,2,9,9,16], index: 0, kind: input, shape index: {}]
  %s1 = inlined_call_operand.vmem [shape: bf16[2,8,8,16], index: 1, kind: output, shape index: {}]
  %s2 = sld [smem:[#allocation0]]
  $region14: #{cotrain_forward.17} parent=0
    _
  %s4 = ssub.s32 1, %s2
  %s5 = scalar_select 0, %s4, %s2
  // Predicated region
  $region2: #{cotrain_forward.17} parent=0 // pred_check
    _
  $region3: #{cotrain_forward.17} parent=0 // pred_check_branch
    %7 = sbr.rel (0) target = $region5
  $region4: #{cotrain_forward.17} parent=0 // pred_region
    _
  $region5: #{cotrain_forward.17} parent=0 // pred_fallthru
    _
  %v8 = vld [vmem:[%s0] sm:$0xf]
  %v9 = vld [vmem:[%s0 + $0x4] sm:$0x1]
  %v10 = vld [vmem:[%s0 + $0x8] sm:$0xf]
  %v11 = vld [vmem:[%s0 + $0xc] sm:$0x1]
  %v12 = vld [vmem:[%s0 + $0x10] sm:$0xf]
  %v13 = vld [vmem:[%s0 + $0x14] sm:$0x1]
  %v14 = vld [vmem:[%s0 + $0x18] sm:$0xf]
  %v15 = vld [vmem:[%s0 + $0x1c] sm:$0x1]
  %v16 = vld [vmem:[%s0 + $0x20] sm:$0xf]
  %v17 = vld [vmem:[%s0 + $0x24] sm:$0x1]
  %v18 = vld [vmem:[%s0 + $0x28] sm:$0xf]
  %v19 = vld [vmem:[%s0 + $0x2c] sm:$0x1]
  %v20 = vld [vmem:[%s0 + $0x30] sm:$0xf]
  %v21 = vld [vmem:[%s0 + $0x34] sm:$0x1]
  %v22 = vld [vmem:[%s0 + $0x38] sm:$0xf]
  %v23 = vld [vmem:[%s0 + $0x3c] sm:$0x1]
  %v24 = vld [vmem:[%s0 + $0x40] sm:$0xf]
  %v25 = vld [vmem:[%s0 + $0x44] sm:$0x1]
  %v26 = vld [vmem:[%s0 + $0x48] sm:$0xf]
  %v27 = vld [vmem:[%s0 + $0x4c] sm:$0x1]
  %v28 = vld [vmem:[%s0 + $0x50] sm:$0xf]
  %v29 = vld [vmem:[%s0 + $0x54] sm:$0x1]
  %v30 = vld [vmem:[%s0 + $0x58] sm:$0xf]
  %v31 = vld [vmem:[%s0 + $0x5c] sm:$0x1]
  %v32 = vld [vmem:[%s0 + $0x60] sm:$0xf]
  %v33 = vld [vmem:[%s0 + $0x64] sm:$0x1]
  %v34 = vld [vmem:[%s0 + $0x68] sm:$0xf]
  %v35 = vld [vmem:[%s0 + $0x6c] sm:$0x1]
  %v36 = vld [vmem:[%s0 + $0x70] sm:$0xf]
  %v37 = vld [vmem:[%s0 + $0x74] sm:$0x1]
  %v38 = vld [vmem:[%s0 + $0x78] sm:$0xf]
  %v39 = vld [vmem:[%s0 + $0x7c] sm:$0x1]
  %v40 = vld [vmem:[%s0 + $0x80] sm:$0xf]
  %v41 = vld [vmem:[%s0 + $0x84] sm:$0x1]
  %v42 = vld [vmem:[%s0 + $0x88] sm:$0xf]
  %v43 = vld [vmem:[%s0 + $0x8c] sm:$0x1]
  %v44 = vld [vmem:[%s0 + $0x90] sm:$0xf]
  %v45 = vld [vmem:[%s0 + $0x98] sm:$0xf]
  %v46 = vld [vmem:[%s0 + $0xa0] sm:$0xf]
  %v47 = vld [vmem:[%s0 + $0xa8] sm:$0xf]
  %v48 = vld [vmem:[%s0 + $0xb0] sm:$0xf]
  %v49 = vld [vmem:[%s0 + $0xb8] sm:$0xf]
  %v50 = vld [vmem:[%s0 + $0xc0] sm:$0xf]
  %v51 = vld [vmem:[%s0 + $0xc8] sm:$0xf]
  %v52 = vld [vmem:[%s0 + $0xd0] sm:$0xf]
  %v53 = vld [vmem:[%s0 + $0xd8] sm:$0xf]
  %v54 = vld [vmem:[%s0 + $0xe0] sm:$0xf]
  %v55 = vld [vmem:[%s0 + $0xe8] sm:$0xf]
  %v56 = vld [vmem:[%s0 + $0xf0] sm:$0xf]
  %v57 = vld [vmem:[%s0 + $0xf8] sm:$0xf]
  %v58 = vld [vmem:[%s0 + $0x100] sm:$0xf]
  %v59 = vld [vmem:[%s0 + $0x108] sm:$0xf]
  %v60 = vld [vmem:[%s0 + $0x110] sm:$0xf]
  %v61 = vld [vmem:[%s0 + $0x118] sm:$0xf]
  %v62 = vld [vmem:[%s0 + $0x120] sm:$0xf]
  %v63 = vld [vmem:[%s0 + $0x124] sm:$0x1]
  %v64 = vld [vmem:[%s0 + $0x128] sm:$0xf]
  %v65 = vld [vmem:[%s0 + $0x12c] sm:$0x1]
  %v66 = vld [vmem:[%s0 + $0x130] sm:$0xf]
  %v67 = vld [vmem:[%s0 + $0x134] sm:$0x1]
  %v68 = vld [vmem:[%s0 + $0x138] sm:$0xf]
  %v69 = vld [vmem:[%s0 + $0x13c] sm:$0x1]
  %v70 = vld [vmem:[%s0 + $0x140] sm:$0xf]
  %v71 = vld [vmem:[%s0 + $0x144] sm:$0x1]
  %v72 = vld [vmem:[%s0 + $0x148] sm:$0xf]
  %v73 = vld [vmem:[%s0 + $0x14c] sm:$0x1]
  %v74 = vld [vmem:[%s0 + $0x150] sm:$0xf]
  %v75 = vld [vmem:[%s0 + $0x154] sm:$0x1]
  %v76 = vld [vmem:[%s0 + $0x158] sm:$0xf]
  %v77 = vld [vmem:[%s0 + $0x15c] sm:$0x1]
  %v78 = vld [vmem:[%s0 + $0x168] sm:$0xf]
  %v79 = vld [vmem:[%s0 + $0x16c] sm:$0x1]
  %v80 = vld [vmem:[%s0 + $0x170] sm:$0xf]
  %v81 = vld [vmem:[%s0 + $0x174] sm:$0x1]
  %v82 = vld [vmem:[%s0 + $0x178] sm:$0xf]
  %v83 = vld [vmem:[%s0 + $0x17c] sm:$0x1]
  %v84 = vld [vmem:[%s0 + $0x180] sm:$0xf]
  %v85 = vld [vmem:[%s0 + $0x184] sm:$0x1]
  %v86 = vld [vmem:[%s0 + $0x188] sm:$0xf]
  %v87 = vld [vmem:[%s0 + $0x18c] sm:$0x1]
  %v88 = vld [vmem:[%s0 + $0x190] sm:$0xf]
  %v89 = vld [vmem:[%s0 + $0x194] sm:$0x1]
  %v90 = vld [vmem:[%s0 + $0x198] sm:$0xf]
  %v91 = vld [vmem:[%s0 + $0x19c] sm:$0x1]
  %v92 = vld [vmem:[%s0 + $0x1a0] sm:$0xf]
  %v93 = vld [vmem:[%s0 + $0x1a4] sm:$0x1]
  %v94 = vld [vmem:[%s0 + $0x1b0] sm:$0xf]
  %v95 = vld [vmem:[%s0 + $0x1b8] sm:$0xf]
  %v96 = vld [vmem:[%s0 + $0x1c0] sm:$0xf]
  %v97 = vld [vmem:[%s0 + $0x1c8] sm:$0xf]
  %v98 = vld [vmem:[%s0 + $0x1d0] sm:$0xf]
  %v99 = vld [vmem:[%s0 + $0x1d8] sm:$0xf]
  %v100 = vld [vmem:[%s0 + $0x1e0] sm:$0xf]
  %v101 = vld [vmem:[%s0 + $0x1e8] sm:$0xf]
  %v102 = vld [vmem:[%s0 + $0x1f8] sm:$0xf]
  %v103 = vld [vmem:[%s0 + $0x200] sm:$0xf]
  %v104 = vld [vmem:[%s0 + $0x208] sm:$0xf]
  %v105 = vld [vmem:[%s0 + $0x210] sm:$0xf]
  %v106 = vld [vmem:[%s0 + $0x218] sm:$0xf]
  %v107 = vld [vmem:[%s0 + $0x220] sm:$0xf]
  %v108 = vld [vmem:[%s0 + $0x228] sm:$0xf]
  %v109 = vld [vmem:[%s0 + $0x230] sm:$0xf]
  %v110 = vunpack.c.l.bf16 %v8
  %v111 = vunpack.c.l.bf16 %v10
  %v112 = vunpack.c.l.bf16 %v12
  %v113 = vunpack.c.l.bf16 %v14
  %v114 = vunpack.c.l.bf16 %v16
  %v115 = vunpack.c.l.bf16 %v18
  %v116 = vunpack.c.l.bf16 %v20
  %v117 = vunpack.c.l.bf16 %v22
  %v118 = vunpack.c.l.bf16 %v26
  %v119 = vunpack.c.l.bf16 %v28
  %v120 = vunpack.c.l.bf16 %v30
  %v121 = vunpack.c.l.bf16 %v32
  %v122 = vunpack.c.l.bf16 %v34
  %v123 = vunpack.c.l.bf16 %v36
  %v124 = vunpack.c.l.bf16 %v38
  %v125 = vunpack.c.l.bf16 %v40
  %v126 = vunpack.c.l.bf16 %v44
  %v127 = vunpack.c.l.bf16 %v45
  %v128 = vunpack.c.l.bf16 %v46
  %v129 = vunpack.c.l.bf16 %v47
  %v130 = vunpack.c.l.bf16 %v48
  %v131 = vunpack.c.l.bf16 %v49
  %v132 = vunpack.c.l.bf16 %v50
  %v133 = vunpack.c.l.bf16 %v51
  %v134 = vunpack.c.l.bf16 %v53
  %v135 = vunpack.c.l.bf16 %v54
  %v136 = vunpack.c.l.bf16 %v55
  %v137 = vunpack.c.l.bf16 %v56
  %v138 = vunpack.c.l.bf16 %v57
  %v139 = vunpack.c.l.bf16 %v58
  %v140 = vunpack.c.l.bf16 %v59
  %v141 = vunpack.c.l.bf16 %v60
  %v142 = vmax.f32 %v110, %v126
  %v143 = vmax.f32 %v111, %v127
  %v144 = vmax.f32 %v112, %v128
  %v145 = vmax.f32 %v113, %v129
  %v146 = vmax.f32 %v114, %v130
  %v147 = vmax.f32 %v115, %v131
  %v148 = vmax.f32 %v116, %v132
  %v149 = vmax.f32 %v117, %v133
  %v150 = vmax.f32 %v118, %v134
  %v151 = vmax.f32 %v119, %v135
  %v152 = vmax.f32 %v120, %v136
  %v153 = vmax.f32 %v121, %v137
  %v154 = vmax.f32 %v122, %v138
  %v155 = vmax.f32 %v123, %v139
  %v156 = vmax.f32 %v124, %v140
  %v157 = vmax.f32 %v125, %v141
  %v158 = vpack.c.bf16 %v142, %v142
  %v159 = vpack.c.bf16 %v143, %v143
  %v160 = vpack.c.bf16 %v144, %v144
  %v161 = vpack.c.bf16 %v145, %v145
  %v162 = vpack.c.bf16 %v146, %v146
  %v163 = vpack.c.bf16 %v147, %v147
  %v164 = vpack.c.bf16 %v148, %v148
  %v165 = vpack.c.bf16 %v149, %v149
  %v166 = vpack.c.bf16 %v150, %v150
  %v167 = vpack.c.bf16 %v151, %v151
  %v168 = vpack.c.bf16 %v152, %v152
  %v169 = vpack.c.bf16 %v153, %v153
  %v170 = vpack.c.bf16 %v154, %v154
  %v171 = vpack.c.bf16 %v155, %v155
  %v172 = vpack.c.bf16 %v156, %v156
  %v173 = vpack.c.bf16 %v157, %v157
  %v174 = vunpack.c.l.bf16 %v158
  %v175 = vunpack.c.l.bf16 %v159
  %v176 = vunpack.c.l.bf16 %v160
  %v177 = vunpack.c.l.bf16 %v161
  %v178 = vunpack.c.l.bf16 %v162
  %v179 = vunpack.c.l.bf16 %v163
  %v180 = vunpack.c.l.bf16 %v164
  %v181 = vunpack.c.l.bf16 %v165
  %v182 = vunpack.c.l.bf16 %v166
  %v183 = vunpack.c.l.bf16 %v167
  %v184 = vunpack.c.l.bf16 %v168
  %v185 = vunpack.c.l.bf16 %v169
  %v186 = vunpack.c.l.bf16 %v170
  %v187 = vunpack.c.l.bf16 %v171
  %v188 = vunpack.c.l.bf16 %v172
  %v189 = vunpack.c.l.bf16 %v173
  %v190 = vunpack.c.l.bf16 %v9
  %v191 = vunpack.c.l.bf16 %v11
  %v192 = vunpack.c.l.bf16 %v13
  %v193 = vunpack.c.l.bf16 %v15
  %v194 = vunpack.c.l.bf16 %v17
  %v195 = vunpack.c.l.bf16 %v19
  %v196 = vunpack.c.l.bf16 %v21
  %v197 = vunpack.c.l.bf16 %v23
  %v198 = vunpack.c.l.bf16 %v27
  %v199 = vunpack.c.l.bf16 %v29
  %v200 = vunpack.c.l.bf16 %v31
  %v201 = vunpack.c.l.bf16 %v33
  %v202 = vunpack.c.l.bf16 %v35
  %v203 = vunpack.c.l.bf16 %v37
  %v204 = vunpack.c.l.bf16 %v39
  %v205 = vunpack.c.l.bf16 %v41
  %vm238 = vcmask 1046528
  %v239 = vrot.slane %v110, 1
  %v240 = vrot.slane %v190, 1
  %v241 = vsel %vm238, %v239, %v240
  %v242 = vrot.slane %v111, 1
  %v243 = vrot.slane %v191, 1
  %v244 = vsel %vm238, %v242, %v243
  %v245 = vrot.slane %v112, 1
  %v246 = vrot.slane %v192, 1
  %v247 = vsel %vm238, %v245, %v246
  %v248 = vrot.slane %v113, 1
  %v249 = vrot.slane %v193, 1
  %v250 = vsel %vm238, %v248, %v249
  %v251 = vrot.slane %v114, 1
  %v252 = vrot.slane %v194, 1
  %v253 = vsel %vm238, %v251, %v252
  %v254 = vrot.slane %v115, 1
  %v255 = vrot.slane %v195, 1
  %v256 = vsel %vm238, %v254, %v255
  %v257 = vrot.slane %v116, 1
  %v258 = vrot.slane %v196, 1
  %v259 = vsel %vm238, %v257, %v258
  %v260 = vrot.slane %v117, 1
  %v261 = vrot.slane %v197, 1
  %v262 = vsel %vm238, %v260, %v261
  %v263 = vrot.slane %v118, 1
  %v264 = vrot.slane %v198, 1
  %v265 = vsel %vm238, %v263, %v264
  %v266 = vrot.slane %v119, 1
  %v267 = vrot.slane %v199, 1
  %v268 = vsel %vm238, %v266, %v267
  %v269 = vrot.slane %v120, 1
  %v270 = vrot.slane %v200, 1
  %v271 = vsel %vm238, %v269, %v270
  %v272 = vrot.slane %v121, 1
  %v273 = vrot.slane %v201, 1
  %v274 = vsel %vm238, %v272, %v273
  %v275 = vrot.slane %v122, 1
  %v276 = vrot.slane %v202, 1
  %v277 = vsel %vm238, %v275, %v276
  %v278 = vrot.slane %v123, 1
  %v279 = vrot.slane %v203, 1
  %v280 = vsel %vm238, %v278, %v279
  %v281 = vrot.slane %v124, 1
  %v282 = vrot.slane %v204, 1
  %v283 = vsel %vm238, %v281, %v282
  %v284 = vrot.slane %v125, 1
  %v285 = vrot.slane %v205, 1
  %v286 = vsel %vm238, %v284, %v285
  %v303 = vmax.f32 %v174, %v241
  %v304 = vmax.f32 %v175, %v244
  %v305 = vmax.f32 %v176, %v247
  %v306 = vmax.f32 %v177, %v250
  %v307 = vmax.f32 %v178, %v253
  %v308 = vmax.f32 %v179, %v256
  %v309 = vmax.f32 %v180, %v259
  %v310 = vmax.f32 %v181, %v262
  %v311 = vmax.f32 %v182, %v265
  %v312 = vmax.f32 %v183, %v268
  %v313 = vmax.f32 %v184, %v271
  %v314 = vmax.f32 %v185, %v274
  %v315 = vmax.f32 %v186, %v277
  %v316 = vmax.f32 %v187, %v280
  %v317 = vmax.f32 %v188, %v283
  %v318 = vmax.f32 %v189, %v286
  %v319 = vpack.c.bf16 %v303, %v303
  %v320 = vpack.c.bf16 %v304, %v304
  %v321 = vpack.c.bf16 %v305, %v305
  %v322 = vpack.c.bf16 %v306, %v306
  %v323 = vpack.c.bf16 %v307, %v307
  %v324 = vpack.c.bf16 %v308, %v308
  %v325 = vpack.c.bf16 %v309, %v309
  %v326 = vpack.c.bf16 %v310, %v310
  %v327 = vpack.c.bf16 %v311, %v311
  %v328 = vpack.c.bf16 %v312, %v312
  %v329 = vpack.c.bf16 %v313, %v313
  %v330 = vpack.c.bf16 %v314, %v314
  %v331 = vpack.c.bf16 %v315, %v315
  %v332 = vpack.c.bf16 %v316, %v316
  %v333 = vpack.c.bf16 %v317, %v317
  %v334 = vpack.c.bf16 %v318, %v318
  %v335 = vunpack.c.l.bf16 %v319
  %v336 = vunpack.c.l.bf16 %v320
  %v337 = vunpack.c.l.bf16 %v321
  %v338 = vunpack.c.l.bf16 %v322
  %v339 = vunpack.c.l.bf16 %v323
  %v340 = vunpack.c.l.bf16 %v324
  %v341 = vunpack.c.l.bf16 %v325
  %v342 = vunpack.c.l.bf16 %v326
  %v343 = vunpack.c.l.bf16 %v327
  %v344 = vunpack.c.l.bf16 %v328
  %v345 = vunpack.c.l.bf16 %v329
  %v346 = vunpack.c.l.bf16 %v330
  %v347 = vunpack.c.l.bf16 %v331
  %v348 = vunpack.c.l.bf16 %v332
  %v349 = vunpack.c.l.bf16 %v333
  %v350 = vunpack.c.l.bf16 %v334
  %v351 = vunpack.c.l.bf16 %v62
  %v352 = vunpack.c.l.bf16 %v64
  %v353 = vunpack.c.l.bf16 %v66
  %v354 = vunpack.c.l.bf16 %v68
  %v355 = vunpack.c.l.bf16 %v70
  %v356 = vunpack.c.l.bf16 %v72
  %v357 = vunpack.c.l.bf16 %v74
  %v358 = vunpack.c.l.bf16 %v76
  %v359 = vunpack.c.l.bf16 %v78
  %v360 = vunpack.c.l.bf16 %v80
  %v361 = vunpack.c.l.bf16 %v82
  %v362 = vunpack.c.l.bf16 %v84
  %v363 = vunpack.c.l.bf16 %v86
  %v364 = vunpack.c.l.bf16 %v88
  %v365 = vunpack.c.l.bf16 %v90
  %v366 = vunpack.c.l.bf16 %v92
  %v367 = vmax.f32 %v335, %v351
  %v368 = vmax.f32 %v336, %v352
  %v369 = vmax.f32 %v337, %v353
  %v370 = vmax.f32 %v338, %v354
  %v371 = vmax.f32 %v339, %v355
  %v372 = vmax.f32 %v340, %v356
  %v373 = vmax.f32 %v341, %v357
  %v374 = vmax.f32 %v342, %v358
  %v375 = vmax.f32 %v343, %v359
  %v376 = vmax.f32 %v344, %v360
  %v377 = vmax.f32 %v345, %v361
  %v378 = vmax.f32 %v346, %v362
  %v379 = vmax.f32 %v347, %v363
  %v380 = vmax.f32 %v348, %v364
  %v381 = vmax.f32 %v349, %v365
  %v382 = vmax.f32 %v350, %v366
  %v383 = vpack.c.bf16 %v367, %v367
  %v384 = vpack.c.bf16 %v368, %v368
  %v385 = vpack.c.bf16 %v369, %v369
  %v386 = vpack.c.bf16 %v370, %v370
  %v387 = vpack.c.bf16 %v371, %v371
  %v388 = vpack.c.bf16 %v372, %v372
  %v389 = vpack.c.bf16 %v373, %v373
  %v390 = vpack.c.bf16 %v374, %v374
  %v391 = vpack.c.bf16 %v375, %v375
  %v392 = vpack.c.bf16 %v376, %v376
  %v393 = vpack.c.bf16 %v377, %v377
  %v394 = vpack.c.bf16 %v378, %v378
  %v395 = vpack.c.bf16 %v379, %v379
  %v396 = vpack.c.bf16 %v380, %v380
  %v397 = vpack.c.bf16 %v381, %v381
  %v398 = vpack.c.bf16 %v382, %v382
  %v399 = vunpack.c.l.bf16 %v383
  %v400 = vunpack.c.l.bf16 %v384
  %v401 = vunpack.c.l.bf16 %v385
  %v402 = vunpack.c.l.bf16 %v386
  %v403 = vunpack.c.l.bf16 %v387
  %v404 = vunpack.c.l.bf16 %v388
  %v405 = vunpack.c.l.bf16 %v389
  %v406 = vunpack.c.l.bf16 %v390
  %v407 = vunpack.c.l.bf16 %v391
  %v408 = vunpack.c.l.bf16 %v392
  %v409 = vunpack.c.l.bf16 %v393
  %v410 = vunpack.c.l.bf16 %v394
  %v411 = vunpack.c.l.bf16 %v395
  %v412 = vunpack.c.l.bf16 %v396
  %v413 = vunpack.c.l.bf16 %v397
  %v414 = vunpack.c.l.bf16 %v398
  %v415 = vunpack.c.l.bf16 %v94
  %v416 = vunpack.c.l.bf16 %v95
  %v417 = vunpack.c.l.bf16 %v96
  %v418 = vunpack.c.l.bf16 %v97
  %v419 = vunpack.c.l.bf16 %v98
  %v420 = vunpack.c.l.bf16 %v99
  %v421 = vunpack.c.l.bf16 %v100
  %v422 = vunpack.c.l.bf16 %v101
  %v423 = vunpack.c.l.bf16 %v102
  %v424 = vunpack.c.l.bf16 %v103
  %v425 = vunpack.c.l.bf16 %v104
  %v426 = vunpack.c.l.bf16 %v105
  %v427 = vunpack.c.l.bf16 %v106
  %v428 = vunpack.c.l.bf16 %v107
  %v429 = vunpack.c.l.bf16 %v108
  %v430 = vunpack.c.l.bf16 %v109
  %v431 = vmax.f32 %v399, %v415
  %v432 = vmax.f32 %v400, %v416
  %v433 = vmax.f32 %v401, %v417
  %v434 = vmax.f32 %v402, %v418
  %v435 = vmax.f32 %v403, %v419
  %v436 = vmax.f32 %v404, %v420
  %v437 = vmax.f32 %v405, %v421
  %v438 = vmax.f32 %v406, %v422
  %v439 = vmax.f32 %v407, %v423
  %v440 = vmax.f32 %v408, %v424
  %v441 = vmax.f32 %v409, %v425
  %v442 = vmax.f32 %v410, %v426
  %v443 = vmax.f32 %v411, %v427
  %v444 = vmax.f32 %v412, %v428
  %v445 = vmax.f32 %v413, %v429
  %v446 = vmax.f32 %v414, %v430
  %v447 = vpack.c.bf16 %v431, %v431
  %v448 = vpack.c.bf16 %v432, %v432
  %v449 = vpack.c.bf16 %v433, %v433
  %v450 = vpack.c.bf16 %v434, %v434
  %v451 = vpack.c.bf16 %v435, %v435
  %v452 = vpack.c.bf16 %v436, %v436
  %v453 = vpack.c.bf16 %v437, %v437
  %v454 = vpack.c.bf16 %v438, %v438
  %v455 = vpack.c.bf16 %v439, %v439
  %v456 = vpack.c.bf16 %v440, %v440
  %v457 = vpack.c.bf16 %v441, %v441
  %v458 = vpack.c.bf16 %v442, %v442
  %v459 = vpack.c.bf16 %v443, %v443
  %v460 = vpack.c.bf16 %v444, %v444
  %v461 = vpack.c.bf16 %v445, %v445
  %v462 = vpack.c.bf16 %v446, %v446
  %v463 = vunpack.c.l.bf16 %v447
  %v464 = vunpack.c.l.bf16 %v448
  %v465 = vunpack.c.l.bf16 %v449
  %v466 = vunpack.c.l.bf16 %v450
  %v467 = vunpack.c.l.bf16 %v451
  %v468 = vunpack.c.l.bf16 %v452
  %v469 = vunpack.c.l.bf16 %v453
  %v470 = vunpack.c.l.bf16 %v454
  %v471 = vunpack.c.l.bf16 %v455
  %v472 = vunpack.c.l.bf16 %v456
  %v473 = vunpack.c.l.bf16 %v457
  %v474 = vunpack.c.l.bf16 %v458
  %v475 = vunpack.c.l.bf16 %v459
  %v476 = vunpack.c.l.bf16 %v460
  %v477 = vunpack.c.l.bf16 %v461
  %v478 = vunpack.c.l.bf16 %v462
  %v479 = vunpack.c.l.bf16 %v63
  %v480 = vunpack.c.l.bf16 %v65
  %v481 = vunpack.c.l.bf16 %v67
  %v482 = vunpack.c.l.bf16 %v69
  %v483 = vunpack.c.l.bf16 %v71
  %v484 = vunpack.c.l.bf16 %v73
  %v485 = vunpack.c.l.bf16 %v75
  %v486 = vunpack.c.l.bf16 %v77
  %v487 = vunpack.c.l.bf16 %v79
  %v488 = vunpack.c.l.bf16 %v81
  %v489 = vunpack.c.l.bf16 %v83
  %v490 = vunpack.c.l.bf16 %v85
  %v491 = vunpack.c.l.bf16 %v87
  %v492 = vunpack.c.l.bf16 %v89
  %v493 = vunpack.c.l.bf16 %v91
  %v494 = vunpack.c.l.bf16 %v93
  %v527 = vrot.slane %v351, 1
  %v528 = vrot.slane %v479, 1
  %v529 = vsel %vm238, %v527, %v528
  %v530 = vrot.slane %v352, 1
  %v531 = vrot.slane %v480, 1
  %v532 = vsel %vm238, %v530, %v531
  %v533 = vrot.slane %v353, 1
  %v534 = vrot.slane %v481, 1
  %v535 = vsel %vm238, %v533, %v534
  %v536 = vrot.slane %v354, 1
  %v537 = vrot.slane %v482, 1
  %v538 = vsel %vm238, %v536, %v537
  %v539 = vrot.slane %v355, 1
  %v540 = vrot.slane %v483, 1
  %v541 = vsel %vm238, %v539, %v540
  %v542 = vrot.slane %v356, 1
  %v543 = vrot.slane %v484, 1
  %v544 = vsel %vm238, %v542, %v543
  %v545 = vrot.slane %v357, 1
  %v546 = vrot.slane %v485, 1
  %v547 = vsel %vm238, %v545, %v546
  %v548 = vrot.slane %v358, 1
  %v549 = vrot.slane %v486, 1
  %v550 = vsel %vm238, %v548, %v549
  %v551 = vrot.slane %v359, 1
  %v552 = vrot.slane %v487, 1
  %v553 = vsel %vm238, %v551, %v552
  %v554 = vrot.slane %v360, 1
  %v555 = vrot.slane %v488, 1
  %v556 = vsel %vm238, %v554, %v555
  %v557 = vrot.slane %v361, 1
  %v558 = vrot.slane %v489, 1
  %v559 = vsel %vm238, %v557, %v558
  %v560 = vrot.slane %v362, 1
  %v561 = vrot.slane %v490, 1
  %v562 = vsel %vm238, %v560, %v561
  %v563 = vrot.slane %v363, 1
  %v564 = vrot.slane %v491, 1
  %v565 = vsel %vm238, %v563, %v564
  %v566 = vrot.slane %v364, 1
  %v567 = vrot.slane %v492, 1
  %v568 = vsel %vm238, %v566, %v567
  %v569 = vrot.slane %v365, 1
  %v570 = vrot.slane %v493, 1
  %v571 = vsel %vm238, %v569, %v570
  %v572 = vrot.slane %v366, 1
  %v573 = vrot.slane %v494, 1
  %v574 = vsel %vm238, %v572, %v573
  %v591 = vmax.f32 %v463, %v529
  %v592 = vmax.f32 %v464, %v532
  %v593 = vmax.f32 %v465, %v535
  %v594 = vmax.f32 %v466, %v538
  %v595 = vmax.f32 %v467, %v541
  %v596 = vmax.f32 %v468, %v544
  %v597 = vmax.f32 %v469, %v547
  %v598 = vmax.f32 %v470, %v550
  %v599 = vmax.f32 %v471, %v553
  %v600 = vmax.f32 %v472, %v556
  %v601 = vmax.f32 %v473, %v559
  %v602 = vmax.f32 %v474, %v562
  %v603 = vmax.f32 %v475, %v565
  %v604 = vmax.f32 %v476, %v568
  %v605 = vmax.f32 %v477, %v571
  %v606 = vmax.f32 %v478, %v574
  %v607 = vpack.c.bf16 %v591, %v591
  %v608 = vpack.c.bf16 %v592, %v592
  %v609 = vpack.c.bf16 %v593, %v593
  %v610 = vpack.c.bf16 %v594, %v594
  %v611 = vpack.c.bf16 %v595, %v595
  %v612 = vpack.c.bf16 %v596, %v596
  %v613 = vpack.c.bf16 %v597, %v597
  %v614 = vpack.c.bf16 %v598, %v598
  %v615 = vpack.c.bf16 %v599, %v599
  %v616 = vpack.c.bf16 %v600, %v600
  %v617 = vpack.c.bf16 %v601, %v601
  %v618 = vpack.c.bf16 %v602, %v602
  %v619 = vpack.c.bf16 %v603, %v603
  %v620 = vpack.c.bf16 %v604, %v604
  %v621 = vpack.c.bf16 %v605, %v605
  %v622 = vpack.c.bf16 %v606, %v606
  %v623 = vunpack.c.l.bf16 %v607
  %v624 = vunpack.c.l.bf16 %v608
  %v625 = vunpack.c.l.bf16 %v609
  %v626 = vunpack.c.l.bf16 %v610
  %v627 = vunpack.c.l.bf16 %v611
  %v628 = vunpack.c.l.bf16 %v612
  %v629 = vunpack.c.l.bf16 %v613
  %v630 = vunpack.c.l.bf16 %v614
  %v631 = vunpack.c.l.bf16 %v615
  %v632 = vunpack.c.l.bf16 %v616
  %v633 = vunpack.c.l.bf16 %v617
  %v634 = vunpack.c.l.bf16 %v618
  %v635 = vunpack.c.l.bf16 %v619
  %v636 = vunpack.c.l.bf16 %v620
  %v637 = vunpack.c.l.bf16 %v621
  %v638 = vunpack.c.l.bf16 %v622
  %v639 = vunpack.c.l.bf16 %v24
  %v640 = vunpack.c.l.bf16 %v42
  %v641 = vmax.f32 %v623, %v111
  %v642 = vmax.f32 %v624, %v112
  %v643 = vmax.f32 %v625, %v113
  %v644 = vmax.f32 %v626, %v114
  %v645 = vmax.f32 %v627, %v115
  %v646 = vmax.f32 %v628, %v116
  %v647 = vmax.f32 %v629, %v117
  %v648 = vmax.f32 %v630, %v639
  %v649 = vmax.f32 %v631, %v119
  %v650 = vmax.f32 %v632, %v120
  %v651 = vmax.f32 %v633, %v121
  %v652 = vmax.f32 %v634, %v122
  %v653 = vmax.f32 %v635, %v123
  %v654 = vmax.f32 %v636, %v124
  %v655 = vmax.f32 %v637, %v125
  %v656 = vmax.f32 %v638, %v640
  %v657 = vpack.c.bf16 %v641, %v641
  %v658 = vpack.c.bf16 %v642, %v642
  %v659 = vpack.c.bf16 %v643, %v643
  %v660 = vpack.c.bf16 %v644, %v644
  %v661 = vpack.c.bf16 %v645, %v645
  %v662 = vpack.c.bf16 %v646, %v646
  %v663 = vpack.c.bf16 %v647, %v647
  %v664 = vpack.c.bf16 %v648, %v648
  %v665 = vpack.c.bf16 %v649, %v649
  %v666 = vpack.c.bf16 %v650, %v650
  %v667 = vpack.c.bf16 %v651, %v651
  %v668 = vpack.c.bf16 %v652, %v652
  %v669 = vpack.c.bf16 %v653, %v653
  %v670 = vpack.c.bf16 %v654, %v654
  %v671 = vpack.c.bf16 %v655, %v655
  %v672 = vpack.c.bf16 %v656, %v656
  %v673 = vunpack.c.l.bf16 %v657
  %v674 = vunpack.c.l.bf16 %v658
  %v675 = vunpack.c.l.bf16 %v659
  %v676 = vunpack.c.l.bf16 %v660
  %v677 = vunpack.c.l.bf16 %v661
  %v678 = vunpack.c.l.bf16 %v662
  %v679 = vunpack.c.l.bf16 %v663
  %v680 = vunpack.c.l.bf16 %v664
  %v681 = vunpack.c.l.bf16 %v665
  %v682 = vunpack.c.l.bf16 %v666
  %v683 = vunpack.c.l.bf16 %v667
  %v684 = vunpack.c.l.bf16 %v668
  %v685 = vunpack.c.l.bf16 %v669
  %v686 = vunpack.c.l.bf16 %v670
  %v687 = vunpack.c.l.bf16 %v671
  %v688 = vunpack.c.l.bf16 %v672
  %v689 = vunpack.c.l.bf16 %v52
  %v690 = vunpack.c.l.bf16 %v61
  %v691 = vmax.f32 %v673, %v127
  %v692 = vmax.f32 %v674, %v128
  %v693 = vmax.f32 %v675, %v129
  %v694 = vmax.f32 %v676, %v130
  %v695 = vmax.f32 %v677, %v131
  %v696 = vmax.f32 %v678, %v132
  %v697 = vmax.f32 %v679, %v133
  %v698 = vmax.f32 %v680, %v689
  %v699 = vmax.f32 %v681, %v135
  %v700 = vmax.f32 %v682, %v136
  %v701 = vmax.f32 %v683, %v137
  %v702 = vmax.f32 %v684, %v138
  %v703 = vmax.f32 %v685, %v139
  %v704 = vmax.f32 %v686, %v140
  %v705 = vmax.f32 %v687, %v141
  %v706 = vmax.f32 %v688, %v690
  %v707 = vpack.c.bf16 %v691, %v691
  %v708 = vpack.c.bf16 %v692, %v692
  %v709 = vpack.c.bf16 %v693, %v693
  %v710 = vpack.c.bf16 %v694, %v694
  %v711 = vpack.c.bf16 %v695, %v695
  %v712 = vpack.c.bf16 %v696, %v696
  %v713 = vpack.c.bf16 %v697, %v697
  %v714 = vpack.c.bf16 %v698, %v698
  %v715 = vpack.c.bf16 %v699, %v699
  %v716 = vpack.c.bf16 %v700, %v700
  %v717 = vpack.c.bf16 %v701, %v701
  %v718 = vpack.c.bf16 %v702, %v702
  %v719 = vpack.c.bf16 %v703, %v703
  %v720 = vpack.c.bf16 %v704, %v704
  %v721 = vpack.c.bf16 %v705, %v705
  %v722 = vpack.c.bf16 %v706, %v706
  %v723 = vunpack.c.l.bf16 %v707
  %v724 = vunpack.c.l.bf16 %v708
  %v725 = vunpack.c.l.bf16 %v709
  %v726 = vunpack.c.l.bf16 %v710
  %v727 = vunpack.c.l.bf16 %v711
  %v728 = vunpack.c.l.bf16 %v712
  %v729 = vunpack.c.l.bf16 %v713
  %v730 = vunpack.c.l.bf16 %v714
  %v731 = vunpack.c.l.bf16 %v715
  %v732 = vunpack.c.l.bf16 %v716
  %v733 = vunpack.c.l.bf16 %v717
  %v734 = vunpack.c.l.bf16 %v718
  %v735 = vunpack.c.l.bf16 %v719
  %v736 = vunpack.c.l.bf16 %v720
  %v737 = vunpack.c.l.bf16 %v721
  %v738 = vunpack.c.l.bf16 %v722
  %v739 = vunpack.c.l.bf16 %v25
  %v740 = vunpack.c.l.bf16 %v43
  %v745 = vrot.slane %v639, 1
  %v746 = vrot.slane %v739, 1
  %v747 = vsel %vm238, %v745, %v746
  %v748 = vrot.slane %v640, 1
  %v749 = vrot.slane %v740, 1
  %v750 = vsel %vm238, %v748, %v749
  %v753 = vmax.f32 %v723, %v244
  %v754 = vmax.f32 %v724, %v247
  %v755 = vmax.f32 %v725, %v250
  %v756 = vmax.f32 %v726, %v253
  %v757 = vmax.f32 %v727, %v256
  %v758 = vmax.f32 %v728, %v259
  %v759 = vmax.f32 %v729, %v262
  %v760 = vmax.f32 %v730, %v747
  %v761 = vmax.f32 %v731, %v268
  %v762 = vmax.f32 %v732, %v271
  %v763 = vmax.f32 %v733, %v274
  %v764 = vmax.f32 %v734, %v277
  %v765 = vmax.f32 %v735, %v280
  %v766 = vmax.f32 %v736, %v283
  %v767 = vmax.f32 %v737, %v286
  %v768 = vmax.f32 %v738, %v750
  %v769 = vpack.c.bf16 %v753, %v753
  %v770 = vpack.c.bf16 %v754, %v754
  %v771 = vpack.c.bf16 %v755, %v755
  %v772 = vpack.c.bf16 %v756, %v756
  %v773 = vpack.c.bf16 %v757, %v757
  %v774 = vpack.c.bf16 %v758, %v758
  %v775 = vpack.c.bf16 %v759, %v759
  %v776 = vpack.c.bf16 %v760, %v760
  %v777 = vpack.c.bf16 %v761, %v761
  %v778 = vpack.c.bf16 %v762, %v762
  %v779 = vpack.c.bf16 %v763, %v763
  %v780 = vpack.c.bf16 %v764, %v764
  %v781 = vpack.c.bf16 %v765, %v765
  %v782 = vpack.c.bf16 %v766, %v766
  %v783 = vpack.c.bf16 %v767, %v767
  %v784 = vpack.c.bf16 %v768, %v768
  %vm785 = vcmask 125952
  %786 = vst.msk [vmem:[%s1] sm:$0xf] %vm785, %v769
  %787 = vst.msk [vmem:[%s1 + $0x4] sm:$0xf] %vm785, %v770
  %788 = vst.msk [vmem:[%s1 + $0x8] sm:$0xf] %vm785, %v771
  %789 = vst.msk [vmem:[%s1 + $0xc] sm:$0xf] %vm785, %v772
  %790 = vst.msk [vmem:[%s1 + $0x10] sm:$0xf] %vm785, %v773
  %791 = vst.msk [vmem:[%s1 + $0x14] sm:$0xf] %vm785, %v774
  %792 = vst.msk [vmem:[%s1 + $0x18] sm:$0xf] %vm785, %v775
  %793 = vst.msk [vmem:[%s1 + $0x1c] sm:$0xf] %vm785, %v776
  %794 = vst.msk [vmem:[%s1 + $0x20] sm:$0xf] %vm785, %v777
  %795 = vst.msk [vmem:[%s1 + $0x24] sm:$0xf] %vm785, %v778
  %796 = vst.msk [vmem:[%s1 + $0x28] sm:$0xf] %vm785, %v779
  %797 = vst.msk [vmem:[%s1 + $0x2c] sm:$0xf] %vm785, %v780
  %798 = vst.msk [vmem:[%s1 + $0x30] sm:$0xf] %vm785, %v781
  %799 = vst.msk [vmem:[%s1 + $0x34] sm:$0xf] %vm785, %v782
  %800 = vst.msk [vmem:[%s1 + $0x38] sm:$0xf] %vm785, %v783
  %801 = vst.msk [vmem:[%s1 + $0x3c] sm:$0xf] %vm785, %v784
  // Predicated region
  $region6: #{cotrain_forward.17} parent=0 // pred_check
    _
  $region7: #{cotrain_forward.17} parent=0 // pred_check_branch
    %803 = sbr.rel (0) target = $region9
  $region8: #{cotrain_forward.17} parent=0 // pred_region
    _
  $region9: #{cotrain_forward.17} parent=0 // pred_fallthru
    _
  // Predicated region
  $region10: #{cotrain_forward.17} parent=0 // pred_check
    _
  $region11: #{cotrain_forward.17} parent=0 // pred_check_branch
    %805 = sbr.rel (0) target = $region13
  $region12: #{cotrain_forward.17} parent=0 // pred_region
    _
  $region13: #{cotrain_forward.17} parent=0 // pred_fallthru
    _

// kernel: cotrain_forward.18
$region0: #{cotrain_forward.18}
  #allocation0 [shape = 'u32[]', space=smem, size = 0x4, offset = 0x4, fixed_abs, tag = 'smem constant byte address 0x4 - core index']
  #allocation1 [shape = 'u32[72,128]{1,0:T(1,128)}', space=vmem, size = 0x9000, scoped, tag = 'internal scratch']
  #allocation2 [shape = 'f32[128,128]{1,0:T(8,128)}', space=vmem, size = 0x10000, scoped, tag = 'scratch operand']
  %s0 = inlined_call_operand.vmem [shape: bf16[128,144], index: 0, kind: input, shape index: {}]
  %s1 = inlined_call_operand.vmem [shape: bf16[144,128], index: 1, kind: input, shape index: {}]
  %s2 = inlined_call_operand.vmem [shape: f32[1,128], index: 2, kind: input, shape index: {}]
  %s3 = inlined_call_operand.vmem [shape: f32[1,128], index: 3, kind: input, shape index: {}]
  %s4 = inlined_call_operand.vmem [shape: bf16[128,128], index: 4, kind: output, shape index: {}]
  %s5 = sld [smem:[#allocation0]]
  $region34: #{cotrain_forward.18} parent=0
    _
  %s7 = ssub.s32 1, %s5
  %s8 = scalar_select 0, %s7, %s5
  // Predicated region
  $region2: #{cotrain_forward.18} parent=0 // pred_check
    _
  $region3: #{cotrain_forward.18} parent=0 // pred_check_branch
    %10 = sbr.rel (0) target = $region5
  $region4: #{cotrain_forward.18} parent=0 // pred_region
    _
  $region5: #{cotrain_forward.18} parent=0 // pred_fallthru
    _
  // Predicated region
  $region6: #{cotrain_forward.18} parent=0 // pred_check
    _
  $region7: #{cotrain_forward.18} parent=0 // pred_check_branch
    %12 = sbr.rel (0) target = $region9
  $region8: #{cotrain_forward.18} parent=0 // pred_region
    _
  $region9: #{cotrain_forward.18} parent=0 // pred_fallthru
    _
  // Predicated region
  $region10: #{cotrain_forward.18} parent=0 // pred_check
    _
  $region11: #{cotrain_forward.18} parent=0 // pred_check_branch
    %14 = sbr.rel (0) target = $region13
  $region12: #{cotrain_forward.18} parent=0 // pred_region
    _
  $region13: #{cotrain_forward.18} parent=0 // pred_fallthru
    _
  // Predicated region
  $region14: #{cotrain_forward.18} parent=0 // pred_check
    _
  $region15: #{cotrain_forward.18} parent=0 // pred_check_branch
    %16 = sbr.rel (0) target = $region17
  $region16: #{cotrain_forward.18} parent=0 // pred_region
    _
  $region17: #{cotrain_forward.18} parent=0 // pred_fallthru
    _
  %p18 = scmp.eq.s32.totalorder 0, 0
  // Predicated region
  $region18: #{cotrain_forward.18} parent=0 // pred_check
    %p19 = pneg %p18
  $region19: #{cotrain_forward.18} parent=0 // pred_check_branch
    %21 = sbr.rel (%p19) target = $region21
  $region20: #{cotrain_forward.18} parent=0 // pred_region
    %22 = vst [vmem:[#allocation2] sm:$0xff] 0.0
    %23 = vst [vmem:[#allocation2 + $0x8] sm:$0xff] 0.0
    %24 = vst [vmem:[#allocation2 + $0x10] sm:$0xff] 0.0
    %25 = vst [vmem:[#allocation2 + $0x18] sm:$0xff] 0.0
    %26 = vst [vmem:[#allocation2 + $0x20] sm:$0xff] 0.0
    %27 = vst [vmem:[#allocation2 + $0x28] sm:$0xff] 0.0
    %28 = vst [vmem:[#allocation2 + $0x30] sm:$0xff] 0.0
    %29 = vst [vmem:[#allocation2 + $0x38] sm:$0xff] 0.0
    %30 = vst [vmem:[#allocation2 + $0x40] sm:$0xff] 0.0
    %31 = vst [vmem:[#allocation2 + $0x48] sm:$0xff] 0.0
    %32 = vst [vmem:[#allocation2 + $0x50] sm:$0xff] 0.0
    %33 = vst [vmem:[#allocation2 + $0x58] sm:$0xff] 0.0
    %34 = vst [vmem:[#allocation2 + $0x60] sm:$0xff] 0.0
    %35 = vst [vmem:[#allocation2 + $0x68] sm:$0xff] 0.0
    %36 = vst [vmem:[#allocation2 + $0x70] sm:$0xff] 0.0
    %37 = vst [vmem:[#allocation2 + $0x78] sm:$0xff] 0.0
  $region21: #{cotrain_forward.18} parent=0 // pred_fallthru
    _
  %v38 = vld [vmem:[#allocation2] sm:$0xff]
  %v39 = vld [vmem:[#allocation2 + $0x8] sm:$0xff]
  %v40 = vld [vmem:[#allocation2 + $0x10] sm:$0xff]
  %v41 = vld [vmem:[#allocation2 + $0x18] sm:$0xff]
  %v42 = vld [vmem:[#allocation2 + $0x20] sm:$0xff]
  %v43 = vld [vmem:[#allocation2 + $0x28] sm:$0xff]
  %v44 = vld [vmem:[#allocation2 + $0x30] sm:$0xff]
  %v45 = vld [vmem:[#allocation2 + $0x38] sm:$0xff]
  %v46 = vld [vmem:[#allocation2 + $0x40] sm:$0xff]
  %v47 = vld [vmem:[#allocation2 + $0x48] sm:$0xff]
  %v48 = vld [vmem:[#allocation2 + $0x50] sm:$0xff]
  %v49 = vld [vmem:[#allocation2 + $0x58] sm:$0xff]
  %v50 = vld [vmem:[#allocation2 + $0x60] sm:$0xff]
  %v51 = vld [vmem:[#allocation2 + $0x68] sm:$0xff]
  %v52 = vld [vmem:[#allocation2 + $0x70] sm:$0xff]
  %v53 = vld [vmem:[#allocation2 + $0x78] sm:$0xff]
  %v54 = vld [vmem:[%s0] sm:$0xff]
  %v55 = vld [vmem:[%s0 + $0x8] sm:$0xff]
  %v56 = vld [vmem:[%s0 + $0x10] sm:$0xff]
  %v57 = vld [vmem:[%s0 + $0x18] sm:$0xff]
  %v58 = vld [vmem:[%s0 + $0x20] sm:$0xff]
  %v59 = vld [vmem:[%s0 + $0x28] sm:$0xff]
  %v60 = vld [vmem:[%s0 + $0x30] sm:$0xff]
  %v61 = vld [vmem:[%s0 + $0x38] sm:$0xff]
  %v62 = vld [vmem:[%s0 + $0x40] sm:$0xff]
  %v63 = vld [vmem:[%s0 + $0x48] sm:$0xff]
  %v64 = vld [vmem:[%s0 + $0x50] sm:$0xff]
  %v65 = vld [vmem:[%s0 + $0x58] sm:$0xff]
  %v66 = vld [vmem:[%s0 + $0x60] sm:$0xff]
  %v67 = vld [vmem:[%s0 + $0x68] sm:$0xff]
  %v68 = vld [vmem:[%s0 + $0x70] sm:$0xff]
  %v69 = vld [vmem:[%s0 + $0x78] sm:$0xff]
  %v70 = vld [vmem:[%s1] sm:$0xf]
  %v71 = vld [vmem:[%s1 + $0x4] sm:$0xf]
  %v72 = vld [vmem:[%s1 + $0x8] sm:$0xf]
  %v73 = vld [vmem:[%s1 + $0xc] sm:$0xf]
  %v74 = vld [vmem:[%s1 + $0x10] sm:$0xf]
  %v75 = vld [vmem:[%s1 + $0x14] sm:$0xf]
  %v76 = vld [vmem:[%s1 + $0x18] sm:$0xf]
  %v77 = vld [vmem:[%s1 + $0x1c] sm:$0xf]
  %v78 = vld [vmem:[%s1 + $0x20] sm:$0xf]
  %v79 = vld [vmem:[%s1 + $0x24] sm:$0xf]
  %v80 = vld [vmem:[%s1 + $0x28] sm:$0xf]
  %v81 = vld [vmem:[%s1 + $0x2c] sm:$0xf]
  %v82 = vld [vmem:[%s1 + $0x30] sm:$0xf]
  %v83 = vld [vmem:[%s1 + $0x34] sm:$0xf]
  %v84 = vld [vmem:[%s1 + $0x38] sm:$0xf]
  %v85 = vld [vmem:[%s1 + $0x3c] sm:$0xf]
  %v86 = vld [vmem:[%s1 + $0x40] sm:$0xf]
  %v87 = vld [vmem:[%s1 + $0x44] sm:$0xf]
  %v104 = vunpack.c.l.b16 %v54
  %v105 = vunpack.c.h.b16 %v54
  %v106 = vunpack.c.l.b16 %v55
  %v107 = vunpack.c.h.b16 %v55
  %v108 = vunpack.c.l.b16 %v56
  %v109 = vunpack.c.h.b16 %v56
  %v110 = vunpack.c.l.b16 %v57
  %v111 = vunpack.c.h.b16 %v57
  %v112 = vunpack.c.l.b16 %v58
  %v113 = vunpack.c.h.b16 %v58
  %v114 = vunpack.c.l.b16 %v59
  %v115 = vunpack.c.h.b16 %v59
  %v116 = vunpack.c.l.b16 %v60
  %v117 = vunpack.c.h.b16 %v60
  %v118 = vunpack.c.l.b16 %v61
  %v119 = vunpack.c.h.b16 %v61
  %v120 = vunpack.c.l.b16 %v62
  %v121 = vunpack.c.h.b16 %v62
  %v122 = vunpack.c.l.b16 %v63
  %v123 = vunpack.c.h.b16 %v63
  %v124 = vunpack.c.l.b16 %v64
  %v125 = vunpack.c.h.b16 %v64
  %v126 = vunpack.c.l.b16 %v65
  %v127 = vunpack.c.h.b16 %v65
  %v128 = vunpack.c.l.b16 %v66
  %v129 = vunpack.c.h.b16 %v66
  %v130 = vunpack.c.l.b16 %v67
  %v131 = vunpack.c.h.b16 %v67
  %v132 = vunpack.c.l.b16 %v68
  %v133 = vunpack.c.h.b16 %v68
  %v134 = vunpack.c.l.b16 %v69
  %v135 = vunpack.c.h.b16 %v69
  %v136 = vpack.c.b16 %v106, %v104
  %v137 = vpack.c.b16 %v107, %v105
  %v138 = vpack.c.b16 %v110, %v108
  %v139 = vpack.c.b16 %v111, %v109
  %v140 = vpack.c.b16 %v114, %v112
  %v141 = vpack.c.b16 %v115, %v113
  %v142 = vpack.c.b16 %v118, %v116
  %v143 = vpack.c.b16 %v119, %v117
  %v144 = vpack.c.b16 %v122, %v120
  %v145 = vpack.c.b16 %v123, %v121
  %v146 = vpack.c.b16 %v126, %v124
  %v147 = vpack.c.b16 %v127, %v125
  %v148 = vpack.c.b16 %v130, %v128
  %v149 = vpack.c.b16 %v131, %v129
  %v150 = vpack.c.b16 %v134, %v132
  %v151 = vpack.c.b16 %v135, %v133
  %v178 = vunpack.c.l.b16 %v70
  %v179 = vunpack.c.l.b16 %v71
  %v180 = vunpack.c.l.b16 %v72
  %v181 = vunpack.c.l.b16 %v73
  %v182 = vunpack.c.l.b16 %v74
  %v183 = vunpack.c.l.b16 %v75
  %v184 = vunpack.c.l.b16 %v76
  %v185 = vunpack.c.l.b16 %v77
  %v186 = vunpack.c.l.b16 %v78
  %v187 = vunpack.c.l.b16 %v79
  %v188 = vunpack.c.l.b16 %v80
  %v189 = vunpack.c.l.b16 %v81
  %v190 = vunpack.c.l.b16 %v82
  %v191 = vunpack.c.l.b16 %v83
  %v192 = vunpack.c.l.b16 %v84
  %v193 = vunpack.c.l.b16 %v85
  %v194 = vunpack.c.l.b16 %v86
  %v195 = vunpack.c.l.b16 %v87
  %v196 = vpack.c.b16 %v179, %v178
  %v197 = vpack.c.b16 %v181, %v180
  %v198 = vpack.c.b16 %v183, %v182
  %v199 = vpack.c.b16 %v185, %v184
  %v200 = vpack.c.b16 %v187, %v186
  %v201 = vpack.c.b16 %v189, %v188
  %v202 = vpack.c.b16 %v191, %v190
  %v203 = vpack.c.b16 %v193, %v192
  %v204 = vpack.c.b16 %v195, %v194
  %vm214 = vcmask 130048
  %v216 = vsel %vm214, %v137, 0
  %v219 = vsel %vm214, %v139, 0
  %v222 = vsel %vm214, %v141, 0
  %v225 = vsel %vm214, %v143, 0
  %v228 = vsel %vm214, %v145, 0
  %v231 = vsel %vm214, %v147, 0
  %v234 = vsel %vm214, %v149, 0
  %v237 = vsel %vm214, %v151, 0
  %239 = vmatpush.bf16.msra.mxu0 %v203
  %240 = vmatpush.bf16.msra.mxu0 %v202
  %241 = vmatpush.bf16.msra.mxu0 %v201
  %242 = vmatpush.bf16.msra.mxu0 %v200
  %243 = vmatpush.bf16.msra.mxu0 %v199
  %244 = vmatpush.bf16.msra.mxu0 %v198
  %245 = vmatpush.bf16.msra.mxu0 %v197
  %246 = vmatpush.bf16.msra.mxu0 %v196
  %247 = vmatmul.bf16.gmra.mxu0 %v136
  %v248 = vpop.f32.mrf.mxu0
  %v249 = vadd.f32 0.0, %v248
  %v250 = vpop.f32.mrf.mxu0
  %v251 = vadd.f32 0.0, %v250
  %252 = vmatmul.bf16.gmra.mxu0 %v138
  %v253 = vpop.f32.mrf.mxu0
  %v254 = vadd.f32 0.0, %v253
  %v255 = vpop.f32.mrf.mxu0
  %v256 = vadd.f32 0.0, %v255
  %257 = vmatmul.bf16.gmra.mxu0 %v140
  %v258 = vpop.f32.mrf.mxu0
  %v259 = vadd.f32 0.0, %v258
  %v260 = vpop.f32.mrf.mxu0
  %v261 = vadd.f32 0.0, %v260
  %262 = vmatmul.bf16.gmra.mxu0 %v142
  %v263 = vpop.f32.mrf.mxu0
  %v264 = vadd.f32 0.0, %v263
  %v265 = vpop.f32.mrf.mxu0
  %v266 = vadd.f32 0.0, %v265
  %267 = vmatmul.bf16.gmra.mxu0 %v144
  %v268 = vpop.f32.mrf.mxu0
  %v269 = vadd.f32 0.0, %v268
  %v270 = vpop.f32.mrf.mxu0
  %v271 = vadd.f32 0.0, %v270
  %272 = vmatmul.bf16.gmra.mxu0 %v146
  %v273 = vpop.f32.mrf.mxu0
  %v274 = vadd.f32 0.0, %v273
  %v275 = vpop.f32.mrf.mxu0
  %v276 = vadd.f32 0.0, %v275
  %277 = vmatmul.bf16.gmra.mxu0 %v148
  %v278 = vpop.f32.mrf.mxu0
  %v279 = vadd.f32 0.0, %v278
  %v280 = vpop.f32.mrf.mxu0
  %v281 = vadd.f32 0.0, %v280
  %282 = vmatmul.bf16.gmra.mxu0 %v150
  %v283 = vpop.f32.mrf.mxu0
  %v284 = vadd.f32 0.0, %v283
  %v285 = vpop.f32.mrf.mxu0
  %v286 = vadd.f32 0.0, %v285
  %287 = vdwg.mxu0
  %288 = vmatpush.bf16.msra.mxu0 0
  %289 = vmatpush.bf16.msra.mxu0 0
  %290 = vmatpush.bf16.msra.mxu0 0
  %291 = vmatpush.bf16.msra.mxu0 0
  %292 = vmatpush.bf16.msra.mxu0 0
  %293 = vmatpush.bf16.msra.mxu0 0
  %294 = vmatpush.bf16.msra.mxu0 0
  %295 = vmatpush.bf16.msra.mxu0 %v204
  %296 = vmatmul.bf16.gmra.mxu0 %v216
  %v297 = vpop.f32.mrf.mxu0
  %v298 = vadd.f32 %v249, %v297
  %v299 = vpop.f32.mrf.mxu0
  %v300 = vadd.f32 %v251, %v299
  %301 = vmatmul.bf16.gmra.mxu0 %v219
  %v302 = vpop.f32.mrf.mxu0
  %v303 = vadd.f32 %v254, %v302
  %v304 = vpop.f32.mrf.mxu0
  %v305 = vadd.f32 %v256, %v304
  %306 = vmatmul.bf16.gmra.mxu0 %v222
  %v307 = vpop.f32.mrf.mxu0
  %v308 = vadd.f32 %v259, %v307
  %v309 = vpop.f32.mrf.mxu0
  %v310 = vadd.f32 %v261, %v309
  %311 = vmatmul.bf16.gmra.mxu0 %v225
  %v312 = vpop.f32.mrf.mxu0
  %v313 = vadd.f32 %v264, %v312
  %v314 = vpop.f32.mrf.mxu0
  %v315 = vadd.f32 %v266, %v314
  %316 = vmatmul.bf16.gmra.mxu0 %v228
  %v317 = vpop.f32.mrf.mxu0
  %v318 = vadd.f32 %v269, %v317
  %v319 = vpop.f32.mrf.mxu0
  %v320 = vadd.f32 %v271, %v319
  %321 = vmatmul.bf16.gmra.mxu0 %v231
  %v322 = vpop.f32.mrf.mxu0
  %v323 = vadd.f32 %v274, %v322
  %v324 = vpop.f32.mrf.mxu0
  %v325 = vadd.f32 %v276, %v324
  %326 = vmatmul.bf16.gmra.mxu0 %v234
  %v327 = vpop.f32.mrf.mxu0
  %v328 = vadd.f32 %v279, %v327
  %v329 = vpop.f32.mrf.mxu0
  %v330 = vadd.f32 %v281, %v329
  %331 = vmatmul.bf16.gmra.mxu0 %v237
  %v332 = vpop.f32.mrf.mxu0
  %v333 = vadd.f32 %v284, %v332
  %v334 = vpop.f32.mrf.mxu0
  %v335 = vadd.f32 %v286, %v334
  %336 = vdwg.mxu0
  %v337 = vadd.f32 %v38, %v298
  %v338 = vadd.f32 %v39, %v300
  %v339 = vadd.f32 %v40, %v303
  %v340 = vadd.f32 %v41, %v305
  %v341 = vadd.f32 %v42, %v308
  %v342 = vadd.f32 %v43, %v310
  %v343 = vadd.f32 %v44, %v313
  %v344 = vadd.f32 %v45, %v315
  %v345 = vadd.f32 %v46, %v318
  %v346 = vadd.f32 %v47, %v320
  %v347 = vadd.f32 %v48, %v323
  %v348 = vadd.f32 %v49, %v325
  %v349 = vadd.f32 %v50, %v328
  %v350 = vadd.f32 %v51, %v330
  %v351 = vadd.f32 %v52, %v333
  %v352 = vadd.f32 %v53, %v335
  %353 = vst [vmem:[#allocation2] sm:$0xff] %v337
  %354 = vst [vmem:[#allocation2 + $0x8] sm:$0xff] %v338
  %355 = vst [vmem:[#allocation2 + $0x10] sm:$0xff] %v339
  %356 = vst [vmem:[#allocation2 + $0x18] sm:$0xff] %v340
  %357 = vst [vmem:[#allocation2 + $0x20] sm:$0xff] %v341
  %358 = vst [vmem:[#allocation2 + $0x28] sm:$0xff] %v342
  %359 = vst [vmem:[#allocation2 + $0x30] sm:$0xff] %v343
  %360 = vst [vmem:[#allocation2 + $0x38] sm:$0xff] %v344
  %361 = vst [vmem:[#allocation2 + $0x40] sm:$0xff] %v345
  %362 = vst [vmem:[#allocation2 + $0x48] sm:$0xff] %v346
  %363 = vst [vmem:[#allocation2 + $0x50] sm:$0xff] %v347
  %364 = vst [vmem:[#allocation2 + $0x58] sm:$0xff] %v348
  %365 = vst [vmem:[#allocation2 + $0x60] sm:$0xff] %v349
  %366 = vst [vmem:[#allocation2 + $0x68] sm:$0xff] %v350
  %367 = vst [vmem:[#allocation2 + $0x70] sm:$0xff] %v351
  %368 = vst [vmem:[#allocation2 + $0x78] sm:$0xff] %v352
  // Predicated region
  $region22: #{cotrain_forward.18} parent=0 // pred_check
    %p369 = pneg %p18
  $region23: #{cotrain_forward.18} parent=0 // pred_check_branch
    %371 = sbr.rel (%p369) target = $region25
  $region24: #{cotrain_forward.18} parent=0 // pred_region
    %v372 = vld [vmem:[#allocation2] sm:$0xff]
    %v373 = vld [vmem:[#allocation2 + $0x8] sm:$0xff]
    %v374 = vld [vmem:[#allocation2 + $0x10] sm:$0xff]
    %v375 = vld [vmem:[#allocation2 + $0x18] sm:$0xff]
    %v376 = vld [vmem:[#allocation2 + $0x20] sm:$0xff]
    %v377 = vld [vmem:[#allocation2 + $0x28] sm:$0xff]
    %v378 = vld [vmem:[#allocation2 + $0x30] sm:$0xff]
    %v379 = vld [vmem:[#allocation2 + $0x38] sm:$0xff]
    %v380 = vld [vmem:[#allocation2 + $0x40] sm:$0xff]
    %v381 = vld [vmem:[#allocation2 + $0x48] sm:$0xff]
    %v382 = vld [vmem:[#allocation2 + $0x50] sm:$0xff]
    %v383 = vld [vmem:[#allocation2 + $0x58] sm:$0xff]
    %v384 = vld [vmem:[#allocation2 + $0x60] sm:$0xff]
    %v385 = vld [vmem:[#allocation2 + $0x68] sm:$0xff]
    %v386 = vld [vmem:[#allocation2 + $0x70] sm:$0xff]
    %v387 = vld [vmem:[#allocation2 + $0x78] sm:$0xff]
    %v388 = vld [vmem:[%s2] sm:$0x1]
    %v390 = vperm.slane %v388, 0
    %v392 = vmul.f32 %v372, %v390
    %v393 = vmul.f32 %v373, %v390
    %v394 = vmul.f32 %v374, %v390
    %v395 = vmul.f32 %v375, %v390
    %v396 = vmul.f32 %v376, %v390
    %v397 = vmul.f32 %v377, %v390
    %v398 = vmul.f32 %v378, %v390
    %v399 = vmul.f32 %v379, %v390
    %v400 = vmul.f32 %v380, %v390
    %v401 = vmul.f32 %v381, %v390
    %v402 = vmul.f32 %v382, %v390
    %v403 = vmul.f32 %v383, %v390
    %v404 = vmul.f32 %v384, %v390
    %v405 = vmul.f32 %v385, %v390
    %v406 = vmul.f32 %v386, %v390
    %v407 = vmul.f32 %v387, %v390
    %v408 = vld [vmem:[%s3] sm:$0x1]
    %v410 = vperm.slane %v408, 0
    %v412 = vadd.f32 %v392, %v410
    %v413 = vadd.f32 %v393, %v410
    %v414 = vadd.f32 %v394, %v410
    %v415 = vadd.f32 %v395, %v410
    %v416 = vadd.f32 %v396, %v410
    %v417 = vadd.f32 %v397, %v410
    %v418 = vadd.f32 %v398, %v410
    %v419 = vadd.f32 %v399, %v410
    %v420 = vadd.f32 %v400, %v410
    %v421 = vadd.f32 %v401, %v410
    %v422 = vadd.f32 %v402, %v410
    %v423 = vadd.f32 %v403, %v410
    %v424 = vadd.f32 %v404, %v410
    %v425 = vadd.f32 %v405, %v410
    %v426 = vadd.f32 %v406, %v410
    %v427 = vadd.f32 %v407, %v410
    %v428 = vmax.f32 %v412, 0.0
    %v429 = vmax.f32 %v413, 0.0
    %v430 = vmax.f32 %v414, 0.0
    %v431 = vmax.f32 %v415, 0.0
    %v432 = vmax.f32 %v416, 0.0
    %v433 = vmax.f32 %v417, 0.0
    %v434 = vmax.f32 %v418, 0.0
    %v435 = vmax.f32 %v419, 0.0
    %v436 = vmax.f32 %v420, 0.0
    %v437 = vmax.f32 %v421, 0.0
    %v438 = vmax.f32 %v422, 0.0
    %v439 = vmax.f32 %v423, 0.0
    %v440 = vmax.f32 %v424, 0.0
    %v441 = vmax.f32 %v425, 0.0
    %v442 = vmax.f32 %v426, 0.0
    %v443 = vmax.f32 %v427, 0.0
    %v444 = vpack.c.bf16 %v428, %v428
    %v445 = vpack.c.bf16 %v429, %v429
    %v446 = vpack.c.bf16 %v430, %v430
    %v447 = vpack.c.bf16 %v431, %v431
    %v448 = vpack.c.bf16 %v432, %v432
    %v449 = vpack.c.bf16 %v433, %v433
    %v450 = vpack.c.bf16 %v434, %v434
    %v451 = vpack.c.bf16 %v435, %v435
    %v452 = vpack.c.bf16 %v436, %v436
    %v453 = vpack.c.bf16 %v437, %v437
    %v454 = vpack.c.bf16 %v438, %v438
    %v455 = vpack.c.bf16 %v439, %v439
    %v456 = vpack.c.bf16 %v440, %v440
    %v457 = vpack.c.bf16 %v441, %v441
    %v458 = vpack.c.bf16 %v442, %v442
    %v459 = vpack.c.bf16 %v443, %v443
    %460 = vst [vmem:[%s4] sm:$0xf] %v444
    %461 = vst [vmem:[%s4 + $0x4] sm:$0xf] %v445
    %462 = vst [vmem:[%s4 + $0x8] sm:$0xf] %v446
    %463 = vst [vmem:[%s4 + $0xc] sm:$0xf] %v447
    %464 = vst [vmem:[%s4 + $0x10] sm:$0xf] %v448
    %465 = vst [vmem:[%s4 + $0x14] sm:$0xf] %v449
    %466 = vst [vmem:[%s4 + $0x18] sm:$0xf] %v450
    %467 = vst [vmem:[%s4 + $0x1c] sm:$0xf] %v451
    %468 = vst [vmem:[%s4 + $0x20] sm:$0xf] %v452
    %469 = vst [vmem:[%s4 + $0x24] sm:$0xf] %v453
    %470 = vst [vmem:[%s4 + $0x28] sm:$0xf] %v454
    %471 = vst [vmem:[%s4 + $0x2c] sm:$0xf] %v455
    %472 = vst [vmem:[%s4 + $0x30] sm:$0xf] %v456
    %473 = vst [vmem:[%s4 + $0x34] sm:$0xf] %v457
    %474 = vst [vmem:[%s4 + $0x38] sm:$0xf] %v458
    %475 = vst [vmem:[%s4 + $0x3c] sm:$0xf] %v459
  $region25: #{cotrain_forward.18} parent=0 // pred_fallthru
    _
  // Predicated region
  $region26: #{cotrain_forward.18} parent=0 // pred_check
    _
  $region27: #{cotrain_forward.18} parent=0 // pred_check_branch
    %477 = sbr.rel (0) target = $region29
  $region28: #{cotrain_forward.18} parent=0 // pred_region
    _
  $region29: #{cotrain_forward.18} parent=0 // pred_fallthru
    _
  // Predicated region
  $region30: #{cotrain_forward.18} parent=0 // pred_check
    _
  $region31: #{cotrain_forward.18} parent=0 // pred_check_branch
    %479 = sbr.rel (0) target = $region33
  $region32: #{cotrain_forward.18} parent=0 // pred_region
    _
  $region33: #{cotrain_forward.18} parent=0 // pred_fallthru
    _

// kernel: cotrain_forward.19
$region0: #{cotrain_forward.19}
  #allocation0 [shape = 'u32[]', space=smem, size = 0x4, offset = 0x4, fixed_abs, tag = 'smem constant byte address 0x4 - core index']
  #allocation1 [shape = 'u32[72,128]{1,0:T(1,128)}', space=vmem, size = 0x9000, scoped, tag = 'internal scratch']
  #allocation2 [shape = 'f32[128,128]{1,0:T(8,128)}', space=vmem, size = 0x10000, scoped, tag = 'scratch operand']
  %s0 = inlined_call_operand.vmem [shape: bf16[128,144], index: 0, kind: input, shape index: {}]
  %s1 = inlined_call_operand.vmem [shape: bf16[144,128], index: 1, kind: input, shape index: {}]
  %s2 = inlined_call_operand.vmem [shape: f32[1,128], index: 2, kind: input, shape index: {}]
  %s3 = inlined_call_operand.vmem [shape: f32[1,128], index: 3, kind: input, shape index: {}]
  %s4 = inlined_call_operand.vmem [shape: bf16[128,128], index: 4, kind: input, shape index: {}]
  %s5 = inlined_call_operand.vmem [shape: bf16[128,128], index: 5, kind: output, shape index: {}]
  %s6 = sld [smem:[#allocation0]]
  $region38: #{cotrain_forward.19} parent=0
    _
  %s8 = ssub.s32 1, %s6
  %s9 = scalar_select 0, %s8, %s6
  // Predicated region
  $region2: #{cotrain_forward.19} parent=0 // pred_check
    _
  $region3: #{cotrain_forward.19} parent=0 // pred_check_branch
    %11 = sbr.rel (0) target = $region5
  $region4: #{cotrain_forward.19} parent=0 // pred_region
    _
  $region5: #{cotrain_forward.19} parent=0 // pred_fallthru
    _
  // Predicated region
  $region6: #{cotrain_forward.19} parent=0 // pred_check
    _
  $region7: #{cotrain_forward.19} parent=0 // pred_check_branch
    %13 = sbr.rel (0) target = $region9
  $region8: #{cotrain_forward.19} parent=0 // pred_region
    _
  $region9: #{cotrain_forward.19} parent=0 // pred_fallthru
    _
  // Predicated region
  $region10: #{cotrain_forward.19} parent=0 // pred_check
    _
  $region11: #{cotrain_forward.19} parent=0 // pred_check_branch
    %15 = sbr.rel (0) target = $region13
  $region12: #{cotrain_forward.19} parent=0 // pred_region
    _
  $region13: #{cotrain_forward.19} parent=0 // pred_fallthru
    _
  // Predicated region
  $region14: #{cotrain_forward.19} parent=0 // pred_check
    _
  $region15: #{cotrain_forward.19} parent=0 // pred_check_branch
    %17 = sbr.rel (0) target = $region17
  $region16: #{cotrain_forward.19} parent=0 // pred_region
    _
  $region17: #{cotrain_forward.19} parent=0 // pred_fallthru
    _
  // Predicated region
  $region18: #{cotrain_forward.19} parent=0 // pred_check
    _
  $region19: #{cotrain_forward.19} parent=0 // pred_check_branch
    %19 = sbr.rel (0) target = $region21
  $region20: #{cotrain_forward.19} parent=0 // pred_region
    _
  $region21: #{cotrain_forward.19} parent=0 // pred_fallthru
    _
  %p21 = scmp.eq.s32.totalorder 0, 0
  // Predicated region
  $region22: #{cotrain_forward.19} parent=0 // pred_check
    %p22 = pneg %p21
  $region23: #{cotrain_forward.19} parent=0 // pred_check_branch
    %24 = sbr.rel (%p22) target = $region25
  $region24: #{cotrain_forward.19} parent=0 // pred_region
    %25 = vst [vmem:[#allocation2] sm:$0xff] 0.0
    %26 = vst [vmem:[#allocation2 + $0x8] sm:$0xff] 0.0
    %27 = vst [vmem:[#allocation2 + $0x10] sm:$0xff] 0.0
    %28 = vst [vmem:[#allocation2 + $0x18] sm:$0xff] 0.0
    %29 = vst [vmem:[#allocation2 + $0x20] sm:$0xff] 0.0
    %30 = vst [vmem:[#allocation2 + $0x28] sm:$0xff] 0.0
    %31 = vst [vmem:[#allocation2 + $0x30] sm:$0xff] 0.0
    %32 = vst [vmem:[#allocation2 + $0x38] sm:$0xff] 0.0
    %33 = vst [vmem:[#allocation2 + $0x40] sm:$0xff] 0.0
    %34 = vst [vmem:[#allocation2 + $0x48] sm:$0xff] 0.0
    %35 = vst [vmem:[#allocation2 + $0x50] sm:$0xff] 0.0
    %36 = vst [vmem:[#allocation2 + $0x58] sm:$0xff] 0.0
    %37 = vst [vmem:[#allocation2 + $0x60] sm:$0xff] 0.0
    %38 = vst [vmem:[#allocation2 + $0x68] sm:$0xff] 0.0
    %39 = vst [vmem:[#allocation2 + $0x70] sm:$0xff] 0.0
    %40 = vst [vmem:[#allocation2 + $0x78] sm:$0xff] 0.0
  $region25: #{cotrain_forward.19} parent=0 // pred_fallthru
    _
  %v41 = vld [vmem:[#allocation2] sm:$0xff]
  %v42 = vld [vmem:[#allocation2 + $0x8] sm:$0xff]
  %v43 = vld [vmem:[#allocation2 + $0x10] sm:$0xff]
  %v44 = vld [vmem:[#allocation2 + $0x18] sm:$0xff]
  %v45 = vld [vmem:[#allocation2 + $0x20] sm:$0xff]
  %v46 = vld [vmem:[#allocation2 + $0x28] sm:$0xff]
  %v47 = vld [vmem:[#allocation2 + $0x30] sm:$0xff]
  %v48 = vld [vmem:[#allocation2 + $0x38] sm:$0xff]
  %v49 = vld [vmem:[#allocation2 + $0x40] sm:$0xff]
  %v50 = vld [vmem:[#allocation2 + $0x48] sm:$0xff]
  %v51 = vld [vmem:[#allocation2 + $0x50] sm:$0xff]
  %v52 = vld [vmem:[#allocation2 + $0x58] sm:$0xff]
  %v53 = vld [vmem:[#allocation2 + $0x60] sm:$0xff]
  %v54 = vld [vmem:[#allocation2 + $0x68] sm:$0xff]
  %v55 = vld [vmem:[#allocation2 + $0x70] sm:$0xff]
  %v56 = vld [vmem:[#allocation2 + $0x78] sm:$0xff]
  %v57 = vld [vmem:[%s0] sm:$0xff]
  %v58 = vld [vmem:[%s0 + $0x8] sm:$0xff]
  %v59 = vld [vmem:[%s0 + $0x10] sm:$0xff]
  %v60 = vld [vmem:[%s0 + $0x18] sm:$0xff]
  %v61 = vld [vmem:[%s0 + $0x20] sm:$0xff]
  %v62 = vld [vmem:[%s0 + $0x28] sm:$0xff]
  %v63 = vld [vmem:[%s0 + $0x30] sm:$0xff]
  %v64 = vld [vmem:[%s0 + $0x38] sm:$0xff]
  %v65 = vld [vmem:[%s0 + $0x40] sm:$0xff]
  %v66 = vld [vmem:[%s0 + $0x48] sm:$0xff]
  %v67 = vld [vmem:[%s0 + $0x50] sm:$0xff]
  %v68 = vld [vmem:[%s0 + $0x58] sm:$0xff]
  %v69 = vld [vmem:[%s0 + $0x60] sm:$0xff]
  %v70 = vld [vmem:[%s0 + $0x68] sm:$0xff]
  %v71 = vld [vmem:[%s0 + $0x70] sm:$0xff]
  %v72 = vld [vmem:[%s0 + $0x78] sm:$0xff]
  %v73 = vld [vmem:[%s1] sm:$0xf]
  %v74 = vld [vmem:[%s1 + $0x4] sm:$0xf]
  %v75 = vld [vmem:[%s1 + $0x8] sm:$0xf]
  %v76 = vld [vmem:[%s1 + $0xc] sm:$0xf]
  %v77 = vld [vmem:[%s1 + $0x10] sm:$0xf]
  %v78 = vld [vmem:[%s1 + $0x14] sm:$0xf]
  %v79 = vld [vmem:[%s1 + $0x18] sm:$0xf]
  %v80 = vld [vmem:[%s1 + $0x1c] sm:$0xf]
  %v81 = vld [vmem:[%s1 + $0x20] sm:$0xf]
  %v82 = vld [vmem:[%s1 + $0x24] sm:$0xf]
  %v83 = vld [vmem:[%s1 + $0x28] sm:$0xf]
  %v84 = vld [vmem:[%s1 + $0x2c] sm:$0xf]
  %v85 = vld [vmem:[%s1 + $0x30] sm:$0xf]
  %v86 = vld [vmem:[%s1 + $0x34] sm:$0xf]
  %v87 = vld [vmem:[%s1 + $0x38] sm:$0xf]
  %v88 = vld [vmem:[%s1 + $0x3c] sm:$0xf]
  %v89 = vld [vmem:[%s1 + $0x40] sm:$0xf]
  %v90 = vld [vmem:[%s1 + $0x44] sm:$0xf]
  %v107 = vunpack.c.l.b16 %v57
  %v108 = vunpack.c.h.b16 %v57
  %v109 = vunpack.c.l.b16 %v58
  %v110 = vunpack.c.h.b16 %v58
  %v111 = vunpack.c.l.b16 %v59
  %v112 = vunpack.c.h.b16 %v59
  %v113 = vunpack.c.l.b16 %v60
  %v114 = vunpack.c.h.b16 %v60
  %v115 = vunpack.c.l.b16 %v61
  %v116 = vunpack.c.h.b16 %v61
  %v117 = vunpack.c.l.b16 %v62
  %v118 = vunpack.c.h.b16 %v62
  %v119 = vunpack.c.l.b16 %v63
  %v120 = vunpack.c.h.b16 %v63
  %v121 = vunpack.c.l.b16 %v64
  %v122 = vunpack.c.h.b16 %v64
  %v123 = vunpack.c.l.b16 %v65
  %v124 = vunpack.c.h.b16 %v65
  %v125 = vunpack.c.l.b16 %v66
  %v126 = vunpack.c.h.b16 %v66
  %v127 = vunpack.c.l.b16 %v67
  %v128 = vunpack.c.h.b16 %v67
  %v129 = vunpack.c.l.b16 %v68
  %v130 = vunpack.c.h.b16 %v68
  %v131 = vunpack.c.l.b16 %v69
  %v132 = vunpack.c.h.b16 %v69
  %v133 = vunpack.c.l.b16 %v70
  %v134 = vunpack.c.h.b16 %v70
  %v135 = vunpack.c.l.b16 %v71
  %v136 = vunpack.c.h.b16 %v71
  %v137 = vunpack.c.l.b16 %v72
  %v138 = vunpack.c.h.b16 %v72
  %v139 = vpack.c.b16 %v109, %v107
  %v140 = vpack.c.b16 %v110, %v108
  %v141 = vpack.c.b16 %v113, %v111
  %v142 = vpack.c.b16 %v114, %v112
  %v143 = vpack.c.b16 %v117, %v115
  %v144 = vpack.c.b16 %v118, %v116
  %v145 = vpack.c.b16 %v121, %v119
  %v146 = vpack.c.b16 %v122, %v120
  %v147 = vpack.c.b16 %v125, %v123
  %v148 = vpack.c.b16 %v126, %v124
  %v149 = vpack.c.b16 %v129, %v127
  %v150 = vpack.c.b16 %v130, %v128
  %v151 = vpack.c.b16 %v133, %v131
  %v152 = vpack.c.b16 %v134, %v132
  %v153 = vpack.c.b16 %v137, %v135
  %v154 = vpack.c.b16 %v138, %v136
  %v181 = vunpack.c.l.b16 %v73
  %v182 = vunpack.c.l.b16 %v74
  %v183 = vunpack.c.l.b16 %v75
  %v184 = vunpack.c.l.b16 %v76
  %v185 = vunpack.c.l.b16 %v77
  %v186 = vunpack.c.l.b16 %v78
  %v187 = vunpack.c.l.b16 %v79
  %v188 = vunpack.c.l.b16 %v80
  %v189 = vunpack.c.l.b16 %v81
  %v190 = vunpack.c.l.b16 %v82
  %v191 = vunpack.c.l.b16 %v83
  %v192 = vunpack.c.l.b16 %v84
  %v193 = vunpack.c.l.b16 %v85
  %v194 = vunpack.c.l.b16 %v86
  %v195 = vunpack.c.l.b16 %v87
  %v196 = vunpack.c.l.b16 %v88
  %v197 = vunpack.c.l.b16 %v89
  %v198 = vunpack.c.l.b16 %v90
  %v199 = vpack.c.b16 %v182, %v181
  %v200 = vpack.c.b16 %v184, %v183
  %v201 = vpack.c.b16 %v186, %v185
  %v202 = vpack.c.b16 %v188, %v187
  %v203 = vpack.c.b16 %v190, %v189
  %v204 = vpack.c.b16 %v192, %v191
  %v205 = vpack.c.b16 %v194, %v193
  %v206 = vpack.c.b16 %v196, %v195
  %v207 = vpack.c.b16 %v198, %v197
  %vm217 = vcmask 130048
  %v219 = vsel %vm217, %v140, 0
  %v222 = vsel %vm217, %v142, 0
  %v225 = vsel %vm217, %v144, 0
  %v228 = vsel %vm217, %v146, 0
  %v231 = vsel %vm217, %v148, 0
  %v234 = vsel %vm217, %v150, 0
  %v237 = vsel %vm217, %v152, 0
  %v240 = vsel %vm217, %v154, 0
  %242 = vmatpush.bf16.msra.mxu0 %v206
  %243 = vmatpush.bf16.msra.mxu0 %v205
  %244 = vmatpush.bf16.msra.mxu0 %v204
  %245 = vmatpush.bf16.msra.mxu0 %v203
  %246 = vmatpush.bf16.msra.mxu0 %v202
  %247 = vmatpush.bf16.msra.mxu0 %v201
  %248 = vmatpush.bf16.msra.mxu0 %v200
  %249 = vmatpush.bf16.msra.mxu0 %v199
  %250 = vmatmul.bf16.gmra.mxu0 %v139
  %v251 = vpop.f32.mrf.mxu0
  %v252 = vadd.f32 0.0, %v251
  %v253 = vpop.f32.mrf.mxu0
  %v254 = vadd.f32 0.0, %v253
  %255 = vmatmul.bf16.gmra.mxu0 %v141
  %v256 = vpop.f32.mrf.mxu0
  %v257 = vadd.f32 0.0, %v256
  %v258 = vpop.f32.mrf.mxu0
  %v259 = vadd.f32 0.0, %v258
  %260 = vmatmul.bf16.gmra.mxu0 %v143
  %v261 = vpop.f32.mrf.mxu0
  %v262 = vadd.f32 0.0, %v261
  %v263 = vpop.f32.mrf.mxu0
  %v264 = vadd.f32 0.0, %v263
  %265 = vmatmul.bf16.gmra.mxu0 %v145
  %v266 = vpop.f32.mrf.mxu0
  %v267 = vadd.f32 0.0, %v266
  %v268 = vpop.f32.mrf.mxu0
  %v269 = vadd.f32 0.0, %v268
  %270 = vmatmul.bf16.gmra.mxu0 %v147
  %v271 = vpop.f32.mrf.mxu0
  %v272 = vadd.f32 0.0, %v271
  %v273 = vpop.f32.mrf.mxu0
  %v274 = vadd.f32 0.0, %v273
  %275 = vmatmul.bf16.gmra.mxu0 %v149
  %v276 = vpop.f32.mrf.mxu0
  %v277 = vadd.f32 0.0, %v276
  %v278 = vpop.f32.mrf.mxu0
  %v279 = vadd.f32 0.0, %v278
  %280 = vmatmul.bf16.gmra.mxu0 %v151
  %v281 = vpop.f32.mrf.mxu0
  %v282 = vadd.f32 0.0, %v281
  %v283 = vpop.f32.mrf.mxu0
  %v284 = vadd.f32 0.0, %v283
  %285 = vmatmul.bf16.gmra.mxu0 %v153
  %v286 = vpop.f32.mrf.mxu0
  %v287 = vadd.f32 0.0, %v286
  %v288 = vpop.f32.mrf.mxu0
  %v289 = vadd.f32 0.0, %v288
  %290 = vdwg.mxu0
  %291 = vmatpush.bf16.msra.mxu0 0
  %292 = vmatpush.bf16.msra.mxu0 0
  %293 = vmatpush.bf16.msra.mxu0 0
  %294 = vmatpush.bf16.msra.mxu0 0
  %295 = vmatpush.bf16.msra.mxu0 0
  %296 = vmatpush.bf16.msra.mxu0 0
  %297 = vmatpush.bf16.msra.mxu0 0
  %298 = vmatpush.bf16.msra.mxu0 %v207
  %299 = vmatmul.bf16.gmra.mxu0 %v219
  %v300 = vpop.f32.mrf.mxu0
  %v301 = vadd.f32 %v252, %v300
  %v302 = vpop.f32.mrf.mxu0
  %v303 = vadd.f32 %v254, %v302
  %304 = vmatmul.bf16.gmra.mxu0 %v222
  %v305 = vpop.f32.mrf.mxu0
  %v306 = vadd.f32 %v257, %v305
  %v307 = vpop.f32.mrf.mxu0
  %v308 = vadd.f32 %v259, %v307
  %309 = vmatmul.bf16.gmra.mxu0 %v225
  %v310 = vpop.f32.mrf.mxu0
  %v311 = vadd.f32 %v262, %v310
  %v312 = vpop.f32.mrf.mxu0
  %v313 = vadd.f32 %v264, %v312
  %314 = vmatmul.bf16.gmra.mxu0 %v228
  %v315 = vpop.f32.mrf.mxu0
  %v316 = vadd.f32 %v267, %v315
  %v317 = vpop.f32.mrf.mxu0
  %v318 = vadd.f32 %v269, %v317
  %319 = vmatmul.bf16.gmra.mxu0 %v231
  %v320 = vpop.f32.mrf.mxu0
  %v321 = vadd.f32 %v272, %v320
  %v322 = vpop.f32.mrf.mxu0
  %v323 = vadd.f32 %v274, %v322
  %324 = vmatmul.bf16.gmra.mxu0 %v234
  %v325 = vpop.f32.mrf.mxu0
  %v326 = vadd.f32 %v277, %v325
  %v327 = vpop.f32.mrf.mxu0
  %v328 = vadd.f32 %v279, %v327
  %329 = vmatmul.bf16.gmra.mxu0 %v237
  %v330 = vpop.f32.mrf.mxu0
  %v331 = vadd.f32 %v282, %v330
  %v332 = vpop.f32.mrf.mxu0
  %v333 = vadd.f32 %v284, %v332
  %334 = vmatmul.bf16.gmra.mxu0 %v240
  %v335 = vpop.f32.mrf.mxu0
  %v336 = vadd.f32 %v287, %v335
  %v337 = vpop.f32.mrf.mxu0
  %v338 = vadd.f32 %v289, %v337
  %339 = vdwg.mxu0
  %v340 = vadd.f32 %v41, %v301
  %v341 = vadd.f32 %v42, %v303
  %v342 = vadd.f32 %v43, %v306
  %v343 = vadd.f32 %v44, %v308
  %v344 = vadd.f32 %v45, %v311
  %v345 = vadd.f32 %v46, %v313
  %v346 = vadd.f32 %v47, %v316
  %v347 = vadd.f32 %v48, %v318
  %v348 = vadd.f32 %v49, %v321
  %v349 = vadd.f32 %v50, %v323
  %v350 = vadd.f32 %v51, %v326
  %v351 = vadd.f32 %v52, %v328
  %v352 = vadd.f32 %v53, %v331
  %v353 = vadd.f32 %v54, %v333
  %v354 = vadd.f32 %v55, %v336
  %v355 = vadd.f32 %v56, %v338
  %356 = vst [vmem:[#allocation2] sm:$0xff] %v340
  %357 = vst [vmem:[#allocation2 + $0x8] sm:$0xff] %v341
  %358 = vst [vmem:[#allocation2 + $0x10] sm:$0xff] %v342
  %359 = vst [vmem:[#allocation2 + $0x18] sm:$0xff] %v343
  %360 = vst [vmem:[#allocation2 + $0x20] sm:$0xff] %v344
  %361 = vst [vmem:[#allocation2 + $0x28] sm:$0xff] %v345
  %362 = vst [vmem:[#allocation2 + $0x30] sm:$0xff] %v346
  %363 = vst [vmem:[#allocation2 + $0x38] sm:$0xff] %v347
  %364 = vst [vmem:[#allocation2 + $0x40] sm:$0xff] %v348
  %365 = vst [vmem:[#allocation2 + $0x48] sm:$0xff] %v349
  %366 = vst [vmem:[#allocation2 + $0x50] sm:$0xff] %v350
  %367 = vst [vmem:[#allocation2 + $0x58] sm:$0xff] %v351
  %368 = vst [vmem:[#allocation2 + $0x60] sm:$0xff] %v352
  %369 = vst [vmem:[#allocation2 + $0x68] sm:$0xff] %v353
  %370 = vst [vmem:[#allocation2 + $0x70] sm:$0xff] %v354
  %371 = vst [vmem:[#allocation2 + $0x78] sm:$0xff] %v355
  // Predicated region
  $region26: #{cotrain_forward.19} parent=0 // pred_check
    %p372 = pneg %p21
  $region27: #{cotrain_forward.19} parent=0 // pred_check_branch
    %374 = sbr.rel (%p372) target = $region29
  $region28: #{cotrain_forward.19} parent=0 // pred_region
    %v375 = vld [vmem:[#allocation2] sm:$0xff]
    %v376 = vld [vmem:[#allocation2 + $0x8] sm:$0xff]
    %v377 = vld [vmem:[#allocation2 + $0x10] sm:$0xff]
    %v378 = vld [vmem:[#allocation2 + $0x18] sm:$0xff]
    %v379 = vld [vmem:[#allocation2 + $0x20] sm:$0xff]
    %v380 = vld [vmem:[#allocation2 + $0x28] sm:$0xff]
    %v381 = vld [vmem:[#allocation2 + $0x30] sm:$0xff]
    %v382 = vld [vmem:[#allocation2 + $0x38] sm:$0xff]
    %v383 = vld [vmem:[#allocation2 + $0x40] sm:$0xff]
    %v384 = vld [vmem:[#allocation2 + $0x48] sm:$0xff]
    %v385 = vld [vmem:[#allocation2 + $0x50] sm:$0xff]
    %v386 = vld [vmem:[#allocation2 + $0x58] sm:$0xff]
    %v387 = vld [vmem:[#allocation2 + $0x60] sm:$0xff]
    %v388 = vld [vmem:[#allocation2 + $0x68] sm:$0xff]
    %v389 = vld [vmem:[#allocation2 + $0x70] sm:$0xff]
    %v390 = vld [vmem:[#allocation2 + $0x78] sm:$0xff]
    %v391 = vld [vmem:[%s2] sm:$0x1]
    %v393 = vperm.slane %v391, 0
    %v395 = vmul.f32 %v375, %v393
    %v396 = vmul.f32 %v376, %v393
    %v397 = vmul.f32 %v377, %v393
    %v398 = vmul.f32 %v378, %v393
    %v399 = vmul.f32 %v379, %v393
    %v400 = vmul.f32 %v380, %v393
    %v401 = vmul.f32 %v381, %v393
    %v402 = vmul.f32 %v382, %v393
    %v403 = vmul.f32 %v383, %v393
    %v404 = vmul.f32 %v384, %v393
    %v405 = vmul.f32 %v385, %v393
    %v406 = vmul.f32 %v386, %v393
    %v407 = vmul.f32 %v387, %v393
    %v408 = vmul.f32 %v388, %v393
    %v409 = vmul.f32 %v389, %v393
    %v410 = vmul.f32 %v390, %v393
    %v411 = vld [vmem:[%s3] sm:$0x1]
    %v413 = vperm.slane %v411, 0
    %v415 = vadd.f32 %v395, %v413
    %v416 = vadd.f32 %v396, %v413
    %v417 = vadd.f32 %v397, %v413
    %v418 = vadd.f32 %v398, %v413
    %v419 = vadd.f32 %v399, %v413
    %v420 = vadd.f32 %v400, %v413
    %v421 = vadd.f32 %v401, %v413
    %v422 = vadd.f32 %v402, %v413
    %v423 = vadd.f32 %v403, %v413
    %v424 = vadd.f32 %v404, %v413
    %v425 = vadd.f32 %v405, %v413
    %v426 = vadd.f32 %v406, %v413
    %v427 = vadd.f32 %v407, %v413
    %v428 = vadd.f32 %v408, %v413
    %v429 = vadd.f32 %v409, %v413
    %v430 = vadd.f32 %v410, %v413
    %v431 = vld [vmem:[%s4] sm:$0xf]
    %v432 = vld [vmem:[%s4 + $0x4] sm:$0xf]
    %v433 = vld [vmem:[%s4 + $0x8] sm:$0xf]
    %v434 = vld [vmem:[%s4 + $0xc] sm:$0xf]
    %v435 = vld [vmem:[%s4 + $0x10] sm:$0xf]
    %v436 = vld [vmem:[%s4 + $0x14] sm:$0xf]
    %v437 = vld [vmem:[%s4 + $0x18] sm:$0xf]
    %v438 = vld [vmem:[%s4 + $0x1c] sm:$0xf]
    %v439 = vld [vmem:[%s4 + $0x20] sm:$0xf]
    %v440 = vld [vmem:[%s4 + $0x24] sm:$0xf]
    %v441 = vld [vmem:[%s4 + $0x28] sm:$0xf]
    %v442 = vld [vmem:[%s4 + $0x2c] sm:$0xf]
    %v443 = vld [vmem:[%s4 + $0x30] sm:$0xf]
    %v444 = vld [vmem:[%s4 + $0x34] sm:$0xf]
    %v445 = vld [vmem:[%s4 + $0x38] sm:$0xf]
    %v446 = vld [vmem:[%s4 + $0x3c] sm:$0xf]
    %v447 = vunpack.c.l.bf16 %v431
    %v448 = vunpack.c.l.bf16 %v432
    %v449 = vunpack.c.l.bf16 %v433
    %v450 = vunpack.c.l.bf16 %v434
    %v451 = vunpack.c.l.bf16 %v435
    %v452 = vunpack.c.l.bf16 %v436
    %v453 = vunpack.c.l.bf16 %v437
    %v454 = vunpack.c.l.bf16 %v438
    %v455 = vunpack.c.l.bf16 %v439
    %v456 = vunpack.c.l.bf16 %v440
    %v457 = vunpack.c.l.bf16 %v441
    %v458 = vunpack.c.l.bf16 %v442
    %v459 = vunpack.c.l.bf16 %v443
    %v460 = vunpack.c.l.bf16 %v444
    %v461 = vunpack.c.l.bf16 %v445
    %v462 = vunpack.c.l.bf16 %v446
    %v463 = vadd.f32 %v415, %v447
    %v464 = vadd.f32 %v416, %v448
    %v465 = vadd.f32 %v417, %v449
    %v466 = vadd.f32 %v418, %v450
    %v467 = vadd.f32 %v419, %v451
    %v468 = vadd.f32 %v420, %v452
    %v469 = vadd.f32 %v421, %v453
    %v470 = vadd.f32 %v422, %v454
    %v471 = vadd.f32 %v423, %v455
    %v472 = vadd.f32 %v424, %v456
    %v473 = vadd.f32 %v425, %v457
    %v474 = vadd.f32 %v426, %v458
    %v475 = vadd.f32 %v427, %v459
    %v476 = vadd.f32 %v428, %v460
    %v477 = vadd.f32 %v429, %v461
    %v478 = vadd.f32 %v430, %v462
    %v479 = vmax.f32 %v463, 0.0
    %v480 = vmax.f32 %v464, 0.0
    %v481 = vmax.f32 %v465, 0.0
    %v482 = vmax.f32 %v466, 0.0
    %v483 = vmax.f32 %v467, 0.0
    %v484 = vmax.f32 %v468, 0.0
    %v485 = vmax.f32 %v469, 0.0
    %v486 = vmax.f32 %v470, 0.0
    %v487 = vmax.f32 %v471, 0.0
    %v488 = vmax.f32 %v472, 0.0
    %v489 = vmax.f32 %v473, 0.0
    %v490 = vmax.f32 %v474, 0.0
    %v491 = vmax.f32 %v475, 0.0
    %v492 = vmax.f32 %v476, 0.0
    %v493 = vmax.f32 %v477, 0.0
    %v494 = vmax.f32 %v478, 0.0
    %v495 = vpack.c.bf16 %v479, %v479
    %v496 = vpack.c.bf16 %v480, %v480
    %v497 = vpack.c.bf16 %v481, %v481
    %v498 = vpack.c.bf16 %v482, %v482
    %v499 = vpack.c.bf16 %v483, %v483
    %v500 = vpack.c.bf16 %v484, %v484
    %v501 = vpack.c.bf16 %v485, %v485
    %v502 = vpack.c.bf16 %v486, %v486
    %v503 = vpack.c.bf16 %v487, %v487
    %v504 = vpack.c.bf16 %v488, %v488
    %v505 = vpack.c.bf16 %v489, %v489
    %v506 = vpack.c.bf16 %v490, %v490
    %v507 = vpack.c.bf16 %v491, %v491
    %v508 = vpack.c.bf16 %v492, %v492
    %v509 = vpack.c.bf16 %v493, %v493
    %v510 = vpack.c.bf16 %v494, %v494
    %511 = vst [vmem:[%s5] sm:$0xf] %v495
    %512 = vst [vmem:[%s5 + $0x4] sm:$0xf] %v496
    %513 = vst [vmem:[%s5 + $0x8] sm:$0xf] %v497
    %514 = vst [vmem:[%s5 + $0xc] sm:$0xf] %v498
    %515 = vst [vmem:[%s5 + $0x10] sm:$0xf] %v499
    %516 = vst [vmem:[%s5 + $0x14] sm:$0xf] %v500
    %517 = vst [vmem:[%s5 + $0x18] sm:$0xf] %v501
    %518 = vst [vmem:[%s5 + $0x1c] sm:$0xf] %v502
    %519 = vst [vmem:[%s5 + $0x20] sm:$0xf] %v503
    %520 = vst [vmem:[%s5 + $0x24] sm:$0xf] %v504
    %521 = vst [vmem:[%s5 + $0x28] sm:$0xf] %v505
    %522 = vst [vmem:[%s5 + $0x2c] sm:$0xf] %v506
    %523 = vst [vmem:[%s5 + $0x30] sm:$0xf] %v507
    %524 = vst [vmem:[%s5 + $0x34] sm:$0xf] %v508
    %525 = vst [vmem:[%s5 + $0x38] sm:$0xf] %v509
    %526 = vst [vmem:[%s5 + $0x3c] sm:$0xf] %v510
  $region29: #{cotrain_forward.19} parent=0 // pred_fallthru
    _
  // Predicated region
  $region30: #{cotrain_forward.19} parent=0 // pred_check
    _
  $region31: #{cotrain_forward.19} parent=0 // pred_check_branch
    %528 = sbr.rel (0) target = $region33
  $region32: #{cotrain_forward.19} parent=0 // pred_region
    _
  $region33: #{cotrain_forward.19} parent=0 // pred_fallthru
    _
  // Predicated region
  $region34: #{cotrain_forward.19} parent=0 // pred_check
    _
  $region35: #{cotrain_forward.19} parent=0 // pred_check_branch
    %530 = sbr.rel (0) target = $region37
  $region36: #{cotrain_forward.19} parent=0 // pred_region
    _
  $region37: #{cotrain_forward.19} parent=0 // pred_fallthru
    _

// kernel: cotrain_forward.21
$region0: #{cotrain_forward.21}
  #allocation0 [shape = 'u32[]', space=smem, size = 0x4, offset = 0x4, fixed_abs, tag = 'smem constant byte address 0x4 - core index']
  #allocation1 [shape = 'u32[72,128]{1,0:T(1,128)}', space=vmem, size = 0x9000, scoped, tag = 'internal scratch']
  #allocation2 [shape = 'f32[32,128]{1,0:T(8,128)}', space=vmem, size = 0x4000, scoped, tag = 'scratch operand']
  %s0 = inlined_call_operand.vmem [shape: bf16[32,144], index: 0, kind: input, shape index: {}]
  %s1 = inlined_call_operand.vmem [shape: bf16[144,128], index: 1, kind: input, shape index: {}]
  %s2 = inlined_call_operand.vmem [shape: f32[1,128], index: 2, kind: input, shape index: {}]
  %s3 = inlined_call_operand.vmem [shape: f32[1,128], index: 3, kind: input, shape index: {}]
  %s4 = inlined_call_operand.vmem [shape: bf16[32,128], index: 4, kind: output, shape index: {}]
  %s5 = sld [smem:[#allocation0]]
  $region34: #{cotrain_forward.21} parent=0
    _
  %s7 = ssub.s32 1, %s5
  %s8 = scalar_select 0, %s7, %s5
  // Predicated region
  $region2: #{cotrain_forward.21} parent=0 // pred_check
    _
  $region3: #{cotrain_forward.21} parent=0 // pred_check_branch
    %10 = sbr.rel (0) target = $region5
  $region4: #{cotrain_forward.21} parent=0 // pred_region
    _
  $region5: #{cotrain_forward.21} parent=0 // pred_fallthru
    _
  // Predicated region
  $region6: #{cotrain_forward.21} parent=0 // pred_check
    _
  $region7: #{cotrain_forward.21} parent=0 // pred_check_branch
    %12 = sbr.rel (0) target = $region9
  $region8: #{cotrain_forward.21} parent=0 // pred_region
    _
  $region9: #{cotrain_forward.21} parent=0 // pred_fallthru
    _
  // Predicated region
  $region10: #{cotrain_forward.21} parent=0 // pred_check
    _
  $region11: #{cotrain_forward.21} parent=0 // pred_check_branch
    %14 = sbr.rel (0) target = $region13
  $region12: #{cotrain_forward.21} parent=0 // pred_region
    _
  $region13: #{cotrain_forward.21} parent=0 // pred_fallthru
    _
  // Predicated region
  $region14: #{cotrain_forward.21} parent=0 // pred_check
    _
  $region15: #{cotrain_forward.21} parent=0 // pred_check_branch
    %16 = sbr.rel (0) target = $region17
  $region16: #{cotrain_forward.21} parent=0 // pred_region
    _
  $region17: #{cotrain_forward.21} parent=0 // pred_fallthru
    _
  %p18 = scmp.eq.s32.totalorder 0, 0
  // Predicated region
  $region18: #{cotrain_forward.21} parent=0 // pred_check
    %p19 = pneg %p18
  $region19: #{cotrain_forward.21} parent=0 // pred_check_branch
    %21 = sbr.rel (%p19) target = $region21
  $region20: #{cotrain_forward.21} parent=0 // pred_region
    %22 = vst [vmem:[#allocation2] sm:$0xff] 0.0
    %23 = vst [vmem:[#allocation2 + $0x8] sm:$0xff] 0.0
    %24 = vst [vmem:[#allocation2 + $0x10] sm:$0xff] 0.0
    %25 = vst [vmem:[#allocation2 + $0x18] sm:$0xff] 0.0
  $region21: #{cotrain_forward.21} parent=0 // pred_fallthru
    _
  %v26 = vld [vmem:[#allocation2] sm:$0xff]
  %v27 = vld [vmem:[#allocation2 + $0x8] sm:$0xff]
  %v28 = vld [vmem:[#allocation2 + $0x10] sm:$0xff]
  %v29 = vld [vmem:[#allocation2 + $0x18] sm:$0xff]
  %v30 = vld [vmem:[%s0] sm:$0xff]
  %v31 = vld [vmem:[%s0 + $0x8] sm:$0xff]
  %v32 = vld [vmem:[%s0 + $0x10] sm:$0xff]
  %v33 = vld [vmem:[%s0 + $0x18] sm:$0xff]
  %v34 = vld [vmem:[%s1] sm:$0xf]
  %v35 = vld [vmem:[%s1 + $0x4] sm:$0xf]
  %v36 = vld [vmem:[%s1 + $0x8] sm:$0xf]
  %v37 = vld [vmem:[%s1 + $0xc] sm:$0xf]
  %v38 = vld [vmem:[%s1 + $0x10] sm:$0xf]
  %v39 = vld [vmem:[%s1 + $0x14] sm:$0xf]
  %v40 = vld [vmem:[%s1 + $0x18] sm:$0xf]
  %v41 = vld [vmem:[%s1 + $0x1c] sm:$0xf]
  %v42 = vld [vmem:[%s1 + $0x20] sm:$0xf]
  %v43 = vld [vmem:[%s1 + $0x24] sm:$0xf]
  %v44 = vld [vmem:[%s1 + $0x28] sm:$0xf]
  %v45 = vld [vmem:[%s1 + $0x2c] sm:$0xf]
  %v46 = vld [vmem:[%s1 + $0x30] sm:$0xf]
  %v47 = vld [vmem:[%s1 + $0x34] sm:$0xf]
  %v48 = vld [vmem:[%s1 + $0x38] sm:$0xf]
  %v49 = vld [vmem:[%s1 + $0x3c] sm:$0xf]
  %v50 = vld [vmem:[%s1 + $0x40] sm:$0xf]
  %v51 = vld [vmem:[%s1 + $0x44] sm:$0xf]
  %v56 = vunpack.c.l.b16 %v30
  %v57 = vunpack.c.h.b16 %v30
  %v58 = vunpack.c.l.b16 %v31
  %v59 = vunpack.c.h.b16 %v31
  %v60 = vunpack.c.l.b16 %v32
  %v61 = vunpack.c.h.b16 %v32
  %v62 = vunpack.c.l.b16 %v33
  %v63 = vunpack.c.h.b16 %v33
  %v64 = vpack.c.b16 %v58, %v56
  %v65 = vpack.c.b16 %v59, %v57
  %v66 = vpack.c.b16 %v62, %v60
  %v67 = vpack.c.b16 %v63, %v61
  %v88 = vunpack.c.l.b16 %v34
  %v89 = vunpack.c.l.b16 %v35
  %v90 = vunpack.c.l.b16 %v36
  %v91 = vunpack.c.l.b16 %v37
  %v92 = vunpack.c.l.b16 %v38
  %v93 = vunpack.c.l.b16 %v39
  %v94 = vunpack.c.l.b16 %v40
  %v95 = vunpack.c.l.b16 %v41
  %v96 = vunpack.c.l.b16 %v42
  %v97 = vunpack.c.l.b16 %v43
  %v98 = vunpack.c.l.b16 %v44
  %v99 = vunpack.c.l.b16 %v45
  %v100 = vunpack.c.l.b16 %v46
  %v101 = vunpack.c.l.b16 %v47
  %v102 = vunpack.c.l.b16 %v48
  %v103 = vunpack.c.l.b16 %v49
  %v104 = vunpack.c.l.b16 %v50
  %v105 = vunpack.c.l.b16 %v51
  %v106 = vpack.c.b16 %v89, %v88
  %v107 = vpack.c.b16 %v91, %v90
  %v108 = vpack.c.b16 %v93, %v92
  %v109 = vpack.c.b16 %v95, %v94
  %v110 = vpack.c.b16 %v97, %v96
  %v111 = vpack.c.b16 %v99, %v98
  %v112 = vpack.c.b16 %v101, %v100
  %v113 = vpack.c.b16 %v103, %v102
  %v114 = vpack.c.b16 %v105, %v104
  %vm124 = vcmask 130048
  %v126 = vsel %vm124, %v65, 0
  %v129 = vsel %vm124, %v67, 0
  %131 = vmatpush.bf16.msra.mxu0 %v113
  %132 = vmatpush.bf16.msra.mxu0 %v112
  %133 = vmatpush.bf16.msra.mxu0 %v111
  %134 = vmatpush.bf16.msra.mxu0 %v110
  %135 = vmatpush.bf16.msra.mxu0 %v109
  %136 = vmatpush.bf16.msra.mxu0 %v108
  %137 = vmatpush.bf16.msra.mxu0 %v107
  %138 = vmatpush.bf16.msra.mxu0 %v106
  %139 = vmatmul.bf16.gmra.mxu0 %v64
  %v140 = vpop.f32.mrf.mxu0
  %v141 = vadd.f32 0.0, %v140
  %v142 = vpop.f32.mrf.mxu0
  %v143 = vadd.f32 0.0, %v142
  %144 = vmatmul.bf16.gmra.mxu0 %v66
  %v145 = vpop.f32.mrf.mxu0
  %v146 = vadd.f32 0.0, %v145
  %v147 = vpop.f32.mrf.mxu0
  %v148 = vadd.f32 0.0, %v147
  %149 = vdwg.mxu0
  %150 = vmatpush.bf16.msra.mxu0 0
  %151 = vmatpush.bf16.msra.mxu0 0
  %152 = vmatpush.bf16.msra.mxu0 0
  %153 = vmatpush.bf16.msra.mxu0 0
  %154 = vmatpush.bf16.msra.mxu0 0
  %155 = vmatpush.bf16.msra.mxu0 0
  %156 = vmatpush.bf16.msra.mxu0 0
  %157 = vmatpush.bf16.msra.mxu0 %v114
  %158 = vmatmul.bf16.gmra.mxu0 %v126
  %v159 = vpop.f32.mrf.mxu0
  %v160 = vadd.f32 %v141, %v159
  %v161 = vpop.f32.mrf.mxu0
  %v162 = vadd.f32 %v143, %v161
  %163 = vmatmul.bf16.gmra.mxu0 %v129
  %v164 = vpop.f32.mrf.mxu0
  %v165 = vadd.f32 %v146, %v164
  %v166 = vpop.f32.mrf.mxu0
  %v167 = vadd.f32 %v148, %v166
  %168 = vdwg.mxu0
  %v169 = vadd.f32 %v26, %v160
  %v170 = vadd.f32 %v27, %v162
  %v171 = vadd.f32 %v28, %v165
  %v172 = vadd.f32 %v29, %v167
  %173 = vst [vmem:[#allocation2] sm:$0xff] %v169
  %174 = vst [vmem:[#allocation2 + $0x8] sm:$0xff] %v170
  %175 = vst [vmem:[#allocation2 + $0x10] sm:$0xff] %v171
  %176 = vst [vmem:[#allocation2 + $0x18] sm:$0xff] %v172
  // Predicated region
  $region22: #{cotrain_forward.21} parent=0 // pred_check
    %p177 = pneg %p18
  $region23: #{cotrain_forward.21} parent=0 // pred_check_branch
    %179 = sbr.rel (%p177) target = $region25
  $region24: #{cotrain_forward.21} parent=0 // pred_region
    %v180 = vld [vmem:[#allocation2] sm:$0xff]
    %v181 = vld [vmem:[#allocation2 + $0x8] sm:$0xff]
    %v182 = vld [vmem:[#allocation2 + $0x10] sm:$0xff]
    %v183 = vld [vmem:[#allocation2 + $0x18] sm:$0xff]
    %v184 = vld [vmem:[%s2] sm:$0x1]
    %v186 = vperm.slane %v184, 0
    %v188 = vmul.f32 %v180, %v186
    %v189 = vmul.f32 %v181, %v186
    %v190 = vmul.f32 %v182, %v186
    %v191 = vmul.f32 %v183, %v186
    %v192 = vld [vmem:[%s3] sm:$0x1]
    %v194 = vperm.slane %v192, 0
    %v196 = vadd.f32 %v188, %v194
    %v197 = vadd.f32 %v189, %v194
    %v198 = vadd.f32 %v190, %v194
    %v199 = vadd.f32 %v191, %v194
    %v200 = vmax.f32 %v196, 0.0
    %v201 = vmax.f32 %v197, 0.0
    %v202 = vmax.f32 %v198, 0.0
    %v203 = vmax.f32 %v199, 0.0
    %v204 = vpack.c.bf16 %v200, %v200
    %v205 = vpack.c.bf16 %v201, %v201
    %v206 = vpack.c.bf16 %v202, %v202
    %v207 = vpack.c.bf16 %v203, %v203
    %208 = vst [vmem:[%s4] sm:$0xf] %v204
    %209 = vst [vmem:[%s4 + $0x4] sm:$0xf] %v205
    %210 = vst [vmem:[%s4 + $0x8] sm:$0xf] %v206
    %211 = vst [vmem:[%s4 + $0xc] sm:$0xf] %v207
  $region25: #{cotrain_forward.21} parent=0 // pred_fallthru
    _
  // Predicated region
  $region26: #{cotrain_forward.21} parent=0 // pred_check
    _
  $region27: #{cotrain_forward.21} parent=0 // pred_check_branch
    %213 = sbr.rel (0) target = $region29
  $region28: #{cotrain_forward.21} parent=0 // pred_region
    _
  $region29: #{cotrain_forward.21} parent=0 // pred_fallthru
    _
  // Predicated region
  $region30: #{cotrain_forward.21} parent=0 // pred_check
    _
  $region31: #{cotrain_forward.21} parent=0 // pred_check_branch
    %215 = sbr.rel (0) target = $region33
  $region32: #{cotrain_forward.21} parent=0 // pred_region
    _
  $region33: #{cotrain_forward.21} parent=0 // pred_fallthru
    _

// kernel: cotrain_forward.20
$region0: #{cotrain_forward.20}
  #allocation0 [shape = 'u32[]', space=smem, size = 0x4, offset = 0x4, fixed_abs, tag = 'smem constant byte address 0x4 - core index']
  #allocation1 [shape = 'u32[72,128]{1,0:T(1,128)}', space=vmem, size = 0x9000, scoped, tag = 'internal scratch']
  #allocation2 [shape = 'f32[32,128]{1,0:T(8,128)}', space=vmem, size = 0x4000, scoped, tag = 'scratch operand']
  %s0 = inlined_call_operand.vmem [shape: bf16[32,16], index: 0, kind: input, shape index: {}]
  %s1 = inlined_call_operand.vmem [shape: bf16[16,128], index: 1, kind: input, shape index: {}]
  %s2 = inlined_call_operand.vmem [shape: f32[1,128], index: 2, kind: input, shape index: {}]
  %s3 = inlined_call_operand.vmem [shape: f32[1,128], index: 3, kind: input, shape index: {}]
  %s4 = inlined_call_operand.vmem [shape: bf16[32,128], index: 4, kind: output, shape index: {}]
  %s5 = sld [smem:[#allocation0]]
  $region34: #{cotrain_forward.20} parent=0
    _
  %s7 = ssub.s32 1, %s5
  %s8 = scalar_select 0, %s7, %s5
  // Predicated region
  $region2: #{cotrain_forward.20} parent=0 // pred_check
    _
  $region3: #{cotrain_forward.20} parent=0 // pred_check_branch
    %10 = sbr.rel (0) target = $region5
  $region4: #{cotrain_forward.20} parent=0 // pred_region
    _
  $region5: #{cotrain_forward.20} parent=0 // pred_fallthru
    _
  // Predicated region
  $region6: #{cotrain_forward.20} parent=0 // pred_check
    _
  $region7: #{cotrain_forward.20} parent=0 // pred_check_branch
    %12 = sbr.rel (0) target = $region9
  $region8: #{cotrain_forward.20} parent=0 // pred_region
    _
  $region9: #{cotrain_forward.20} parent=0 // pred_fallthru
    _
  // Predicated region
  $region10: #{cotrain_forward.20} parent=0 // pred_check
    _
  $region11: #{cotrain_forward.20} parent=0 // pred_check_branch
    %14 = sbr.rel (0) target = $region13
  $region12: #{cotrain_forward.20} parent=0 // pred_region
    _
  $region13: #{cotrain_forward.20} parent=0 // pred_fallthru
    _
  // Predicated region
  $region14: #{cotrain_forward.20} parent=0 // pred_check
    _
  $region15: #{cotrain_forward.20} parent=0 // pred_check_branch
    %16 = sbr.rel (0) target = $region17
  $region16: #{cotrain_forward.20} parent=0 // pred_region
    _
  $region17: #{cotrain_forward.20} parent=0 // pred_fallthru
    _
  %p18 = scmp.eq.s32.totalorder 0, 0
  // Predicated region
  $region18: #{cotrain_forward.20} parent=0 // pred_check
    %p19 = pneg %p18
  $region19: #{cotrain_forward.20} parent=0 // pred_check_branch
    %21 = sbr.rel (%p19) target = $region21
  $region20: #{cotrain_forward.20} parent=0 // pred_region
    %22 = vst [vmem:[#allocation2] sm:$0xff] 0.0
    %23 = vst [vmem:[#allocation2 + $0x8] sm:$0xff] 0.0
    %24 = vst [vmem:[#allocation2 + $0x10] sm:$0xff] 0.0
    %25 = vst [vmem:[#allocation2 + $0x18] sm:$0xff] 0.0
  $region21: #{cotrain_forward.20} parent=0 // pred_fallthru
    _
  %v26 = vld [vmem:[#allocation2] sm:$0xff]
  %v27 = vld [vmem:[#allocation2 + $0x8] sm:$0xff]
  %v28 = vld [vmem:[#allocation2 + $0x10] sm:$0xff]
  %v29 = vld [vmem:[#allocation2 + $0x18] sm:$0xff]
  %v30 = vld [vmem:[%s0] sm:$0xf]
  %v31 = vld [vmem:[%s0 + $0x4] sm:$0xf]
  %v32 = vld [vmem:[%s0 + $0x8] sm:$0xf]
  %v33 = vld [vmem:[%s0 + $0xc] sm:$0xf]
  %v34 = vld [vmem:[%s1] sm:$0xf]
  %v35 = vld [vmem:[%s1 + $0x4] sm:$0xf]
  %v40 = vunpack.c.l.b16 %v30
  %v41 = vunpack.c.l.b16 %v31
  %v42 = vunpack.c.l.b16 %v32
  %v43 = vunpack.c.l.b16 %v33
  %v44 = vpack.c.b16 %v41, %v40
  %v45 = vpack.c.b16 %v43, %v42
  %v48 = vunpack.c.l.b16 %v34
  %v49 = vunpack.c.l.b16 %v35
  %v50 = vpack.c.b16 %v49, %v48
  %vm52 = vcmask 130048
  %v54 = vsel %vm52, %v44, 0
  %v57 = vsel %vm52, %v45, 0
  %59 = vmatpush.bf16.msra.mxu0 0
  %60 = vmatpush.bf16.msra.mxu0 0
  %61 = vmatpush.bf16.msra.mxu0 0
  %62 = vmatpush.bf16.msra.mxu0 0
  %63 = vmatpush.bf16.msra.mxu0 0
  %64 = vmatpush.bf16.msra.mxu0 0
  %65 = vmatpush.bf16.msra.mxu0 0
  %66 = vmatpush.bf16.msra.mxu0 %v50
  %67 = vmatmul.bf16.gmra.mxu0 %v54
  %v68 = vpop.f32.mrf.mxu0
  %v69 = vadd.f32 0.0, %v68
  %v70 = vpop.f32.mrf.mxu0
  %v71 = vadd.f32 0.0, %v70
  %72 = vmatmul.bf16.gmra.mxu0 %v57
  %v73 = vpop.f32.mrf.mxu0
  %v74 = vadd.f32 0.0, %v73
  %v75 = vpop.f32.mrf.mxu0
  %v76 = vadd.f32 0.0, %v75
  %77 = vdwg.mxu0
  %v78 = vadd.f32 %v26, %v69
  %v79 = vadd.f32 %v27, %v71
  %v80 = vadd.f32 %v28, %v74
  %v81 = vadd.f32 %v29, %v76
  %82 = vst [vmem:[#allocation2] sm:$0xff] %v78
  %83 = vst [vmem:[#allocation2 + $0x8] sm:$0xff] %v79
  %84 = vst [vmem:[#allocation2 + $0x10] sm:$0xff] %v80
  %85 = vst [vmem:[#allocation2 + $0x18] sm:$0xff] %v81
  // Predicated region
  $region22: #{cotrain_forward.20} parent=0 // pred_check
    %p86 = pneg %p18
  $region23: #{cotrain_forward.20} parent=0 // pred_check_branch
    %88 = sbr.rel (%p86) target = $region25
  $region24: #{cotrain_forward.20} parent=0 // pred_region
    %v89 = vld [vmem:[#allocation2] sm:$0xff]
    %v90 = vld [vmem:[#allocation2 + $0x8] sm:$0xff]
    %v91 = vld [vmem:[#allocation2 + $0x10] sm:$0xff]
    %v92 = vld [vmem:[#allocation2 + $0x18] sm:$0xff]
    %v93 = vld [vmem:[%s2] sm:$0x1]
    %v95 = vperm.slane %v93, 0
    %v97 = vmul.f32 %v89, %v95
    %v98 = vmul.f32 %v90, %v95
    %v99 = vmul.f32 %v91, %v95
    %v100 = vmul.f32 %v92, %v95
    %v101 = vld [vmem:[%s3] sm:$0x1]
    %v103 = vperm.slane %v101, 0
    %v105 = vadd.f32 %v97, %v103
    %v106 = vadd.f32 %v98, %v103
    %v107 = vadd.f32 %v99, %v103
    %v108 = vadd.f32 %v100, %v103
    %v109 = vpack.c.bf16 %v105, %v105
    %v110 = vpack.c.bf16 %v106, %v106
    %v111 = vpack.c.bf16 %v107, %v107
    %v112 = vpack.c.bf16 %v108, %v108
    %113 = vst [vmem:[%s4] sm:$0xf] %v109
    %114 = vst [vmem:[%s4 + $0x4] sm:$0xf] %v110
    %115 = vst [vmem:[%s4 + $0x8] sm:$0xf] %v111
    %116 = vst [vmem:[%s4 + $0xc] sm:$0xf] %v112
  $region25: #{cotrain_forward.20} parent=0 // pred_fallthru
    _
  // Predicated region
  $region26: #{cotrain_forward.20} parent=0 // pred_check
    _
  $region27: #{cotrain_forward.20} parent=0 // pred_check_branch
    %118 = sbr.rel (0) target = $region29
  $region28: #{cotrain_forward.20} parent=0 // pred_region
    _
  $region29: #{cotrain_forward.20} parent=0 // pred_fallthru
    _
  // Predicated region
  $region30: #{cotrain_forward.20} parent=0 // pred_check
    _
  $region31: #{cotrain_forward.20} parent=0 // pred_check_branch
    %120 = sbr.rel (0) target = $region33
  $region32: #{cotrain_forward.20} parent=0 // pred_region
    _
  $region33: #{cotrain_forward.20} parent=0 // pred_fallthru
    _

// kernel: cotrain_forward.22
$region0: #{cotrain_forward.22}
  #allocation0 [shape = 'u32[]', space=smem, size = 0x4, offset = 0x4, fixed_abs, tag = 'smem constant byte address 0x4 - core index']
  #allocation1 [shape = 'u32[72,128]{1,0:T(1,128)}', space=vmem, size = 0x9000, scoped, tag = 'internal scratch']
  #allocation2 [shape = 'f32[32,128]{1,0:T(8,128)}', space=vmem, size = 0x4000, scoped, tag = 'scratch operand']
  %s0 = inlined_call_operand.vmem [shape: bf16[32,288], index: 0, kind: input, shape index: {}]
  %s1 = inlined_call_operand.vmem [shape: bf16[288,128], index: 1, kind: input, shape index: {}]
  %s2 = inlined_call_operand.vmem [shape: f32[1,128], index: 2, kind: input, shape index: {}]
  %s3 = inlined_call_operand.vmem [shape: f32[1,128], index: 3, kind: input, shape index: {}]
  %s4 = inlined_call_operand.vmem [shape: bf16[32,128], index: 4, kind: input, shape index: {}]
  %s5 = inlined_call_operand.vmem [shape: bf16[32,128], index: 5, kind: output, shape index: {}]
  %s6 = sld [smem:[#allocation0]]
  $region38: #{cotrain_forward.22} parent=0
    _
  %s8 = ssub.s32 1, %s6
  %s9 = scalar_select 0, %s8, %s6
  // Predicated region
  $region2: #{cotrain_forward.22} parent=0 // pred_check
    _
  $region3: #{cotrain_forward.22} parent=0 // pred_check_branch
    %11 = sbr.rel (0) target = $region5
  $region4: #{cotrain_forward.22} parent=0 // pred_region
    _
  $region5: #{cotrain_forward.22} parent=0 // pred_fallthru
    _
  // Predicated region
  $region6: #{cotrain_forward.22} parent=0 // pred_check
    _
  $region7: #{cotrain_forward.22} parent=0 // pred_check_branch
    %13 = sbr.rel (0) target = $region9
  $region8: #{cotrain_forward.22} parent=0 // pred_region
    _
  $region9: #{cotrain_forward.22} parent=0 // pred_fallthru
    _
  // Predicated region
  $region10: #{cotrain_forward.22} parent=0 // pred_check
    _
  $region11: #{cotrain_forward.22} parent=0 // pred_check_branch
    %15 = sbr.rel (0) target = $region13
  $region12: #{cotrain_forward.22} parent=0 // pred_region
    _
  $region13: #{cotrain_forward.22} parent=0 // pred_fallthru
    _
  // Predicated region
  $region14: #{cotrain_forward.22} parent=0 // pred_check
    _
  $region15: #{cotrain_forward.22} parent=0 // pred_check_branch
    %17 = sbr.rel (0) target = $region17
  $region16: #{cotrain_forward.22} parent=0 // pred_region
    _
  $region17: #{cotrain_forward.22} parent=0 // pred_fallthru
    _
  // Predicated region
  $region18: #{cotrain_forward.22} parent=0 // pred_check
    _
  $region19: #{cotrain_forward.22} parent=0 // pred_check_branch
    %19 = sbr.rel (0) target = $region21
  $region20: #{cotrain_forward.22} parent=0 // pred_region
    _
  $region21: #{cotrain_forward.22} parent=0 // pred_fallthru
    _
  %p21 = scmp.eq.s32.totalorder 0, 0
  // Predicated region
  $region22: #{cotrain_forward.22} parent=0 // pred_check
    %p22 = pneg %p21
  $region23: #{cotrain_forward.22} parent=0 // pred_check_branch
    %24 = sbr.rel (%p22) target = $region25
  $region24: #{cotrain_forward.22} parent=0 // pred_region
    %25 = vst [vmem:[#allocation2] sm:$0xff] 0.0
    %26 = vst [vmem:[#allocation2 + $0x8] sm:$0xff] 0.0
    %27 = vst [vmem:[#allocation2 + $0x10] sm:$0xff] 0.0
    %28 = vst [vmem:[#allocation2 + $0x18] sm:$0xff] 0.0
  $region25: #{cotrain_forward.22} parent=0 // pred_fallthru
    _
  %v29 = vld [vmem:[#allocation2] sm:$0xff]
  %v30 = vld [vmem:[#allocation2 + $0x8] sm:$0xff]
  %v31 = vld [vmem:[#allocation2 + $0x10] sm:$0xff]
  %v32 = vld [vmem:[#allocation2 + $0x18] sm:$0xff]
  %v33 = vld [vmem:[%s0] sm:$0xff]
  %v34 = vld [vmem:[%s0 + $0x8] sm:$0xf]
  %v35 = vld [vmem:[%s0 + $0xc] sm:$0xff]
  %v36 = vld [vmem:[%s0 + $0x14] sm:$0xf]
  %v37 = vld [vmem:[%s0 + $0x18] sm:$0xff]
  %v38 = vld [vmem:[%s0 + $0x20] sm:$0xf]
  %v39 = vld [vmem:[%s0 + $0x24] sm:$0xff]
  %v40 = vld [vmem:[%s0 + $0x2c] sm:$0xf]
  %v41 = vld [vmem:[%s1] sm:$0xf]
  %v42 = vld [vmem:[%s1 + $0x4] sm:$0xf]
  %v43 = vld [vmem:[%s1 + $0x8] sm:$0xf]
  %v44 = vld [vmem:[%s1 + $0xc] sm:$0xf]
  %v45 = vld [vmem:[%s1 + $0x10] sm:$0xf]
  %v46 = vld [vmem:[%s1 + $0x14] sm:$0xf]
  %v47 = vld [vmem:[%s1 + $0x18] sm:$0xf]
  %v48 = vld [vmem:[%s1 + $0x1c] sm:$0xf]
  %v49 = vld [vmem:[%s1 + $0x20] sm:$0xf]
  %v50 = vld [vmem:[%s1 + $0x24] sm:$0xf]
  %v51 = vld [vmem:[%s1 + $0x28] sm:$0xf]
  %v52 = vld [vmem:[%s1 + $0x2c] sm:$0xf]
  %v53 = vld [vmem:[%s1 + $0x30] sm:$0xf]
  %v54 = vld [vmem:[%s1 + $0x34] sm:$0xf]
  %v55 = vld [vmem:[%s1 + $0x38] sm:$0xf]
  %v56 = vld [vmem:[%s1 + $0x3c] sm:$0xf]
  %v57 = vld [vmem:[%s1 + $0x40] sm:$0xf]
  %v58 = vld [vmem:[%s1 + $0x44] sm:$0xf]
  %v59 = vld [vmem:[%s1 + $0x48] sm:$0xf]
  %v60 = vld [vmem:[%s1 + $0x4c] sm:$0xf]
  %v61 = vld [vmem:[%s1 + $0x50] sm:$0xf]
  %v62 = vld [vmem:[%s1 + $0x54] sm:$0xf]
  %v63 = vld [vmem:[%s1 + $0x58] sm:$0xf]
  %v64 = vld [vmem:[%s1 + $0x5c] sm:$0xf]
  %v65 = vld [vmem:[%s1 + $0x60] sm:$0xf]
  %v66 = vld [vmem:[%s1 + $0x64] sm:$0xf]
  %v67 = vld [vmem:[%s1 + $0x68] sm:$0xf]
  %v68 = vld [vmem:[%s1 + $0x6c] sm:$0xf]
  %v69 = vld [vmem:[%s1 + $0x70] sm:$0xf]
  %v70 = vld [vmem:[%s1 + $0x74] sm:$0xf]
  %v71 = vld [vmem:[%s1 + $0x78] sm:$0xf]
  %v72 = vld [vmem:[%s1 + $0x7c] sm:$0xf]
  %v73 = vld [vmem:[%s1 + $0x80] sm:$0xf]
  %v74 = vld [vmem:[%s1 + $0x84] sm:$0xf]
  %v75 = vld [vmem:[%s1 + $0x88] sm:$0xf]
  %v76 = vld [vmem:[%s1 + $0x8c] sm:$0xf]
  %v85 = vunpack.c.l.b16 %v33
  %v86 = vunpack.c.h.b16 %v33
  %v87 = vunpack.c.l.b16 %v34
  %v88 = vunpack.c.l.b16 %v35
  %v89 = vunpack.c.h.b16 %v35
  %v90 = vunpack.c.l.b16 %v36
  %v91 = vunpack.c.l.b16 %v37
  %v92 = vunpack.c.h.b16 %v37
  %v93 = vunpack.c.l.b16 %v38
  %v94 = vunpack.c.l.b16 %v39
  %v95 = vunpack.c.h.b16 %v39
  %v96 = vunpack.c.l.b16 %v40
  %v97 = vpack.c.b16 %v88, %v85
  %v98 = vpack.c.b16 %v89, %v86
  %v99 = vpack.c.b16 %v90, %v87
  %v100 = vpack.c.b16 %v94, %v91
  %v101 = vpack.c.b16 %v95, %v92
  %v102 = vpack.c.b16 %v96, %v93
  %v143 = vunpack.c.l.b16 %v41
  %v144 = vunpack.c.l.b16 %v42
  %v145 = vunpack.c.l.b16 %v43
  %v146 = vunpack.c.l.b16 %v44
  %v147 = vunpack.c.l.b16 %v45
  %v148 = vunpack.c.l.b16 %v46
  %v149 = vunpack.c.l.b16 %v47
  %v150 = vunpack.c.l.b16 %v48
  %v151 = vunpack.c.l.b16 %v49
  %v152 = vunpack.c.l.b16 %v50
  %v153 = vunpack.c.l.b16 %v51
  %v154 = vunpack.c.l.b16 %v52
  %v155 = vunpack.c.l.b16 %v53
  %v156 = vunpack.c.l.b16 %v54
  %v157 = vunpack.c.l.b16 %v55
  %v158 = vunpack.c.l.b16 %v56
  %v159 = vunpack.c.l.b16 %v57
  %v160 = vunpack.c.l.b16 %v58
  %v161 = vunpack.c.l.b16 %v59
  %v162 = vunpack.c.l.b16 %v60
  %v163 = vunpack.c.l.b16 %v61
  %v164 = vunpack.c.l.b16 %v62
  %v165 = vunpack.c.l.b16 %v63
  %v166 = vunpack.c.l.b16 %v64
  %v167 = vunpack.c.l.b16 %v65
  %v168 = vunpack.c.l.b16 %v66
  %v169 = vunpack.c.l.b16 %v67
  %v170 = vunpack.c.l.b16 %v68
  %v171 = vunpack.c.l.b16 %v69
  %v172 = vunpack.c.l.b16 %v70
  %v173 = vunpack.c.l.b16 %v71
  %v174 = vunpack.c.l.b16 %v72
  %v175 = vunpack.c.l.b16 %v73
  %v176 = vunpack.c.l.b16 %v74
  %v177 = vunpack.c.l.b16 %v75
  %v178 = vunpack.c.l.b16 %v76
  %v179 = vpack.c.b16 %v144, %v143
  %v180 = vpack.c.b16 %v146, %v145
  %v181 = vpack.c.b16 %v148, %v147
  %v182 = vpack.c.b16 %v150, %v149
  %v183 = vpack.c.b16 %v152, %v151
  %v184 = vpack.c.b16 %v154, %v153
  %v185 = vpack.c.b16 %v156, %v155
  %v186 = vpack.c.b16 %v158, %v157
  %v187 = vpack.c.b16 %v160, %v159
  %v188 = vpack.c.b16 %v162, %v161
  %v189 = vpack.c.b16 %v164, %v163
  %v190 = vpack.c.b16 %v166, %v165
  %v191 = vpack.c.b16 %v168, %v167
  %v192 = vpack.c.b16 %v170, %v169
  %v193 = vpack.c.b16 %v172, %v171
  %v194 = vpack.c.b16 %v174, %v173
  %v195 = vpack.c.b16 %v176, %v175
  %v196 = vpack.c.b16 %v178, %v177
  %vm215 = vcmask 261120
  %v217 = vsel %vm215, %v99, 0
  %v220 = vsel %vm215, %v102, 0
  %222 = vmatpush.bf16.msra.mxu0 %v186
  %223 = vmatpush.bf16.msra.mxu0 %v185
  %224 = vmatpush.bf16.msra.mxu0 %v184
  %225 = vmatpush.bf16.msra.mxu0 %v183
  %226 = vmatpush.bf16.msra.mxu0 %v182
  %227 = vmatpush.bf16.msra.mxu0 %v181
  %228 = vmatpush.bf16.msra.mxu0 %v180
  %229 = vmatpush.bf16.msra.mxu0 %v179
  %230 = vmatmul.bf16.gmra.mxu0 %v97
  %v231 = vpop.f32.mrf.mxu0
  %v232 = vadd.f32 0.0, %v231
  %v233 = vpop.f32.mrf.mxu0
  %v234 = vadd.f32 0.0, %v233
  %235 = vmatmul.bf16.gmra.mxu0 %v100
  %v236 = vpop.f32.mrf.mxu0
  %v237 = vadd.f32 0.0, %v236
  %v238 = vpop.f32.mrf.mxu0
  %v239 = vadd.f32 0.0, %v238
  %240 = vdwg.mxu0
  %241 = vmatpush.bf16.msra.mxu0 %v194
  %242 = vmatpush.bf16.msra.mxu0 %v193
  %243 = vmatpush.bf16.msra.mxu0 %v192
  %244 = vmatpush.bf16.msra.mxu0 %v191
  %245 = vmatpush.bf16.msra.mxu0 %v190
  %246 = vmatpush.bf16.msra.mxu0 %v189
  %247 = vmatpush.bf16.msra.mxu0 %v188
  %248 = vmatpush.bf16.msra.mxu0 %v187
  %249 = vmatmul.bf16.gmra.mxu0 %v98
  %v250 = vpop.f32.mrf.mxu0
  %v251 = vadd.f32 %v232, %v250
  %v252 = vpop.f32.mrf.mxu0
  %v253 = vadd.f32 %v234, %v252
  %254 = vmatmul.bf16.gmra.mxu0 %v101
  %v255 = vpop.f32.mrf.mxu0
  %v256 = vadd.f32 %v237, %v255
  %v257 = vpop.f32.mrf.mxu0
  %v258 = vadd.f32 %v239, %v257
  %259 = vdwg.mxu0
  %260 = vmatpush.bf16.msra.mxu0 0
  %261 = vmatpush.bf16.msra.mxu0 0
  %262 = vmatpush.bf16.msra.mxu0 0
  %263 = vmatpush.bf16.msra.mxu0 0
  %264 = vmatpush.bf16.msra.mxu0 0
  %265 = vmatpush.bf16.msra.mxu0 0
  %266 = vmatpush.bf16.msra.mxu0 %v196
  %267 = vmatpush.bf16.msra.mxu0 %v195
  %268 = vmatmul.bf16.gmra.mxu0 %v217
  %v269 = vpop.f32.mrf.mxu0
  %v270 = vadd.f32 %v251, %v269
  %v271 = vpop.f32.mrf.mxu0
  %v272 = vadd.f32 %v253, %v271
  %273 = vmatmul.bf16.gmra.mxu0 %v220
  %v274 = vpop.f32.mrf.mxu0
  %v275 = vadd.f32 %v256, %v274
  %v276 = vpop.f32.mrf.mxu0
  %v277 = vadd.f32 %v258, %v276
  %278 = vdwg.mxu0
  %v279 = vadd.f32 %v29, %v270
  %v280 = vadd.f32 %v30, %v272
  %v281 = vadd.f32 %v31, %v275
  %v282 = vadd.f32 %v32, %v277
  %283 = vst [vmem:[#allocation2] sm:$0xff] %v279
  %284 = vst [vmem:[#allocation2 + $0x8] sm:$0xff] %v280
  %285 = vst [vmem:[#allocation2 + $0x10] sm:$0xff] %v281
  %286 = vst [vmem:[#allocation2 + $0x18] sm:$0xff] %v282
  // Predicated region
  $region26: #{cotrain_forward.22} parent=0 // pred_check
    %p287 = pneg %p21
  $region27: #{cotrain_forward.22} parent=0 // pred_check_branch
    %289 = sbr.rel (%p287) target = $region29
  $region28: #{cotrain_forward.22} parent=0 // pred_region
    %v290 = vld [vmem:[#allocation2] sm:$0xff]
    %v291 = vld [vmem:[#allocation2 + $0x8] sm:$0xff]
    %v292 = vld [vmem:[#allocation2 + $0x10] sm:$0xff]
    %v293 = vld [vmem:[#allocation2 + $0x18] sm:$0xff]
    %v294 = vld [vmem:[%s2] sm:$0x1]
    %v296 = vperm.slane %v294, 0
    %v298 = vmul.f32 %v290, %v296
    %v299 = vmul.f32 %v291, %v296
    %v300 = vmul.f32 %v292, %v296
    %v301 = vmul.f32 %v293, %v296
    %v302 = vld [vmem:[%s3] sm:$0x1]
    %v304 = vperm.slane %v302, 0
    %v306 = vadd.f32 %v298, %v304
    %v307 = vadd.f32 %v299, %v304
    %v308 = vadd.f32 %v300, %v304
    %v309 = vadd.f32 %v301, %v304
    %v310 = vld [vmem:[%s4] sm:$0xf]
    %v311 = vld [vmem:[%s4 + $0x4] sm:$0xf]
    %v312 = vld [vmem:[%s4 + $0x8] sm:$0xf]
    %v313 = vld [vmem:[%s4 + $0xc] sm:$0xf]
    %v314 = vunpack.c.l.bf16 %v310
    %v315 = vunpack.c.l.bf16 %v311
    %v316 = vunpack.c.l.bf16 %v312
    %v317 = vunpack.c.l.bf16 %v313
    %v318 = vadd.f32 %v306, %v314
    %v319 = vadd.f32 %v307, %v315
    %v320 = vadd.f32 %v308, %v316
    %v321 = vadd.f32 %v309, %v317
    %v322 = vmax.f32 %v318, 0.0
    %v323 = vmax.f32 %v319, 0.0
    %v324 = vmax.f32 %v320, 0.0
    %v325 = vmax.f32 %v321, 0.0
    %v326 = vpack.c.bf16 %v322, %v322
    %v327 = vpack.c.bf16 %v323, %v323
    %v328 = vpack.c.bf16 %v324, %v324
    %v329 = vpack.c.bf16 %v325, %v325
    %330 = vst [vmem:[%s5] sm:$0xf] %v326
    %331 = vst [vmem:[%s5 + $0x4] sm:$0xf] %v327
    %332 = vst [vmem:[%s5 + $0x8] sm:$0xf] %v328
    %333 = vst [vmem:[%s5 + $0xc] sm:$0xf] %v329
  $region29: #{cotrain_forward.22} parent=0 // pred_fallthru
    _
  // Predicated region
  $region30: #{cotrain_forward.22} parent=0 // pred_check
    _
  $region31: #{cotrain_forward.22} parent=0 // pred_check_branch
    %335 = sbr.rel (0) target = $region33
  $region32: #{cotrain_forward.22} parent=0 // pred_region
    _
  $region33: #{cotrain_forward.22} parent=0 // pred_fallthru
    _
  // Predicated region
  $region34: #{cotrain_forward.22} parent=0 // pred_check
    _
  $region35: #{cotrain_forward.22} parent=0 // pred_check_branch
    %337 = sbr.rel (0) target = $region37
  $region36: #{cotrain_forward.22} parent=0 // pred_region
    _
  $region37: #{cotrain_forward.22} parent=0 // pred_fallthru
    _

// kernel: cotrain_forward.24
$region0: #{cotrain_forward.24}
  #allocation0 [shape = 'u32[]', space=smem, size = 0x4, offset = 0x4, fixed_abs, tag = 'smem constant byte address 0x4 - core index']
  #allocation1 [shape = 'u32[72,128]{1,0:T(1,128)}', space=vmem, size = 0x9000, scoped, tag = 'internal scratch']
  #allocation2 [shape = 'f32[16,128]{1,0:T(8,128)}', space=vmem, size = 0x2000, scoped, tag = 'scratch operand']
  %s0 = inlined_call_operand.vmem [shape: bf16[16,288], index: 0, kind: input, shape index: {}]
  %s1 = inlined_call_operand.vmem [shape: bf16[288,128], index: 1, kind: input, shape index: {}]
  %s2 = inlined_call_operand.vmem [shape: f32[1,128], index: 2, kind: input, shape index: {}]
  %s3 = inlined_call_operand.vmem [shape: f32[1,128], index: 3, kind: input, shape index: {}]
  %s4 = inlined_call_operand.vmem [shape: bf16[16,128], index: 4, kind: output, shape index: {}]
  %s5 = sld [smem:[#allocation0]]
  $region34: #{cotrain_forward.24} parent=0
    _
  %s7 = ssub.s32 1, %s5
  %s8 = scalar_select 0, %s7, %s5
  // Predicated region
  $region2: #{cotrain_forward.24} parent=0 // pred_check
    _
  $region3: #{cotrain_forward.24} parent=0 // pred_check_branch
    %10 = sbr.rel (0) target = $region5
  $region4: #{cotrain_forward.24} parent=0 // pred_region
    _
  $region5: #{cotrain_forward.24} parent=0 // pred_fallthru
    _
  // Predicated region
  $region6: #{cotrain_forward.24} parent=0 // pred_check
    _
  $region7: #{cotrain_forward.24} parent=0 // pred_check_branch
    %12 = sbr.rel (0) target = $region9
  $region8: #{cotrain_forward.24} parent=0 // pred_region
    _
  $region9: #{cotrain_forward.24} parent=0 // pred_fallthru
    _
  // Predicated region
  $region10: #{cotrain_forward.24} parent=0 // pred_check
    _
  $region11: #{cotrain_forward.24} parent=0 // pred_check_branch
    %14 = sbr.rel (0) target = $region13
  $region12: #{cotrain_forward.24} parent=0 // pred_region
    _
  $region13: #{cotrain_forward.24} parent=0 // pred_fallthru
    _
  // Predicated region
  $region14: #{cotrain_forward.24} parent=0 // pred_check
    _
  $region15: #{cotrain_forward.24} parent=0 // pred_check_branch
    %16 = sbr.rel (0) target = $region17
  $region16: #{cotrain_forward.24} parent=0 // pred_region
    _
  $region17: #{cotrain_forward.24} parent=0 // pred_fallthru
    _
  %p18 = scmp.eq.s32.totalorder 0, 0
  // Predicated region
  $region18: #{cotrain_forward.24} parent=0 // pred_check
    %p19 = pneg %p18
  $region19: #{cotrain_forward.24} parent=0 // pred_check_branch
    %21 = sbr.rel (%p19) target = $region21
  $region20: #{cotrain_forward.24} parent=0 // pred_region
    %22 = vst [vmem:[#allocation2] sm:$0xff] 0.0
    %23 = vst [vmem:[#allocation2 + $0x8] sm:$0xff] 0.0
  $region21: #{cotrain_forward.24} parent=0 // pred_fallthru
    _
  %v24 = vld [vmem:[#allocation2] sm:$0xff]
  %v25 = vld [vmem:[#allocation2 + $0x8] sm:$0xff]
  %v26 = vld [vmem:[%s0] sm:$0xff]
  %v27 = vld [vmem:[%s0 + $0x8] sm:$0xf]
  %v28 = vld [vmem:[%s0 + $0xc] sm:$0xff]
  %v29 = vld [vmem:[%s0 + $0x14] sm:$0xf]
  %v30 = vld [vmem:[%s1] sm:$0xf]
  %v31 = vld [vmem:[%s1 + $0x4] sm:$0xf]
  %v32 = vld [vmem:[%s1 + $0x8] sm:$0xf]
  %v33 = vld [vmem:[%s1 + $0xc] sm:$0xf]
  %v34 = vld [vmem:[%s1 + $0x10] sm:$0xf]
  %v35 = vld [vmem:[%s1 + $0x14] sm:$0xf]
  %v36 = vld [vmem:[%s1 + $0x18] sm:$0xf]
  %v37 = vld [vmem:[%s1 + $0x1c] sm:$0xf]
  %v38 = vld [vmem:[%s1 + $0x20] sm:$0xf]
  %v39 = vld [vmem:[%s1 + $0x24] sm:$0xf]
  %v40 = vld [vmem:[%s1 + $0x28] sm:$0xf]
  %v41 = vld [vmem:[%s1 + $0x2c] sm:$0xf]
  %v42 = vld [vmem:[%s1 + $0x30] sm:$0xf]
  %v43 = vld [vmem:[%s1 + $0x34] sm:$0xf]
  %v44 = vld [vmem:[%s1 + $0x38] sm:$0xf]
  %v45 = vld [vmem:[%s1 + $0x3c] sm:$0xf]
  %v46 = vld [vmem:[%s1 + $0x40] sm:$0xf]
  %v47 = vld [vmem:[%s1 + $0x44] sm:$0xf]
  %v48 = vld [vmem:[%s1 + $0x48] sm:$0xf]
  %v49 = vld [vmem:[%s1 + $0x4c] sm:$0xf]
  %v50 = vld [vmem:[%s1 + $0x50] sm:$0xf]
  %v51 = vld [vmem:[%s1 + $0x54] sm:$0xf]
  %v52 = vld [vmem:[%s1 + $0x58] sm:$0xf]
  %v53 = vld [vmem:[%s1 + $0x5c] sm:$0xf]
  %v54 = vld [vmem:[%s1 + $0x60] sm:$0xf]
  %v55 = vld [vmem:[%s1 + $0x64] sm:$0xf]
  %v56 = vld [vmem:[%s1 + $0x68] sm:$0xf]
  %v57 = vld [vmem:[%s1 + $0x6c] sm:$0xf]
  %v58 = vld [vmem:[%s1 + $0x70] sm:$0xf]
  %v59 = vld [vmem:[%s1 + $0x74] sm:$0xf]
  %v60 = vld [vmem:[%s1 + $0x78] sm:$0xf]
  %v61 = vld [vmem:[%s1 + $0x7c] sm:$0xf]
  %v62 = vld [vmem:[%s1 + $0x80] sm:$0xf]
  %v63 = vld [vmem:[%s1 + $0x84] sm:$0xf]
  %v64 = vld [vmem:[%s1 + $0x88] sm:$0xf]
  %v65 = vld [vmem:[%s1 + $0x8c] sm:$0xf]
  %v70 = vunpack.c.l.b16 %v26
  %v71 = vunpack.c.h.b16 %v26
  %v72 = vunpack.c.l.b16 %v27
  %v73 = vunpack.c.l.b16 %v28
  %v74 = vunpack.c.h.b16 %v28
  %v75 = vunpack.c.l.b16 %v29
  %v76 = vpack.c.b16 %v73, %v70
  %v77 = vpack.c.b16 %v74, %v71
  %v78 = vpack.c.b16 %v75, %v72
  %v117 = vunpack.c.l.b16 %v30
  %v118 = vunpack.c.l.b16 %v31
  %v119 = vunpack.c.l.b16 %v32
  %v120 = vunpack.c.l.b16 %v33
  %v121 = vunpack.c.l.b16 %v34
  %v122 = vunpack.c.l.b16 %v35
  %v123 = vunpack.c.l.b16 %v36
  %v124 = vunpack.c.l.b16 %v37
  %v125 = vunpack.c.l.b16 %v38
  %v126 = vunpack.c.l.b16 %v39
  %v127 = vunpack.c.l.b16 %v40
  %v128 = vunpack.c.l.b16 %v41
  %v129 = vunpack.c.l.b16 %v42
  %v130 = vunpack.c.l.b16 %v43
  %v131 = vunpack.c.l.b16 %v44
  %v132 = vunpack.c.l.b16 %v45
  %v133 = vunpack.c.l.b16 %v46
  %v134 = vunpack.c.l.b16 %v47
  %v135 = vunpack.c.l.b16 %v48
  %v136 = vunpack.c.l.b16 %v49
  %v137 = vunpack.c.l.b16 %v50
  %v138 = vunpack.c.l.b16 %v51
  %v139 = vunpack.c.l.b16 %v52
  %v140 = vunpack.c.l.b16 %v53
  %v141 = vunpack.c.l.b16 %v54
  %v142 = vunpack.c.l.b16 %v55
  %v143 = vunpack.c.l.b16 %v56
  %v144 = vunpack.c.l.b16 %v57
  %v145 = vunpack.c.l.b16 %v58
  %v146 = vunpack.c.l.b16 %v59
  %v147 = vunpack.c.l.b16 %v60
  %v148 = vunpack.c.l.b16 %v61
  %v149 = vunpack.c.l.b16 %v62
  %v150 = vunpack.c.l.b16 %v63
  %v151 = vunpack.c.l.b16 %v64
  %v152 = vunpack.c.l.b16 %v65
  %v153 = vpack.c.b16 %v118, %v117
  %v154 = vpack.c.b16 %v120, %v119
  %v155 = vpack.c.b16 %v122, %v121
  %v156 = vpack.c.b16 %v124, %v123
  %v157 = vpack.c.b16 %v126, %v125
  %v158 = vpack.c.b16 %v128, %v127
  %v159 = vpack.c.b16 %v130, %v129
  %v160 = vpack.c.b16 %v132, %v131
  %v161 = vpack.c.b16 %v134, %v133
  %v162 = vpack.c.b16 %v136, %v135
  %v163 = vpack.c.b16 %v138, %v137
  %v164 = vpack.c.b16 %v140, %v139
  %v165 = vpack.c.b16 %v142, %v141
  %v166 = vpack.c.b16 %v144, %v143
  %v167 = vpack.c.b16 %v146, %v145
  %v168 = vpack.c.b16 %v148, %v147
  %v169 = vpack.c.b16 %v150, %v149
  %v170 = vpack.c.b16 %v152, %v151
  %vm189 = vcmask 261120
  %v191 = vsel %vm189, %v78, 0
  %193 = vmatpush.bf16.msra.mxu0 %v160
  %194 = vmatpush.bf16.msra.mxu0 %v159
  %195 = vmatpush.bf16.msra.mxu0 %v158
  %196 = vmatpush.bf16.msra.mxu0 %v157
  %197 = vmatpush.bf16.msra.mxu0 %v156
  %198 = vmatpush.bf16.msra.mxu0 %v155
  %199 = vmatpush.bf16.msra.mxu0 %v154
  %200 = vmatpush.bf16.msra.mxu0 %v153
  %201 = vmatmul.bf16.gmra.mxu0 %v76
  %v202 = vpop.f32.mrf.mxu0
  %v203 = vadd.f32 0.0, %v202
  %v204 = vpop.f32.mrf.mxu0
  %v205 = vadd.f32 0.0, %v204
  %206 = vdwg.mxu0
  %207 = vmatpush.bf16.msra.mxu0 %v168
  %208 = vmatpush.bf16.msra.mxu0 %v167
  %209 = vmatpush.bf16.msra.mxu0 %v166
  %210 = vmatpush.bf16.msra.mxu0 %v165
  %211 = vmatpush.bf16.msra.mxu0 %v164
  %212 = vmatpush.bf16.msra.mxu0 %v163
  %213 = vmatpush.bf16.msra.mxu0 %v162
  %214 = vmatpush.bf16.msra.mxu0 %v161
  %215 = vmatmul.bf16.gmra.mxu0 %v77
  %v216 = vpop.f32.mrf.mxu0
  %v217 = vadd.f32 %v203, %v216
  %v218 = vpop.f32.mrf.mxu0
  %v219 = vadd.f32 %v205, %v218
  %220 = vdwg.mxu0
  %221 = vmatpush.bf16.msra.mxu0 0
  %222 = vmatpush.bf16.msra.mxu0 0
  %223 = vmatpush.bf16.msra.mxu0 0
  %224 = vmatpush.bf16.msra.mxu0 0
  %225 = vmatpush.bf16.msra.mxu0 0
  %226 = vmatpush.bf16.msra.mxu0 0
  %227 = vmatpush.bf16.msra.mxu0 %v170
  %228 = vmatpush.bf16.msra.mxu0 %v169
  %229 = vmatmul.bf16.gmra.mxu0 %v191
  %v230 = vpop.f32.mrf.mxu0
  %v231 = vadd.f32 %v217, %v230
  %v232 = vpop.f32.mrf.mxu0
  %v233 = vadd.f32 %v219, %v232
  %234 = vdwg.mxu0
  %v235 = vadd.f32 %v24, %v231
  %v236 = vadd.f32 %v25, %v233
  %237 = vst [vmem:[#allocation2] sm:$0xff] %v235
  %238 = vst [vmem:[#allocation2 + $0x8] sm:$0xff] %v236
  // Predicated region
  $region22: #{cotrain_forward.24} parent=0 // pred_check
    %p239 = pneg %p18
  $region23: #{cotrain_forward.24} parent=0 // pred_check_branch
    %241 = sbr.rel (%p239) target = $region25
  $region24: #{cotrain_forward.24} parent=0 // pred_region
    %v242 = vld [vmem:[#allocation2] sm:$0xff]
    %v243 = vld [vmem:[#allocation2 + $0x8] sm:$0xff]
    %v244 = vld [vmem:[%s2] sm:$0x1]
    %v246 = vperm.slane %v244, 0
    %v248 = vmul.f32 %v242, %v246
    %v249 = vmul.f32 %v243, %v246
    %v250 = vld [vmem:[%s3] sm:$0x1]
    %v252 = vperm.slane %v250, 0
    %v254 = vadd.f32 %v248, %v252
    %v255 = vadd.f32 %v249, %v252
    %v256 = vmax.f32 %v254, 0.0
    %v257 = vmax.f32 %v255, 0.0
    %v258 = vpack.c.bf16 %v256, %v256
    %v259 = vpack.c.bf16 %v257, %v257
    %260 = vst [vmem:[%s4] sm:$0xf] %v258
    %261 = vst [vmem:[%s4 + $0x4] sm:$0xf] %v259
  $region25: #{cotrain_forward.24} parent=0 // pred_fallthru
    _
  // Predicated region
  $region26: #{cotrain_forward.24} parent=0 // pred_check
    _
  $region27: #{cotrain_forward.24} parent=0 // pred_check_branch
    %263 = sbr.rel (0) target = $region29
  $region28: #{cotrain_forward.24} parent=0 // pred_region
    _
  $region29: #{cotrain_forward.24} parent=0 // pred_fallthru
    _
  // Predicated region
  $region30: #{cotrain_forward.24} parent=0 // pred_check
    _
  $region31: #{cotrain_forward.24} parent=0 // pred_check_branch
    %265 = sbr.rel (0) target = $region33
  $region32: #{cotrain_forward.24} parent=0 // pred_region
    _
  $region33: #{cotrain_forward.24} parent=0 // pred_fallthru
    _

// kernel: cotrain_forward.23
$region0: #{cotrain_forward.23}
  #allocation0 [shape = 'u32[]', space=smem, size = 0x4, offset = 0x4, fixed_abs, tag = 'smem constant byte address 0x4 - core index']
  #allocation1 [shape = 'u32[72,128]{1,0:T(1,128)}', space=vmem, size = 0x9000, scoped, tag = 'internal scratch']
  #allocation2 [shape = 'f32[16,128]{1,0:T(8,128)}', space=vmem, size = 0x2000, scoped, tag = 'scratch operand']
  %s0 = inlined_call_operand.vmem [shape: bf16[16,32], index: 0, kind: input, shape index: {}]
  %s1 = inlined_call_operand.vmem [shape: bf16[32,128], index: 1, kind: input, shape index: {}]
  %s2 = inlined_call_operand.vmem [shape: f32[1,128], index: 2, kind: input, shape index: {}]
  %s3 = inlined_call_operand.vmem [shape: f32[1,128], index: 3, kind: input, shape index: {}]
  %s4 = inlined_call_operand.vmem [shape: bf16[16,128], index: 4, kind: output, shape index: {}]
  %s5 = sld [smem:[#allocation0]]
  $region34: #{cotrain_forward.23} parent=0
    _
  %s7 = ssub.s32 1, %s5
  %s8 = scalar_select 0, %s7, %s5
  // Predicated region
  $region2: #{cotrain_forward.23} parent=0 // pred_check
    _
  $region3: #{cotrain_forward.23} parent=0 // pred_check_branch
    %10 = sbr.rel (0) target = $region5
  $region4: #{cotrain_forward.23} parent=0 // pred_region
    _
  $region5: #{cotrain_forward.23} parent=0 // pred_fallthru
    _
  // Predicated region
  $region6: #{cotrain_forward.23} parent=0 // pred_check
    _
  $region7: #{cotrain_forward.23} parent=0 // pred_check_branch
    %12 = sbr.rel (0) target = $region9
  $region8: #{cotrain_forward.23} parent=0 // pred_region
    _
  $region9: #{cotrain_forward.23} parent=0 // pred_fallthru
    _
  // Predicated region
  $region10: #{cotrain_forward.23} parent=0 // pred_check
    _
  $region11: #{cotrain_forward.23} parent=0 // pred_check_branch
    %14 = sbr.rel (0) target = $region13
  $region12: #{cotrain_forward.23} parent=0 // pred_region
    _
  $region13: #{cotrain_forward.23} parent=0 // pred_fallthru
    _
  // Predicated region
  $region14: #{cotrain_forward.23} parent=0 // pred_check
    _
  $region15: #{cotrain_forward.23} parent=0 // pred_check_branch
    %16 = sbr.rel (0) target = $region17
  $region16: #{cotrain_forward.23} parent=0 // pred_region
    _
  $region17: #{cotrain_forward.23} parent=0 // pred_fallthru
    _
  %p18 = scmp.eq.s32.totalorder 0, 0
  // Predicated region
  $region18: #{cotrain_forward.23} parent=0 // pred_check
    %p19 = pneg %p18
  $region19: #{cotrain_forward.23} parent=0 // pred_check_branch
    %21 = sbr.rel (%p19) target = $region21
  $region20: #{cotrain_forward.23} parent=0 // pred_region
    %22 = vst [vmem:[#allocation2] sm:$0xff] 0.0
    %23 = vst [vmem:[#allocation2 + $0x8] sm:$0xff] 0.0
  $region21: #{cotrain_forward.23} parent=0 // pred_fallthru
    _
  %v24 = vld [vmem:[#allocation2] sm:$0xff]
  %v25 = vld [vmem:[#allocation2 + $0x8] sm:$0xff]
  %v26 = vld [vmem:[%s0] sm:$0xf]
  %v27 = vld [vmem:[%s0 + $0x4] sm:$0xf]
  %v28 = vld [vmem:[%s1] sm:$0xf]
  %v29 = vld [vmem:[%s1 + $0x4] sm:$0xf]
  %v30 = vld [vmem:[%s1 + $0x8] sm:$0xf]
  %v31 = vld [vmem:[%s1 + $0xc] sm:$0xf]
  %v34 = vunpack.c.l.b16 %v26
  %v35 = vunpack.c.l.b16 %v27
  %v36 = vpack.c.b16 %v35, %v34
  %v41 = vunpack.c.l.b16 %v28
  %v42 = vunpack.c.l.b16 %v29
  %v43 = vunpack.c.l.b16 %v30
  %v44 = vunpack.c.l.b16 %v31
  %v45 = vpack.c.b16 %v42, %v41
  %v46 = vpack.c.b16 %v44, %v43
  %vm49 = vcmask 261120
  %v51 = vsel %vm49, %v36, 0
  %53 = vmatpush.bf16.msra.mxu0 0
  %54 = vmatpush.bf16.msra.mxu0 0
  %55 = vmatpush.bf16.msra.mxu0 0
  %56 = vmatpush.bf16.msra.mxu0 0
  %57 = vmatpush.bf16.msra.mxu0 0
  %58 = vmatpush.bf16.msra.mxu0 0
  %59 = vmatpush.bf16.msra.mxu0 %v46
  %60 = vmatpush.bf16.msra.mxu0 %v45
  %61 = vmatmul.bf16.gmra.mxu0 %v51
  %v62 = vpop.f32.mrf.mxu0
  %v63 = vadd.f32 0.0, %v62
  %v64 = vpop.f32.mrf.mxu0
  %v65 = vadd.f32 0.0, %v64
  %66 = vdwg.mxu0
  %v67 = vadd.f32 %v24, %v63
  %v68 = vadd.f32 %v25, %v65
  %69 = vst [vmem:[#allocation2] sm:$0xff] %v67
  %70 = vst [vmem:[#allocation2 + $0x8] sm:$0xff] %v68
  // Predicated region
  $region22: #{cotrain_forward.23} parent=0 // pred_check
    %p71 = pneg %p18
  $region23: #{cotrain_forward.23} parent=0 // pred_check_branch
    %73 = sbr.rel (%p71) target = $region25
  $region24: #{cotrain_forward.23} parent=0 // pred_region
    %v74 = vld [vmem:[#allocation2] sm:$0xff]
    %v75 = vld [vmem:[#allocation2 + $0x8] sm:$0xff]
    %v76 = vld [vmem:[%s2] sm:$0x1]
    %v78 = vperm.slane %v76, 0
    %v80 = vmul.f32 %v74, %v78
    %v81 = vmul.f32 %v75, %v78
    %v82 = vld [vmem:[%s3] sm:$0x1]
    %v84 = vperm.slane %v82, 0
    %v86 = vadd.f32 %v80, %v84
    %v87 = vadd.f32 %v81, %v84
    %v88 = vpack.c.bf16 %v86, %v86
    %v89 = vpack.c.bf16 %v87, %v87
    %90 = vst [vmem:[%s4] sm:$0xf] %v88
    %91 = vst [vmem:[%s4 + $0x4] sm:$0xf] %v89
  $region25: #{cotrain_forward.23} parent=0 // pred_fallthru
    _
  // Predicated region
  $region26: #{cotrain_forward.23} parent=0 // pred_check
    _
  $region27: #{cotrain_forward.23} parent=0 // pred_check_branch
    %93 = sbr.rel (0) target = $region29
  $region28: #{cotrain_forward.23} parent=0 // pred_region
    _
  $region29: #{cotrain_forward.23} parent=0 // pred_fallthru
    _
  // Predicated region
  $region30: #{cotrain_forward.23} parent=0 // pred_check
    _
  $region31: #{cotrain_forward.23} parent=0 // pred_check_branch
    %95 = sbr.rel (0) target = $region33
  $region32: #{cotrain_forward.23} parent=0 // pred_region
    _
  $region33: #{cotrain_forward.23} parent=0 // pred_fallthru
    _

// kernel: cotrain_forward.25
$region0: #{cotrain_forward.25}
  #allocation0 [shape = 'u32[]', space=smem, size = 0x4, offset = 0x4, fixed_abs, tag = 'smem constant byte address 0x4 - core index']
  #allocation1 [shape = 'u32[72,128]{1,0:T(1,128)}', space=vmem, size = 0x9000, scoped, tag = 'internal scratch']
  #allocation2 [shape = 'f32[16,128]{1,0:T(8,128)}', space=vmem, size = 0x2000, scoped, tag = 'scratch operand']
  %s0 = inlined_call_operand.vmem [shape: bf16[16,768], index: 0, kind: input, shape index: {}]
  %s1 = inlined_call_operand.vmem [shape: bf16[768,128], index: 1, kind: input, shape index: {}]
  %s2 = inlined_call_operand.vmem [shape: f32[1,128], index: 2, kind: input, shape index: {}]
  %s3 = inlined_call_operand.vmem [shape: f32[1,128], index: 3, kind: input, shape index: {}]
  %s4 = inlined_call_operand.vmem [shape: bf16[16,128], index: 4, kind: input, shape index: {}]
  %s5 = inlined_call_operand.vmem [shape: bf16[16,128], index: 5, kind: output, shape index: {}]
  %s6 = sld [smem:[#allocation0]]
  $region87: #{cotrain_forward.25} parent=0
    _
  %s8 = ssub.s32 1, %s6
  %s9 = scalar_select 0, %s8, %s6
  $region1: #{cotrain_forward.25} parent=0
    #allocation3 [shape = 'u8[24576]{0}', space=vmem, size = 0x6000, scoped, tag = 'input window, operand 0']
    loop: start=0, step=1, limit=4
    $region2: #{cotrain_forward.25} parent=1 // loop_pre_header
      _
    $region3: #{cotrain_forward.25} parent=1 // loop_header
      %s11 = sphi 0, %s15
      %p12 = scmp.ge.s32.totalorder %s11, 4
      %s18 = sphi 0, %s37
      %s19 = sphi 0, %s33
      %s20 = sphi 0, %s29
      %s21 = sphi 0, %s18
      %s22 = sphi 0, %s19
      %s23 = sphi 0, %s20
      %s24 = sphi 0, %s21
      %s25 = sphi 0, %s22
      %s26 = sphi 0, %s23
      %s42 = sphi 0, %s44
      %s45 = sphi 0, %s42
      %s46 = sphi 0, %s45
      %s62 = sphi 0, %s46
      %s70 = sphi 0, %s72
      %s73 = sphi 0, %s70
      %s74 = sphi 0, %s73
      %s90 = sphi 0, %s74
      %s96 = sphi 0, %s98
      %s99 = sphi 0, %s96
      %s100 = sphi 0, %s99
      %s116 = sphi 0, %s100
      %s122 = sphi 0, %s124
      %s125 = sphi 0, %s122
      %s126 = sphi 0, %s125
      %s142 = sphi 0, %s126
      %s150 = sphi 0, %s152
      %s153 = sphi 0, %s150
      %s154 = sphi 0, %s153
      %s170 = sphi 0, %s154
      %s178 = sphi 0, %s180
      %s181 = sphi 0, %s178
      %s182 = sphi 0, %s181
      %s198 = sphi 0, %s182
    $region4: #{cotrain_forward.25} parent=1 // loop_header_branch
      %14 = sbr.rel (%p12) target = $region8
    $region5: #{cotrain_forward.25} parent=1 // loop_body
      %s16 = ssub.s32 %s11, 1
      %s17 = ssub.s32 %s11, 2
      %s27 = sadd.s32 1, %s20
      %p28 = scmp.ge.s32.totalorder %s27, 2
      %s29 = scalar_select %p28, 0, %s27
      %s30 = sadd.s32 1, %s19
      %s31 = scalar_select %p28, %s30, %s19
      %p32 = scmp.ge.s32.totalorder %s31, 1
      %s33 = scalar_select %p32, 0, %s31
      %s34 = sadd.s32 1, %s18
      %s35 = scalar_select %p32, %s34, %s18
      %p36 = scmp.ge.s32.totalorder %s35, 1
      %s37 = scalar_select %p36, 0, %s35
      %s38 = ssub.s32 %s18, %s37
      %s39 = ssub.s32 %s20, %s29
      %s40 = sor.u32 %s38, %s39
      %p41 = scmp.eq.s32.totalorder %s40, 0
      %s43 = sadd.s32 %s42, 1
      %s44 = scalar_select %p41, %s42, %s43
      %p47 = pneg %p41
      %p48 = scmp.eq.s32.totalorder %s11, 1
      %p49 = por %p47, %p48
      %p50 = scmp.ne.s32.totalorder %s42, %s45
      %p51 = scmp.eq.s32.totalorder %s11, 0
      %p52 = por %p50, %p51
      %p53 = scmp.ne.s32.totalorder %s42, %s45
      %p54 = scmp.eq.s32.totalorder %s16, 1
      %p55 = por %p53, %p54
      %p56 = scmp.ne.s32.totalorder %s45, %s46
      %p57 = scmp.eq.s32.totalorder %s16, 0
      %p58 = por %p56, %p57
      %p59 = scmp.ne.s32.totalorder %s45, %s46
      %p60 = scmp.eq.s32.totalorder %s17, 1
      %p61 = por %p59, %p60
      %p63 = scmp.ne.s32.totalorder %s46, %s62
      %p64 = scmp.eq.s32.totalorder %s17, 0
      %p65 = por %p63, %p64
      %s66 = ssub.s32 %s20, %s29
      %s67 = ssub.s32 %s19, %s33
      %s68 = sor.u32 %s66, %s67
      %p69 = scmp.eq.s32.totalorder %s68, 0
      %s71 = sadd.s32 %s70, 1
      %s72 = scalar_select %p69, %s70, %s71
      %p75 = pneg %p69
      %p76 = scmp.eq.s32.totalorder %s11, 1
      %p77 = por %p75, %p76
      %p78 = scmp.ne.s32.totalorder %s70, %s73
      %p79 = scmp.eq.s32.totalorder %s11, 0
      %p80 = por %p78, %p79
      %p81 = scmp.ne.s32.totalorder %s70, %s73
      %p82 = scmp.eq.s32.totalorder %s16, 1
      %p83 = por %p81, %p82
      %p84 = scmp.ne.s32.totalorder %s73, %s74
      %p85 = scmp.eq.s32.totalorder %s16, 0
      %p86 = por %p84, %p85
      %p87 = scmp.ne.s32.totalorder %s73, %s74
      %p88 = scmp.eq.s32.totalorder %s17, 1
      %p89 = por %p87, %p88
      %p91 = scmp.ne.s32.totalorder %s74, %s90
      %p92 = scmp.eq.s32.totalorder %s17, 0
      %p93 = por %p91, %p92
      %s94 = ssub.s32 %s19, %s33
      %p95 = scmp.eq.s32.totalorder %s94, 0
      %s97 = sadd.s32 %s96, 1
      %s98 = scalar_select %p95, %s96, %s97
      %p101 = pneg %p95
      %p102 = scmp.eq.s32.totalorder %s11, 1
      %p103 = por %p101, %p102
      %p104 = scmp.ne.s32.totalorder %s96, %s99
      %p105 = scmp.eq.s32.totalorder %s11, 0
      %p106 = por %p104, %p105
      %p107 = scmp.ne.s32.totalorder %s96, %s99
      %p108 = scmp.eq.s32.totalorder %s16, 1
      %p109 = por %p107, %p108
      %p110 = scmp.ne.s32.totalorder %s99, %s100
      %p111 = scmp.eq.s32.totalorder %s16, 0
      %p112 = por %p110, %p111
      %p113 = scmp.ne.s32.totalorder %s99, %s100
      %p114 = scmp.eq.s32.totalorder %s17, 1
      %p115 = por %p113, %p114
      %p117 = scmp.ne.s32.totalorder %s100, %s116
      %p118 = scmp.eq.s32.totalorder %s17, 0
      %p119 = por %p117, %p118
      %s120 = ssub.s32 %s19, %s33
      %p121 = scmp.eq.s32.totalorder %s120, 0
      %s123 = sadd.s32 %s122, 1
      %s124 = scalar_select %p121, %s122, %s123
      %p127 = pneg %p121
      %p128 = scmp.eq.s32.totalorder %s11, 1
      %p129 = por %p127, %p128
      %p130 = scmp.ne.s32.totalorder %s122, %s125
      %p131 = scmp.eq.s32.totalorder %s11, 0
      %p132 = por %p130, %p131
      %p133 = scmp.ne.s32.totalorder %s122, %s125
      %p134 = scmp.eq.s32.totalorder %s16, 1
      %p135 = por %p133, %p134
      %p136 = scmp.ne.s32.totalorder %s125, %s126
      %p137 = scmp.eq.s32.totalorder %s16, 0
      %p138 = por %p136, %p137
      %p139 = scmp.ne.s32.totalorder %s125, %s126
      %p140 = scmp.eq.s32.totalorder %s17, 1
      %p141 = por %p139, %p140
      %p143 = scmp.ne.s32.totalorder %s126, %s142
      %p144 = scmp.eq.s32.totalorder %s17, 0
      %p145 = por %p143, %p144
      %s146 = ssub.s32 %s18, %s37
      %s147 = ssub.s32 %s19, %s33
      %s148 = sor.u32 %s146, %s147
      %p149 = scmp.eq.s32.totalorder %s148, 0
      %s151 = sadd.s32 %s150, 1
      %s152 = scalar_select %p149, %s150, %s151
      %p155 = pneg %p149
      %p156 = scmp.eq.s32.totalorder %s11, 1
      %p157 = por %p155, %p156
      %p158 = scmp.ne.s32.totalorder %s150, %s153
      %p159 = scmp.eq.s32.totalorder %s11, 0
      %p160 = por %p158, %p159
      %p161 = scmp.ne.s32.totalorder %s150, %s153
      %p162 = scmp.eq.s32.totalorder %s16, 1
      %p163 = por %p161, %p162
      %p164 = scmp.ne.s32.totalorder %s153, %s154
      %p165 = scmp.eq.s32.totalorder %s16, 0
      %p166 = por %p164, %p165
      %p167 = scmp.ne.s32.totalorder %s153, %s154
      %p168 = scmp.eq.s32.totalorder %s17, 1
      %p169 = por %p167, %p168
      %p171 = scmp.ne.s32.totalorder %s154, %s170
      %p172 = scmp.eq.s32.totalorder %s17, 0
      %p173 = por %p171, %p172
      %s174 = ssub.s32 %s18, %s37
      %s175 = ssub.s32 %s19, %s33
      %s176 = sor.u32 %s174, %s175
      %p177 = scmp.eq.s32.totalorder %s176, 0
      %s179 = sadd.s32 %s178, 1
      %s180 = scalar_select %p177, %s178, %s179
      %p183 = pneg %p177
      %p184 = scmp.eq.s32.totalorder %s11, 1
      %p185 = por %p183, %p184
      %p186 = scmp.ne.s32.totalorder %s178, %s181
      %p187 = scmp.eq.s32.totalorder %s11, 0
      %p188 = por %p186, %p187
      %p189 = scmp.ne.s32.totalorder %s178, %s181
      %p190 = scmp.eq.s32.totalorder %s16, 1
      %p191 = por %p189, %p190
      %p192 = scmp.ne.s32.totalorder %s181, %s182
      %p193 = scmp.eq.s32.totalorder %s16, 0
      %p194 = por %p192, %p193
      %p195 = scmp.ne.s32.totalorder %s181, %s182
      %p196 = scmp.eq.s32.totalorder %s17, 1
      %p197 = por %p195, %p196
      %p199 = scmp.ne.s32.totalorder %s182, %s198
      %p200 = scmp.eq.s32.totalorder %s17, 0
      %p201 = por %p199, %p200
      %p202 = scmp.le.s32.totalorder 1, %s11
      %p203 = scmp.lt.s32.totalorder %s11, 3
      %p204 = pnand %p202, %p203
      %p205 = pneg %p204
      // Predicated region
      $region9: #{cotrain_forward.25} parent=5 // pred_check
        _
      $region10: #{cotrain_forward.25} parent=5 // pred_check_branch
        %207 = sbr.rel (%p204) target = $region12
      $region11: #{cotrain_forward.25} parent=5 // pred_region
        %s208 = ssub.s32 %s11, 1
        // Predicated region
        $region13: #{cotrain_forward.25} parent=11 // pred_check
          %p209 = pneg %p112
        $region14: #{cotrain_forward.25} parent=11 // pred_check_branch
          %211 = sbr.rel (%p209) target = $region16
        $region15: #{cotrain_forward.25} parent=11 // pred_region
          %p212 = scmp.lt.s32.totalorder %s22, 0
          %s213 = scalar_select %p212, %s22, 0
          %s214 = scalar_lea.vmem %s2, %s213
        $region16: #{cotrain_forward.25} parent=11 // pred_fallthru
          _
        // Predicated region
        $region17: #{cotrain_forward.25} parent=11 // pred_check
          %p215 = pneg %p138
        $region18: #{cotrain_forward.25} parent=11 // pred_check_branch
          %217 = sbr.rel (%p215) target = $region20
        $region19: #{cotrain_forward.25} parent=11 // pred_region
          %p218 = scmp.lt.s32.totalorder %s22, 0
          %s219 = scalar_select %p218, %s22, 0
          %s220 = scalar_lea.vmem %s3, %s219
        $region20: #{cotrain_forward.25} parent=11 // pred_fallthru
          _
        // Predicated region
        $region21: #{cotrain_forward.25} parent=11 // pred_check
          %p221 = pneg %p166
        $region22: #{cotrain_forward.25} parent=11 // pred_check_branch
          %223 = sbr.rel (%p221) target = $region24
        $region23: #{cotrain_forward.25} parent=11 // pred_region
          %s224 = smul.u32 2, %s21
          %p225 = scmp.lt.s32.totalorder %s224, 1
          %s226 = scalar_select %p225, %s224, 1
          %p227 = scmp.lt.s32.totalorder %s22, 0
          %s228 = scalar_select %p227, %s22, 0
          %s229 = sadd.s32 %s228, %s226
          %s230 = smul.addr %s229, 4
          %s231 = scalar_lea.vmem %s4, %s230
          %s232 = smul.u32 2, %s21
        $region24: #{cotrain_forward.25} parent=11 // pred_fallthru
          _
      $region12: #{cotrain_forward.25} parent=5 // pred_fallthru
        _
      %p233 = scmp.lt.s32.totalorder %s11, 2
      // Predicated region
      $region25: #{cotrain_forward.25} parent=5 // pred_check
        %p234 = pneg %p233
      $region26: #{cotrain_forward.25} parent=5 // pred_check_branch
        %236 = sbr.rel (%p234) target = $region28
      $region27: #{cotrain_forward.25} parent=5 // pred_region
        // Predicated region
        $region29: #{cotrain_forward.25} parent=27 // pred_check
          %p237 = pneg %p52
        $region30: #{cotrain_forward.25} parent=27 // pred_check_branch
          %239 = sbr.rel (%p237) target = $region32
        $region31: #{cotrain_forward.25} parent=27 // pred_region
          %s240 = sand.u32 %s42, 1
          %s241 = sand.u32 %s42, 1
          %s242 = smul.addr %s241, 24
          %s243 = scalar_lea.vmem [#allocation3], %s242
          %s244 = smul.u32 2, %s18
          %s245 = smul.u32 3, %s20
          %s246 = smul.addr %s244, 6
          %s247 = sadd.s32 %s245, %s246
          %s248 = smul.addr %s247, 4
          %s249 = scalar_lea.vmem %s0, %s248
          // Predicated region
          $region33: #{cotrain_forward.25} parent=31 // pred_check
            _
          $region34: #{cotrain_forward.25} parent=31 // pred_check_branch
            %251 = sbr.rel (0) target = $region36
          $region35: #{cotrain_forward.25} parent=31 // pred_region
            // Predicated region
            $region37: #{cotrain_forward.25} parent=35 // pred_check
              _
            $region38: #{cotrain_forward.25} parent=35 // pred_check_branch
              %253 = sbr.rel (0) target = $region40
            $region39: #{cotrain_forward.25} parent=35 // pred_region
              %s254 = scalar_lea.vmem %s249, 8
              %s255 = scalar_lea.vmem %s243, 8 [#allocation3]
              loop: start=0, step=1, limit=1
              $region41: #{cotrain_forward.25} parent=39 // loop_pre_header
                _
              $region42: #{cotrain_forward.25} parent=39 // loop_header
                %s257 = sphi 0, %s261
                %p258 = scmp.ge.s32.totalorder %s257, 1
                %s262 = sphi %s249, %s249
                %s263 = sphi %s243, %s243
              $region43: #{cotrain_forward.25} parent=39 // loop_header_branch
                %260 = sbr.rel (%p258) target = $region47
              $region44: #{cotrain_forward.25} parent=39 // loop_body
                %v264 = vld [vmem:[%s262] sm:$0xff]
                %265 = vst [vmem:[%s263] sm:$0xff] %v264
                %v266 = vld [vmem:[%s262 + $0x18] sm:$0xff]
                %267 = vst [vmem:[%s263 + $0xc] sm:$0xff] %v266
              $region45: #{cotrain_forward.25} parent=39 // loop_footer
                %s261 = sadd.s32 1, %s257
              $region46: #{cotrain_forward.25} parent=39 // loop_footer_branch
                %256 = sbr.rel target = $region42
              $region47: #{cotrain_forward.25} parent=39 // loop_exit
                _
              %s269 = ssub.s32 16, 1
              loop: start=0, step=1, limit=1
              $region48: #{cotrain_forward.25} parent=39 // loop_pre_header
                _
              $region49: #{cotrain_forward.25} parent=39 // loop_header
                %s271 = sphi 0, %s275
                %p272 = scmp.ge.s32.totalorder %s271, 1
                %s276 = sphi %s254, %s254
                %s277 = sphi %s255, %s255
              $region50: #{cotrain_forward.25} parent=39 // loop_header_branch
                %274 = sbr.rel (%p272) target = $region54
              $region51: #{cotrain_forward.25} parent=39 // loop_body
                %v278 = vld [vmem:[%s276] sm:%s269]
                %279 = vst [vmem:[%s277] sm:%s269] %v278
                %v280 = vld [vmem:[%s276 + $0x18] sm:%s269]
                %281 = vst [vmem:[%s277 + $0xc] sm:%s269] %v280
              $region52: #{cotrain_forward.25} parent=39 // loop_footer
                %s275 = sadd.s32 1, %s271
              $region53: #{cotrain_forward.25} parent=39 // loop_footer_branch
                %270 = sbr.rel target = $region49
              $region54: #{cotrain_forward.25} parent=39 // loop_exit
                _
            $region40: #{cotrain_forward.25} parent=35 // pred_fallthru
              _
          $region36: #{cotrain_forward.25} parent=31 // pred_fallthru
            _
          %282 = vnop
        $region32: #{cotrain_forward.25} parent=27 // pred_fallthru
          _
        // Predicated region
        $region55: #{cotrain_forward.25} parent=27 // pred_check
          %p283 = pneg %p80
        $region56: #{cotrain_forward.25} parent=27 // pred_check_branch
          %285 = sbr.rel (%p283) target = $region58
        $region57: #{cotrain_forward.25} parent=27 // pred_region
          %s286 = smul.u32 48, %s20
          %p287 = scmp.lt.s32.totalorder %s286, 95
          %s288 = scalar_select %p287, %s286, 95
          %p289 = scmp.lt.s32.totalorder %s19, 0
          %s290 = scalar_select %p289, %s19, 0
          %s291 = sadd.s32 %s290, %s288
          %s292 = smul.addr %s291, 4
          %s293 = scalar_lea.vmem %s1, %s292
          %s294 = smul.u32 48, %s20
        $region58: #{cotrain_forward.25} parent=27 // pred_fallthru
          _
      $region28: #{cotrain_forward.25} parent=5 // pred_fallthru
        _
      %p295 = scmp.le.s32.totalorder 1, %s11
      %p296 = scmp.lt.s32.totalorder %s11, 3
      %p297 = pnand %p295, %p296
      %p298 = pneg %p297
      // Predicated region
      $region59: #{cotrain_forward.25} parent=5 // pred_check
        _
      $region60: #{cotrain_forward.25} parent=5 // pred_check_branch
        %300 = sbr.rel (%p297) target = $region62
      $region61: #{cotrain_forward.25} parent=5 // pred_region
        %s301 = ssub.s32 %s11, 1
        %s302 = sand.u32 %s45, 1
        %s303 = sand.u32 %s45, 1
        %s304 = smul.addr %s303, 24
        %s305 = scalar_lea.vmem [#allocation3], %s304
        // Predicated region
        $region63: #{cotrain_forward.25} parent=61 // pred_check
          %p306 = pneg %p58
        $region64: #{cotrain_forward.25} parent=61 // pred_check_branch
          %308 = sbr.rel (%p306) target = $region66
        $region65: #{cotrain_forward.25} parent=61 // pred_region
          _
        $region66: #{cotrain_forward.25} parent=61 // pred_fallthru
          _
        %s309 = sand.u32 %s45, 1
        %s310 = sand.u32 %s45, 1
        %s311 = smul.addr %s310, 24
        %s312 = scalar_lea.vmem [#allocation3], %s311
        %p313 = pneg %p58
        %p314 = pneg %p55
        %s315 = smul.u32 48, %s23
        %p316 = scmp.lt.s32.totalorder %s315, 95
        %s317 = scalar_select %p316, %s315, 95
        %p318 = scmp.lt.s32.totalorder %s22, 0
        %s319 = scalar_select %p318, %s22, 0
        %s320 = sadd.s32 %s319, %s317
        %s321 = smul.addr %s320, 4
        %s322 = scalar_lea.vmem %s1, %s321
        %p323 = pneg %p86
        %p324 = pneg %p83
        %p325 = scmp.lt.s32.totalorder %s22, 0
        %s326 = scalar_select %p325, %s22, 0
        %s327 = scalar_lea.vmem %s2, %s326
        %p328 = pneg %p112
        %p329 = pneg %p109
        %p330 = scmp.lt.s32.totalorder %s22, 0
        %s331 = scalar_select %p330, %s22, 0
        %s332 = scalar_lea.vmem %s3, %s331
        %p333 = pneg %p138
        %p334 = pneg %p135
        %s335 = smul.u32 2, %s21
        %p336 = scmp.lt.s32.totalorder %s335, 1
        %s337 = scalar_select %p336, %s335, 1
        %p338 = scmp.lt.s32.totalorder %s22, 0
        %s339 = scalar_select %p338, %s22, 0
        %s340 = sadd.s32 %s339, %s337
        %s341 = smul.addr %s340, 4
        %s342 = scalar_lea.vmem %s4, %s341
        %p343 = pneg %p166
        %p344 = pneg %p163
        %p345 = pneg %p194
        %p346 = pneg %p191
        %s347 = smul.u32 2, %s21
        %p348 = scmp.lt.s32.totalorder %s347, 1
        %s349 = scalar_select %p348, %s347, 1
        %p350 = scmp.lt.s32.totalorder %s22, 0
        %s351 = scalar_select %p350, %s22, 0
        %s352 = sadd.s32 %s351, %s349
        %s353 = smul.addr %s352, 4
        %s354 = scalar_lea.vmem %s5, %s353
        %s355 = smul.u32 2, %s21
        %s356 = smul.u32 3, %s23
        %s357 = smul.u32 48, %s23
        %p358 = scmp.lt.s32.totalorder %s357, 95
        %s359 = scalar_select %p358, %s357, 95
        %p360 = scmp.lt.s32.totalorder %s22, 0
        %s361 = scalar_select %p360, %s22, 0
        %s362 = sadd.s32 %s361, %s359
        %s363 = smul.addr %s362, 4
        %s364 = scalar_lea.vmem %s1, %s363
        %s365 = smul.u32 48, %s23
        %p366 = scmp.lt.s32.totalorder %s22, 0
        %s367 = scalar_select %p366, %s22, 0
        %s368 = scalar_lea.vmem %s2, %s367
        %p369 = scmp.lt.s32.totalorder %s22, 0
        %s370 = scalar_select %p369, %s22, 0
        %s371 = scalar_lea.vmem %s3, %s370
        %s372 = smul.u32 2, %s21
        %p373 = scmp.lt.s32.totalorder %s372, 1
        %s374 = scalar_select %p373, %s372, 1
        %p375 = scmp.lt.s32.totalorder %s22, 0
        %s376 = scalar_select %p375, %s22, 0
        %s377 = sadd.s32 %s376, %s374
        %s378 = smul.addr %s377, 4
        %s379 = scalar_lea.vmem %s4, %s378
        %s380 = smul.u32 2, %s21
        %s381 = smul.u32 2, %s21
        %p382 = scmp.lt.s32.totalorder %s381, 1
        %s383 = scalar_select %p382, %s381, 1
        %p384 = scmp.lt.s32.totalorder %s22, 0
        %s385 = scalar_select %p384, %s22, 0
        %s386 = sadd.s32 %s385, %s383
        %s387 = smul.addr %s386, 4
        %s388 = scalar_lea.vmem %s5, %s387
        %s389 = smul.u32 2, %s21
        %p390 = scmp.eq.s32.totalorder %s23, 0
        // Predicated region
        $region67: #{cotrain_forward.25} parent=61 // pred_check
          %p391 = pneg %p390
        $region68: #{cotrain_forward.25} parent=61 // pred_check_branch
          %393 = sbr.rel (%p391) target = $region70
        $region69: #{cotrain_forward.25} parent=61 // pred_region
          %394 = vst [vmem:[#allocation2] sm:$0xff] 0.0
          %395 = vst [vmem:[#allocation2 + $0x8] sm:$0xff] 0.0
        $region70: #{cotrain_forward.25} parent=61 // pred_fallthru
          _
        %v396 = vld [vmem:[#allocation2] sm:$0xff]
        %v397 = vld [vmem:[#allocation2 + $0x8] sm:$0xff]
        %v398 = vld [vmem:[%s305] sm:$0xff]
        %v399 = vld [vmem:[%s305 + $0x8] sm:$0xf]
        %v400 = vld [vmem:[%s305 + $0xc] sm:$0xff]
        %v401 = vld [vmem:[%s305 + $0x14] sm:$0xf]
        %v402 = vld [vmem:[%s364] sm:$0xf]
        %v403 = vld [vmem:[%s364 + $0x4] sm:$0xf]
        %v404 = vld [vmem:[%s364 + $0x8] sm:$0xf]
        %v405 = vld [vmem:[%s364 + $0xc] sm:$0xf]
        %v406 = vld [vmem:[%s364 + $0x10] sm:$0xf]
        %v407 = vld [vmem:[%s364 + $0x14] sm:$0xf]
        %v408 = vld [vmem:[%s364 + $0x18] sm:$0xf]
        %v409 = vld [vmem:[%s364 + $0x1c] sm:$0xf]
        %v410 = vld [vmem:[%s364 + $0x20] sm:$0xf]
        %v411 = vld [vmem:[%s364 + $0x24] sm:$0xf]
        %v412 = vld [vmem:[%s364 + $0x28] sm:$0xf]
        %v413 = vld [vmem:[%s364 + $0x2c] sm:$0xf]
        %v414 = vld [vmem:[%s364 + $0x30] sm:$0xf]
        %v415 = vld [vmem:[%s364 + $0x34] sm:$0xf]
        %v416 = vld [vmem:[%s364 + $0x38] sm:$0xf]
        %v417 = vld [vmem:[%s364 + $0x3c] sm:$0xf]
        %v418 = vld [vmem:[%s364 + $0x40] sm:$0xf]
        %v419 = vld [vmem:[%s364 + $0x44] sm:$0xf]
        %v420 = vld [vmem:[%s364 + $0x48] sm:$0xf]
        %v421 = vld [vmem:[%s364 + $0x4c] sm:$0xf]
        %v422 = vld [vmem:[%s364 + $0x50] sm:$0xf]
        %v423 = vld [vmem:[%s364 + $0x54] sm:$0xf]
        %v424 = vld [vmem:[%s364 + $0x58] sm:$0xf]
        %v425 = vld [vmem:[%s364 + $0x5c] sm:$0xf]
        %v426 = vld [vmem:[%s364 + $0x60] sm:$0xf]
        %v427 = vld [vmem:[%s364 + $0x64] sm:$0xf]
        %v428 = vld [vmem:[%s364 + $0x68] sm:$0xf]
        %v429 = vld [vmem:[%s364 + $0x6c] sm:$0xf]
        %v430 = vld [vmem:[%s364 + $0x70] sm:$0xf]
        %v431 = vld [vmem:[%s364 + $0x74] sm:$0xf]
        %v432 = vld [vmem:[%s364 + $0x78] sm:$0xf]
        %v433 = vld [vmem:[%s364 + $0x7c] sm:$0xf]
        %v434 = vld [vmem:[%s364 + $0x80] sm:$0xf]
        %v435 = vld [vmem:[%s364 + $0x84] sm:$0xf]
        %v436 = vld [vmem:[%s364 + $0x88] sm:$0xf]
        %v437 = vld [vmem:[%s364 + $0x8c] sm:$0xf]
        %v438 = vld [vmem:[%s364 + $0x90] sm:$0xf]
        %v439 = vld [vmem:[%s364 + $0x94] sm:$0xf]
        %v440 = vld [vmem:[%s364 + $0x98] sm:$0xf]
        %v441 = vld [vmem:[%s364 + $0x9c] sm:$0xf]
        %v442 = vld [vmem:[%s364 + $0xa0] sm:$0xf]
        %v443 = vld [vmem:[%s364 + $0xa4] sm:$0xf]
        %v444 = vld [vmem:[%s364 + $0xa8] sm:$0xf]
        %v445 = vld [vmem:[%s364 + $0xac] sm:$0xf]
        %v446 = vld [vmem:[%s364 + $0xb0] sm:$0xf]
        %v447 = vld [vmem:[%s364 + $0xb4] sm:$0xf]
        %v448 = vld [vmem:[%s364 + $0xb8] sm:$0xf]
        %v449 = vld [vmem:[%s364 + $0xbc] sm:$0xf]
        %v454 = vunpack.c.l.b16 %v398
        %v455 = vunpack.c.h.b16 %v398
        %v456 = vunpack.c.l.b16 %v399
        %v457 = vunpack.c.l.b16 %v400
        %v458 = vunpack.c.h.b16 %v400
        %v459 = vunpack.c.l.b16 %v401
        %v460 = vpack.c.b16 %v457, %v454
        %v461 = vpack.c.b16 %v458, %v455
        %v462 = vpack.c.b16 %v459, %v456
        %v514 = vunpack.c.l.b16 %v402
        %v515 = vunpack.c.l.b16 %v403
        %v516 = vunpack.c.l.b16 %v404
        %v517 = vunpack.c.l.b16 %v405
        %v518 = vunpack.c.l.b16 %v406
        %v519 = vunpack.c.l.b16 %v407
        %v520 = vunpack.c.l.b16 %v408
        %v521 = vunpack.c.l.b16 %v409
        %v522 = vunpack.c.l.b16 %v410
        %v523 = vunpack.c.l.b16 %v411
        %v524 = vunpack.c.l.b16 %v412
        %v525 = vunpack.c.l.b16 %v413
        %v526 = vunpack.c.l.b16 %v414
        %v527 = vunpack.c.l.b16 %v415
        %v528 = vunpack.c.l.b16 %v416
        %v529 = vunpack.c.l.b16 %v417
        %v530 = vunpack.c.l.b16 %v418
        %v531 = vunpack.c.l.b16 %v419
        %v532 = vunpack.c.l.b16 %v420
        %v533 = vunpack.c.l.b16 %v421
        %v534 = vunpack.c.l.b16 %v422
        %v535 = vunpack.c.l.b16 %v423
        %v536 = vunpack.c.l.b16 %v424
        %v537 = vunpack.c.l.b16 %v425
        %v538 = vunpack.c.l.b16 %v426
        %v539 = vunpack.c.l.b16 %v427
        %v540 = vunpack.c.l.b16 %v428
        %v541 = vunpack.c.l.b16 %v429
        %v542 = vunpack.c.l.b16 %v430
        %v543 = vunpack.c.l.b16 %v431
        %v544 = vunpack.c.l.b16 %v432
        %v545 = vunpack.c.l.b16 %v433
        %v546 = vunpack.c.l.b16 %v434
        %v547 = vunpack.c.l.b16 %v435
        %v548 = vunpack.c.l.b16 %v436
        %v549 = vunpack.c.l.b16 %v437
        %v550 = vunpack.c.l.b16 %v438
        %v551 = vunpack.c.l.b16 %v439
        %v552 = vunpack.c.l.b16 %v440
        %v553 = vunpack.c.l.b16 %v441
        %v554 = vunpack.c.l.b16 %v442
        %v555 = vunpack.c.l.b16 %v443
        %v556 = vunpack.c.l.b16 %v444
        %v557 = vunpack.c.l.b16 %v445
        %v558 = vunpack.c.l.b16 %v446
        %v559 = vunpack.c.l.b16 %v447
        %v560 = vunpack.c.l.b16 %v448
        %v561 = vunpack.c.l.b16 %v449
        %v562 = vpack.c.b16 %v515, %v514
        %v563 = vpack.c.b16 %v517, %v516
        %v564 = vpack.c.b16 %v519, %v518
        %v565 = vpack.c.b16 %v521, %v520
        %v566 = vpack.c.b16 %v523, %v522
        %v567 = vpack.c.b16 %v525, %v524
        %v568 = vpack.c.b16 %v527, %v526
        %v569 = vpack.c.b16 %v529, %v528
        %v570 = vpack.c.b16 %v531, %v530
        %v571 = vpack.c.b16 %v533, %v532
        %v572 = vpack.c.b16 %v535, %v534
        %v573 = vpack.c.b16 %v537, %v536
        %v574 = vpack.c.b16 %v539, %v538
        %v575 = vpack.c.b16 %v541, %v540
        %v576 = vpack.c.b16 %v543, %v542
        %v577 = vpack.c.b16 %v545, %v544
        %v578 = vpack.c.b16 %v547, %v546
        %v579 = vpack.c.b16 %v549, %v548
        %v580 = vpack.c.b16 %v551, %v550
        %v581 = vpack.c.b16 %v553, %v552
        %v582 = vpack.c.b16 %v555, %v554
        %v583 = vpack.c.b16 %v557, %v556
        %v584 = vpack.c.b16 %v559, %v558
        %v585 = vpack.c.b16 %v561, %v560
        %610 = vmatpush.bf16.msra.mxu0 %v569
        %611 = vmatpush.bf16.msra.mxu0 %v568
        %612 = vmatpush.bf16.msra.mxu0 %v567
        %613 = vmatpush.bf16.msra.mxu0 %v566
        %614 = vmatpush.bf16.msra.mxu0 %v565
        %615 = vmatpush.bf16.msra.mxu0 %v564
        %616 = vmatpush.bf16.msra.mxu0 %v563
        %617 = vmatpush.bf16.msra.mxu0 %v562
        %618 = vmatmul.bf16.gmra.mxu0 %v460
        %v619 = vpop.f32.mrf.mxu0
        %v620 = vadd.f32 0.0, %v619
        %v621 = vpop.f32.mrf.mxu0
        %v622 = vadd.f32 0.0, %v621
        %623 = vdwg.mxu0
        %624 = vmatpush.bf16.msra.mxu0 %v577
        %625 = vmatpush.bf16.msra.mxu0 %v576
        %626 = vmatpush.bf16.msra.mxu0 %v575
        %627 = vmatpush.bf16.msra.mxu0 %v574
        %628 = vmatpush.bf16.msra.mxu0 %v573
        %629 = vmatpush.bf16.msra.mxu0 %v572
        %630 = vmatpush.bf16.msra.mxu0 %v571
        %631 = vmatpush.bf16.msra.mxu0 %v570
        %632 = vmatmul.bf16.gmra.mxu0 %v461
        %v633 = vpop.f32.mrf.mxu0
        %v634 = vadd.f32 %v620, %v633
        %v635 = vpop.f32.mrf.mxu0
        %v636 = vadd.f32 %v622, %v635
        %637 = vdwg.mxu0
        %638 = vmatpush.bf16.msra.mxu0 %v585
        %639 = vmatpush.bf16.msra.mxu0 %v584
        %640 = vmatpush.bf16.msra.mxu0 %v583
        %641 = vmatpush.bf16.msra.mxu0 %v582
        %642 = vmatpush.bf16.msra.mxu0 %v581
        %643 = vmatpush.bf16.msra.mxu0 %v580
        %644 = vmatpush.bf16.msra.mxu0 %v579
        %645 = vmatpush.bf16.msra.mxu0 %v578
        %646 = vmatmul.bf16.gmra.mxu0 %v462
        %v647 = vpop.f32.mrf.mxu0
        %v648 = vadd.f32 %v634, %v647
        %v649 = vpop.f32.mrf.mxu0
        %v650 = vadd.f32 %v636, %v649
        %651 = vdwg.mxu0
        %v652 = vadd.f32 %v396, %v648
        %v653 = vadd.f32 %v397, %v650
        %654 = vst [vmem:[#allocation2] sm:$0xff] %v652
        %655 = vst [vmem:[#allocation2 + $0x8] sm:$0xff] %v653
        %p656 = scmp.eq.s32.totalorder %s23, 1
        // Predicated region
        $region71: #{cotrain_forward.25} parent=61 // pred_check
          %p657 = pneg %p656
        $region72: #{cotrain_forward.25} parent=61 // pred_check_branch
          %659 = sbr.rel (%p657) target = $region74
        $region73: #{cotrain_forward.25} parent=61 // pred_region
          %v660 = vld [vmem:[#allocation2] sm:$0xff]
          %v661 = vld [vmem:[#allocation2 + $0x8] sm:$0xff]
          %v662 = vld [vmem:[%s368] sm:$0x1]
          %v664 = vperm.slane %v662, 0
          %v666 = vmul.f32 %v660, %v664
          %v667 = vmul.f32 %v661, %v664
          %v668 = vld [vmem:[%s371] sm:$0x1]
          %v670 = vperm.slane %v668, 0
          %v672 = vadd.f32 %v666, %v670
          %v673 = vadd.f32 %v667, %v670
          %v674 = vld [vmem:[%s379] sm:$0xf]
          %v675 = vld [vmem:[%s379 + $0x4] sm:$0xf]
          %v676 = vunpack.c.l.bf16 %v674
          %v677 = vunpack.c.l.bf16 %v675
          %v678 = vadd.f32 %v672, %v676
          %v679 = vadd.f32 %v673, %v677
          %v680 = vmax.f32 %v678, 0.0
          %v681 = vmax.f32 %v679, 0.0
          %v682 = vpack.c.bf16 %v680, %v680
          %v683 = vpack.c.bf16 %v681, %v681
          %684 = vst [vmem:[%s388] sm:$0xf] %v682
          %685 = vst [vmem:[%s388 + $0x4] sm:$0xf] %v683
        $region74: #{cotrain_forward.25} parent=61 // pred_fallthru
          _
        %s686 = smul.u32 2, %s21
        %p687 = scmp.lt.s32.totalorder %s686, 1
        %s688 = scalar_select %p687, %s686, 1
        %p689 = scmp.lt.s32.totalorder %s22, 0
        %s690 = scalar_select %p689, %s22, 0
        %s691 = sadd.s32 %s690, %s688
        %s692 = smul.addr %s691, 4
        %s693 = scalar_lea.vmem %s5, %s692
        // Predicated region
        $region75: #{cotrain_forward.25} parent=61 // pred_check
          %p694 = pneg %p191
        $region76: #{cotrain_forward.25} parent=61 // pred_check_branch
          %696 = sbr.rel (%p694) target = $region78
        $region77: #{cotrain_forward.25} parent=61 // pred_region
          %s697 = smul.u32 2, %s21
        $region78: #{cotrain_forward.25} parent=61 // pred_fallthru
          _
        // Predicated region
        $region79: #{cotrain_forward.25} parent=61 // pred_check
          %p698 = pneg %p191
        $region80: #{cotrain_forward.25} parent=61 // pred_check_branch
          %700 = sbr.rel (%p698) target = $region82
        $region81: #{cotrain_forward.25} parent=61 // pred_region
          %s701 = smul.u32 2, %s21
          %p702 = scmp.lt.s32.totalorder %s701, 1
          %s703 = scalar_select %p702, %s701, 1
          %p704 = scmp.lt.s32.totalorder %s22, 0
          %s705 = scalar_select %p704, %s22, 0
          %s706 = sadd.s32 %s705, %s703
          %s707 = smul.addr %s706, 4
          %s708 = scalar_lea.vmem %s5, %s707
        $region82: #{cotrain_forward.25} parent=61 // pred_fallthru
          _
      $region62: #{cotrain_forward.25} parent=5 // pred_fallthru
        _
      %p709 = scmp.le.s32.totalorder 2, %s11
      // Predicated region
      $region83: #{cotrain_forward.25} parent=5 // pred_check
        %p710 = pneg %p709
      $region84: #{cotrain_forward.25} parent=5 // pred_check_branch
        %712 = sbr.rel (%p710) target = $region86
      $region85: #{cotrain_forward.25} parent=5 // pred_region
        %s713 = ssub.s32 %s11, 2
      $region86: #{cotrain_forward.25} parent=5 // pred_fallthru
        _
    $region6: #{cotrain_forward.25} parent=1 // loop_footer
      %s15 = sadd.s32 1, %s11
    $region7: #{cotrain_forward.25} parent=1 // loop_footer_branch
      %10 = sbr.rel target = $region3
    $region8: #{cotrain_forward.25} parent=1 // loop_exit
      _

// kernel: cotrain_forward.27
$region0: #{cotrain_forward.27}
  #allocation0 [shape = 'u32[]', space=smem, size = 0x4, offset = 0x4, fixed_abs, tag = 'smem constant byte address 0x4 - core index']
  #allocation1 [shape = 'u32[72,128]{1,0:T(1,128)}', space=vmem, size = 0x9000, scoped, tag = 'internal scratch']
  #allocation2 [shape = 'f32[16,128]{1,0:T(8,128)}', space=vmem, size = 0x2000, scoped, tag = 'scratch operand']
  %s0 = inlined_call_operand.vmem [shape: bf16[16,768], index: 0, kind: input, shape index: {}]
  %s1 = inlined_call_operand.vmem [shape: bf16[768,128], index: 1, kind: input, shape index: {}]
  %s2 = inlined_call_operand.vmem [shape: f32[1,128], index: 2, kind: input, shape index: {}]
  %s3 = inlined_call_operand.vmem [shape: f32[1,128], index: 3, kind: input, shape index: {}]
  %s4 = inlined_call_operand.vmem [shape: bf16[16,128], index: 4, kind: output, shape index: {}]
  %s5 = sld [smem:[#allocation0]]
  $region83: #{cotrain_forward.27} parent=0
    _
  %s7 = ssub.s32 1, %s5
  %s8 = scalar_select 0, %s7, %s5
  $region1: #{cotrain_forward.27} parent=0
    #allocation3 [shape = 'u8[24576]{0}', space=vmem, size = 0x6000, scoped, tag = 'input window, operand 0']
    loop: start=0, step=1, limit=4
    $region2: #{cotrain_forward.27} parent=1 // loop_pre_header
      _
    $region3: #{cotrain_forward.27} parent=1 // loop_header
      %s10 = sphi 0, %s14
      %p11 = scmp.ge.s32.totalorder %s10, 4
      %s17 = sphi 0, %s36
      %s18 = sphi 0, %s32
      %s19 = sphi 0, %s28
      %s20 = sphi 0, %s17
      %s21 = sphi 0, %s18
      %s22 = sphi 0, %s19
      %s23 = sphi 0, %s20
      %s24 = sphi 0, %s21
      %s25 = sphi 0, %s22
      %s41 = sphi 0, %s43
      %s44 = sphi 0, %s41
      %s45 = sphi 0, %s44
      %s61 = sphi 0, %s45
      %s69 = sphi 0, %s71
      %s72 = sphi 0, %s69
      %s73 = sphi 0, %s72
      %s89 = sphi 0, %s73
      %s95 = sphi 0, %s97
      %s98 = sphi 0, %s95
      %s99 = sphi 0, %s98
      %s115 = sphi 0, %s99
      %s121 = sphi 0, %s123
      %s124 = sphi 0, %s121
      %s125 = sphi 0, %s124
      %s141 = sphi 0, %s125
      %s149 = sphi 0, %s151
      %s152 = sphi 0, %s149
      %s153 = sphi 0, %s152
      %s169 = sphi 0, %s153
    $region4: #{cotrain_forward.27} parent=1 // loop_header_branch
      %13 = sbr.rel (%p11) target = $region8
    $region5: #{cotrain_forward.27} parent=1 // loop_body
      %s15 = ssub.s32 %s10, 1
      %s16 = ssub.s32 %s10, 2
      %s26 = sadd.s32 1, %s19
      %p27 = scmp.ge.s32.totalorder %s26, 2
      %s28 = scalar_select %p27, 0, %s26
      %s29 = sadd.s32 1, %s18
      %s30 = scalar_select %p27, %s29, %s18
      %p31 = scmp.ge.s32.totalorder %s30, 1
      %s32 = scalar_select %p31, 0, %s30
      %s33 = sadd.s32 1, %s17
      %s34 = scalar_select %p31, %s33, %s17
      %p35 = scmp.ge.s32.totalorder %s34, 1
      %s36 = scalar_select %p35, 0, %s34
      %s37 = ssub.s32 %s17, %s36
      %s38 = ssub.s32 %s19, %s28
      %s39 = sor.u32 %s37, %s38
      %p40 = scmp.eq.s32.totalorder %s39, 0
      %s42 = sadd.s32 %s41, 1
      %s43 = scalar_select %p40, %s41, %s42
      %p46 = pneg %p40
      %p47 = scmp.eq.s32.totalorder %s10, 1
      %p48 = por %p46, %p47
      %p49 = scmp.ne.s32.totalorder %s41, %s44
      %p50 = scmp.eq.s32.totalorder %s10, 0
      %p51 = por %p49, %p50
      %p52 = scmp.ne.s32.totalorder %s41, %s44
      %p53 = scmp.eq.s32.totalorder %s15, 1
      %p54 = por %p52, %p53
      %p55 = scmp.ne.s32.totalorder %s44, %s45
      %p56 = scmp.eq.s32.totalorder %s15, 0
      %p57 = por %p55, %p56
      %p58 = scmp.ne.s32.totalorder %s44, %s45
      %p59 = scmp.eq.s32.totalorder %s16, 1
      %p60 = por %p58, %p59
      %p62 = scmp.ne.s32.totalorder %s45, %s61
      %p63 = scmp.eq.s32.totalorder %s16, 0
      %p64 = por %p62, %p63
      %s65 = ssub.s32 %s19, %s28
      %s66 = ssub.s32 %s18, %s32
      %s67 = sor.u32 %s65, %s66
      %p68 = scmp.eq.s32.totalorder %s67, 0
      %s70 = sadd.s32 %s69, 1
      %s71 = scalar_select %p68, %s69, %s70
      %p74 = pneg %p68
      %p75 = scmp.eq.s32.totalorder %s10, 1
      %p76 = por %p74, %p75
      %p77 = scmp.ne.s32.totalorder %s69, %s72
      %p78 = scmp.eq.s32.totalorder %s10, 0
      %p79 = por %p77, %p78
      %p80 = scmp.ne.s32.totalorder %s69, %s72
      %p81 = scmp.eq.s32.totalorder %s15, 1
      %p82 = por %p80, %p81
      %p83 = scmp.ne.s32.totalorder %s72, %s73
      %p84 = scmp.eq.s32.totalorder %s15, 0
      %p85 = por %p83, %p84
      %p86 = scmp.ne.s32.totalorder %s72, %s73
      %p87 = scmp.eq.s32.totalorder %s16, 1
      %p88 = por %p86, %p87
      %p90 = scmp.ne.s32.totalorder %s73, %s89
      %p91 = scmp.eq.s32.totalorder %s16, 0
      %p92 = por %p90, %p91
      %s93 = ssub.s32 %s18, %s32
      %p94 = scmp.eq.s32.totalorder %s93, 0
      %s96 = sadd.s32 %s95, 1
      %s97 = scalar_select %p94, %s95, %s96
      %p100 = pneg %p94
      %p101 = scmp.eq.s32.totalorder %s10, 1
      %p102 = por %p100, %p101
      %p103 = scmp.ne.s32.totalorder %s95, %s98
      %p104 = scmp.eq.s32.totalorder %s10, 0
      %p105 = por %p103, %p104
      %p106 = scmp.ne.s32.totalorder %s95, %s98
      %p107 = scmp.eq.s32.totalorder %s15, 1
      %p108 = por %p106, %p107
      %p109 = scmp.ne.s32.totalorder %s98, %s99
      %p110 = scmp.eq.s32.totalorder %s15, 0
      %p111 = por %p109, %p110
      %p112 = scmp.ne.s32.totalorder %s98, %s99
      %p113 = scmp.eq.s32.totalorder %s16, 1
      %p114 = por %p112, %p113
      %p116 = scmp.ne.s32.totalorder %s99, %s115
      %p117 = scmp.eq.s32.totalorder %s16, 0
      %p118 = por %p116, %p117
      %s119 = ssub.s32 %s18, %s32
      %p120 = scmp.eq.s32.totalorder %s119, 0
      %s122 = sadd.s32 %s121, 1
      %s123 = scalar_select %p120, %s121, %s122
      %p126 = pneg %p120
      %p127 = scmp.eq.s32.totalorder %s10, 1
      %p128 = por %p126, %p127
      %p129 = scmp.ne.s32.totalorder %s121, %s124
      %p130 = scmp.eq.s32.totalorder %s10, 0
      %p131 = por %p129, %p130
      %p132 = scmp.ne.s32.totalorder %s121, %s124
      %p133 = scmp.eq.s32.totalorder %s15, 1
      %p134 = por %p132, %p133
      %p135 = scmp.ne.s32.totalorder %s124, %s125
      %p136 = scmp.eq.s32.totalorder %s15, 0
      %p137 = por %p135, %p136
      %p138 = scmp.ne.s32.totalorder %s124, %s125
      %p139 = scmp.eq.s32.totalorder %s16, 1
      %p140 = por %p138, %p139
      %p142 = scmp.ne.s32.totalorder %s125, %s141
      %p143 = scmp.eq.s32.totalorder %s16, 0
      %p144 = por %p142, %p143
      %s145 = ssub.s32 %s17, %s36
      %s146 = ssub.s32 %s18, %s32
      %s147 = sor.u32 %s145, %s146
      %p148 = scmp.eq.s32.totalorder %s147, 0
      %s150 = sadd.s32 %s149, 1
      %s151 = scalar_select %p148, %s149, %s150
      %p154 = pneg %p148
      %p155 = scmp.eq.s32.totalorder %s10, 1
      %p156 = por %p154, %p155
      %p157 = scmp.ne.s32.totalorder %s149, %s152
      %p158 = scmp.eq.s32.totalorder %s10, 0
      %p159 = por %p157, %p158
      %p160 = scmp.ne.s32.totalorder %s149, %s152
      %p161 = scmp.eq.s32.totalorder %s15, 1
      %p162 = por %p160, %p161
      %p163 = scmp.ne.s32.totalorder %s152, %s153
      %p164 = scmp.eq.s32.totalorder %s15, 0
      %p165 = por %p163, %p164
      %p166 = scmp.ne.s32.totalorder %s152, %s153
      %p167 = scmp.eq.s32.totalorder %s16, 1
      %p168 = por %p166, %p167
      %p170 = scmp.ne.s32.totalorder %s153, %s169
      %p171 = scmp.eq.s32.totalorder %s16, 0
      %p172 = por %p170, %p171
      %p173 = scmp.le.s32.totalorder 1, %s10
      %p174 = scmp.lt.s32.totalorder %s10, 3
      %p175 = pnand %p173, %p174
      %p176 = pneg %p175
      // Predicated region
      $region9: #{cotrain_forward.27} parent=5 // pred_check
        _
      $region10: #{cotrain_forward.27} parent=5 // pred_check_branch
        %178 = sbr.rel (%p175) target = $region12
      $region11: #{cotrain_forward.27} parent=5 // pred_region
        %s179 = ssub.s32 %s10, 1
        // Predicated region
        $region13: #{cotrain_forward.27} parent=11 // pred_check
          %p180 = pneg %p111
        $region14: #{cotrain_forward.27} parent=11 // pred_check_branch
          %182 = sbr.rel (%p180) target = $region16
        $region15: #{cotrain_forward.27} parent=11 // pred_region
          %p183 = scmp.lt.s32.totalorder %s21, 0
          %s184 = scalar_select %p183, %s21, 0
          %s185 = scalar_lea.vmem %s2, %s184
        $region16: #{cotrain_forward.27} parent=11 // pred_fallthru
          _
        // Predicated region
        $region17: #{cotrain_forward.27} parent=11 // pred_check
          %p186 = pneg %p137
        $region18: #{cotrain_forward.27} parent=11 // pred_check_branch
          %188 = sbr.rel (%p186) target = $region20
        $region19: #{cotrain_forward.27} parent=11 // pred_region
          %p189 = scmp.lt.s32.totalorder %s21, 0
          %s190 = scalar_select %p189, %s21, 0
          %s191 = scalar_lea.vmem %s3, %s190
        $region20: #{cotrain_forward.27} parent=11 // pred_fallthru
          _
      $region12: #{cotrain_forward.27} parent=5 // pred_fallthru
        _
      %p192 = scmp.lt.s32.totalorder %s10, 2
      // Predicated region
      $region21: #{cotrain_forward.27} parent=5 // pred_check
        %p193 = pneg %p192
      $region22: #{cotrain_forward.27} parent=5 // pred_check_branch
        %195 = sbr.rel (%p193) target = $region24
      $region23: #{cotrain_forward.27} parent=5 // pred_region
        // Predicated region
        $region25: #{cotrain_forward.27} parent=23 // pred_check
          %p196 = pneg %p51
        $region26: #{cotrain_forward.27} parent=23 // pred_check_branch
          %198 = sbr.rel (%p196) target = $region28
        $region27: #{cotrain_forward.27} parent=23 // pred_region
          %s199 = sand.u32 %s41, 1
          %s200 = sand.u32 %s41, 1
          %s201 = smul.addr %s200, 24
          %s202 = scalar_lea.vmem [#allocation3], %s201
          %s203 = smul.u32 2, %s17
          %s204 = smul.u32 3, %s19
          %s205 = smul.addr %s203, 6
          %s206 = sadd.s32 %s204, %s205
          %s207 = smul.addr %s206, 4
          %s208 = scalar_lea.vmem %s0, %s207
          // Predicated region
          $region29: #{cotrain_forward.27} parent=27 // pred_check
            _
          $region30: #{cotrain_forward.27} parent=27 // pred_check_branch
            %210 = sbr.rel (0) target = $region32
          $region31: #{cotrain_forward.27} parent=27 // pred_region
            // Predicated region
            $region33: #{cotrain_forward.27} parent=31 // pred_check
              _
            $region34: #{cotrain_forward.27} parent=31 // pred_check_branch
              %212 = sbr.rel (0) target = $region36
            $region35: #{cotrain_forward.27} parent=31 // pred_region
              %s213 = scalar_lea.vmem %s208, 8
              %s214 = scalar_lea.vmem %s202, 8 [#allocation3]
              loop: start=0, step=1, limit=1
              $region37: #{cotrain_forward.27} parent=35 // loop_pre_header
                _
              $region38: #{cotrain_forward.27} parent=35 // loop_header
                %s216 = sphi 0, %s220
                %p217 = scmp.ge.s32.totalorder %s216, 1
                %s221 = sphi %s208, %s208
                %s222 = sphi %s202, %s202
              $region39: #{cotrain_forward.27} parent=35 // loop_header_branch
                %219 = sbr.rel (%p217) target = $region43
              $region40: #{cotrain_forward.27} parent=35 // loop_body
                %v223 = vld [vmem:[%s221] sm:$0xff]
                %224 = vst [vmem:[%s222] sm:$0xff] %v223
                %v225 = vld [vmem:[%s221 + $0x18] sm:$0xff]
                %226 = vst [vmem:[%s222 + $0xc] sm:$0xff] %v225
              $region41: #{cotrain_forward.27} parent=35 // loop_footer
                %s220 = sadd.s32 1, %s216
              $region42: #{cotrain_forward.27} parent=35 // loop_footer_branch
                %215 = sbr.rel target = $region38
              $region43: #{cotrain_forward.27} parent=35 // loop_exit
                _
              %s228 = ssub.s32 16, 1
              loop: start=0, step=1, limit=1
              $region44: #{cotrain_forward.27} parent=35 // loop_pre_header
                _
              $region45: #{cotrain_forward.27} parent=35 // loop_header
                %s230 = sphi 0, %s234
                %p231 = scmp.ge.s32.totalorder %s230, 1
                %s235 = sphi %s213, %s213
                %s236 = sphi %s214, %s214
              $region46: #{cotrain_forward.27} parent=35 // loop_header_branch
                %233 = sbr.rel (%p231) target = $region50
              $region47: #{cotrain_forward.27} parent=35 // loop_body
                %v237 = vld [vmem:[%s235] sm:%s228]
                %238 = vst [vmem:[%s236] sm:%s228] %v237
                %v239 = vld [vmem:[%s235 + $0x18] sm:%s228]
                %240 = vst [vmem:[%s236 + $0xc] sm:%s228] %v239
              $region48: #{cotrain_forward.27} parent=35 // loop_footer
                %s234 = sadd.s32 1, %s230
              $region49: #{cotrain_forward.27} parent=35 // loop_footer_branch
                %229 = sbr.rel target = $region45
              $region50: #{cotrain_forward.27} parent=35 // loop_exit
                _
            $region36: #{cotrain_forward.27} parent=31 // pred_fallthru
              _
          $region32: #{cotrain_forward.27} parent=27 // pred_fallthru
            _
          %241 = vnop
        $region28: #{cotrain_forward.27} parent=23 // pred_fallthru
          _
        // Predicated region
        $region51: #{cotrain_forward.27} parent=23 // pred_check
          %p242 = pneg %p79
        $region52: #{cotrain_forward.27} parent=23 // pred_check_branch
          %244 = sbr.rel (%p242) target = $region54
        $region53: #{cotrain_forward.27} parent=23 // pred_region
          %s245 = smul.u32 48, %s19
          %p246 = scmp.lt.s32.totalorder %s245, 95
          %s247 = scalar_select %p246, %s245, 95
          %p248 = scmp.lt.s32.totalorder %s18, 0
          %s249 = scalar_select %p248, %s18, 0
          %s250 = sadd.s32 %s249, %s247
          %s251 = smul.addr %s250, 4
          %s252 = scalar_lea.vmem %s1, %s251
          %s253 = smul.u32 48, %s19
        $region54: #{cotrain_forward.27} parent=23 // pred_fallthru
          _
      $region24: #{cotrain_forward.27} parent=5 // pred_fallthru
        _
      %p254 = scmp.le.s32.totalorder 1, %s10
      %p255 = scmp.lt.s32.totalorder %s10, 3
      %p256 = pnand %p254, %p255
      %p257 = pneg %p256
      // Predicated region
      $region55: #{cotrain_forward.27} parent=5 // pred_check
        _
      $region56: #{cotrain_forward.27} parent=5 // pred_check_branch
        %259 = sbr.rel (%p256) target = $region58
      $region57: #{cotrain_forward.27} parent=5 // pred_region
        %s260 = ssub.s32 %s10, 1
        %s261 = sand.u32 %s44, 1
        %s262 = sand.u32 %s44, 1
        %s263 = smul.addr %s262, 24
        %s264 = scalar_lea.vmem [#allocation3], %s263
        // Predicated region
        $region59: #{cotrain_forward.27} parent=57 // pred_check
          %p265 = pneg %p57
        $region60: #{cotrain_forward.27} parent=57 // pred_check_branch
          %267 = sbr.rel (%p265) target = $region62
        $region61: #{cotrain_forward.27} parent=57 // pred_region
          _
        $region62: #{cotrain_forward.27} parent=57 // pred_fallthru
          _
        %s268 = sand.u32 %s44, 1
        %s269 = sand.u32 %s44, 1
        %s270 = smul.addr %s269, 24
        %s271 = scalar_lea.vmem [#allocation3], %s270
        %p272 = pneg %p57
        %p273 = pneg %p54
        %s274 = smul.u32 48, %s22
        %p275 = scmp.lt.s32.totalorder %s274, 95
        %s276 = scalar_select %p275, %s274, 95
        %p277 = scmp.lt.s32.totalorder %s21, 0
        %s278 = scalar_select %p277, %s21, 0
        %s279 = sadd.s32 %s278, %s276
        %s280 = smul.addr %s279, 4
        %s281 = scalar_lea.vmem %s1, %s280
        %p282 = pneg %p85
        %p283 = pneg %p82
        %p284 = scmp.lt.s32.totalorder %s21, 0
        %s285 = scalar_select %p284, %s21, 0
        %s286 = scalar_lea.vmem %s2, %s285
        %p287 = pneg %p111
        %p288 = pneg %p108
        %p289 = scmp.lt.s32.totalorder %s21, 0
        %s290 = scalar_select %p289, %s21, 0
        %s291 = scalar_lea.vmem %s3, %s290
        %p292 = pneg %p137
        %p293 = pneg %p134
        %p294 = pneg %p165
        %p295 = pneg %p162
        %s296 = smul.u32 2, %s20
        %p297 = scmp.lt.s32.totalorder %s296, 1
        %s298 = scalar_select %p297, %s296, 1
        %p299 = scmp.lt.s32.totalorder %s21, 0
        %s300 = scalar_select %p299, %s21, 0
        %s301 = sadd.s32 %s300, %s298
        %s302 = smul.addr %s301, 4
        %s303 = scalar_lea.vmem %s4, %s302
        %s304 = smul.u32 2, %s20
        %s305 = smul.u32 3, %s22
        %s306 = smul.u32 48, %s22
        %p307 = scmp.lt.s32.totalorder %s306, 95
        %s308 = scalar_select %p307, %s306, 95
        %p309 = scmp.lt.s32.totalorder %s21, 0
        %s310 = scalar_select %p309, %s21, 0
        %s311 = sadd.s32 %s310, %s308
        %s312 = smul.addr %s311, 4
        %s313 = scalar_lea.vmem %s1, %s312
        %s314 = smul.u32 48, %s22
        %p315 = scmp.lt.s32.totalorder %s21, 0
        %s316 = scalar_select %p315, %s21, 0
        %s317 = scalar_lea.vmem %s2, %s316
        %p318 = scmp.lt.s32.totalorder %s21, 0
        %s319 = scalar_select %p318, %s21, 0
        %s320 = scalar_lea.vmem %s3, %s319
        %s321 = smul.u32 2, %s20
        %p322 = scmp.lt.s32.totalorder %s321, 1
        %s323 = scalar_select %p322, %s321, 1
        %p324 = scmp.lt.s32.totalorder %s21, 0
        %s325 = scalar_select %p324, %s21, 0
        %s326 = sadd.s32 %s325, %s323
        %s327 = smul.addr %s326, 4
        %s328 = scalar_lea.vmem %s4, %s327
        %s329 = smul.u32 2, %s20
        %p330 = scmp.eq.s32.totalorder %s22, 0
        // Predicated region
        $region63: #{cotrain_forward.27} parent=57 // pred_check
          %p331 = pneg %p330
        $region64: #{cotrain_forward.27} parent=57 // pred_check_branch
          %333 = sbr.rel (%p331) target = $region66
        $region65: #{cotrain_forward.27} parent=57 // pred_region
          %334 = vst [vmem:[#allocation2] sm:$0xff] 0.0
          %335 = vst [vmem:[#allocation2 + $0x8] sm:$0xff] 0.0
        $region66: #{cotrain_forward.27} parent=57 // pred_fallthru
          _
        %v336 = vld [vmem:[#allocation2] sm:$0xff]
        %v337 = vld [vmem:[#allocation2 + $0x8] sm:$0xff]
        %v338 = vld [vmem:[%s264] sm:$0xff]
        %v339 = vld [vmem:[%s264 + $0x8] sm:$0xf]
        %v340 = vld [vmem:[%s264 + $0xc] sm:$0xff]
        %v341 = vld [vmem:[%s264 + $0x14] sm:$0xf]
        %v342 = vld [vmem:[%s313] sm:$0xf]
        %v343 = vld [vmem:[%s313 + $0x4] sm:$0xf]
        %v344 = vld [vmem:[%s313 + $0x8] sm:$0xf]
        %v345 = vld [vmem:[%s313 + $0xc] sm:$0xf]
        %v346 = vld [vmem:[%s313 + $0x10] sm:$0xf]
        %v347 = vld [vmem:[%s313 + $0x14] sm:$0xf]
        %v348 = vld [vmem:[%s313 + $0x18] sm:$0xf]
        %v349 = vld [vmem:[%s313 + $0x1c] sm:$0xf]
        %v350 = vld [vmem:[%s313 + $0x20] sm:$0xf]
        %v351 = vld [vmem:[%s313 + $0x24] sm:$0xf]
        %v352 = vld [vmem:[%s313 + $0x28] sm:$0xf]
        %v353 = vld [vmem:[%s313 + $0x2c] sm:$0xf]
        %v354 = vld [vmem:[%s313 + $0x30] sm:$0xf]
        %v355 = vld [vmem:[%s313 + $0x34] sm:$0xf]
        %v356 = vld [vmem:[%s313 + $0x38] sm:$0xf]
        %v357 = vld [vmem:[%s313 + $0x3c] sm:$0xf]
        %v358 = vld [vmem:[%s313 + $0x40] sm:$0xf]
        %v359 = vld [vmem:[%s313 + $0x44] sm:$0xf]
        %v360 = vld [vmem:[%s313 + $0x48] sm:$0xf]
        %v361 = vld [vmem:[%s313 + $0x4c] sm:$0xf]
        %v362 = vld [vmem:[%s313 + $0x50] sm:$0xf]
        %v363 = vld [vmem:[%s313 + $0x54] sm:$0xf]
        %v364 = vld [vmem:[%s313 + $0x58] sm:$0xf]
        %v365 = vld [vmem:[%s313 + $0x5c] sm:$0xf]
        %v366 = vld [vmem:[%s313 + $0x60] sm:$0xf]
        %v367 = vld [vmem:[%s313 + $0x64] sm:$0xf]
        %v368 = vld [vmem:[%s313 + $0x68] sm:$0xf]
        %v369 = vld [vmem:[%s313 + $0x6c] sm:$0xf]
        %v370 = vld [vmem:[%s313 + $0x70] sm:$0xf]
        %v371 = vld [vmem:[%s313 + $0x74] sm:$0xf]
        %v372 = vld [vmem:[%s313 + $0x78] sm:$0xf]
        %v373 = vld [vmem:[%s313 + $0x7c] sm:$0xf]
        %v374 = vld [vmem:[%s313 + $0x80] sm:$0xf]
        %v375 = vld [vmem:[%s313 + $0x84] sm:$0xf]
        %v376 = vld [vmem:[%s313 + $0x88] sm:$0xf]
        %v377 = vld [vmem:[%s313 + $0x8c] sm:$0xf]
        %v378 = vld [vmem:[%s313 + $0x90] sm:$0xf]
        %v379 = vld [vmem:[%s313 + $0x94] sm:$0xf]
        %v380 = vld [vmem:[%s313 + $0x98] sm:$0xf]
        %v381 = vld [vmem:[%s313 + $0x9c] sm:$0xf]
        %v382 = vld [vmem:[%s313 + $0xa0] sm:$0xf]
        %v383 = vld [vmem:[%s313 + $0xa4] sm:$0xf]
        %v384 = vld [vmem:[%s313 + $0xa8] sm:$0xf]
        %v385 = vld [vmem:[%s313 + $0xac] sm:$0xf]
        %v386 = vld [vmem:[%s313 + $0xb0] sm:$0xf]
        %v387 = vld [vmem:[%s313 + $0xb4] sm:$0xf]
        %v388 = vld [vmem:[%s313 + $0xb8] sm:$0xf]
        %v389 = vld [vmem:[%s313 + $0xbc] sm:$0xf]
        %v394 = vunpack.c.l.b16 %v338
        %v395 = vunpack.c.h.b16 %v338
        %v396 = vunpack.c.l.b16 %v339
        %v397 = vunpack.c.l.b16 %v340
        %v398 = vunpack.c.h.b16 %v340
        %v399 = vunpack.c.l.b16 %v341
        %v400 = vpack.c.b16 %v397, %v394
        %v401 = vpack.c.b16 %v398, %v395
        %v402 = vpack.c.b16 %v399, %v396
        %v454 = vunpack.c.l.b16 %v342
        %v455 = vunpack.c.l.b16 %v343
        %v456 = vunpack.c.l.b16 %v344
        %v457 = vunpack.c.l.b16 %v345
        %v458 = vunpack.c.l.b16 %v346
        %v459 = vunpack.c.l.b16 %v347
        %v460 = vunpack.c.l.b16 %v348
        %v461 = vunpack.c.l.b16 %v349
        %v462 = vunpack.c.l.b16 %v350
        %v463 = vunpack.c.l.b16 %v351
        %v464 = vunpack.c.l.b16 %v352
        %v465 = vunpack.c.l.b16 %v353
        %v466 = vunpack.c.l.b16 %v354
        %v467 = vunpack.c.l.b16 %v355
        %v468 = vunpack.c.l.b16 %v356
        %v469 = vunpack.c.l.b16 %v357
        %v470 = vunpack.c.l.b16 %v358
        %v471 = vunpack.c.l.b16 %v359
        %v472 = vunpack.c.l.b16 %v360
        %v473 = vunpack.c.l.b16 %v361
        %v474 = vunpack.c.l.b16 %v362
        %v475 = vunpack.c.l.b16 %v363
        %v476 = vunpack.c.l.b16 %v364
        %v477 = vunpack.c.l.b16 %v365
        %v478 = vunpack.c.l.b16 %v366
        %v479 = vunpack.c.l.b16 %v367
        %v480 = vunpack.c.l.b16 %v368
        %v481 = vunpack.c.l.b16 %v369
        %v482 = vunpack.c.l.b16 %v370
        %v483 = vunpack.c.l.b16 %v371
        %v484 = vunpack.c.l.b16 %v372
        %v485 = vunpack.c.l.b16 %v373
        %v486 = vunpack.c.l.b16 %v374
        %v487 = vunpack.c.l.b16 %v375
        %v488 = vunpack.c.l.b16 %v376
        %v489 = vunpack.c.l.b16 %v377
        %v490 = vunpack.c.l.b16 %v378
        %v491 = vunpack.c.l.b16 %v379
        %v492 = vunpack.c.l.b16 %v380
        %v493 = vunpack.c.l.b16 %v381
        %v494 = vunpack.c.l.b16 %v382
        %v495 = vunpack.c.l.b16 %v383
        %v496 = vunpack.c.l.b16 %v384
        %v497 = vunpack.c.l.b16 %v385
        %v498 = vunpack.c.l.b16 %v386
        %v499 = vunpack.c.l.b16 %v387
        %v500 = vunpack.c.l.b16 %v388
        %v501 = vunpack.c.l.b16 %v389
        %v502 = vpack.c.b16 %v455, %v454
        %v503 = vpack.c.b16 %v457, %v456
        %v504 = vpack.c.b16 %v459, %v458
        %v505 = vpack.c.b16 %v461, %v460
        %v506 = vpack.c.b16 %v463, %v462
        %v507 = vpack.c.b16 %v465, %v464
        %v508 = vpack.c.b16 %v467, %v466
        %v509 = vpack.c.b16 %v469, %v468
        %v510 = vpack.c.b16 %v471, %v470
        %v511 = vpack.c.b16 %v473, %v472
        %v512 = vpack.c.b16 %v475, %v474
        %v513 = vpack.c.b16 %v477, %v476
        %v514 = vpack.c.b16 %v479, %v478
        %v515 = vpack.c.b16 %v481, %v480
        %v516 = vpack.c.b16 %v483, %v482
        %v517 = vpack.c.b16 %v485, %v484
        %v518 = vpack.c.b16 %v487, %v486
        %v519 = vpack.c.b16 %v489, %v488
        %v520 = vpack.c.b16 %v491, %v490
        %v521 = vpack.c.b16 %v493, %v492
        %v522 = vpack.c.b16 %v495, %v494
        %v523 = vpack.c.b16 %v497, %v496
        %v524 = vpack.c.b16 %v499, %v498
        %v525 = vpack.c.b16 %v501, %v500
        %550 = vmatpush.bf16.msra.mxu0 %v509
        %551 = vmatpush.bf16.msra.mxu0 %v508
        %552 = vmatpush.bf16.msra.mxu0 %v507
        %553 = vmatpush.bf16.msra.mxu0 %v506
        %554 = vmatpush.bf16.msra.mxu0 %v505
        %555 = vmatpush.bf16.msra.mxu0 %v504
        %556 = vmatpush.bf16.msra.mxu0 %v503
        %557 = vmatpush.bf16.msra.mxu0 %v502
        %558 = vmatmul.bf16.gmra.mxu0 %v400
        %v559 = vpop.f32.mrf.mxu0
        %v560 = vadd.f32 0.0, %v559
        %v561 = vpop.f32.mrf.mxu0
        %v562 = vadd.f32 0.0, %v561
        %563 = vdwg.mxu0
        %564 = vmatpush.bf16.msra.mxu0 %v517
        %565 = vmatpush.bf16.msra.mxu0 %v516
        %566 = vmatpush.bf16.msra.mxu0 %v515
        %567 = vmatpush.bf16.msra.mxu0 %v514
        %568 = vmatpush.bf16.msra.mxu0 %v513
        %569 = vmatpush.bf16.msra.mxu0 %v512
        %570 = vmatpush.bf16.msra.mxu0 %v511
        %571 = vmatpush.bf16.msra.mxu0 %v510
        %572 = vmatmul.bf16.gmra.mxu0 %v401
        %v573 = vpop.f32.mrf.mxu0
        %v574 = vadd.f32 %v560, %v573
        %v575 = vpop.f32.mrf.mxu0
        %v576 = vadd.f32 %v562, %v575
        %577 = vdwg.mxu0
        %578 = vmatpush.bf16.msra.mxu0 %v525
        %579 = vmatpush.bf16.msra.mxu0 %v524
        %580 = vmatpush.bf16.msra.mxu0 %v523
        %581 = vmatpush.bf16.msra.mxu0 %v522
        %582 = vmatpush.bf16.msra.mxu0 %v521
        %583 = vmatpush.bf16.msra.mxu0 %v520
        %584 = vmatpush.bf16.msra.mxu0 %v519
        %585 = vmatpush.bf16.msra.mxu0 %v518
        %586 = vmatmul.bf16.gmra.mxu0 %v402
        %v587 = vpop.f32.mrf.mxu0
        %v588 = vadd.f32 %v574, %v587
        %v589 = vpop.f32.mrf.mxu0
        %v590 = vadd.f32 %v576, %v589
        %591 = vdwg.mxu0
        %v592 = vadd.f32 %v336, %v588
        %v593 = vadd.f32 %v337, %v590
        %594 = vst [vmem:[#allocation2] sm:$0xff] %v592
        %595 = vst [vmem:[#allocation2 + $0x8] sm:$0xff] %v593
        %p596 = scmp.eq.s32.totalorder %s22, 1
        // Predicated region
        $region67: #{cotrain_forward.27} parent=57 // pred_check
          %p597 = pneg %p596
        $region68: #{cotrain_forward.27} parent=57 // pred_check_branch
          %599 = sbr.rel (%p597) target = $region70
        $region69: #{cotrain_forward.27} parent=57 // pred_region
          %v600 = vld [vmem:[#allocation2] sm:$0xff]
          %v601 = vld [vmem:[#allocation2 + $0x8] sm:$0xff]
          %v602 = vld [vmem:[%s317] sm:$0x1]
          %v604 = vperm.slane %v602, 0
          %v606 = vmul.f32 %v600, %v604
          %v607 = vmul.f32 %v601, %v604
          %v608 = vld [vmem:[%s320] sm:$0x1]
          %v610 = vperm.slane %v608, 0
          %v612 = vadd.f32 %v606, %v610
          %v613 = vadd.f32 %v607, %v610
          %v614 = vmax.f32 %v612, 0.0
          %v615 = vmax.f32 %v613, 0.0
          %v616 = vpack.c.bf16 %v614, %v614
          %v617 = vpack.c.bf16 %v615, %v615
          %618 = vst [vmem:[%s328] sm:$0xf] %v616
          %619 = vst [vmem:[%s328 + $0x4] sm:$0xf] %v617
        $region70: #{cotrain_forward.27} parent=57 // pred_fallthru
          _
        %s620 = smul.u32 2, %s20
        %p621 = scmp.lt.s32.totalorder %s620, 1
        %s622 = scalar_select %p621, %s620, 1
        %p623 = scmp.lt.s32.totalorder %s21, 0
        %s624 = scalar_select %p623, %s21, 0
        %s625 = sadd.s32 %s624, %s622
        %s626 = smul.addr %s625, 4
        %s627 = scalar_lea.vmem %s4, %s626
        // Predicated region
        $region71: #{cotrain_forward.27} parent=57 // pred_check
          %p628 = pneg %p162
        $region72: #{cotrain_forward.27} parent=57 // pred_check_branch
          %630 = sbr.rel (%p628) target = $region74
        $region73: #{cotrain_forward.27} parent=57 // pred_region
          %s631 = smul.u32 2, %s20
        $region74: #{cotrain_forward.27} parent=57 // pred_fallthru
          _
        // Predicated region
        $region75: #{cotrain_forward.27} parent=57 // pred_check
          %p632 = pneg %p162
        $region76: #{cotrain_forward.27} parent=57 // pred_check_branch
          %634 = sbr.rel (%p632) target = $region78
        $region77: #{cotrain_forward.27} parent=57 // pred_region
          %s635 = smul.u32 2, %s20
          %p636 = scmp.lt.s32.totalorder %s635, 1
          %s637 = scalar_select %p636, %s635, 1
          %p638 = scmp.lt.s32.totalorder %s21, 0
          %s639 = scalar_select %p638, %s21, 0
          %s640 = sadd.s32 %s639, %s637
          %s641 = smul.addr %s640, 4
          %s642 = scalar_lea.vmem %s4, %s641
        $region78: #{cotrain_forward.27} parent=57 // pred_fallthru
          _
      $region58: #{cotrain_forward.27} parent=5 // pred_fallthru
        _
      %p643 = scmp.le.s32.totalorder 2, %s10
      // Predicated region
      $region79: #{cotrain_forward.27} parent=5 // pred_check
        %p644 = pneg %p643
      $region80: #{cotrain_forward.27} parent=5 // pred_check_branch
        %646 = sbr.rel (%p644) target = $region82
      $region81: #{cotrain_forward.27} parent=5 // pred_region
        %s647 = ssub.s32 %s10, 2
      $region82: #{cotrain_forward.27} parent=5 // pred_fallthru
        _
    $region6: #{cotrain_forward.27} parent=1 // loop_footer
      %s14 = sadd.s32 1, %s10
    $region7: #{cotrain_forward.27} parent=1 // loop_footer_branch
      %9 = sbr.rel target = $region3
    $region8: #{cotrain_forward.27} parent=1 // loop_exit
      _

// kernel: cotrain_forward.26
$region0: #{cotrain_forward.26}
  #allocation0 [shape = 'u32[]', space=smem, size = 0x4, offset = 0x4, fixed_abs, tag = 'smem constant byte address 0x4 - core index']
  #allocation1 [shape = 'u32[72,128]{1,0:T(1,128)}', space=vmem, size = 0x9000, scoped, tag = 'internal scratch']
  #allocation2 [shape = 'f32[16,128]{1,0:T(8,128)}', space=vmem, size = 0x2000, scoped, tag = 'scratch operand']
  %s0 = inlined_call_operand.vmem [shape: bf16[16,64], index: 0, kind: input, shape index: {}]
  %s1 = inlined_call_operand.vmem [shape: bf16[64,128], index: 1, kind: input, shape index: {}]
  %s2 = inlined_call_operand.vmem [shape: f32[1,128], index: 2, kind: input, shape index: {}]
  %s3 = inlined_call_operand.vmem [shape: f32[1,128], index: 3, kind: input, shape index: {}]
  %s4 = inlined_call_operand.vmem [shape: bf16[16,128], index: 4, kind: output, shape index: {}]
  %s5 = sld [smem:[#allocation0]]
  $region34: #{cotrain_forward.26} parent=0
    _
  %s7 = ssub.s32 1, %s5
  %s8 = scalar_select 0, %s7, %s5
  // Predicated region
  $region2: #{cotrain_forward.26} parent=0 // pred_check
    _
  $region3: #{cotrain_forward.26} parent=0 // pred_check_branch
    %10 = sbr.rel (0) target = $region5
  $region4: #{cotrain_forward.26} parent=0 // pred_region
    _
  $region5: #{cotrain_forward.26} parent=0 // pred_fallthru
    _
  // Predicated region
  $region6: #{cotrain_forward.26} parent=0 // pred_check
    _
  $region7: #{cotrain_forward.26} parent=0 // pred_check_branch
    %12 = sbr.rel (0) target = $region9
  $region8: #{cotrain_forward.26} parent=0 // pred_region
    _
  $region9: #{cotrain_forward.26} parent=0 // pred_fallthru
    _
  // Predicated region
  $region10: #{cotrain_forward.26} parent=0 // pred_check
    _
  $region11: #{cotrain_forward.26} parent=0 // pred_check_branch
    %14 = sbr.rel (0) target = $region13
  $region12: #{cotrain_forward.26} parent=0 // pred_region
    _
  $region13: #{cotrain_forward.26} parent=0 // pred_fallthru
    _
  // Predicated region
  $region14: #{cotrain_forward.26} parent=0 // pred_check
    _
  $region15: #{cotrain_forward.26} parent=0 // pred_check_branch
    %16 = sbr.rel (0) target = $region17
  $region16: #{cotrain_forward.26} parent=0 // pred_region
    _
  $region17: #{cotrain_forward.26} parent=0 // pred_fallthru
    _
  %p18 = scmp.eq.s32.totalorder 0, 0
  // Predicated region
  $region18: #{cotrain_forward.26} parent=0 // pred_check
    %p19 = pneg %p18
  $region19: #{cotrain_forward.26} parent=0 // pred_check_branch
    %21 = sbr.rel (%p19) target = $region21
  $region20: #{cotrain_forward.26} parent=0 // pred_region
    %22 = vst [vmem:[#allocation2] sm:$0xff] 0.0
    %23 = vst [vmem:[#allocation2 + $0x8] sm:$0xff] 0.0
  $region21: #{cotrain_forward.26} parent=0 // pred_fallthru
    _
  %v24 = vld [vmem:[#allocation2] sm:$0xff]
  %v25 = vld [vmem:[#allocation2 + $0x8] sm:$0xff]
  %v26 = vld [vmem:[%s0] sm:$0xf]
  %v27 = vld [vmem:[%s0 + $0x4] sm:$0xf]
  %v28 = vld [vmem:[%s1] sm:$0xf]
  %v29 = vld [vmem:[%s1 + $0x4] sm:$0xf]
  %v30 = vld [vmem:[%s1 + $0x8] sm:$0xf]
  %v31 = vld [vmem:[%s1 + $0xc] sm:$0xf]
  %v32 = vld [vmem:[%s1 + $0x10] sm:$0xf]
  %v33 = vld [vmem:[%s1 + $0x14] sm:$0xf]
  %v34 = vld [vmem:[%s1 + $0x18] sm:$0xf]
  %v35 = vld [vmem:[%s1 + $0x1c] sm:$0xf]
  %v38 = vunpack.c.l.b16 %v26
  %v39 = vunpack.c.l.b16 %v27
  %v40 = vpack.c.b16 %v39, %v38
  %v49 = vunpack.c.l.b16 %v28
  %v50 = vunpack.c.l.b16 %v29
  %v51 = vunpack.c.l.b16 %v30
  %v52 = vunpack.c.l.b16 %v31
  %v53 = vunpack.c.l.b16 %v32
  %v54 = vunpack.c.l.b16 %v33
  %v55 = vunpack.c.l.b16 %v34
  %v56 = vunpack.c.l.b16 %v35
  %v57 = vpack.c.b16 %v50, %v49
  %v58 = vpack.c.b16 %v52, %v51
  %v59 = vpack.c.b16 %v54, %v53
  %v60 = vpack.c.b16 %v56, %v55
  %vm65 = vcmask 523264
  %v67 = vsel %vm65, %v40, 0
  %69 = vmatpush.bf16.msra.mxu0 0
  %70 = vmatpush.bf16.msra.mxu0 0
  %71 = vmatpush.bf16.msra.mxu0 0
  %72 = vmatpush.bf16.msra.mxu0 0
  %73 = vmatpush.bf16.msra.mxu0 %v60
  %74 = vmatpush.bf16.msra.mxu0 %v59
  %75 = vmatpush.bf16.msra.mxu0 %v58
  %76 = vmatpush.bf16.msra.mxu0 %v57
  %77 = vmatmul.bf16.gmra.mxu0 %v67
  %v78 = vpop.f32.mrf.mxu0
  %v79 = vadd.f32 0.0, %v78
  %v80 = vpop.f32.mrf.mxu0
  %v81 = vadd.f32 0.0, %v80
  %82 = vdwg.mxu0
  %v83 = vadd.f32 %v24, %v79
  %v84 = vadd.f32 %v25, %v81
  %85 = vst [vmem:[#allocation2] sm:$0xff] %v83
  %86 = vst [vmem:[#allocation2 + $0x8] sm:$0xff] %v84
  // Predicated region
  $region22: #{cotrain_forward.26} parent=0 // pred_check
    %p87 = pneg %p18
  $region23: #{cotrain_forward.26} parent=0 // pred_check_branch
    %89 = sbr.rel (%p87) target = $region25
  $region24: #{cotrain_forward.26} parent=0 // pred_region
    %v90 = vld [vmem:[#allocation2] sm:$0xff]
    %v91 = vld [vmem:[#allocation2 + $0x8] sm:$0xff]
    %v92 = vld [vmem:[%s2] sm:$0x1]
    %v94 = vperm.slane %v92, 0
    %v96 = vmul.f32 %v90, %v94
    %v97 = vmul.f32 %v91, %v94
    %v98 = vld [vmem:[%s3] sm:$0x1]
    %v100 = vperm.slane %v98, 0
    %v102 = vadd.f32 %v96, %v100
    %v103 = vadd.f32 %v97, %v100
    %v104 = vpack.c.bf16 %v102, %v102
    %v105 = vpack.c.bf16 %v103, %v103
    %106 = vst [vmem:[%s4] sm:$0xf] %v104
    %107 = vst [vmem:[%s4 + $0x4] sm:$0xf] %v105
  $region25: #{cotrain_forward.26} parent=0 // pred_fallthru
    _
  // Predicated region
  $region26: #{cotrain_forward.26} parent=0 // pred_check
    _
  $region27: #{cotrain_forward.26} parent=0 // pred_check_branch
    %109 = sbr.rel (0) target = $region29
  $region28: #{cotrain_forward.26} parent=0 // pred_region
    _
  $region29: #{cotrain_forward.26} parent=0 // pred_fallthru
    _
  // Predicated region
  $region30: #{cotrain_forward.26} parent=0 // pred_check
    _
  $region31: #{cotrain_forward.26} parent=0 // pred_check_branch
    %111 = sbr.rel (0) target = $region33
  $region32: #{cotrain_forward.26} parent=0 // pred_region
    _
  $region33: #{cotrain_forward.26} parent=0 // pred_fallthru
    _

// kernel: cotrain_forward.29
$region0: #{cotrain_forward.29}
  #allocation0 [shape = 'u32[]', space=smem, size = 0x4, offset = 0x4, fixed_abs, tag = 'smem constant byte address 0x4 - core index']
  #allocation1 [shape = 'u32[72,128]{1,0:T(1,128)}', space=vmem, size = 0x9000, scoped, tag = 'internal scratch']
  %s0 = inlined_call_operand.vmem [shape: bf16[2,1,128], index: 0, kind: input, shape index: {}]
  %s1 = inlined_call_operand.vmem [shape: f32[2,128], index: 1, kind: output, shape index: {}]
  %s2 = sld [smem:[#allocation0]]
  $region14: #{cotrain_forward.29} parent=0
    _
  %s4 = ssub.s32 1, %s2
  %s5 = scalar_select 0, %s4, %s2
  // Predicated region
  $region2: #{cotrain_forward.29} parent=0 // pred_check
    _
  $region3: #{cotrain_forward.29} parent=0 // pred_check_branch
    %7 = sbr.rel (0) target = $region5
  $region4: #{cotrain_forward.29} parent=0 // pred_region
    _
  $region5: #{cotrain_forward.29} parent=0 // pred_fallthru
    _
  %v8 = vld [vmem:[%s0] sm:$0x1]
  %v9 = vld [vmem:[%s0 + $0x1] sm:$0x1]
  %v10 = vunpack.c.l.bf16 %v8
  %v11 = vunpack.c.l.bf16 %v9
  %v12 = vadd.f32 %v10, 0.0
  %v13 = vadd.f32 %v11, 0.0
  %v16 = vperm.slane %v12, 0
  %v17 = vperm.slane %v13, 0
  %vm18 = vcmask 1041409
  %v19 = vsel %vm18, %v17, %v16
  %21 = vst [vmem:[%s1] sm:$0x3] %v19
  // Predicated region
  $region6: #{cotrain_forward.29} parent=0 // pred_check
    _
  $region7: #{cotrain_forward.29} parent=0 // pred_check_branch
    %23 = sbr.rel (0) target = $region9
  $region8: #{cotrain_forward.29} parent=0 // pred_region
    _
  $region9: #{cotrain_forward.29} parent=0 // pred_fallthru
    _
  // Predicated region
  $region10: #{cotrain_forward.29} parent=0 // pred_check
    _
  $region11: #{cotrain_forward.29} parent=0 // pred_check_branch
    %25 = sbr.rel (0) target = $region13
  $region12: #{cotrain_forward.29} parent=0 // pred_region
    _
  $region13: #{cotrain_forward.29} parent=0 // pred_fallthru
    _

// kernel: cotrain_forward.28
$region0: #{cotrain_forward.28}
  #allocation0 [shape = 'u32[]', space=smem, size = 0x4, offset = 0x4, fixed_abs, tag = 'smem constant byte address 0x4 - core index']
  #allocation1 [shape = 'u32[72,128]{1,0:T(1,128)}', space=vmem, size = 0x9000, scoped, tag = 'internal scratch']
  #allocation2 [shape = 'f32[16,128]{1,0:T(8,128)}', space=vmem, size = 0x2000, scoped, tag = 'scratch operand']
  %s0 = inlined_call_operand.vmem [shape: bf16[16,1152], index: 0, kind: input, shape index: {}]
  %s1 = inlined_call_operand.vmem [shape: bf16[1152,128], index: 1, kind: input, shape index: {}]
  %s2 = inlined_call_operand.vmem [shape: f32[1,128], index: 2, kind: input, shape index: {}]
  %s3 = inlined_call_operand.vmem [shape: f32[1,128], index: 3, kind: input, shape index: {}]
  %s4 = inlined_call_operand.vmem [shape: bf16[16,128], index: 4, kind: input, shape index: {}]
  %s5 = inlined_call_operand.vmem [shape: bf16[16,128], index: 5, kind: output, shape index: {}]
  %s6 = sld [smem:[#allocation0]]
  $region87: #{cotrain_forward.28} parent=0
    _
  %s8 = ssub.s32 1, %s6
  %s9 = scalar_select 0, %s8, %s6
  $region1: #{cotrain_forward.28} parent=0
    #allocation3 [shape = 'u8[24576]{0}', space=vmem, size = 0x6000, scoped, tag = 'input window, operand 0']
    loop: start=0, step=1, limit=5
    $region2: #{cotrain_forward.28} parent=1 // loop_pre_header
      _
    $region3: #{cotrain_forward.28} parent=1 // loop_header
      %s11 = sphi 0, %s15
      %p12 = scmp.ge.s32.totalorder %s11, 5
      %s18 = sphi 0, %s37
      %s19 = sphi 0, %s33
      %s20 = sphi 0, %s29
      %s21 = sphi 0, %s18
      %s22 = sphi 0, %s19
      %s23 = sphi 0, %s20
      %s24 = sphi 0, %s21
      %s25 = sphi 0, %s22
      %s26 = sphi 0, %s23
      %s42 = sphi 0, %s44
      %s45 = sphi 0, %s42
      %s46 = sphi 0, %s45
      %s62 = sphi 0, %s46
      %s70 = sphi 0, %s72
      %s73 = sphi 0, %s70
      %s74 = sphi 0, %s73
      %s90 = sphi 0, %s74
      %s96 = sphi 0, %s98
      %s99 = sphi 0, %s96
      %s100 = sphi 0, %s99
      %s116 = sphi 0, %s100
      %s122 = sphi 0, %s124
      %s125 = sphi 0, %s122
      %s126 = sphi 0, %s125
      %s142 = sphi 0, %s126
      %s150 = sphi 0, %s152
      %s153 = sphi 0, %s150
      %s154 = sphi 0, %s153
      %s170 = sphi 0, %s154
      %s178 = sphi 0, %s180
      %s181 = sphi 0, %s178
      %s182 = sphi 0, %s181
      %s198 = sphi 0, %s182
    $region4: #{cotrain_forward.28} parent=1 // loop_header_branch
      %14 = sbr.rel (%p12) target = $region8
    $region5: #{cotrain_forward.28} parent=1 // loop_body
      %s16 = ssub.s32 %s11, 1
      %s17 = ssub.s32 %s11, 2
      %s27 = sadd.s32 1, %s20
      %p28 = scmp.ge.s32.totalorder %s27, 3
      %s29 = scalar_select %p28, 0, %s27
      %s30 = sadd.s32 1, %s19
      %s31 = scalar_select %p28, %s30, %s19
      %p32 = scmp.ge.s32.totalorder %s31, 1
      %s33 = scalar_select %p32, 0, %s31
      %s34 = sadd.s32 1, %s18
      %s35 = scalar_select %p32, %s34, %s18
      %p36 = scmp.ge.s32.totalorder %s35, 1
      %s37 = scalar_select %p36, 0, %s35
      %s38 = ssub.s32 %s18, %s37
      %s39 = ssub.s32 %s20, %s29
      %s40 = sor.u32 %s38, %s39
      %p41 = scmp.eq.s32.totalorder %s40, 0
      %s43 = sadd.s32 %s42, 1
      %s44 = scalar_select %p41, %s42, %s43
      %p47 = pneg %p41
      %p48 = scmp.eq.s32.totalorder %s11, 2
      %p49 = por %p47, %p48
      %p50 = scmp.ne.s32.totalorder %s42, %s45
      %p51 = scmp.eq.s32.totalorder %s11, 0
      %p52 = por %p50, %p51
      %p53 = scmp.ne.s32.totalorder %s42, %s45
      %p54 = scmp.eq.s32.totalorder %s16, 2
      %p55 = por %p53, %p54
      %p56 = scmp.ne.s32.totalorder %s45, %s46
      %p57 = scmp.eq.s32.totalorder %s16, 0
      %p58 = por %p56, %p57
      %p59 = scmp.ne.s32.totalorder %s45, %s46
      %p60 = scmp.eq.s32.totalorder %s17, 2
      %p61 = por %p59, %p60
      %p63 = scmp.ne.s32.totalorder %s46, %s62
      %p64 = scmp.eq.s32.totalorder %s17, 0
      %p65 = por %p63, %p64
      %s66 = ssub.s32 %s20, %s29
      %s67 = ssub.s32 %s19, %s33
      %s68 = sor.u32 %s66, %s67
      %p69 = scmp.eq.s32.totalorder %s68, 0
      %s71 = sadd.s32 %s70, 1
      %s72 = scalar_select %p69, %s70, %s71
      %p75 = pneg %p69
      %p76 = scmp.eq.s32.totalorder %s11, 2
      %p77 = por %p75, %p76
      %p78 = scmp.ne.s32.totalorder %s70, %s73
      %p79 = scmp.eq.s32.totalorder %s11, 0
      %p80 = por %p78, %p79
      %p81 = scmp.ne.s32.totalorder %s70, %s73
      %p82 = scmp.eq.s32.totalorder %s16, 2
      %p83 = por %p81, %p82
      %p84 = scmp.ne.s32.totalorder %s73, %s74
      %p85 = scmp.eq.s32.totalorder %s16, 0
      %p86 = por %p84, %p85
      %p87 = scmp.ne.s32.totalorder %s73, %s74
      %p88 = scmp.eq.s32.totalorder %s17, 2
      %p89 = por %p87, %p88
      %p91 = scmp.ne.s32.totalorder %s74, %s90
      %p92 = scmp.eq.s32.totalorder %s17, 0
      %p93 = por %p91, %p92
      %s94 = ssub.s32 %s19, %s33
      %p95 = scmp.eq.s32.totalorder %s94, 0
      %s97 = sadd.s32 %s96, 1
      %s98 = scalar_select %p95, %s96, %s97
      %p101 = pneg %p95
      %p102 = scmp.eq.s32.totalorder %s11, 2
      %p103 = por %p101, %p102
      %p104 = scmp.ne.s32.totalorder %s96, %s99
      %p105 = scmp.eq.s32.totalorder %s11, 0
      %p106 = por %p104, %p105
      %p107 = scmp.ne.s32.totalorder %s96, %s99
      %p108 = scmp.eq.s32.totalorder %s16, 2
      %p109 = por %p107, %p108
      %p110 = scmp.ne.s32.totalorder %s99, %s100
      %p111 = scmp.eq.s32.totalorder %s16, 0
      %p112 = por %p110, %p111
      %p113 = scmp.ne.s32.totalorder %s99, %s100
      %p114 = scmp.eq.s32.totalorder %s17, 2
      %p115 = por %p113, %p114
      %p117 = scmp.ne.s32.totalorder %s100, %s116
      %p118 = scmp.eq.s32.totalorder %s17, 0
      %p119 = por %p117, %p118
      %s120 = ssub.s32 %s19, %s33
      %p121 = scmp.eq.s32.totalorder %s120, 0
      %s123 = sadd.s32 %s122, 1
      %s124 = scalar_select %p121, %s122, %s123
      %p127 = pneg %p121
      %p128 = scmp.eq.s32.totalorder %s11, 2
      %p129 = por %p127, %p128
      %p130 = scmp.ne.s32.totalorder %s122, %s125
      %p131 = scmp.eq.s32.totalorder %s11, 0
      %p132 = por %p130, %p131
      %p133 = scmp.ne.s32.totalorder %s122, %s125
      %p134 = scmp.eq.s32.totalorder %s16, 2
      %p135 = por %p133, %p134
      %p136 = scmp.ne.s32.totalorder %s125, %s126
      %p137 = scmp.eq.s32.totalorder %s16, 0
      %p138 = por %p136, %p137
      %p139 = scmp.ne.s32.totalorder %s125, %s126
      %p140 = scmp.eq.s32.totalorder %s17, 2
      %p141 = por %p139, %p140
      %p143 = scmp.ne.s32.totalorder %s126, %s142
      %p144 = scmp.eq.s32.totalorder %s17, 0
      %p145 = por %p143, %p144
      %s146 = ssub.s32 %s18, %s37
      %s147 = ssub.s32 %s19, %s33
      %s148 = sor.u32 %s146, %s147
      %p149 = scmp.eq.s32.totalorder %s148, 0
      %s151 = sadd.s32 %s150, 1
      %s152 = scalar_select %p149, %s150, %s151
      %p155 = pneg %p149
      %p156 = scmp.eq.s32.totalorder %s11, 2
      %p157 = por %p155, %p156
      %p158 = scmp.ne.s32.totalorder %s150, %s153
      %p159 = scmp.eq.s32.totalorder %s11, 0
      %p160 = por %p158, %p159
      %p161 = scmp.ne.s32.totalorder %s150, %s153
      %p162 = scmp.eq.s32.totalorder %s16, 2
      %p163 = por %p161, %p162
      %p164 = scmp.ne.s32.totalorder %s153, %s154
      %p165 = scmp.eq.s32.totalorder %s16, 0
      %p166 = por %p164, %p165
      %p167 = scmp.ne.s32.totalorder %s153, %s154
      %p168 = scmp.eq.s32.totalorder %s17, 2
      %p169 = por %p167, %p168
      %p171 = scmp.ne.s32.totalorder %s154, %s170
      %p172 = scmp.eq.s32.totalorder %s17, 0
      %p173 = por %p171, %p172
      %s174 = ssub.s32 %s18, %s37
      %s175 = ssub.s32 %s19, %s33
      %s176 = sor.u32 %s174, %s175
      %p177 = scmp.eq.s32.totalorder %s176, 0
      %s179 = sadd.s32 %s178, 1
      %s180 = scalar_select %p177, %s178, %s179
      %p183 = pneg %p177
      %p184 = scmp.eq.s32.totalorder %s11, 2
      %p185 = por %p183, %p184
      %p186 = scmp.ne.s32.totalorder %s178, %s181
      %p187 = scmp.eq.s32.totalorder %s11, 0
      %p188 = por %p186, %p187
      %p189 = scmp.ne.s32.totalorder %s178, %s181
      %p190 = scmp.eq.s32.totalorder %s16, 2
      %p191 = por %p189, %p190
      %p192 = scmp.ne.s32.totalorder %s181, %s182
      %p193 = scmp.eq.s32.totalorder %s16, 0
      %p194 = por %p192, %p193
      %p195 = scmp.ne.s32.totalorder %s181, %s182
      %p196 = scmp.eq.s32.totalorder %s17, 2
      %p197 = por %p195, %p196
      %p199 = scmp.ne.s32.totalorder %s182, %s198
      %p200 = scmp.eq.s32.totalorder %s17, 0
      %p201 = por %p199, %p200
      %p202 = scmp.le.s32.totalorder 1, %s11
      %p203 = scmp.lt.s32.totalorder %s11, 4
      %p204 = pnand %p202, %p203
      %p205 = pneg %p204
      // Predicated region
      $region9: #{cotrain_forward.28} parent=5 // pred_check
        _
      $region10: #{cotrain_forward.28} parent=5 // pred_check_branch
        %207 = sbr.rel (%p204) target = $region12
      $region11: #{cotrain_forward.28} parent=5 // pred_region
        %s208 = ssub.s32 %s11, 1
        // Predicated region
        $region13: #{cotrain_forward.28} parent=11 // pred_check
          %p209 = pneg %p112
        $region14: #{cotrain_forward.28} parent=11 // pred_check_branch
          %211 = sbr.rel (%p209) target = $region16
        $region15: #{cotrain_forward.28} parent=11 // pred_region
          %p212 = scmp.lt.s32.totalorder %s22, 0
          %s213 = scalar_select %p212, %s22, 0
          %s214 = scalar_lea.vmem %s2, %s213
        $region16: #{cotrain_forward.28} parent=11 // pred_fallthru
          _
        // Predicated region
        $region17: #{cotrain_forward.28} parent=11 // pred_check
          %p215 = pneg %p138
        $region18: #{cotrain_forward.28} parent=11 // pred_check_branch
          %217 = sbr.rel (%p215) target = $region20
        $region19: #{cotrain_forward.28} parent=11 // pred_region
          %p218 = scmp.lt.s32.totalorder %s22, 0
          %s219 = scalar_select %p218, %s22, 0
          %s220 = scalar_lea.vmem %s3, %s219
        $region20: #{cotrain_forward.28} parent=11 // pred_fallthru
          _
        // Predicated region
        $region21: #{cotrain_forward.28} parent=11 // pred_check
          %p221 = pneg %p166
        $region22: #{cotrain_forward.28} parent=11 // pred_check_branch
          %223 = sbr.rel (%p221) target = $region24
        $region23: #{cotrain_forward.28} parent=11 // pred_region
          %s224 = smul.u32 2, %s21
          %p225 = scmp.lt.s32.totalorder %s224, 1
          %s226 = scalar_select %p225, %s224, 1
          %p227 = scmp.lt.s32.totalorder %s22, 0
          %s228 = scalar_select %p227, %s22, 0
          %s229 = sadd.s32 %s228, %s226
          %s230 = smul.addr %s229, 4
          %s231 = scalar_lea.vmem %s4, %s230
          %s232 = smul.u32 2, %s21
        $region24: #{cotrain_forward.28} parent=11 // pred_fallthru
          _
      $region12: #{cotrain_forward.28} parent=5 // pred_fallthru
        _
      %p233 = scmp.lt.s32.totalorder %s11, 3
      // Predicated region
      $region25: #{cotrain_forward.28} parent=5 // pred_check
        %p234 = pneg %p233
      $region26: #{cotrain_forward.28} parent=5 // pred_check_branch
        %236 = sbr.rel (%p234) target = $region28
      $region27: #{cotrain_forward.28} parent=5 // pred_region
        // Predicated region
        $region29: #{cotrain_forward.28} parent=27 // pred_check
          %p237 = pneg %p52
        $region30: #{cotrain_forward.28} parent=27 // pred_check_branch
          %239 = sbr.rel (%p237) target = $region32
        $region31: #{cotrain_forward.28} parent=27 // pred_region
          %s240 = sand.u32 %s42, 1
          %s241 = sand.u32 %s42, 1
          %s242 = smul.addr %s241, 24
          %s243 = scalar_lea.vmem [#allocation3], %s242
          %s244 = smul.u32 2, %s18
          %s245 = smul.u32 3, %s20
          %s246 = smul.addr %s244, 9
          %s247 = sadd.s32 %s245, %s246
          %s248 = smul.addr %s247, 4
          %s249 = scalar_lea.vmem %s0, %s248
          // Predicated region
          $region33: #{cotrain_forward.28} parent=31 // pred_check
            _
          $region34: #{cotrain_forward.28} parent=31 // pred_check_branch
            %251 = sbr.rel (0) target = $region36
          $region35: #{cotrain_forward.28} parent=31 // pred_region
            // Predicated region
            $region37: #{cotrain_forward.28} parent=35 // pred_check
              _
            $region38: #{cotrain_forward.28} parent=35 // pred_check_branch
              %253 = sbr.rel (0) target = $region40
            $region39: #{cotrain_forward.28} parent=35 // pred_region
              %s254 = scalar_lea.vmem %s249, 8
              %s255 = scalar_lea.vmem %s243, 8 [#allocation3]
              loop: start=0, step=1, limit=1
              $region41: #{cotrain_forward.28} parent=39 // loop_pre_header
                _
              $region42: #{cotrain_forward.28} parent=39 // loop_header
                %s257 = sphi 0, %s261
                %p258 = scmp.ge.s32.totalorder %s257, 1
                %s262 = sphi %s249, %s249
                %s263 = sphi %s243, %s243
              $region43: #{cotrain_forward.28} parent=39 // loop_header_branch
                %260 = sbr.rel (%p258) target = $region47
              $region44: #{cotrain_forward.28} parent=39 // loop_body
                %v264 = vld [vmem:[%s262] sm:$0xff]
                %265 = vst [vmem:[%s263] sm:$0xff] %v264
                %v266 = vld [vmem:[%s262 + $0x24] sm:$0xff]
                %267 = vst [vmem:[%s263 + $0xc] sm:$0xff] %v266
              $region45: #{cotrain_forward.28} parent=39 // loop_footer
                %s261 = sadd.s32 1, %s257
              $region46: #{cotrain_forward.28} parent=39 // loop_footer_branch
                %256 = sbr.rel target = $region42
              $region47: #{cotrain_forward.28} parent=39 // loop_exit
                _
              %s269 = ssub.s32 16, 1
              loop: start=0, step=1, limit=1
              $region48: #{cotrain_forward.28} parent=39 // loop_pre_header
                _
              $region49: #{cotrain_forward.28} parent=39 // loop_header
                %s271 = sphi 0, %s275
                %p272 = scmp.ge.s32.totalorder %s271, 1
                %s276 = sphi %s254, %s254
                %s277 = sphi %s255, %s255
              $region50: #{cotrain_forward.28} parent=39 // loop_header_branch
                %274 = sbr.rel (%p272) target = $region54
              $region51: #{cotrain_forward.28} parent=39 // loop_body
                %v278 = vld [vmem:[%s276] sm:%s269]
                %279 = vst [vmem:[%s277] sm:%s269] %v278
                %v280 = vld [vmem:[%s276 + $0x24] sm:%s269]
                %281 = vst [vmem:[%s277 + $0xc] sm:%s269] %v280
              $region52: #{cotrain_forward.28} parent=39 // loop_footer
                %s275 = sadd.s32 1, %s271
              $region53: #{cotrain_forward.28} parent=39 // loop_footer_branch
                %270 = sbr.rel target = $region49
              $region54: #{cotrain_forward.28} parent=39 // loop_exit
                _
            $region40: #{cotrain_forward.28} parent=35 // pred_fallthru
              _
          $region36: #{cotrain_forward.28} parent=31 // pred_fallthru
            _
          %282 = vnop
        $region32: #{cotrain_forward.28} parent=27 // pred_fallthru
          _
        // Predicated region
        $region55: #{cotrain_forward.28} parent=27 // pred_check
          %p283 = pneg %p80
        $region56: #{cotrain_forward.28} parent=27 // pred_check_branch
          %285 = sbr.rel (%p283) target = $region58
        $region57: #{cotrain_forward.28} parent=27 // pred_region
          %s286 = smul.u32 48, %s20
          %p287 = scmp.lt.s32.totalorder %s286, 143
          %s288 = scalar_select %p287, %s286, 143
          %p289 = scmp.lt.s32.totalorder %s19, 0
          %s290 = scalar_select %p289, %s19, 0
          %s291 = sadd.s32 %s290, %s288
          %s292 = smul.addr %s291, 4
          %s293 = scalar_lea.vmem %s1, %s292
          %s294 = smul.u32 48, %s20
        $region58: #{cotrain_forward.28} parent=27 // pred_fallthru
          _
      $region28: #{cotrain_forward.28} parent=5 // pred_fallthru
        _
      %p295 = scmp.le.s32.totalorder 1, %s11
      %p296 = scmp.lt.s32.totalorder %s11, 4
      %p297 = pnand %p295, %p296
      %p298 = pneg %p297
      // Predicated region
      $region59: #{cotrain_forward.28} parent=5 // pred_check
        _
      $region60: #{cotrain_forward.28} parent=5 // pred_check_branch
        %300 = sbr.rel (%p297) target = $region62
      $region61: #{cotrain_forward.28} parent=5 // pred_region
        %s301 = ssub.s32 %s11, 1
        %s302 = sand.u32 %s45, 1
        %s303 = sand.u32 %s45, 1
        %s304 = smul.addr %s303, 24
        %s305 = scalar_lea.vmem [#allocation3], %s304
        // Predicated region
        $region63: #{cotrain_forward.28} parent=61 // pred_check
          %p306 = pneg %p58
        $region64: #{cotrain_forward.28} parent=61 // pred_check_branch
          %308 = sbr.rel (%p306) target = $region66
        $region65: #{cotrain_forward.28} parent=61 // pred_region
          _
        $region66: #{cotrain_forward.28} parent=61 // pred_fallthru
          _
        %s309 = sand.u32 %s45, 1
        %s310 = sand.u32 %s45, 1
        %s311 = smul.addr %s310, 24
        %s312 = scalar_lea.vmem [#allocation3], %s311
        %p313 = pneg %p58
        %p314 = pneg %p55
        %s315 = smul.u32 48, %s23
        %p316 = scmp.lt.s32.totalorder %s315, 143
        %s317 = scalar_select %p316, %s315, 143
        %p318 = scmp.lt.s32.totalorder %s22, 0
        %s319 = scalar_select %p318, %s22, 0
        %s320 = sadd.s32 %s319, %s317
        %s321 = smul.addr %s320, 4
        %s322 = scalar_lea.vmem %s1, %s321
        %p323 = pneg %p86
        %p324 = pneg %p83
        %p325 = scmp.lt.s32.totalorder %s22, 0
        %s326 = scalar_select %p325, %s22, 0
        %s327 = scalar_lea.vmem %s2, %s326
        %p328 = pneg %p112
        %p329 = pneg %p109
        %p330 = scmp.lt.s32.totalorder %s22, 0
        %s331 = scalar_select %p330, %s22, 0
        %s332 = scalar_lea.vmem %s3, %s331
        %p333 = pneg %p138
        %p334 = pneg %p135
        %s335 = smul.u32 2, %s21
        %p336 = scmp.lt.s32.totalorder %s335, 1
        %s337 = scalar_select %p336, %s335, 1
        %p338 = scmp.lt.s32.totalorder %s22, 0
        %s339 = scalar_select %p338, %s22, 0
        %s340 = sadd.s32 %s339, %s337
        %s341 = smul.addr %s340, 4
        %s342 = scalar_lea.vmem %s4, %s341
        %p343 = pneg %p166
        %p344 = pneg %p163
        %p345 = pneg %p194
        %p346 = pneg %p191
        %s347 = smul.u32 2, %s21
        %p348 = scmp.lt.s32.totalorder %s347, 1
        %s349 = scalar_select %p348, %s347, 1
        %p350 = scmp.lt.s32.totalorder %s22, 0
        %s351 = scalar_select %p350, %s22, 0
        %s352 = sadd.s32 %s351, %s349
        %s353 = smul.addr %s352, 4
        %s354 = scalar_lea.vmem %s5, %s353
        %s355 = smul.u32 2, %s21
        %s356 = smul.u32 3, %s23
        %s357 = smul.u32 48, %s23
        %p358 = scmp.lt.s32.totalorder %s357, 143
        %s359 = scalar_select %p358, %s357, 143
        %p360 = scmp.lt.s32.totalorder %s22, 0
        %s361 = scalar_select %p360, %s22, 0
        %s362 = sadd.s32 %s361, %s359
        %s363 = smul.addr %s362, 4
        %s364 = scalar_lea.vmem %s1, %s363
        %s365 = smul.u32 48, %s23
        %p366 = scmp.lt.s32.totalorder %s22, 0
        %s367 = scalar_select %p366, %s22, 0
        %s368 = scalar_lea.vmem %s2, %s367
        %p369 = scmp.lt.s32.totalorder %s22, 0
        %s370 = scalar_select %p369, %s22, 0
        %s371 = scalar_lea.vmem %s3, %s370
        %s372 = smul.u32 2, %s21
        %p373 = scmp.lt.s32.totalorder %s372, 1
        %s374 = scalar_select %p373, %s372, 1
        %p375 = scmp.lt.s32.totalorder %s22, 0
        %s376 = scalar_select %p375, %s22, 0
        %s377 = sadd.s32 %s376, %s374
        %s378 = smul.addr %s377, 4
        %s379 = scalar_lea.vmem %s4, %s378
        %s380 = smul.u32 2, %s21
        %s381 = smul.u32 2, %s21
        %p382 = scmp.lt.s32.totalorder %s381, 1
        %s383 = scalar_select %p382, %s381, 1
        %p384 = scmp.lt.s32.totalorder %s22, 0
        %s385 = scalar_select %p384, %s22, 0
        %s386 = sadd.s32 %s385, %s383
        %s387 = smul.addr %s386, 4
        %s388 = scalar_lea.vmem %s5, %s387
        %s389 = smul.u32 2, %s21
        %p390 = scmp.eq.s32.totalorder %s23, 0
        // Predicated region
        $region67: #{cotrain_forward.28} parent=61 // pred_check
          %p391 = pneg %p390
        $region68: #{cotrain_forward.28} parent=61 // pred_check_branch
          %393 = sbr.rel (%p391) target = $region70
        $region69: #{cotrain_forward.28} parent=61 // pred_region
          %394 = vst [vmem:[#allocation2] sm:$0xff] 0.0
          %395 = vst [vmem:[#allocation2 + $0x8] sm:$0xff] 0.0
        $region70: #{cotrain_forward.28} parent=61 // pred_fallthru
          _
        %v396 = vld [vmem:[#allocation2] sm:$0xff]
        %v397 = vld [vmem:[#allocation2 + $0x8] sm:$0xff]
        %v398 = vld [vmem:[%s305] sm:$0xff]
        %v399 = vld [vmem:[%s305 + $0x8] sm:$0xf]
        %v400 = vld [vmem:[%s305 + $0xc] sm:$0xff]
        %v401 = vld [vmem:[%s305 + $0x14] sm:$0xf]
        %v402 = vld [vmem:[%s364] sm:$0xf]
        %v403 = vld [vmem:[%s364 + $0x4] sm:$0xf]
        %v404 = vld [vmem:[%s364 + $0x8] sm:$0xf]
        %v405 = vld [vmem:[%s364 + $0xc] sm:$0xf]
        %v406 = vld [vmem:[%s364 + $0x10] sm:$0xf]
        %v407 = vld [vmem:[%s364 + $0x14] sm:$0xf]
        %v408 = vld [vmem:[%s364 + $0x18] sm:$0xf]
        %v409 = vld [vmem:[%s364 + $0x1c] sm:$0xf]
        %v410 = vld [vmem:[%s364 + $0x20] sm:$0xf]
        %v411 = vld [vmem:[%s364 + $0x24] sm:$0xf]
        %v412 = vld [vmem:[%s364 + $0x28] sm:$0xf]
        %v413 = vld [vmem:[%s364 + $0x2c] sm:$0xf]
        %v414 = vld [vmem:[%s364 + $0x30] sm:$0xf]
        %v415 = vld [vmem:[%s364 + $0x34] sm:$0xf]
        %v416 = vld [vmem:[%s364 + $0x38] sm:$0xf]
        %v417 = vld [vmem:[%s364 + $0x3c] sm:$0xf]
        %v418 = vld [vmem:[%s364 + $0x40] sm:$0xf]
        %v419 = vld [vmem:[%s364 + $0x44] sm:$0xf]
        %v420 = vld [vmem:[%s364 + $0x48] sm:$0xf]
        %v421 = vld [vmem:[%s364 + $0x4c] sm:$0xf]
        %v422 = vld [vmem:[%s364 + $0x50] sm:$0xf]
        %v423 = vld [vmem:[%s364 + $0x54] sm:$0xf]
        %v424 = vld [vmem:[%s364 + $0x58] sm:$0xf]
        %v425 = vld [vmem:[%s364 + $0x5c] sm:$0xf]
        %v426 = vld [vmem:[%s364 + $0x60] sm:$0xf]
        %v427 = vld [vmem:[%s364 + $0x64] sm:$0xf]
        %v428 = vld [vmem:[%s364 + $0x68] sm:$0xf]
        %v429 = vld [vmem:[%s364 + $0x6c] sm:$0xf]
        %v430 = vld [vmem:[%s364 + $0x70] sm:$0xf]
        %v431 = vld [vmem:[%s364 + $0x74] sm:$0xf]
        %v432 = vld [vmem:[%s364 + $0x78] sm:$0xf]
        %v433 = vld [vmem:[%s364 + $0x7c] sm:$0xf]
        %v434 = vld [vmem:[%s364 + $0x80] sm:$0xf]
        %v435 = vld [vmem:[%s364 + $0x84] sm:$0xf]
        %v436 = vld [vmem:[%s364 + $0x88] sm:$0xf]
        %v437 = vld [vmem:[%s364 + $0x8c] sm:$0xf]
        %v438 = vld [vmem:[%s364 + $0x90] sm:$0xf]
        %v439 = vld [vmem:[%s364 + $0x94] sm:$0xf]
        %v440 = vld [vmem:[%s364 + $0x98] sm:$0xf]
        %v441 = vld [vmem:[%s364 + $0x9c] sm:$0xf]
        %v442 = vld [vmem:[%s364 + $0xa0] sm:$0xf]
        %v443 = vld [vmem:[%s364 + $0xa4] sm:$0xf]
        %v444 = vld [vmem:[%s364 + $0xa8] sm:$0xf]
        %v445 = vld [vmem:[%s364 + $0xac] sm:$0xf]
        %v446 = vld [vmem:[%s364 + $0xb0] sm:$0xf]
        %v447 = vld [vmem:[%s364 + $0xb4] sm:$0xf]
        %v448 = vld [vmem:[%s364 + $0xb8] sm:$0xf]
        %v449 = vld [vmem:[%s364 + $0xbc] sm:$0xf]
        %v454 = vunpack.c.l.b16 %v398
        %v455 = vunpack.c.h.b16 %v398
        %v456 = vunpack.c.l.b16 %v399
        %v457 = vunpack.c.l.b16 %v400
        %v458 = vunpack.c.h.b16 %v400
        %v459 = vunpack.c.l.b16 %v401
        %v460 = vpack.c.b16 %v457, %v454
        %v461 = vpack.c.b16 %v458, %v455
        %v462 = vpack.c.b16 %v459, %v456
        %v514 = vunpack.c.l.b16 %v402
        %v515 = vunpack.c.l.b16 %v403
        %v516 = vunpack.c.l.b16 %v404
        %v517 = vunpack.c.l.b16 %v405
        %v518 = vunpack.c.l.b16 %v406
        %v519 = vunpack.c.l.b16 %v407
        %v520 = vunpack.c.l.b16 %v408
        %v521 = vunpack.c.l.b16 %v409
        %v522 = vunpack.c.l.b16 %v410
        %v523 = vunpack.c.l.b16 %v411
        %v524 = vunpack.c.l.b16 %v412
        %v525 = vunpack.c.l.b16 %v413
        %v526 = vunpack.c.l.b16 %v414
        %v527 = vunpack.c.l.b16 %v415
        %v528 = vunpack.c.l.b16 %v416
        %v529 = vunpack.c.l.b16 %v417
        %v530 = vunpack.c.l.b16 %v418
        %v531 = vunpack.c.l.b16 %v419
        %v532 = vunpack.c.l.b16 %v420
        %v533 = vunpack.c.l.b16 %v421
        %v534 = vunpack.c.l.b16 %v422
        %v535 = vunpack.c.l.b16 %v423
        %v536 = vunpack.c.l.b16 %v424
        %v537 = vunpack.c.l.b16 %v425
        %v538 = vunpack.c.l.b16 %v426
        %v539 = vunpack.c.l.b16 %v427
        %v540 = vunpack.c.l.b16 %v428
        %v541 = vunpack.c.l.b16 %v429
        %v542 = vunpack.c.l.b16 %v430
        %v543 = vunpack.c.l.b16 %v431
        %v544 = vunpack.c.l.b16 %v432
        %v545 = vunpack.c.l.b16 %v433
        %v546 = vunpack.c.l.b16 %v434
        %v547 = vunpack.c.l.b16 %v435
        %v548 = vunpack.c.l.b16 %v436
        %v549 = vunpack.c.l.b16 %v437
        %v550 = vunpack.c.l.b16 %v438
        %v551 = vunpack.c.l.b16 %v439
        %v552 = vunpack.c.l.b16 %v440
        %v553 = vunpack.c.l.b16 %v441
        %v554 = vunpack.c.l.b16 %v442
        %v555 = vunpack.c.l.b16 %v443
        %v556 = vunpack.c.l.b16 %v444
        %v557 = vunpack.c.l.b16 %v445
        %v558 = vunpack.c.l.b16 %v446
        %v559 = vunpack.c.l.b16 %v447
        %v560 = vunpack.c.l.b16 %v448
        %v561 = vunpack.c.l.b16 %v449
        %v562 = vpack.c.b16 %v515, %v514
        %v563 = vpack.c.b16 %v517, %v516
        %v564 = vpack.c.b16 %v519, %v518
        %v565 = vpack.c.b16 %v521, %v520
        %v566 = vpack.c.b16 %v523, %v522
        %v567 = vpack.c.b16 %v525, %v524
        %v568 = vpack.c.b16 %v527, %v526
        %v569 = vpack.c.b16 %v529, %v528
        %v570 = vpack.c.b16 %v531, %v530
        %v571 = vpack.c.b16 %v533, %v532
        %v572 = vpack.c.b16 %v535, %v534
        %v573 = vpack.c.b16 %v537, %v536
        %v574 = vpack.c.b16 %v539, %v538
        %v575 = vpack.c.b16 %v541, %v540
        %v576 = vpack.c.b16 %v543, %v542
        %v577 = vpack.c.b16 %v545, %v544
        %v578 = vpack.c.b16 %v547, %v546
        %v579 = vpack.c.b16 %v549, %v548
        %v580 = vpack.c.b16 %v551, %v550
        %v581 = vpack.c.b16 %v553, %v552
        %v582 = vpack.c.b16 %v555, %v554
        %v583 = vpack.c.b16 %v557, %v556
        %v584 = vpack.c.b16 %v559, %v558
        %v585 = vpack.c.b16 %v561, %v560
        %610 = vmatpush.bf16.msra.mxu0 %v569
        %611 = vmatpush.bf16.msra.mxu0 %v568
        %612 = vmatpush.bf16.msra.mxu0 %v567
        %613 = vmatpush.bf16.msra.mxu0 %v566
        %614 = vmatpush.bf16.msra.mxu0 %v565
        %615 = vmatpush.bf16.msra.mxu0 %v564
        %616 = vmatpush.bf16.msra.mxu0 %v563
        %617 = vmatpush.bf16.msra.mxu0 %v562
        %618 = vmatmul.bf16.gmra.mxu0 %v460
        %v619 = vpop.f32.mrf.mxu0
        %v620 = vadd.f32 0.0, %v619
        %v621 = vpop.f32.mrf.mxu0
        %v622 = vadd.f32 0.0, %v621
        %623 = vdwg.mxu0
        %624 = vmatpush.bf16.msra.mxu0 %v577
        %625 = vmatpush.bf16.msra.mxu0 %v576
        %626 = vmatpush.bf16.msra.mxu0 %v575
        %627 = vmatpush.bf16.msra.mxu0 %v574
        %628 = vmatpush.bf16.msra.mxu0 %v573
        %629 = vmatpush.bf16.msra.mxu0 %v572
        %630 = vmatpush.bf16.msra.mxu0 %v571
        %631 = vmatpush.bf16.msra.mxu0 %v570
        %632 = vmatmul.bf16.gmra.mxu0 %v461
        %v633 = vpop.f32.mrf.mxu0
        %v634 = vadd.f32 %v620, %v633
        %v635 = vpop.f32.mrf.mxu0
        %v636 = vadd.f32 %v622, %v635
        %637 = vdwg.mxu0
        %638 = vmatpush.bf16.msra.mxu0 %v585
        %639 = vmatpush.bf16.msra.mxu0 %v584
        %640 = vmatpush.bf16.msra.mxu0 %v583
        %641 = vmatpush.bf16.msra.mxu0 %v582
        %642 = vmatpush.bf16.msra.mxu0 %v581
        %643 = vmatpush.bf16.msra.mxu0 %v580
        %644 = vmatpush.bf16.msra.mxu0 %v579
        %645 = vmatpush.bf16.msra.mxu0 %v578
        %646 = vmatmul.bf16.gmra.mxu0 %v462
        %v647 = vpop.f32.mrf.mxu0
        %v648 = vadd.f32 %v634, %v647
        %v649 = vpop.f32.mrf.mxu0
        %v650 = vadd.f32 %v636, %v649
        %651 = vdwg.mxu0
        %v652 = vadd.f32 %v396, %v648
        %v653 = vadd.f32 %v397, %v650
        %654 = vst [vmem:[#allocation2] sm:$0xff] %v652
        %655 = vst [vmem:[#allocation2 + $0x8] sm:$0xff] %v653
        %p656 = scmp.eq.s32.totalorder %s23, 2
        // Predicated region
        $region71: #{cotrain_forward.28} parent=61 // pred_check
          %p657 = pneg %p656
        $region72: #{cotrain_forward.28} parent=61 // pred_check_branch
          %659 = sbr.rel (%p657) target = $region74
        $region73: #{cotrain_forward.28} parent=61 // pred_region
          %v660 = vld [vmem:[#allocation2] sm:$0xff]
          %v661 = vld [vmem:[#allocation2 + $0x8] sm:$0xff]
          %v662 = vld [vmem:[%s368] sm:$0x1]
          %v664 = vperm.slane %v662, 0
          %v666 = vmul.f32 %v660, %v664
          %v667 = vmul.f32 %v661, %v664
          %v668 = vld [vmem:[%s371] sm:$0x1]
          %v670 = vperm.slane %v668, 0
          %v672 = vadd.f32 %v666, %v670
          %v673 = vadd.f32 %v667, %v670
          %v674 = vld [vmem:[%s379] sm:$0xf]
          %v675 = vld [vmem:[%s379 + $0x4] sm:$0xf]
          %v676 = vunpack.c.l.bf16 %v674
          %v677 = vunpack.c.l.bf16 %v675
          %v678 = vadd.f32 %v672, %v676
          %v679 = vadd.f32 %v673, %v677
          %v680 = vmax.f32 %v678, 0.0
          %v681 = vmax.f32 %v679, 0.0
          %v682 = vpack.c.bf16 %v680, %v680
          %v683 = vpack.c.bf16 %v681, %v681
          %684 = vst [vmem:[%s388] sm:$0xf] %v682
          %685 = vst [vmem:[%s388 + $0x4] sm:$0xf] %v683
        $region74: #{cotrain_forward.28} parent=61 // pred_fallthru
          _
        %s686 = smul.u32 2, %s21
        %p687 = scmp.lt.s32.totalorder %s686, 1
        %s688 = scalar_select %p687, %s686, 1
        %p689 = scmp.lt.s32.totalorder %s22, 0
        %s690 = scalar_select %p689, %s22, 0
        %s691 = sadd.s32 %s690, %s688
        %s692 = smul.addr %s691, 4
        %s693 = scalar_lea.vmem %s5, %s692
        // Predicated region
        $region75: #{cotrain_forward.28} parent=61 // pred_check
          %p694 = pneg %p191
        $region76: #{cotrain_forward.28} parent=61 // pred_check_branch
          %696 = sbr.rel (%p694) target = $region78
        $region77: #{cotrain_forward.28} parent=61 // pred_region
          %s697 = smul.u32 2, %s21
        $region78: #{cotrain_forward.28} parent=61 // pred_fallthru
          _
        // Predicated region
        $region79: #{cotrain_forward.28} parent=61 // pred_check
          %p698 = pneg %p191
        $region80: #{cotrain_forward.28} parent=61 // pred_check_branch
          %700 = sbr.rel (%p698) target = $region82
        $region81: #{cotrain_forward.28} parent=61 // pred_region
          %s701 = smul.u32 2, %s21
          %p702 = scmp.lt.s32.totalorder %s701, 1
          %s703 = scalar_select %p702, %s701, 1
          %p704 = scmp.lt.s32.totalorder %s22, 0
          %s705 = scalar_select %p704, %s22, 0
          %s706 = sadd.s32 %s705, %s703
          %s707 = smul.addr %s706, 4
          %s708 = scalar_lea.vmem %s5, %s707
        $region82: #{cotrain_forward.28} parent=61 // pred_fallthru
          _
      $region62: #{cotrain_forward.28} parent=5 // pred_fallthru
        _
      %p709 = scmp.le.s32.totalorder 2, %s11
      // Predicated region
      $region83: #{cotrain_forward.28} parent=5 // pred_check
        %p710 = pneg %p709
      $region84: #{cotrain_forward.28} parent=5 // pred_check_branch
        %712 = sbr.rel (%p710) target = $region86
      $region85: #{cotrain_forward.28} parent=5 // pred_region
        %s713 = ssub.s32 %s11, 2
      $region86: #{cotrain_forward.28} parent=5 // pred_fallthru
        _
    $region6: #{cotrain_forward.28} parent=1 // loop_footer
      %s15 = sadd.s32 1, %s11
    $region7: #{cotrain_forward.28} parent=1 // loop_footer_branch
      %10 = sbr.rel target = $region3
    $region8: #{cotrain_forward.28} parent=1 // loop_exit
      _

// kernel: cotrain_forward.30
$region0: #{cotrain_forward.30}
  #allocation0 [shape = 'u32[]', space=smem, size = 0x4, offset = 0x4, fixed_abs, tag = 'smem constant byte address 0x4 - core index']
  #allocation1 [shape = 'u32[72,128]{1,0:T(1,128)}', space=vmem, size = 0x9000, scoped, tag = 'internal scratch']
  #allocation2 [shape = 'f32[16,128]{1,0:T(8,128)}', space=vmem, size = 0x2000, scoped, tag = 'scratch operand']
  %s0 = inlined_call_operand.vmem [shape: bf16[16,128], index: 0, kind: input, shape index: {}]
  %s1 = inlined_call_operand.vmem [shape: bf16[128,128], index: 1, kind: input, shape index: {}]
  %s2 = inlined_call_operand.vmem [shape: f32[1,128], index: 2, kind: input, shape index: {}]
  %s3 = inlined_call_operand.vmem [shape: f32[1,128], index: 3, kind: input, shape index: {}]
  %s4 = inlined_call_operand.vmem [shape: f32[16,128], index: 4, kind: output, shape index: {}]
  %s5 = sld [smem:[#allocation0]]
  $region34: #{cotrain_forward.30} parent=0
    _
  %s7 = ssub.s32 1, %s5
  %s8 = scalar_select 0, %s7, %s5
  // Predicated region
  $region2: #{cotrain_forward.30} parent=0 // pred_check
    _
  $region3: #{cotrain_forward.30} parent=0 // pred_check_branch
    %10 = sbr.rel (0) target = $region5
  $region4: #{cotrain_forward.30} parent=0 // pred_region
    _
  $region5: #{cotrain_forward.30} parent=0 // pred_fallthru
    _
  // Predicated region
  $region6: #{cotrain_forward.30} parent=0 // pred_check
    _
  $region7: #{cotrain_forward.30} parent=0 // pred_check_branch
    %12 = sbr.rel (0) target = $region9
  $region8: #{cotrain_forward.30} parent=0 // pred_region
    _
  $region9: #{cotrain_forward.30} parent=0 // pred_fallthru
    _
  // Predicated region
  $region10: #{cotrain_forward.30} parent=0 // pred_check
    _
  $region11: #{cotrain_forward.30} parent=0 // pred_check_branch
    %14 = sbr.rel (0) target = $region13
  $region12: #{cotrain_forward.30} parent=0 // pred_region
    _
  $region13: #{cotrain_forward.30} parent=0 // pred_fallthru
    _
  // Predicated region
  $region14: #{cotrain_forward.30} parent=0 // pred_check
    _
  $region15: #{cotrain_forward.30} parent=0 // pred_check_branch
    %16 = sbr.rel (0) target = $region17
  $region16: #{cotrain_forward.30} parent=0 // pred_region
    _
  $region17: #{cotrain_forward.30} parent=0 // pred_fallthru
    _
  %p17 = scmp.eq.s32.totalorder 0, 0
  // Predicated region
  $region18: #{cotrain_forward.30} parent=0 // pred_check
    %p18 = pneg %p17
  $region19: #{cotrain_forward.30} parent=0 // pred_check_branch
    %20 = sbr.rel (%p18) target = $region21
  $region20: #{cotrain_forward.30} parent=0 // pred_region
    %21 = vst [vmem:[#allocation2] sm:$0xff] 0.0
    %22 = vst [vmem:[#allocation2 + $0x8] sm:$0xff] 0.0
  $region21: #{cotrain_forward.30} parent=0 // pred_fallthru
    _
  %v23 = vld [vmem:[#allocation2] sm:$0xff]
  %v24 = vld [vmem:[#allocation2 + $0x8] sm:$0xff]
  %v25 = vld [vmem:[%s0] sm:$0xf]
  %v26 = vld [vmem:[%s0 + $0x4] sm:$0xf]
  %v27 = vld [vmem:[%s1] sm:$0xf]
  %v28 = vld [vmem:[%s1 + $0x4] sm:$0xf]
  %v29 = vld [vmem:[%s1 + $0x8] sm:$0xf]
  %v30 = vld [vmem:[%s1 + $0xc] sm:$0xf]
  %v31 = vld [vmem:[%s1 + $0x10] sm:$0xf]
  %v32 = vld [vmem:[%s1 + $0x14] sm:$0xf]
  %v33 = vld [vmem:[%s1 + $0x18] sm:$0xf]
  %v34 = vld [vmem:[%s1 + $0x1c] sm:$0xf]
  %v35 = vld [vmem:[%s1 + $0x20] sm:$0xf]
  %v36 = vld [vmem:[%s1 + $0x24] sm:$0xf]
  %v37 = vld [vmem:[%s1 + $0x28] sm:$0xf]
  %v38 = vld [vmem:[%s1 + $0x2c] sm:$0xf]
  %v39 = vld [vmem:[%s1 + $0x30] sm:$0xf]
  %v40 = vld [vmem:[%s1 + $0x34] sm:$0xf]
  %v41 = vld [vmem:[%s1 + $0x38] sm:$0xf]
  %v42 = vld [vmem:[%s1 + $0x3c] sm:$0xf]
  %v45 = vunpack.c.l.b16 %v25
  %v46 = vunpack.c.l.b16 %v26
  %v47 = vpack.c.b16 %v46, %v45
  %v65 = vunpack.c.l.b16 %v27
  %v66 = vunpack.c.l.b16 %v28
  %v67 = vunpack.c.l.b16 %v29
  %v68 = vunpack.c.l.b16 %v30
  %v69 = vunpack.c.l.b16 %v31
  %v70 = vunpack.c.l.b16 %v32
  %v71 = vunpack.c.l.b16 %v33
  %v72 = vunpack.c.l.b16 %v34
  %v73 = vunpack.c.l.b16 %v35
  %v74 = vunpack.c.l.b16 %v36
  %v75 = vunpack.c.l.b16 %v37
  %v76 = vunpack.c.l.b16 %v38
  %v77 = vunpack.c.l.b16 %v39
  %v78 = vunpack.c.l.b16 %v40
  %v79 = vunpack.c.l.b16 %v41
  %v80 = vunpack.c.l.b16 %v42
  %v81 = vpack.c.b16 %v66, %v65
  %v82 = vpack.c.b16 %v68, %v67
  %v83 = vpack.c.b16 %v70, %v69
  %v84 = vpack.c.b16 %v72, %v71
  %v85 = vpack.c.b16 %v74, %v73
  %v86 = vpack.c.b16 %v76, %v75
  %v87 = vpack.c.b16 %v78, %v77
  %v88 = vpack.c.b16 %v80, %v79
  %97 = vmatpush.bf16.msra.mxu0 %v88
  %98 = vmatpush.bf16.msra.mxu0 %v87
  %99 = vmatpush.bf16.msra.mxu0 %v86
  %100 = vmatpush.bf16.msra.mxu0 %v85
  %101 = vmatpush.bf16.msra.mxu0 %v84
  %102 = vmatpush.bf16.msra.mxu0 %v83
  %103 = vmatpush.bf16.msra.mxu0 %v82
  %104 = vmatpush.bf16.msra.mxu0 %v81
  %105 = vmatmul.bf16.gmra.mxu0 %v47
  %v106 = vpop.f32.mrf.mxu0
  %v107 = vadd.f32 0.0, %v106
  %v108 = vpop.f32.mrf.mxu0
  %v109 = vadd.f32 0.0, %v108
  %110 = vdwg.mxu0
  %v111 = vadd.f32 %v23, %v107
  %v112 = vadd.f32 %v24, %v109
  %113 = vst [vmem:[#allocation2] sm:$0xff] %v111
  %114 = vst [vmem:[#allocation2 + $0x8] sm:$0xff] %v112
  // Predicated region
  $region22: #{cotrain_forward.30} parent=0 // pred_check
    %p115 = pneg %p17
  $region23: #{cotrain_forward.30} parent=0 // pred_check_branch
    %117 = sbr.rel (%p115) target = $region25
  $region24: #{cotrain_forward.30} parent=0 // pred_region
    %v118 = vld [vmem:[#allocation2] sm:$0xff]
    %v119 = vld [vmem:[#allocation2 + $0x8] sm:$0xff]
    %v120 = vld [vmem:[%s2] sm:$0x1]
    %v122 = vperm.slane %v120, 0
    %v124 = vmul.f32 %v118, %v122
    %v125 = vmul.f32 %v119, %v122
    %v126 = vld [vmem:[%s3] sm:$0x1]
    %v128 = vperm.slane %v126, 0
    %v130 = vadd.f32 %v124, %v128
    %v131 = vadd.f32 %v125, %v128
    %132 = vst [vmem:[%s4] sm:$0xff] %v130
    %133 = vst [vmem:[%s4 + $0x8] sm:$0xff] %v131
  $region25: #{cotrain_forward.30} parent=0 // pred_fallthru
    _
  // Predicated region
  $region26: #{cotrain_forward.30} parent=0 // pred_check
    _
  $region27: #{cotrain_forward.30} parent=0 // pred_check_branch
    %135 = sbr.rel (0) target = $region29
  $region28: #{cotrain_forward.30} parent=0 // pred_region
    _
  $region29: #{cotrain_forward.30} parent=0 // pred_fallthru
    _
  // Predicated region
  $region30: #{cotrain_forward.30} parent=0 // pred_check
    _
  $region31: #{cotrain_forward.30} parent=0 // pred_check_branch
    %137 = sbr.rel (0) target = $region33
  $region32: #{cotrain_forward.30} parent=0 // pred_region
    _
  $region33: #{cotrain_forward.30} parent=0 // pred_fallthru
    _

// kernel: cotrain_forward.31
$region0: #{cotrain_forward.31}
  #allocation0 [shape = 'u32[]', space=smem, size = 0x4, offset = 0x4, fixed_abs, tag = 'smem constant byte address 0x4 - core index']
  #allocation1 [shape = 'u32[72,128]{1,0:T(1,128)}', space=vmem, size = 0x9000, scoped, tag = 'internal scratch']
  %s0 = inlined_call_operand.vmem [shape: bf16[16,3072], index: 0, kind: input, shape index: {}]
  %s1 = inlined_call_operand.vmem [shape: bf16[3072,128], index: 1, kind: input, shape index: {}]
  %s2 = inlined_call_operand.vmem [shape: f32[1,128], index: 2, kind: input, shape index: {}]
  %s3 = inlined_call_operand.vmem [shape: bf16[128,128], index: 3, kind: input, shape index: {}]
  %s4 = inlined_call_operand.vmem [shape: f32[1,128], index: 4, kind: input, shape index: {}]
  %s5 = inlined_call_operand.vmem [shape: f32[16,128], index: 5, kind: output, shape index: {}]
  %s6 = sld [smem:[#allocation0]]
  $region30: #{cotrain_forward.31} parent=0
    _
  %s8 = ssub.s32 1, %s6
  %s9 = scalar_select 0, %s8, %s6
  // Predicated region
  $region2: #{cotrain_forward.31} parent=0 // pred_check
    _
  $region3: #{cotrain_forward.31} parent=0 // pred_check_branch
    %11 = sbr.rel (0) target = $region5
  $region4: #{cotrain_forward.31} parent=0 // pred_region
    _
  $region5: #{cotrain_forward.31} parent=0 // pred_fallthru
    _
  // Predicated region
  $region6: #{cotrain_forward.31} parent=0 // pred_check
    _
  $region7: #{cotrain_forward.31} parent=0 // pred_check_branch
    %13 = sbr.rel (0) target = $region9
  $region8: #{cotrain_forward.31} parent=0 // pred_region
    _
  $region9: #{cotrain_forward.31} parent=0 // pred_fallthru
    _
  // Predicated region
  $region10: #{cotrain_forward.31} parent=0 // pred_check
    _
  $region11: #{cotrain_forward.31} parent=0 // pred_check_branch
    %15 = sbr.rel (0) target = $region13
  $region12: #{cotrain_forward.31} parent=0 // pred_region
    _
  $region13: #{cotrain_forward.31} parent=0 // pred_fallthru
    _
  // Predicated region
  $region14: #{cotrain_forward.31} parent=0 // pred_check
    _
  $region15: #{cotrain_forward.31} parent=0 // pred_check_branch
    %17 = sbr.rel (0) target = $region17
  $region16: #{cotrain_forward.31} parent=0 // pred_region
    _
  $region17: #{cotrain_forward.31} parent=0 // pred_fallthru
    _
  // Predicated region
  $region18: #{cotrain_forward.31} parent=0 // pred_check
    _
  $region19: #{cotrain_forward.31} parent=0 // pred_check_branch
    %19 = sbr.rel (0) target = $region21
  $region20: #{cotrain_forward.31} parent=0 // pred_region
    _
  $region21: #{cotrain_forward.31} parent=0 // pred_fallthru
    _
  %v20 = vld [vmem:[%s0] sm:$0xff]
  %v21 = vld [vmem:[%s0 + $0x8] sm:$0xff]
  %v22 = vld [vmem:[%s0 + $0x10] sm:$0xff]
  %v23 = vld [vmem:[%s0 + $0x18] sm:$0xff]
  %v24 = vld [vmem:[%s0 + $0x20] sm:$0xff]
  %v25 = vld [vmem:[%s0 + $0x28] sm:$0xff]
  %v26 = vld [vmem:[%s0 + $0x30] sm:$0xff]
  %v27 = vld [vmem:[%s0 + $0x38] sm:$0xff]
  %v28 = vld [vmem:[%s0 + $0x40] sm:$0xff]
  %v29 = vld [vmem:[%s0 + $0x48] sm:$0xff]
  %v30 = vld [vmem:[%s0 + $0x50] sm:$0xff]
  %v31 = vld [vmem:[%s0 + $0x58] sm:$0xff]
  %v32 = vld [vmem:[%s0 + $0x60] sm:$0xff]
  %v33 = vld [vmem:[%s0 + $0x68] sm:$0xff]
  %v34 = vld [vmem:[%s0 + $0x70] sm:$0xff]
  %v35 = vld [vmem:[%s0 + $0x78] sm:$0xff]
  %v36 = vld [vmem:[%s0 + $0x80] sm:$0xff]
  %v37 = vld [vmem:[%s0 + $0x88] sm:$0xff]
  %v38 = vld [vmem:[%s0 + $0x90] sm:$0xff]
  %v39 = vld [vmem:[%s0 + $0x98] sm:$0xff]
  %v40 = vld [vmem:[%s0 + $0xa0] sm:$0xff]
  %v41 = vld [vmem:[%s0 + $0xa8] sm:$0xff]
  %v42 = vld [vmem:[%s0 + $0xb0] sm:$0xff]
  %v43 = vld [vmem:[%s0 + $0xb8] sm:$0xff]
  %v44 = vld [vmem:[%s1] sm:$0xf]
  %v45 = vld [vmem:[%s1 + $0x4] sm:$0xf]
  %v46 = vld [vmem:[%s1 + $0x8] sm:$0xf]
  %v47 = vld [vmem:[%s1 + $0xc] sm:$0xf]
  %v48 = vld [vmem:[%s1 + $0x10] sm:$0xf]
  %v49 = vld [vmem:[%s1 + $0x14] sm:$0xf]
  %v50 = vld [vmem:[%s1 + $0x18] sm:$0xf]
  %v51 = vld [vmem:[%s1 + $0x1c] sm:$0xf]
  %v52 = vld [vmem:[%s1 + $0x20] sm:$0xf]
  %v53 = vld [vmem:[%s1 + $0x24] sm:$0xf]
  %v54 = vld [vmem:[%s1 + $0x28] sm:$0xf]
  %v55 = vld [vmem:[%s1 + $0x2c] sm:$0xf]
  %v56 = vld [vmem:[%s1 + $0x30] sm:$0xf]
  %v57 = vld [vmem:[%s1 + $0x34] sm:$0xf]
  %v58 = vld [vmem:[%s1 + $0x38] sm:$0xf]
  %v59 = vld [vmem:[%s1 + $0x3c] sm:$0xf]
  %v60 = vld [vmem:[%s1 + $0x40] sm:$0xf]
  %v61 = vld [vmem:[%s1 + $0x44] sm:$0xf]
  %v62 = vld [vmem:[%s1 + $0x48] sm:$0xf]
  %v63 = vld [vmem:[%s1 + $0x4c] sm:$0xf]
  %v64 = vld [vmem:[%s1 + $0x50] sm:$0xf]
  %v65 = vld [vmem:[%s1 + $0x54] sm:$0xf]
  %v66 = vld [vmem:[%s1 + $0x58] sm:$0xf]
  %v67 = vld [vmem:[%s1 + $0x5c] sm:$0xf]
  %v68 = vld [vmem:[%s1 + $0x60] sm:$0xf]
  %v69 = vld [vmem:[%s1 + $0x64] sm:$0xf]
  %v70 = vld [vmem:[%s1 + $0x68] sm:$0xf]
  %v71 = vld [vmem:[%s1 + $0x6c] sm:$0xf]
  %v72 = vld [vmem:[%s1 + $0x70] sm:$0xf]
  %v73 = vld [vmem:[%s1 + $0x74] sm:$0xf]
  %v74 = vld [vmem:[%s1 + $0x78] sm:$0xf]
  %v75 = vld [vmem:[%s1 + $0x7c] sm:$0xf]
  %v76 = vld [vmem:[%s1 + $0x80] sm:$0xf]
  %v77 = vld [vmem:[%s1 + $0x84] sm:$0xf]
  %v78 = vld [vmem:[%s1 + $0x88] sm:$0xf]
  %v79 = vld [vmem:[%s1 + $0x8c] sm:$0xf]
  %v80 = vld [vmem:[%s1 + $0x90] sm:$0xf]
  %v81 = vld [vmem:[%s1 + $0x94] sm:$0xf]
  %v82 = vld [vmem:[%s1 + $0x98] sm:$0xf]
  %v83 = vld [vmem:[%s1 + $0x9c] sm:$0xf]
  %v84 = vld [vmem:[%s1 + $0xa0] sm:$0xf]
  %v85 = vld [vmem:[%s1 + $0xa4] sm:$0xf]
  %v86 = vld [vmem:[%s1 + $0xa8] sm:$0xf]
  %v87 = vld [vmem:[%s1 + $0xac] sm:$0xf]
  %v88 = vld [vmem:[%s1 + $0xb0] sm:$0xf]
  %v89 = vld [vmem:[%s1 + $0xb4] sm:$0xf]
  %v90 = vld [vmem:[%s1 + $0xb8] sm:$0xf]
  %v91 = vld [vmem:[%s1 + $0xbc] sm:$0xf]
  %v92 = vld [vmem:[%s1 + $0xc0] sm:$0xf]
  %v93 = vld [vmem:[%s1 + $0xc4] sm:$0xf]
  %v94 = vld [vmem:[%s1 + $0xc8] sm:$0xf]
  %v95 = vld [vmem:[%s1 + $0xcc] sm:$0xf]
  %v96 = vld [vmem:[%s1 + $0xd0] sm:$0xf]
  %v97 = vld [vmem:[%s1 + $0xd4] sm:$0xf]
  %v98 = vld [vmem:[%s1 + $0xd8] sm:$0xf]
  %v99 = vld [vmem:[%s1 + $0xdc] sm:$0xf]
  %v100 = vld [vmem:[%s1 + $0xe0] sm:$0xf]
  %v101 = vld [vmem:[%s1 + $0xe4] sm:$0xf]
  %v102 = vld [vmem:[%s1 + $0xe8] sm:$0xf]
  %v103 = vld [vmem:[%s1 + $0xec] sm:$0xf]
  %v104 = vld [vmem:[%s1 + $0xf0] sm:$0xf]
  %v105 = vld [vmem:[%s1 + $0xf4] sm:$0xf]
  %v106 = vld [vmem:[%s1 + $0xf8] sm:$0xf]
  %v107 = vld [vmem:[%s1 + $0xfc] sm:$0xf]
  %v108 = vld [vmem:[%s1 + $0x100] sm:$0xf]
  %v109 = vld [vmem:[%s1 + $0x104] sm:$0xf]
  %v110 = vld [vmem:[%s1 + $0x108] sm:$0xf]
  %v111 = vld [vmem:[%s1 + $0x10c] sm:$0xf]
  %v112 = vld [vmem:[%s1 + $0x110] sm:$0xf]
  %v113 = vld [vmem:[%s1 + $0x114] sm:$0xf]
  %v114 = vld [vmem:[%s1 + $0x118] sm:$0xf]
  %v115 = vld [vmem:[%s1 + $0x11c] sm:$0xf]
  %v116 = vld [vmem:[%s1 + $0x120] sm:$0xf]
  %v117 = vld [vmem:[%s1 + $0x124] sm:$0xf]
  %v118 = vld [vmem:[%s1 + $0x128] sm:$0xf]
  %v119 = vld [vmem:[%s1 + $0x12c] sm:$0xf]
  %v120 = vld [vmem:[%s1 + $0x130] sm:$0xf]
  %v121 = vld [vmem:[%s1 + $0x134] sm:$0xf]
  %v122 = vld [vmem:[%s1 + $0x138] sm:$0xf]
  %v123 = vld [vmem:[%s1 + $0x13c] sm:$0xf]
  %v124 = vld [vmem:[%s1 + $0x140] sm:$0xf]
  %v125 = vld [vmem:[%s1 + $0x144] sm:$0xf]
  %v126 = vld [vmem:[%s1 + $0x148] sm:$0xf]
  %v127 = vld [vmem:[%s1 + $0x14c] sm:$0xf]
  %v128 = vld [vmem:[%s1 + $0x150] sm:$0xf]
  %v129 = vld [vmem:[%s1 + $0x154] sm:$0xf]
  %v130 = vld [vmem:[%s1 + $0x158] sm:$0xf]
  %v131 = vld [vmem:[%s1 + $0x15c] sm:$0xf]
  %v132 = vld [vmem:[%s1 + $0x160] sm:$0xf]
  %v133 = vld [vmem:[%s1 + $0x164] sm:$0xf]
  %v134 = vld [vmem:[%s1 + $0x168] sm:$0xf]
  %v135 = vld [vmem:[%s1 + $0x16c] sm:$0xf]
  %v136 = vld [vmem:[%s1 + $0x170] sm:$0xf]
  %v137 = vld [vmem:[%s1 + $0x174] sm:$0xf]
  %v138 = vld [vmem:[%s1 + $0x178] sm:$0xf]
  %v139 = vld [vmem:[%s1 + $0x17c] sm:$0xf]
  %v140 = vld [vmem:[%s1 + $0x180] sm:$0xf]
  %v141 = vld [vmem:[%s1 + $0x184] sm:$0xf]
  %v142 = vld [vmem:[%s1 + $0x188] sm:$0xf]
  %v143 = vld [vmem:[%s1 + $0x18c] sm:$0xf]
  %v144 = vld [vmem:[%s1 + $0x190] sm:$0xf]
  %v145 = vld [vmem:[%s1 + $0x194] sm:$0xf]
  %v146 = vld [vmem:[%s1 + $0x198] sm:$0xf]
  %v147 = vld [vmem:[%s1 + $0x19c] sm:$0xf]
  %v148 = vld [vmem:[%s1 + $0x1a0] sm:$0xf]
  %v149 = vld [vmem:[%s1 + $0x1a4] sm:$0xf]
  %v150 = vld [vmem:[%s1 + $0x1a8] sm:$0xf]
  %v151 = vld [vmem:[%s1 + $0x1ac] sm:$0xf]
  %v152 = vld [vmem:[%s1 + $0x1b0] sm:$0xf]
  %v153 = vld [vmem:[%s1 + $0x1b4] sm:$0xf]
  %v154 = vld [vmem:[%s1 + $0x1b8] sm:$0xf]
  %v155 = vld [vmem:[%s1 + $0x1bc] sm:$0xf]
  %v156 = vld [vmem:[%s1 + $0x1c0] sm:$0xf]
  %v157 = vld [vmem:[%s1 + $0x1c4] sm:$0xf]
  %v158 = vld [vmem:[%s1 + $0x1c8] sm:$0xf]
  %v159 = vld [vmem:[%s1 + $0x1cc] sm:$0xf]
  %v160 = vld [vmem:[%s1 + $0x1d0] sm:$0xf]
  %v161 = vld [vmem:[%s1 + $0x1d4] sm:$0xf]
  %v162 = vld [vmem:[%s1 + $0x1d8] sm:$0xf]
  %v163 = vld [vmem:[%s1 + $0x1dc] sm:$0xf]
  %v164 = vld [vmem:[%s1 + $0x1e0] sm:$0xf]
  %v165 = vld [vmem:[%s1 + $0x1e4] sm:$0xf]
  %v166 = vld [vmem:[%s1 + $0x1e8] sm:$0xf]
  %v167 = vld [vmem:[%s1 + $0x1ec] sm:$0xf]
  %v168 = vld [vmem:[%s1 + $0x1f0] sm:$0xf]
  %v169 = vld [vmem:[%s1 + $0x1f4] sm:$0xf]
  %v170 = vld [vmem:[%s1 + $0x1f8] sm:$0xf]
  %v171 = vld [vmem:[%s1 + $0x1fc] sm:$0xf]
  %v172 = vld [vmem:[%s1 + $0x200] sm:$0xf]
  %v173 = vld [vmem:[%s1 + $0x204] sm:$0xf]
  %v174 = vld [vmem:[%s1 + $0x208] sm:$0xf]
  %v175 = vld [vmem:[%s1 + $0x20c] sm:$0xf]
  %v176 = vld [vmem:[%s1 + $0x210] sm:$0xf]
  %v177 = vld [vmem:[%s1 + $0x214] sm:$0xf]
  %v178 = vld [vmem:[%s1 + $0x218] sm:$0xf]
  %v179 = vld [vmem:[%s1 + $0x21c] sm:$0xf]
  %v180 = vld [vmem:[%s1 + $0x220] sm:$0xf]
  %v181 = vld [vmem:[%s1 + $0x224] sm:$0xf]
  %v182 = vld [vmem:[%s1 + $0x228] sm:$0xf]
  %v183 = vld [vmem:[%s1 + $0x22c] sm:$0xf]
  %v184 = vld [vmem:[%s1 + $0x230] sm:$0xf]
  %v185 = vld [vmem:[%s1 + $0x234] sm:$0xf]
  %v186 = vld [vmem:[%s1 + $0x238] sm:$0xf]
  %v187 = vld [vmem:[%s1 + $0x23c] sm:$0xf]
  %v188 = vld [vmem:[%s1 + $0x240] sm:$0xf]
  %v189 = vld [vmem:[%s1 + $0x244] sm:$0xf]
  %v190 = vld [vmem:[%s1 + $0x248] sm:$0xf]
  %v191 = vld [vmem:[%s1 + $0x24c] sm:$0xf]
  %v192 = vld [vmem:[%s1 + $0x250] sm:$0xf]
  %v193 = vld [vmem:[%s1 + $0x254] sm:$0xf]
  %v194 = vld [vmem:[%s1 + $0x258] sm:$0xf]
  %v195 = vld [vmem:[%s1 + $0x25c] sm:$0xf]
  %v196 = vld [vmem:[%s1 + $0x260] sm:$0xf]
  %v197 = vld [vmem:[%s1 + $0x264] sm:$0xf]
  %v198 = vld [vmem:[%s1 + $0x268] sm:$0xf]
  %v199 = vld [vmem:[%s1 + $0x26c] sm:$0xf]
  %v200 = vld [vmem:[%s1 + $0x270] sm:$0xf]
  %v201 = vld [vmem:[%s1 + $0x274] sm:$0xf]
  %v202 = vld [vmem:[%s1 + $0x278] sm:$0xf]
  %v203 = vld [vmem:[%s1 + $0x27c] sm:$0xf]
  %v204 = vld [vmem:[%s1 + $0x280] sm:$0xf]
  %v205 = vld [vmem:[%s1 + $0x284] sm:$0xf]
  %v206 = vld [vmem:[%s1 + $0x288] sm:$0xf]
  %v207 = vld [vmem:[%s1 + $0x28c] sm:$0xf]
  %v208 = vld [vmem:[%s1 + $0x290] sm:$0xf]
  %v209 = vld [vmem:[%s1 + $0x294] sm:$0xf]
  %v210 = vld [vmem:[%s1 + $0x298] sm:$0xf]
  %v211 = vld [vmem:[%s1 + $0x29c] sm:$0xf]
  %v212 = vld [vmem:[%s1 + $0x2a0] sm:$0xf]
  %v213 = vld [vmem:[%s1 + $0x2a4] sm:$0xf]
  %v214 = vld [vmem:[%s1 + $0x2a8] sm:$0xf]
  %v215 = vld [vmem:[%s1 + $0x2ac] sm:$0xf]
  %v216 = vld [vmem:[%s1 + $0x2b0] sm:$0xf]
  %v217 = vld [vmem:[%s1 + $0x2b4] sm:$0xf]
  %v218 = vld [vmem:[%s1 + $0x2b8] sm:$0xf]
  %v219 = vld [vmem:[%s1 + $0x2bc] sm:$0xf]
  %v220 = vld [vmem:[%s1 + $0x2c0] sm:$0xf]
  %v221 = vld [vmem:[%s1 + $0x2c4] sm:$0xf]
  %v222 = vld [vmem:[%s1 + $0x2c8] sm:$0xf]
  %v223 = vld [vmem:[%s1 + $0x2cc] sm:$0xf]
  %v224 = vld [vmem:[%s1 + $0x2d0] sm:$0xf]
  %v225 = vld [vmem:[%s1 + $0x2d4] sm:$0xf]
  %v226 = vld [vmem:[%s1 + $0x2d8] sm:$0xf]
  %v227 = vld [vmem:[%s1 + $0x2dc] sm:$0xf]
  %v228 = vld [vmem:[%s1 + $0x2e0] sm:$0xf]
  %v229 = vld [vmem:[%s1 + $0x2e4] sm:$0xf]
  %v230 = vld [vmem:[%s1 + $0x2e8] sm:$0xf]
  %v231 = vld [vmem:[%s1 + $0x2ec] sm:$0xf]
  %v232 = vld [vmem:[%s1 + $0x2f0] sm:$0xf]
  %v233 = vld [vmem:[%s1 + $0x2f4] sm:$0xf]
  %v234 = vld [vmem:[%s1 + $0x2f8] sm:$0xf]
  %v235 = vld [vmem:[%s1 + $0x2fc] sm:$0xf]
  %v236 = vld [vmem:[%s1 + $0x300] sm:$0xf]
  %v237 = vld [vmem:[%s1 + $0x304] sm:$0xf]
  %v238 = vld [vmem:[%s1 + $0x308] sm:$0xf]
  %v239 = vld [vmem:[%s1 + $0x30c] sm:$0xf]
  %v240 = vld [vmem:[%s1 + $0x310] sm:$0xf]
  %v241 = vld [vmem:[%s1 + $0x314] sm:$0xf]
  %v242 = vld [vmem:[%s1 + $0x318] sm:$0xf]
  %v243 = vld [vmem:[%s1 + $0x31c] sm:$0xf]
  %v244 = vld [vmem:[%s1 + $0x320] sm:$0xf]
  %v245 = vld [vmem:[%s1 + $0x324] sm:$0xf]
  %v246 = vld [vmem:[%s1 + $0x328] sm:$0xf]
  %v247 = vld [vmem:[%s1 + $0x32c] sm:$0xf]
  %v248 = vld [vmem:[%s1 + $0x330] sm:$0xf]
  %v249 = vld [vmem:[%s1 + $0x334] sm:$0xf]
  %v250 = vld [vmem:[%s1 + $0x338] sm:$0xf]
  %v251 = vld [vmem:[%s1 + $0x33c] sm:$0xf]
  %v252 = vld [vmem:[%s1 + $0x340] sm:$0xf]
  %v253 = vld [vmem:[%s1 + $0x344] sm:$0xf]
  %v254 = vld [vmem:[%s1 + $0x348] sm:$0xf]
  %v255 = vld [vmem:[%s1 + $0x34c] sm:$0xf]
  %v256 = vld [vmem:[%s1 + $0x350] sm:$0xf]
  %v257 = vld [vmem:[%s1 + $0x354] sm:$0xf]
  %v258 = vld [vmem:[%s1 + $0x358] sm:$0xf]
  %v259 = vld [vmem:[%s1 + $0x35c] sm:$0xf]
  %v260 = vld [vmem:[%s1 + $0x360] sm:$0xf]
  %v261 = vld [vmem:[%s1 + $0x364] sm:$0xf]
  %v262 = vld [vmem:[%s1 + $0x368] sm:$0xf]
  %v263 = vld [vmem:[%s1 + $0x36c] sm:$0xf]
  %v264 = vld [vmem:[%s1 + $0x370] sm:$0xf]
  %v265 = vld [vmem:[%s1 + $0x374] sm:$0xf]
  %v266 = vld [vmem:[%s1 + $0x378] sm:$0xf]
  %v267 = vld [vmem:[%s1 + $0x37c] sm:$0xf]
  %v268 = vld [vmem:[%s1 + $0x380] sm:$0xf]
  %v269 = vld [vmem:[%s1 + $0x384] sm:$0xf]
  %v270 = vld [vmem:[%s1 + $0x388] sm:$0xf]
  %v271 = vld [vmem:[%s1 + $0x38c] sm:$0xf]
  %v272 = vld [vmem:[%s1 + $0x390] sm:$0xf]
  %v273 = vld [vmem:[%s1 + $0x394] sm:$0xf]
  %v274 = vld [vmem:[%s1 + $0x398] sm:$0xf]
  %v275 = vld [vmem:[%s1 + $0x39c] sm:$0xf]
  %v276 = vld [vmem:[%s1 + $0x3a0] sm:$0xf]
  %v277 = vld [vmem:[%s1 + $0x3a4] sm:$0xf]
  %v278 = vld [vmem:[%s1 + $0x3a8] sm:$0xf]
  %v279 = vld [vmem:[%s1 + $0x3ac] sm:$0xf]
  %v280 = vld [vmem:[%s1 + $0x3b0] sm:$0xf]
  %v281 = vld [vmem:[%s1 + $0x3b4] sm:$0xf]
  %v282 = vld [vmem:[%s1 + $0x3b8] sm:$0xf]
  %v283 = vld [vmem:[%s1 + $0x3bc] sm:$0xf]
  %v284 = vld [vmem:[%s1 + $0x3c0] sm:$0xf]
  %v285 = vld [vmem:[%s1 + $0x3c4] sm:$0xf]
  %v286 = vld [vmem:[%s1 + $0x3c8] sm:$0xf]
  %v287 = vld [vmem:[%s1 + $0x3cc] sm:$0xf]
  %v288 = vld [vmem:[%s1 + $0x3d0] sm:$0xf]
  %v289 = vld [vmem:[%s1 + $0x3d4] sm:$0xf]
  %v290 = vld [vmem:[%s1 + $0x3d8] sm:$0xf]
  %v291 = vld [vmem:[%s1 + $0x3dc] sm:$0xf]
  %v292 = vld [vmem:[%s1 + $0x3e0] sm:$0xf]
  %v293 = vld [vmem:[%s1 + $0x3e4] sm:$0xf]
  %v294 = vld [vmem:[%s1 + $0x3e8] sm:$0xf]
  %v295 = vld [vmem:[%s1 + $0x3ec] sm:$0xf]
  %v296 = vld [vmem:[%s1 + $0x3f0] sm:$0xf]
  %v297 = vld [vmem:[%s1 + $0x3f4] sm:$0xf]
  %v298 = vld [vmem:[%s1 + $0x3f8] sm:$0xf]
  %v299 = vld [vmem:[%s1 + $0x3fc] sm:$0xf]
  %v300 = vld [vmem:[%s1 + $0x400] sm:$0xf]
  %v301 = vld [vmem:[%s1 + $0x404] sm:$0xf]
  %v302 = vld [vmem:[%s1 + $0x408] sm:$0xf]
  %v303 = vld [vmem:[%s1 + $0x40c] sm:$0xf]
  %v304 = vld [vmem:[%s1 + $0x410] sm:$0xf]
  %v305 = vld [vmem:[%s1 + $0x414] sm:$0xf]
  %v306 = vld [vmem:[%s1 + $0x418] sm:$0xf]
  %v307 = vld [vmem:[%s1 + $0x41c] sm:$0xf]
  %v308 = vld [vmem:[%s1 + $0x420] sm:$0xf]
  %v309 = vld [vmem:[%s1 + $0x424] sm:$0xf]
  %v310 = vld [vmem:[%s1 + $0x428] sm:$0xf]
  %v311 = vld [vmem:[%s1 + $0x42c] sm:$0xf]
  %v312 = vld [vmem:[%s1 + $0x430] sm:$0xf]
  %v313 = vld [vmem:[%s1 + $0x434] sm:$0xf]
  %v314 = vld [vmem:[%s1 + $0x438] sm:$0xf]
  %v315 = vld [vmem:[%s1 + $0x43c] sm:$0xf]
  %v316 = vld [vmem:[%s1 + $0x440] sm:$0xf]
  %v317 = vld [vmem:[%s1 + $0x444] sm:$0xf]
  %v318 = vld [vmem:[%s1 + $0x448] sm:$0xf]
  %v319 = vld [vmem:[%s1 + $0x44c] sm:$0xf]
  %v320 = vld [vmem:[%s1 + $0x450] sm:$0xf]
  %v321 = vld [vmem:[%s1 + $0x454] sm:$0xf]
  %v322 = vld [vmem:[%s1 + $0x458] sm:$0xf]
  %v323 = vld [vmem:[%s1 + $0x45c] sm:$0xf]
  %v324 = vld [vmem:[%s1 + $0x460] sm:$0xf]
  %v325 = vld [vmem:[%s1 + $0x464] sm:$0xf]
  %v326 = vld [vmem:[%s1 + $0x468] sm:$0xf]
  %v327 = vld [vmem:[%s1 + $0x46c] sm:$0xf]
  %v328 = vld [vmem:[%s1 + $0x470] sm:$0xf]
  %v329 = vld [vmem:[%s1 + $0x474] sm:$0xf]
  %v330 = vld [vmem:[%s1 + $0x478] sm:$0xf]
  %v331 = vld [vmem:[%s1 + $0x47c] sm:$0xf]
  %v332 = vld [vmem:[%s1 + $0x480] sm:$0xf]
  %v333 = vld [vmem:[%s1 + $0x484] sm:$0xf]
  %v334 = vld [vmem:[%s1 + $0x488] sm:$0xf]
  %v335 = vld [vmem:[%s1 + $0x48c] sm:$0xf]
  %v336 = vld [vmem:[%s1 + $0x490] sm:$0xf]
  %v337 = vld [vmem:[%s1 + $0x494] sm:$0xf]
  %v338 = vld [vmem:[%s1 + $0x498] sm:$0xf]
  %v339 = vld [vmem:[%s1 + $0x49c] sm:$0xf]
  %v340 = vld [vmem:[%s1 + $0x4a0] sm:$0xf]
  %v341 = vld [vmem:[%s1 + $0x4a4] sm:$0xf]
  %v342 = vld [vmem:[%s1 + $0x4a8] sm:$0xf]
  %v343 = vld [vmem:[%s1 + $0x4ac] sm:$0xf]
  %v344 = vld [vmem:[%s1 + $0x4b0] sm:$0xf]
  %v345 = vld [vmem:[%s1 + $0x4b4] sm:$0xf]
  %v346 = vld [vmem:[%s1 + $0x4b8] sm:$0xf]
  %v347 = vld [vmem:[%s1 + $0x4bc] sm:$0xf]
  %v348 = vld [vmem:[%s1 + $0x4c0] sm:$0xf]
  %v349 = vld [vmem:[%s1 + $0x4c4] sm:$0xf]
  %v350 = vld [vmem:[%s1 + $0x4c8] sm:$0xf]
  %v351 = vld [vmem:[%s1 + $0x4cc] sm:$0xf]
  %v352 = vld [vmem:[%s1 + $0x4d0] sm:$0xf]
  %v353 = vld [vmem:[%s1 + $0x4d4] sm:$0xf]
  %v354 = vld [vmem:[%s1 + $0x4d8] sm:$0xf]
  %v355 = vld [vmem:[%s1 + $0x4dc] sm:$0xf]
  %v356 = vld [vmem:[%s1 + $0x4e0] sm:$0xf]
  %v357 = vld [vmem:[%s1 + $0x4e4] sm:$0xf]
  %v358 = vld [vmem:[%s1 + $0x4e8] sm:$0xf]
  %v359 = vld [vmem:[%s1 + $0x4ec] sm:$0xf]
  %v360 = vld [vmem:[%s1 + $0x4f0] sm:$0xf]
  %v361 = vld [vmem:[%s1 + $0x4f4] sm:$0xf]
  %v362 = vld [vmem:[%s1 + $0x4f8] sm:$0xf]
  %v363 = vld [vmem:[%s1 + $0x4fc] sm:$0xf]
  %v364 = vld [vmem:[%s1 + $0x500] sm:$0xf]
  %v365 = vld [vmem:[%s1 + $0x504] sm:$0xf]
  %v366 = vld [vmem:[%s1 + $0x508] sm:$0xf]
  %v367 = vld [vmem:[%s1 + $0x50c] sm:$0xf]
  %v368 = vld [vmem:[%s1 + $0x510] sm:$0xf]
  %v369 = vld [vmem:[%s1 + $0x514] sm:$0xf]
  %v370 = vld [vmem:[%s1 + $0x518] sm:$0xf]
  %v371 = vld [vmem:[%s1 + $0x51c] sm:$0xf]
  %v372 = vld [vmem:[%s1 + $0x520] sm:$0xf]
  %v373 = vld [vmem:[%s1 + $0x524] sm:$0xf]
  %v374 = vld [vmem:[%s1 + $0x528] sm:$0xf]
  %v375 = vld [vmem:[%s1 + $0x52c] sm:$0xf]
  %v376 = vld [vmem:[%s1 + $0x530] sm:$0xf]
  %v377 = vld [vmem:[%s1 + $0x534] sm:$0xf]
  %v378 = vld [vmem:[%s1 + $0x538] sm:$0xf]
  %v379 = vld [vmem:[%s1 + $0x53c] sm:$0xf]
  %v380 = vld [vmem:[%s1 + $0x540] sm:$0xf]
  %v381 = vld [vmem:[%s1 + $0x544] sm:$0xf]
  %v382 = vld [vmem:[%s1 + $0x548] sm:$0xf]
  %v383 = vld [vmem:[%s1 + $0x54c] sm:$0xf]
  %v384 = vld [vmem:[%s1 + $0x550] sm:$0xf]
  %v385 = vld [vmem:[%s1 + $0x554] sm:$0xf]
  %v386 = vld [vmem:[%s1 + $0x558] sm:$0xf]
  %v387 = vld [vmem:[%s1 + $0x55c] sm:$0xf]
  %v388 = vld [vmem:[%s1 + $0x560] sm:$0xf]
  %v389 = vld [vmem:[%s1 + $0x564] sm:$0xf]
  %v390 = vld [vmem:[%s1 + $0x568] sm:$0xf]
  %v391 = vld [vmem:[%s1 + $0x56c] sm:$0xf]
  %v392 = vld [vmem:[%s1 + $0x570] sm:$0xf]
  %v393 = vld [vmem:[%s1 + $0x574] sm:$0xf]
  %v394 = vld [vmem:[%s1 + $0x578] sm:$0xf]
  %v395 = vld [vmem:[%s1 + $0x57c] sm:$0xf]
  %v396 = vld [vmem:[%s1 + $0x580] sm:$0xf]
  %v397 = vld [vmem:[%s1 + $0x584] sm:$0xf]
  %v398 = vld [vmem:[%s1 + $0x588] sm:$0xf]
  %v399 = vld [vmem:[%s1 + $0x58c] sm:$0xf]
  %v400 = vld [vmem:[%s1 + $0x590] sm:$0xf]
  %v401 = vld [vmem:[%s1 + $0x594] sm:$0xf]
  %v402 = vld [vmem:[%s1 + $0x598] sm:$0xf]
  %v403 = vld [vmem:[%s1 + $0x59c] sm:$0xf]
  %v404 = vld [vmem:[%s1 + $0x5a0] sm:$0xf]
  %v405 = vld [vmem:[%s1 + $0x5a4] sm:$0xf]
  %v406 = vld [vmem:[%s1 + $0x5a8] sm:$0xf]
  %v407 = vld [vmem:[%s1 + $0x5ac] sm:$0xf]
  %v408 = vld [vmem:[%s1 + $0x5b0] sm:$0xf]
  %v409 = vld [vmem:[%s1 + $0x5b4] sm:$0xf]
  %v410 = vld [vmem:[%s1 + $0x5b8] sm:$0xf]
  %v411 = vld [vmem:[%s1 + $0x5bc] sm:$0xf]
  %v412 = vld [vmem:[%s1 + $0x5c0] sm:$0xf]
  %v413 = vld [vmem:[%s1 + $0x5c4] sm:$0xf]
  %v414 = vld [vmem:[%s1 + $0x5c8] sm:$0xf]
  %v415 = vld [vmem:[%s1 + $0x5cc] sm:$0xf]
  %v416 = vld [vmem:[%s1 + $0x5d0] sm:$0xf]
  %v417 = vld [vmem:[%s1 + $0x5d4] sm:$0xf]
  %v418 = vld [vmem:[%s1 + $0x5d8] sm:$0xf]
  %v419 = vld [vmem:[%s1 + $0x5dc] sm:$0xf]
  %v420 = vld [vmem:[%s1 + $0x5e0] sm:$0xf]
  %v421 = vld [vmem:[%s1 + $0x5e4] sm:$0xf]
  %v422 = vld [vmem:[%s1 + $0x5e8] sm:$0xf]
  %v423 = vld [vmem:[%s1 + $0x5ec] sm:$0xf]
  %v424 = vld [vmem:[%s1 + $0x5f0] sm:$0xf]
  %v425 = vld [vmem:[%s1 + $0x5f4] sm:$0xf]
  %v426 = vld [vmem:[%s1 + $0x5f8] sm:$0xf]
  %v427 = vld [vmem:[%s1 + $0x5fc] sm:$0xf]
  %v428 = vld [vmem:[%s2] sm:$0x1]
  %v430 = vperm.slane %v428, 0
  %v456 = vunpack.c.l.b16 %v20
  %v457 = vunpack.c.h.b16 %v20
  %v458 = vunpack.c.l.b16 %v21
  %v459 = vunpack.c.h.b16 %v21
  %v460 = vunpack.c.l.b16 %v22
  %v461 = vunpack.c.h.b16 %v22
  %v462 = vunpack.c.l.b16 %v23
  %v463 = vunpack.c.h.b16 %v23
  %v464 = vunpack.c.l.b16 %v24
  %v465 = vunpack.c.h.b16 %v24
  %v466 = vunpack.c.l.b16 %v25
  %v467 = vunpack.c.h.b16 %v25
  %v468 = vunpack.c.l.b16 %v26
  %v469 = vunpack.c.h.b16 %v26
  %v470 = vunpack.c.l.b16 %v27
  %v471 = vunpack.c.h.b16 %v27
  %v472 = vunpack.c.l.b16 %v28
  %v473 = vunpack.c.h.b16 %v28
  %v474 = vunpack.c.l.b16 %v29
  %v475 = vunpack.c.h.b16 %v29
  %v476 = vunpack.c.l.b16 %v30
  %v477 = vunpack.c.h.b16 %v30
  %v478 = vunpack.c.l.b16 %v31
  %v479 = vunpack.c.h.b16 %v31
  %v480 = vunpack.c.l.b16 %v32
  %v481 = vunpack.c.h.b16 %v32
  %v482 = vunpack.c.l.b16 %v33
  %v483 = vunpack.c.h.b16 %v33
  %v484 = vunpack.c.l.b16 %v34
  %v485 = vunpack.c.h.b16 %v34
  %v486 = vunpack.c.l.b16 %v35
  %v487 = vunpack.c.h.b16 %v35
  %v488 = vunpack.c.l.b16 %v36
  %v489 = vunpack.c.h.b16 %v36
  %v490 = vunpack.c.l.b16 %v37
  %v491 = vunpack.c.h.b16 %v37
  %v492 = vunpack.c.l.b16 %v38
  %v493 = vunpack.c.h.b16 %v38
  %v494 = vunpack.c.l.b16 %v39
  %v495 = vunpack.c.h.b16 %v39
  %v496 = vunpack.c.l.b16 %v40
  %v497 = vunpack.c.h.b16 %v40
  %v498 = vunpack.c.l.b16 %v41
  %v499 = vunpack.c.h.b16 %v41
  %v500 = vunpack.c.l.b16 %v42
  %v501 = vunpack.c.h.b16 %v42
  %v502 = vunpack.c.l.b16 %v43
  %v503 = vunpack.c.h.b16 %v43
  %v504 = vpack.c.b16 %v480, %v456
  %v505 = vpack.c.b16 %v481, %v457
  %v506 = vpack.c.b16 %v482, %v458
  %v507 = vpack.c.b16 %v483, %v459
  %v508 = vpack.c.b16 %v484, %v460
  %v509 = vpack.c.b16 %v485, %v461
  %v510 = vpack.c.b16 %v486, %v462
  %v511 = vpack.c.b16 %v487, %v463
  %v512 = vpack.c.b16 %v488, %v464
  %v513 = vpack.c.b16 %v489, %v465
  %v514 = vpack.c.b16 %v490, %v466
  %v515 = vpack.c.b16 %v491, %v467
  %v516 = vpack.c.b16 %v492, %v468
  %v517 = vpack.c.b16 %v493, %v469
  %v518 = vpack.c.b16 %v494, %v470
  %v519 = vpack.c.b16 %v495, %v471
  %v520 = vpack.c.b16 %v496, %v472
  %v521 = vpack.c.b16 %v497, %v473
  %v522 = vpack.c.b16 %v498, %v474
  %v523 = vpack.c.b16 %v499, %v475
  %v524 = vpack.c.b16 %v500, %v476
  %v525 = vpack.c.b16 %v501, %v477
  %v526 = vpack.c.b16 %v502, %v478
  %v527 = vpack.c.b16 %v503, %v479
  %v936 = vunpack.c.l.b16 %v44
  %v937 = vunpack.c.l.b16 %v45
  %v938 = vunpack.c.l.b16 %v46
  %v939 = vunpack.c.l.b16 %v47
  %v940 = vunpack.c.l.b16 %v48
  %v941 = vunpack.c.l.b16 %v49
  %v942 = vunpack.c.l.b16 %v50
  %v943 = vunpack.c.l.b16 %v51
  %v944 = vunpack.c.l.b16 %v52
  %v945 = vunpack.c.l.b16 %v53
  %v946 = vunpack.c.l.b16 %v54
  %v947 = vunpack.c.l.b16 %v55
  %v948 = vunpack.c.l.b16 %v56
  %v949 = vunpack.c.l.b16 %v57
  %v950 = vunpack.c.l.b16 %v58
  %v951 = vunpack.c.l.b16 %v59
  %v952 = vunpack.c.l.b16 %v60
  %v953 = vunpack.c.l.b16 %v61
  %v954 = vunpack.c.l.b16 %v62
  %v955 = vunpack.c.l.b16 %v63
  %v956 = vunpack.c.l.b16 %v64
  %v957 = vunpack.c.l.b16 %v65
  %v958 = vunpack.c.l.b16 %v66
  %v959 = vunpack.c.l.b16 %v67
  %v960 = vunpack.c.l.b16 %v68
  %v961 = vunpack.c.l.b16 %v69
  %v962 = vunpack.c.l.b16 %v70
  %v963 = vunpack.c.l.b16 %v71
  %v964 = vunpack.c.l.b16 %v72
  %v965 = vunpack.c.l.b16 %v73
  %v966 = vunpack.c.l.b16 %v74
  %v967 = vunpack.c.l.b16 %v75
  %v968 = vunpack.c.l.b16 %v76
  %v969 = vunpack.c.l.b16 %v77
  %v970 = vunpack.c.l.b16 %v78
  %v971 = vunpack.c.l.b16 %v79
  %v972 = vunpack.c.l.b16 %v80
  %v973 = vunpack.c.l.b16 %v81
  %v974 = vunpack.c.l.b16 %v82
  %v975 = vunpack.c.l.b16 %v83
  %v976 = vunpack.c.l.b16 %v84
  %v977 = vunpack.c.l.b16 %v85
  %v978 = vunpack.c.l.b16 %v86
  %v979 = vunpack.c.l.b16 %v87
  %v980 = vunpack.c.l.b16 %v88
  %v981 = vunpack.c.l.b16 %v89
  %v982 = vunpack.c.l.b16 %v90
  %v983 = vunpack.c.l.b16 %v91
  %v984 = vunpack.c.l.b16 %v92
  %v985 = vunpack.c.l.b16 %v93
  %v986 = vunpack.c.l.b16 %v94
  %v987 = vunpack.c.l.b16 %v95
  %v988 = vunpack.c.l.b16 %v96
  %v989 = vunpack.c.l.b16 %v97
  %v990 = vunpack.c.l.b16 %v98
  %v991 = vunpack.c.l.b16 %v99
  %v992 = vunpack.c.l.b16 %v100
  %v993 = vunpack.c.l.b16 %v101
  %v994 = vunpack.c.l.b16 %v102
  %v995 = vunpack.c.l.b16 %v103
  %v996 = vunpack.c.l.b16 %v104
  %v997 = vunpack.c.l.b16 %v105
  %v998 = vunpack.c.l.b16 %v106
  %v999 = vunpack.c.l.b16 %v107
  %v1000 = vunpack.c.l.b16 %v108
  %v1001 = vunpack.c.l.b16 %v109
  %v1002 = vunpack.c.l.b16 %v110
  %v1003 = vunpack.c.l.b16 %v111
  %v1004 = vunpack.c.l.b16 %v112
  %v1005 = vunpack.c.l.b16 %v113
  %v1006 = vunpack.c.l.b16 %v114
  %v1007 = vunpack.c.l.b16 %v115
  %v1008 = vunpack.c.l.b16 %v116
  %v1009 = vunpack.c.l.b16 %v117
  %v1010 = vunpack.c.l.b16 %v118
  %v1011 = vunpack.c.l.b16 %v119
  %v1012 = vunpack.c.l.b16 %v120
  %v1013 = vunpack.c.l.b16 %v121
  %v1014 = vunpack.c.l.b16 %v122
  %v1015 = vunpack.c.l.b16 %v123
  %v1016 = vunpack.c.l.b16 %v124
  %v1017 = vunpack.c.l.b16 %v125
  %v1018 = vunpack.c.l.b16 %v126
  %v1019 = vunpack.c.l.b16 %v127
  %v1020 = vunpack.c.l.b16 %v128
  %v1021 = vunpack.c.l.b16 %v129
  %v1022 = vunpack.c.l.b16 %v130
  %v1023 = vunpack.c.l.b16 %v131
  %v1024 = vunpack.c.l.b16 %v132
  %v1025 = vunpack.c.l.b16 %v133
  %v1026 = vunpack.c.l.b16 %v134
  %v1027 = vunpack.c.l.b16 %v135
  %v1028 = vunpack.c.l.b16 %v136
  %v1029 = vunpack.c.l.b16 %v137
  %v1030 = vunpack.c.l.b16 %v138
  %v1031 = vunpack.c.l.b16 %v139
  %v1032 = vunpack.c.l.b16 %v140
  %v1033 = vunpack.c.l.b16 %v141
  %v1034 = vunpack.c.l.b16 %v142
  %v1035 = vunpack.c.l.b16 %v143
  %v1036 = vunpack.c.l.b16 %v144
  %v1037 = vunpack.c.l.b16 %v145
  %v1038 = vunpack.c.l.b16 %v146
  %v1039 = vunpack.c.l.b16 %v147
  %v1040 = vunpack.c.l.b16 %v148
  %v1041 = vunpack.c.l.b16 %v149
  %v1042 = vunpack.c.l.b16 %v150
  %v1043 = vunpack.c.l.b16 %v151
  %v1044 = vunpack.c.l.b16 %v152
  %v1045 = vunpack.c.l.b16 %v153
  %v1046 = vunpack.c.l.b16 %v154
  %v1047 = vunpack.c.l.b16 %v155
  %v1048 = vunpack.c.l.b16 %v156
  %v1049 = vunpack.c.l.b16 %v157
  %v1050 = vunpack.c.l.b16 %v158
  %v1051 = vunpack.c.l.b16 %v159
  %v1052 = vunpack.c.l.b16 %v160
  %v1053 = vunpack.c.l.b16 %v161
  %v1054 = vunpack.c.l.b16 %v162
  %v1055 = vunpack.c.l.b16 %v163
  %v1056 = vunpack.c.l.b16 %v164
  %v1057 = vunpack.c.l.b16 %v165
  %v1058 = vunpack.c.l.b16 %v166
  %v1059 = vunpack.c.l.b16 %v167
  %v1060 = vunpack.c.l.b16 %v168
  %v1061 = vunpack.c.l.b16 %v169
  %v1062 = vunpack.c.l.b16 %v170
  %v1063 = vunpack.c.l.b16 %v171
  %v1064 = vunpack.c.l.b16 %v172
  %v1065 = vunpack.c.l.b16 %v173
  %v1066 = vunpack.c.l.b16 %v174
  %v1067 = vunpack.c.l.b16 %v175
  %v1068 = vunpack.c.l.b16 %v176
  %v1069 = vunpack.c.l.b16 %v177
  %v1070 = vunpack.c.l.b16 %v178
  %v1071 = vunpack.c.l.b16 %v179
  %v1072 = vunpack.c.l.b16 %v180
  %v1073 = vunpack.c.l.b16 %v181
  %v1074 = vunpack.c.l.b16 %v182
  %v1075 = vunpack.c.l.b16 %v183
  %v1076 = vunpack.c.l.b16 %v184
  %v1077 = vunpack.c.l.b16 %v185
  %v1078 = vunpack.c.l.b16 %v186
  %v1079 = vunpack.c.l.b16 %v187
  %v1080 = vunpack.c.l.b16 %v188
  %v1081 = vunpack.c.l.b16 %v189
  %v1082 = vunpack.c.l.b16 %v190
  %v1083 = vunpack.c.l.b16 %v191
  %v1084 = vunpack.c.l.b16 %v192
  %v1085 = vunpack.c.l.b16 %v193
  %v1086 = vunpack.c.l.b16 %v194
  %v1087 = vunpack.c.l.b16 %v195
  %v1088 = vunpack.c.l.b16 %v196
  %v1089 = vunpack.c.l.b16 %v197
  %v1090 = vunpack.c.l.b16 %v198
  %v1091 = vunpack.c.l.b16 %v199
  %v1092 = vunpack.c.l.b16 %v200
  %v1093 = vunpack.c.l.b16 %v201
  %v1094 = vunpack.c.l.b16 %v202
  %v1095 = vunpack.c.l.b16 %v203
  %v1096 = vunpack.c.l.b16 %v204
  %v1097 = vunpack.c.l.b16 %v205
  %v1098 = vunpack.c.l.b16 %v206
  %v1099 = vunpack.c.l.b16 %v207
  %v1100 = vunpack.c.l.b16 %v208
  %v1101 = vunpack.c.l.b16 %v209
  %v1102 = vunpack.c.l.b16 %v210
  %v1103 = vunpack.c.l.b16 %v211
  %v1104 = vunpack.c.l.b16 %v212
  %v1105 = vunpack.c.l.b16 %v213
  %v1106 = vunpack.c.l.b16 %v214
  %v1107 = vunpack.c.l.b16 %v215
  %v1108 = vunpack.c.l.b16 %v216
  %v1109 = vunpack.c.l.b16 %v217
  %v1110 = vunpack.c.l.b16 %v218
  %v1111 = vunpack.c.l.b16 %v219
  %v1112 = vunpack.c.l.b16 %v220
  %v1113 = vunpack.c.l.b16 %v221
  %v1114 = vunpack.c.l.b16 %v222
  %v1115 = vunpack.c.l.b16 %v223
  %v1116 = vunpack.c.l.b16 %v224
  %v1117 = vunpack.c.l.b16 %v225
  %v1118 = vunpack.c.l.b16 %v226
  %v1119 = vunpack.c.l.b16 %v227
  %v1120 = vunpack.c.l.b16 %v228
  %v1121 = vunpack.c.l.b16 %v229
  %v1122 = vunpack.c.l.b16 %v230
  %v1123 = vunpack.c.l.b16 %v231
  %v1124 = vunpack.c.l.b16 %v232
  %v1125 = vunpack.c.l.b16 %v233
  %v1126 = vunpack.c.l.b16 %v234
  %v1127 = vunpack.c.l.b16 %v235
  %v1128 = vunpack.c.l.b16 %v236
  %v1129 = vunpack.c.l.b16 %v237
  %v1130 = vunpack.c.l.b16 %v238
  %v1131 = vunpack.c.l.b16 %v239
  %v1132 = vunpack.c.l.b16 %v240
  %v1133 = vunpack.c.l.b16 %v241
  %v1134 = vunpack.c.l.b16 %v242
  %v1135 = vunpack.c.l.b16 %v243
  %v1136 = vunpack.c.l.b16 %v244
  %v1137 = vunpack.c.l.b16 %v245
  %v1138 = vunpack.c.l.b16 %v246
  %v1139 = vunpack.c.l.b16 %v247
  %v1140 = vunpack.c.l.b16 %v248
  %v1141 = vunpack.c.l.b16 %v249
  %v1142 = vunpack.c.l.b16 %v250
  %v1143 = vunpack.c.l.b16 %v251
  %v1144 = vunpack.c.l.b16 %v252
  %v1145 = vunpack.c.l.b16 %v253
  %v1146 = vunpack.c.l.b16 %v254
  %v1147 = vunpack.c.l.b16 %v255
  %v1148 = vunpack.c.l.b16 %v256
  %v1149 = vunpack.c.l.b16 %v257
  %v1150 = vunpack.c.l.b16 %v258
  %v1151 = vunpack.c.l.b16 %v259
  %v1152 = vunpack.c.l.b16 %v260
  %v1153 = vunpack.c.l.b16 %v261
  %v1154 = vunpack.c.l.b16 %v262
  %v1155 = vunpack.c.l.b16 %v263
  %v1156 = vunpack.c.l.b16 %v264
  %v1157 = vunpack.c.l.b16 %v265
  %v1158 = vunpack.c.l.b16 %v266
  %v1159 = vunpack.c.l.b16 %v267
  %v1160 = vunpack.c.l.b16 %v268
  %v1161 = vunpack.c.l.b16 %v269
  %v1162 = vunpack.c.l.b16 %v270
  %v1163 = vunpack.c.l.b16 %v271
  %v1164 = vunpack.c.l.b16 %v272
  %v1165 = vunpack.c.l.b16 %v273
  %v1166 = vunpack.c.l.b16 %v274
  %v1167 = vunpack.c.l.b16 %v275
  %v1168 = vunpack.c.l.b16 %v276
  %v1169 = vunpack.c.l.b16 %v277
  %v1170 = vunpack.c.l.b16 %v278
  %v1171 = vunpack.c.l.b16 %v279
  %v1172 = vunpack.c.l.b16 %v280
  %v1173 = vunpack.c.l.b16 %v281
  %v1174 = vunpack.c.l.b16 %v282
  %v1175 = vunpack.c.l.b16 %v283
  %v1176 = vunpack.c.l.b16 %v284
  %v1177 = vunpack.c.l.b16 %v285
  %v1178 = vunpack.c.l.b16 %v286
  %v1179 = vunpack.c.l.b16 %v287
  %v1180 = vunpack.c.l.b16 %v288
  %v1181 = vunpack.c.l.b16 %v289
  %v1182 = vunpack.c.l.b16 %v290
  %v1183 = vunpack.c.l.b16 %v291
  %v1184 = vunpack.c.l.b16 %v292
  %v1185 = vunpack.c.l.b16 %v293
  %v1186 = vunpack.c.l.b16 %v294
  %v1187 = vunpack.c.l.b16 %v295
  %v1188 = vunpack.c.l.b16 %v296
  %v1189 = vunpack.c.l.b16 %v297
  %v1190 = vunpack.c.l.b16 %v298
  %v1191 = vunpack.c.l.b16 %v299
  %v1192 = vunpack.c.l.b16 %v300
  %v1193 = vunpack.c.l.b16 %v301
  %v1194 = vunpack.c.l.b16 %v302
  %v1195 = vunpack.c.l.b16 %v303
  %v1196 = vunpack.c.l.b16 %v304
  %v1197 = vunpack.c.l.b16 %v305
  %v1198 = vunpack.c.l.b16 %v306
  %v1199 = vunpack.c.l.b16 %v307
  %v1200 = vunpack.c.l.b16 %v308
  %v1201 = vunpack.c.l.b16 %v309
  %v1202 = vunpack.c.l.b16 %v310
  %v1203 = vunpack.c.l.b16 %v311
  %v1204 = vunpack.c.l.b16 %v312
  %v1205 = vunpack.c.l.b16 %v313
  %v1206 = vunpack.c.l.b16 %v314
  %v1207 = vunpack.c.l.b16 %v315
  %v1208 = vunpack.c.l.b16 %v316
  %v1209 = vunpack.c.l.b16 %v317
  %v1210 = vunpack.c.l.b16 %v318
  %v1211 = vunpack.c.l.b16 %v319
  %v1212 = vunpack.c.l.b16 %v320
  %v1213 = vunpack.c.l.b16 %v321
  %v1214 = vunpack.c.l.b16 %v322
  %v1215 = vunpack.c.l.b16 %v323
  %v1216 = vunpack.c.l.b16 %v324
  %v1217 = vunpack.c.l.b16 %v325
  %v1218 = vunpack.c.l.b16 %v326
  %v1219 = vunpack.c.l.b16 %v327
  %v1220 = vunpack.c.l.b16 %v328
  %v1221 = vunpack.c.l.b16 %v329
  %v1222 = vunpack.c.l.b16 %v330
  %v1223 = vunpack.c.l.b16 %v331
  %v1224 = vunpack.c.l.b16 %v332
  %v1225 = vunpack.c.l.b16 %v333
  %v1226 = vunpack.c.l.b16 %v334
  %v1227 = vunpack.c.l.b16 %v335
  %v1228 = vunpack.c.l.b16 %v336
  %v1229 = vunpack.c.l.b16 %v337
  %v1230 = vunpack.c.l.b16 %v338
  %v1231 = vunpack.c.l.b16 %v339
  %v1232 = vunpack.c.l.b16 %v340
  %v1233 = vunpack.c.l.b16 %v341
  %v1234 = vunpack.c.l.b16 %v342
  %v1235 = vunpack.c.l.b16 %v343
  %v1236 = vunpack.c.l.b16 %v344
  %v1237 = vunpack.c.l.b16 %v345
  %v1238 = vunpack.c.l.b16 %v346
  %v1239 = vunpack.c.l.b16 %v347
  %v1240 = vunpack.c.l.b16 %v348
  %v1241 = vunpack.c.l.b16 %v349
  %v1242 = vunpack.c.l.b16 %v350
  %v1243 = vunpack.c.l.b16 %v351
  %v1244 = vunpack.c.l.b16 %v352
  %v1245 = vunpack.c.l.b16 %v353
  %v1246 = vunpack.c.l.b16 %v354
  %v1247 = vunpack.c.l.b16 %v355
  %v1248 = vunpack.c.l.b16 %v356
  %v1249 = vunpack.c.l.b16 %v357
  %v1250 = vunpack.c.l.b16 %v358
  %v1251 = vunpack.c.l.b16 %v359
  %v1252 = vunpack.c.l.b16 %v360
  %v1253 = vunpack.c.l.b16 %v361
  %v1254 = vunpack.c.l.b16 %v362
  %v1255 = vunpack.c.l.b16 %v363
  %v1256 = vunpack.c.l.b16 %v364
  %v1257 = vunpack.c.l.b16 %v365
  %v1258 = vunpack.c.l.b16 %v366
  %v1259 = vunpack.c.l.b16 %v367
  %v1260 = vunpack.c.l.b16 %v368
  %v1261 = vunpack.c.l.b16 %v369
  %v1262 = vunpack.c.l.b16 %v370
  %v1263 = vunpack.c.l.b16 %v371
  %v1264 = vunpack.c.l.b16 %v372
  %v1265 = vunpack.c.l.b16 %v373
  %v1266 = vunpack.c.l.b16 %v374
  %v1267 = vunpack.c.l.b16 %v375
  %v1268 = vunpack.c.l.b16 %v376
  %v1269 = vunpack.c.l.b16 %v377
  %v1270 = vunpack.c.l.b16 %v378
  %v1271 = vunpack.c.l.b16 %v379
  %v1272 = vunpack.c.l.b16 %v380
  %v1273 = vunpack.c.l.b16 %v381
  %v1274 = vunpack.c.l.b16 %v382
  %v1275 = vunpack.c.l.b16 %v383
  %v1276 = vunpack.c.l.b16 %v384
  %v1277 = vunpack.c.l.b16 %v385
  %v1278 = vunpack.c.l.b16 %v386
  %v1279 = vunpack.c.l.b16 %v387
  %v1280 = vunpack.c.l.b16 %v388
  %v1281 = vunpack.c.l.b16 %v389
  %v1282 = vunpack.c.l.b16 %v390
  %v1283 = vunpack.c.l.b16 %v391
  %v1284 = vunpack.c.l.b16 %v392
  %v1285 = vunpack.c.l.b16 %v393
  %v1286 = vunpack.c.l.b16 %v394
  %v1287 = vunpack.c.l.b16 %v395
  %v1288 = vunpack.c.l.b16 %v396
  %v1289 = vunpack.c.l.b16 %v397
  %v1290 = vunpack.c.l.b16 %v398
  %v1291 = vunpack.c.l.b16 %v399
  %v1292 = vunpack.c.l.b16 %v400
  %v1293 = vunpack.c.l.b16 %v401
  %v1294 = vunpack.c.l.b16 %v402
  %v1295 = vunpack.c.l.b16 %v403
  %v1296 = vunpack.c.l.b16 %v404
  %v1297 = vunpack.c.l.b16 %v405
  %v1298 = vunpack.c.l.b16 %v406
  %v1299 = vunpack.c.l.b16 %v407
  %v1300 = vunpack.c.l.b16 %v408
  %v1301 = vunpack.c.l.b16 %v409
  %v1302 = vunpack.c.l.b16 %v410
  %v1303 = vunpack.c.l.b16 %v411
  %v1304 = vunpack.c.l.b16 %v412
  %v1305 = vunpack.c.l.b16 %v413
  %v1306 = vunpack.c.l.b16 %v414
  %v1307 = vunpack.c.l.b16 %v415
  %v1308 = vunpack.c.l.b16 %v416
  %v1309 = vunpack.c.l.b16 %v417
  %v1310 = vunpack.c.l.b16 %v418
  %v1311 = vunpack.c.l.b16 %v419
  %v1312 = vunpack.c.l.b16 %v420
  %v1313 = vunpack.c.l.b16 %v421
  %v1314 = vunpack.c.l.b16 %v422
  %v1315 = vunpack.c.l.b16 %v423
  %v1316 = vunpack.c.l.b16 %v424
  %v1317 = vunpack.c.l.b16 %v425
  %v1318 = vunpack.c.l.b16 %v426
  %v1319 = vunpack.c.l.b16 %v427
  %v1320 = vpack.c.b16 %v937, %v936
  %v1321 = vpack.c.b16 %v939, %v938
  %v1322 = vpack.c.b16 %v941, %v940
  %v1323 = vpack.c.b16 %v943, %v942
  %v1324 = vpack.c.b16 %v945, %v944
  %v1325 = vpack.c.b16 %v947, %v946
  %v1326 = vpack.c.b16 %v949, %v948
  %v1327 = vpack.c.b16 %v951, %v950
  %v1328 = vpack.c.b16 %v953, %v952
  %v1329 = vpack.c.b16 %v955, %v954
  %v1330 = vpack.c.b16 %v957, %v956
  %v1331 = vpack.c.b16 %v959, %v958
  %v1332 = vpack.c.b16 %v961, %v960
  %v1333 = vpack.c.b16 %v963, %v962
  %v1334 = vpack.c.b16 %v965, %v964
  %v1335 = vpack.c.b16 %v967, %v966
  %v1336 = vpack.c.b16 %v969, %v968
  %v1337 = vpack.c.b16 %v971, %v970
  %v1338 = vpack.c.b16 %v973, %v972
  %v1339 = vpack.c.b16 %v975, %v974
  %v1340 = vpack.c.b16 %v977, %v976
  %v1341 = vpack.c.b16 %v979, %v978
  %v1342 = vpack.c.b16 %v981, %v980
  %v1343 = vpack.c.b16 %v983, %v982
  %v1344 = vpack.c.b16 %v985, %v984
  %v1345 = vpack.c.b16 %v987, %v986
  %v1346 = vpack.c.b16 %v989, %v988
  %v1347 = vpack.c.b16 %v991, %v990
  %v1348 = vpack.c.b16 %v993, %v992
  %v1349 = vpack.c.b16 %v995, %v994
  %v1350 = vpack.c.b16 %v997, %v996
  %v1351 = vpack.c.b16 %v999, %v998
  %v1352 = vpack.c.b16 %v1001, %v1000
  %v1353 = vpack.c.b16 %v1003, %v1002
  %v1354 = vpack.c.b16 %v1005, %v1004
  %v1355 = vpack.c.b16 %v1007, %v1006
  %v1356 = vpack.c.b16 %v1009, %v1008
  %v1357 = vpack.c.b16 %v1011, %v1010
  %v1358 = vpack.c.b16 %v1013, %v1012
  %v1359 = vpack.c.b16 %v1015, %v1014
  %v1360 = vpack.c.b16 %v1017, %v1016
  %v1361 = vpack.c.b16 %v1019, %v1018
  %v1362 = vpack.c.b16 %v1021, %v1020
  %v1363 = vpack.c.b16 %v1023, %v1022
  %v1364 = vpack.c.b16 %v1025, %v1024
  %v1365 = vpack.c.b16 %v1027, %v1026
  %v1366 = vpack.c.b16 %v1029, %v1028
  %v1367 = vpack.c.b16 %v1031, %v1030
  %v1368 = vpack.c.b16 %v1033, %v1032
  %v1369 = vpack.c.b16 %v1035, %v1034
  %v1370 = vpack.c.b16 %v1037, %v1036
  %v1371 = vpack.c.b16 %v1039, %v1038
  %v1372 = vpack.c.b16 %v1041, %v1040
  %v1373 = vpack.c.b16 %v1043, %v1042
  %v1374 = vpack.c.b16 %v1045, %v1044
  %v1375 = vpack.c.b16 %v1047, %v1046
  %v1376 = vpack.c.b16 %v1049, %v1048
  %v1377 = vpack.c.b16 %v1051, %v1050
  %v1378 = vpack.c.b16 %v1053, %v1052
  %v1379 = vpack.c.b16 %v1055, %v1054
  %v1380 = vpack.c.b16 %v1057, %v1056
  %v1381 = vpack.c.b16 %v1059, %v1058
  %v1382 = vpack.c.b16 %v1061, %v1060
  %v1383 = vpack.c.b16 %v1063, %v1062
  %v1384 = vpack.c.b16 %v1065, %v1064
  %v1385 = vpack.c.b16 %v1067, %v1066
  %v1386 = vpack.c.b16 %v1069, %v1068
  %v1387 = vpack.c.b16 %v1071, %v1070
  %v1388 = vpack.c.b16 %v1073, %v1072
  %v1389 = vpack.c.b16 %v1075, %v1074
  %v1390 = vpack.c.b16 %v1077, %v1076
  %v1391 = vpack.c.b16 %v1079, %v1078
  %v1392 = vpack.c.b16 %v1081, %v1080
  %v1393 = vpack.c.b16 %v1083, %v1082
  %v1394 = vpack.c.b16 %v1085, %v1084
  %v1395 = vpack.c.b16 %v1087, %v1086
  %v1396 = vpack.c.b16 %v1089, %v1088
  %v1397 = vpack.c.b16 %v1091, %v1090
  %v1398 = vpack.c.b16 %v1093, %v1092
  %v1399 = vpack.c.b16 %v1095, %v1094
  %v1400 = vpack.c.b16 %v1097, %v1096
  %v1401 = vpack.c.b16 %v1099, %v1098
  %v1402 = vpack.c.b16 %v1101, %v1100
  %v1403 = vpack.c.b16 %v1103, %v1102
  %v1404 = vpack.c.b16 %v1105, %v1104
  %v1405 = vpack.c.b16 %v1107, %v1106
  %v1406 = vpack.c.b16 %v1109, %v1108
  %v1407 = vpack.c.b16 %v1111, %v1110
  %v1408 = vpack.c.b16 %v1113, %v1112
  %v1409 = vpack.c.b16 %v1115, %v1114
  %v1410 = vpack.c.b16 %v1117, %v1116
  %v1411 = vpack.c.b16 %v1119, %v1118
  %v1412 = vpack.c.b16 %v1121, %v1120
  %v1413 = vpack.c.b16 %v1123, %v1122
  %v1414 = vpack.c.b16 %v1125, %v1124
  %v1415 = vpack.c.b16 %v1127, %v1126
  %v1416 = vpack.c.b16 %v1129, %v1128
  %v1417 = vpack.c.b16 %v1131, %v1130
  %v1418 = vpack.c.b16 %v1133, %v1132
  %v1419 = vpack.c.b16 %v1135, %v1134
  %v1420 = vpack.c.b16 %v1137, %v1136
  %v1421 = vpack.c.b16 %v1139, %v1138
  %v1422 = vpack.c.b16 %v1141, %v1140
  %v1423 = vpack.c.b16 %v1143, %v1142
  %v1424 = vpack.c.b16 %v1145, %v1144
  %v1425 = vpack.c.b16 %v1147, %v1146
  %v1426 = vpack.c.b16 %v1149, %v1148
  %v1427 = vpack.c.b16 %v1151, %v1150
  %v1428 = vpack.c.b16 %v1153, %v1152
  %v1429 = vpack.c.b16 %v1155, %v1154
  %v1430 = vpack.c.b16 %v1157, %v1156
  %v1431 = vpack.c.b16 %v1159, %v1158
  %v1432 = vpack.c.b16 %v1161, %v1160
  %v1433 = vpack.c.b16 %v1163, %v1162
  %v1434 = vpack.c.b16 %v1165, %v1164
  %v1435 = vpack.c.b16 %v1167, %v1166
  %v1436 = vpack.c.b16 %v1169, %v1168
  %v1437 = vpack.c.b16 %v1171, %v1170
  %v1438 = vpack.c.b16 %v1173, %v1172
  %v1439 = vpack.c.b16 %v1175, %v1174
  %v1440 = vpack.c.b16 %v1177, %v1176
  %v1441 = vpack.c.b16 %v1179, %v1178
  %v1442 = vpack.c.b16 %v1181, %v1180
  %v1443 = vpack.c.b16 %v1183, %v1182
  %v1444 = vpack.c.b16 %v1185, %v1184
  %v1445 = vpack.c.b16 %v1187, %v1186
  %v1446 = vpack.c.b16 %v1189, %v1188
  %v1447 = vpack.c.b16 %v1191, %v1190
  %v1448 = vpack.c.b16 %v1193, %v1192
  %v1449 = vpack.c.b16 %v1195, %v1194
  %v1450 = vpack.c.b16 %v1197, %v1196
  %v1451 = vpack.c.b16 %v1199, %v1198
  %v1452 = vpack.c.b16 %v1201, %v1200
  %v1453 = vpack.c.b16 %v1203, %v1202
  %v1454 = vpack.c.b16 %v1205, %v1204
  %v1455 = vpack.c.b16 %v1207, %v1206
  %v1456 = vpack.c.b16 %v1209, %v1208
  %v1457 = vpack.c.b16 %v1211, %v1210
  %v1458 = vpack.c.b16 %v1213, %v1212
  %v1459 = vpack.c.b16 %v1215, %v1214
  %v1460 = vpack.c.b16 %v1217, %v1216
  %v1461 = vpack.c.b16 %v1219, %v1218
  %v1462 = vpack.c.b16 %v1221, %v1220
  %v1463 = vpack.c.b16 %v1223, %v1222
  %v1464 = vpack.c.b16 %v1225, %v1224
  %v1465 = vpack.c.b16 %v1227, %v1226
  %v1466 = vpack.c.b16 %v1229, %v1228
  %v1467 = vpack.c.b16 %v1231, %v1230
  %v1468 = vpack.c.b16 %v1233, %v1232
  %v1469 = vpack.c.b16 %v1235, %v1234
  %v1470 = vpack.c.b16 %v1237, %v1236
  %v1471 = vpack.c.b16 %v1239, %v1238
  %v1472 = vpack.c.b16 %v1241, %v1240
  %v1473 = vpack.c.b16 %v1243, %v1242
  %v1474 = vpack.c.b16 %v1245, %v1244
  %v1475 = vpack.c.b16 %v1247, %v1246
  %v1476 = vpack.c.b16 %v1249, %v1248
  %v1477 = vpack.c.b16 %v1251, %v1250
  %v1478 = vpack.c.b16 %v1253, %v1252
  %v1479 = vpack.c.b16 %v1255, %v1254
  %v1480 = vpack.c.b16 %v1257, %v1256
  %v1481 = vpack.c.b16 %v1259, %v1258
  %v1482 = vpack.c.b16 %v1261, %v1260
  %v1483 = vpack.c.b16 %v1263, %v1262
  %v1484 = vpack.c.b16 %v1265, %v1264
  %v1485 = vpack.c.b16 %v1267, %v1266
  %v1486 = vpack.c.b16 %v1269, %v1268
  %v1487 = vpack.c.b16 %v1271, %v1270
  %v1488 = vpack.c.b16 %v1273, %v1272
  %v1489 = vpack.c.b16 %v1275, %v1274
  %v1490 = vpack.c.b16 %v1277, %v1276
  %v1491 = vpack.c.b16 %v1279, %v1278
  %v1492 = vpack.c.b16 %v1281, %v1280
  %v1493 = vpack.c.b16 %v1283, %v1282
  %v1494 = vpack.c.b16 %v1285, %v1284
  %v1495 = vpack.c.b16 %v1287, %v1286
  %v1496 = vpack.c.b16 %v1289, %v1288
  %v1497 = vpack.c.b16 %v1291, %v1290
  %v1498 = vpack.c.b16 %v1293, %v1292
  %v1499 = vpack.c.b16 %v1295, %v1294
  %v1500 = vpack.c.b16 %v1297, %v1296
  %v1501 = vpack.c.b16 %v1299, %v1298
  %v1502 = vpack.c.b16 %v1301, %v1300
  %v1503 = vpack.c.b16 %v1303, %v1302
  %v1504 = vpack.c.b16 %v1305, %v1304
  %v1505 = vpack.c.b16 %v1307, %v1306
  %v1506 = vpack.c.b16 %v1309, %v1308
  %v1507 = vpack.c.b16 %v1311, %v1310
  %v1508 = vpack.c.b16 %v1313, %v1312
  %v1509 = vpack.c.b16 %v1315, %v1314
  %v1510 = vpack.c.b16 %v1317, %v1316
  %v1511 = vpack.c.b16 %v1319, %v1318
  %1704 = vmatpush.bf16.msra.mxu0 %v1327
  %1705 = vmatpush.bf16.msra.mxu0 %v1326
  %1706 = vmatpush.bf16.msra.mxu0 %v1325
  %1707 = vmatpush.bf16.msra.mxu0 %v1324
  %1708 = vmatpush.bf16.msra.mxu0 %v1323
  %1709 = vmatpush.bf16.msra.mxu0 %v1322
  %1710 = vmatpush.bf16.msra.mxu0 %v1321
  %1711 = vmatpush.bf16.msra.mxu0 %v1320
  %1712 = vmatmul.bf16.gmra.mxu0 %v504
  %v1713 = vpop.f32.mrf.mxu0
  %v1714 = vadd.f32 %v430, %v1713
  %v1715 = vpop.f32.mrf.mxu0
  %v1716 = vadd.f32 %v430, %v1715
  %1717 = vdwg.mxu0
  %1718 = vmatpush.bf16.msra.mxu0 %v1335
  %1719 = vmatpush.bf16.msra.mxu0 %v1334
  %1720 = vmatpush.bf16.msra.mxu0 %v1333
  %1721 = vmatpush.bf16.msra.mxu0 %v1332
  %1722 = vmatpush.bf16.msra.mxu0 %v1331
  %1723 = vmatpush.bf16.msra.mxu0 %v1330
  %1724 = vmatpush.bf16.msra.mxu0 %v1329
  %1725 = vmatpush.bf16.msra.mxu0 %v1328
  %1726 = vmatmul.bf16.gmra.mxu0 %v505
  %v1727 = vpop.f32.mrf.mxu0
  %v1728 = vadd.f32 %v1714, %v1727
  %v1729 = vpop.f32.mrf.mxu0
  %v1730 = vadd.f32 %v1716, %v1729
  %1731 = vdwg.mxu0
  %1732 = vmatpush.bf16.msra.mxu0 %v1343
  %1733 = vmatpush.bf16.msra.mxu0 %v1342
  %1734 = vmatpush.bf16.msra.mxu0 %v1341
  %1735 = vmatpush.bf16.msra.mxu0 %v1340
  %1736 = vmatpush.bf16.msra.mxu0 %v1339
  %1737 = vmatpush.bf16.msra.mxu0 %v1338
  %1738 = vmatpush.bf16.msra.mxu0 %v1337
  %1739 = vmatpush.bf16.msra.mxu0 %v1336
  %1740 = vmatmul.bf16.gmra.mxu0 %v506
  %v1741 = vpop.f32.mrf.mxu0
  %v1742 = vadd.f32 %v1728, %v1741
  %v1743 = vpop.f32.mrf.mxu0
  %v1744 = vadd.f32 %v1730, %v1743
  %1745 = vdwg.mxu0
  %1746 = vmatpush.bf16.msra.mxu0 %v1351
  %1747 = vmatpush.bf16.msra.mxu0 %v1350
  %1748 = vmatpush.bf16.msra.mxu0 %v1349
  %1749 = vmatpush.bf16.msra.mxu0 %v1348
  %1750 = vmatpush.bf16.msra.mxu0 %v1347
  %1751 = vmatpush.bf16.msra.mxu0 %v1346
  %1752 = vmatpush.bf16.msra.mxu0 %v1345
  %1753 = vmatpush.bf16.msra.mxu0 %v1344
  %1754 = vmatmul.bf16.gmra.mxu0 %v507
  %v1755 = vpop.f32.mrf.mxu0
  %v1756 = vadd.f32 %v1742, %v1755
  %v1757 = vpop.f32.mrf.mxu0
  %v1758 = vadd.f32 %v1744, %v1757
  %1759 = vdwg.mxu0
  %1760 = vmatpush.bf16.msra.mxu0 %v1359
  %1761 = vmatpush.bf16.msra.mxu0 %v1358
  %1762 = vmatpush.bf16.msra.mxu0 %v1357
  %1763 = vmatpush.bf16.msra.mxu0 %v1356
  %1764 = vmatpush.bf16.msra.mxu0 %v1355
  %1765 = vmatpush.bf16.msra.mxu0 %v1354
  %1766 = vmatpush.bf16.msra.mxu0 %v1353
  %1767 = vmatpush.bf16.msra.mxu0 %v1352
  %1768 = vmatmul.bf16.gmra.mxu0 %v508
  %v1769 = vpop.f32.mrf.mxu0
  %v1770 = vadd.f32 %v1756, %v1769
  %v1771 = vpop.f32.mrf.mxu0
  %v1772 = vadd.f32 %v1758, %v1771
  %1773 = vdwg.mxu0
  %1774 = vmatpush.bf16.msra.mxu0 %v1367
  %1775 = vmatpush.bf16.msra.mxu0 %v1366
  %1776 = vmatpush.bf16.msra.mxu0 %v1365
  %1777 = vmatpush.bf16.msra.mxu0 %v1364
  %1778 = vmatpush.bf16.msra.mxu0 %v1363
  %1779 = vmatpush.bf16.msra.mxu0 %v1362
  %1780 = vmatpush.bf16.msra.mxu0 %v1361
  %1781 = vmatpush.bf16.msra.mxu0 %v1360
  %1782 = vmatmul.bf16.gmra.mxu0 %v509
  %v1783 = vpop.f32.mrf.mxu0
  %v1784 = vadd.f32 %v1770, %v1783
  %v1785 = vpop.f32.mrf.mxu0
  %v1786 = vadd.f32 %v1772, %v1785
  %1787 = vdwg.mxu0
  %1788 = vmatpush.bf16.msra.mxu0 %v1375
  %1789 = vmatpush.bf16.msra.mxu0 %v1374
  %1790 = vmatpush.bf16.msra.mxu0 %v1373
  %1791 = vmatpush.bf16.msra.mxu0 %v1372
  %1792 = vmatpush.bf16.msra.mxu0 %v1371
  %1793 = vmatpush.bf16.msra.mxu0 %v1370
  %1794 = vmatpush.bf16.msra.mxu0 %v1369
  %1795 = vmatpush.bf16.msra.mxu0 %v1368
  %1796 = vmatmul.bf16.gmra.mxu0 %v510
  %v1797 = vpop.f32.mrf.mxu0
  %v1798 = vadd.f32 %v1784, %v1797
  %v1799 = vpop.f32.mrf.mxu0
  %v1800 = vadd.f32 %v1786, %v1799
  %1801 = vdwg.mxu0
  %1802 = vmatpush.bf16.msra.mxu0 %v1383
  %1803 = vmatpush.bf16.msra.mxu0 %v1382
  %1804 = vmatpush.bf16.msra.mxu0 %v1381
  %1805 = vmatpush.bf16.msra.mxu0 %v1380
  %1806 = vmatpush.bf16.msra.mxu0 %v1379
  %1807 = vmatpush.bf16.msra.mxu0 %v1378
  %1808 = vmatpush.bf16.msra.mxu0 %v1377
  %1809 = vmatpush.bf16.msra.mxu0 %v1376
  %1810 = vmatmul.bf16.gmra.mxu0 %v511
  %v1811 = vpop.f32.mrf.mxu0
  %v1812 = vadd.f32 %v1798, %v1811
  %v1813 = vpop.f32.mrf.mxu0
  %v1814 = vadd.f32 %v1800, %v1813
  %1815 = vdwg.mxu0
  %1816 = vmatpush.bf16.msra.mxu0 %v1391
  %1817 = vmatpush.bf16.msra.mxu0 %v1390
  %1818 = vmatpush.bf16.msra.mxu0 %v1389
  %1819 = vmatpush.bf16.msra.mxu0 %v1388
  %1820 = vmatpush.bf16.msra.mxu0 %v1387
  %1821 = vmatpush.bf16.msra.mxu0 %v1386
  %1822 = vmatpush.bf16.msra.mxu0 %v1385
  %1823 = vmatpush.bf16.msra.mxu0 %v1384
  %1824 = vmatmul.bf16.gmra.mxu0 %v512
  %v1825 = vpop.f32.mrf.mxu0
  %v1826 = vadd.f32 %v1812, %v1825
  %v1827 = vpop.f32.mrf.mxu0
  %v1828 = vadd.f32 %v1814, %v1827
  %1829 = vdwg.mxu0
  %1830 = vmatpush.bf16.msra.mxu0 %v1399
  %1831 = vmatpush.bf16.msra.mxu0 %v1398
  %1832 = vmatpush.bf16.msra.mxu0 %v1397
  %1833 = vmatpush.bf16.msra.mxu0 %v1396
  %1834 = vmatpush.bf16.msra.mxu0 %v1395
  %1835 = vmatpush.bf16.msra.mxu0 %v1394
  %1836 = vmatpush.bf16.msra.mxu0 %v1393
  %1837 = vmatpush.bf16.msra.mxu0 %v1392
  %1838 = vmatmul.bf16.gmra.mxu0 %v513
  %v1839 = vpop.f32.mrf.mxu0
  %v1840 = vadd.f32 %v1826, %v1839
  %v1841 = vpop.f32.mrf.mxu0
  %v1842 = vadd.f32 %v1828, %v1841
  %1843 = vdwg.mxu0
  %1844 = vmatpush.bf16.msra.mxu0 %v1407
  %1845 = vmatpush.bf16.msra.mxu0 %v1406
  %1846 = vmatpush.bf16.msra.mxu0 %v1405
  %1847 = vmatpush.bf16.msra.mxu0 %v1404
  %1848 = vmatpush.bf16.msra.mxu0 %v1403
  %1849 = vmatpush.bf16.msra.mxu0 %v1402
  %1850 = vmatpush.bf16.msra.mxu0 %v1401
  %1851 = vmatpush.bf16.msra.mxu0 %v1400
  %1852 = vmatmul.bf16.gmra.mxu0 %v514
  %v1853 = vpop.f32.mrf.mxu0
  %v1854 = vadd.f32 %v1840, %v1853
  %v1855 = vpop.f32.mrf.mxu0
  %v1856 = vadd.f32 %v1842, %v1855
  %1857 = vdwg.mxu0
  %1858 = vmatpush.bf16.msra.mxu0 %v1415
  %1859 = vmatpush.bf16.msra.mxu0 %v1414
  %1860 = vmatpush.bf16.msra.mxu0 %v1413
  %1861 = vmatpush.bf16.msra.mxu0 %v1412
  %1862 = vmatpush.bf16.msra.mxu0 %v1411
  %1863 = vmatpush.bf16.msra.mxu0 %v1410
  %1864 = vmatpush.bf16.msra.mxu0 %v1409
  %1865 = vmatpush.bf16.msra.mxu0 %v1408
  %1866 = vmatmul.bf16.gmra.mxu0 %v515
  %v1867 = vpop.f32.mrf.mxu0
  %v1868 = vadd.f32 %v1854, %v1867
  %v1869 = vpop.f32.mrf.mxu0
  %v1870 = vadd.f32 %v1856, %v1869
  %1871 = vdwg.mxu0
  %1872 = vmatpush.bf16.msra.mxu0 %v1423
  %1873 = vmatpush.bf16.msra.mxu0 %v1422
  %1874 = vmatpush.bf16.msra.mxu0 %v1421
  %1875 = vmatpush.bf16.msra.mxu0 %v1420
  %1876 = vmatpush.bf16.msra.mxu0 %v1419
  %1877 = vmatpush.bf16.msra.mxu0 %v1418
  %1878 = vmatpush.bf16.msra.mxu0 %v1417
  %1879 = vmatpush.bf16.msra.mxu0 %v1416
  %1880 = vmatmul.bf16.gmra.mxu0 %v516
  %v1881 = vpop.f32.mrf.mxu0
  %v1882 = vadd.f32 %v1868, %v1881
  %v1883 = vpop.f32.mrf.mxu0
  %v1884 = vadd.f32 %v1870, %v1883
  %1885 = vdwg.mxu0
  %1886 = vmatpush.bf16.msra.mxu0 %v1431
  %1887 = vmatpush.bf16.msra.mxu0 %v1430
  %1888 = vmatpush.bf16.msra.mxu0 %v1429
  %1889 = vmatpush.bf16.msra.mxu0 %v1428
  %1890 = vmatpush.bf16.msra.mxu0 %v1427
  %1891 = vmatpush.bf16.msra.mxu0 %v1426
  %1892 = vmatpush.bf16.msra.mxu0 %v1425
  %1893 = vmatpush.bf16.msra.mxu0 %v1424
  %1894 = vmatmul.bf16.gmra.mxu0 %v517
  %v1895 = vpop.f32.mrf.mxu0
  %v1896 = vadd.f32 %v1882, %v1895
  %v1897 = vpop.f32.mrf.mxu0
  %v1898 = vadd.f32 %v1884, %v1897
  %1899 = vdwg.mxu0
  %1900 = vmatpush.bf16.msra.mxu0 %v1439
  %1901 = vmatpush.bf16.msra.mxu0 %v1438
  %1902 = vmatpush.bf16.msra.mxu0 %v1437
  %1903 = vmatpush.bf16.msra.mxu0 %v1436
  %1904 = vmatpush.bf16.msra.mxu0 %v1435
  %1905 = vmatpush.bf16.msra.mxu0 %v1434
  %1906 = vmatpush.bf16.msra.mxu0 %v1433
  %1907 = vmatpush.bf16.msra.mxu0 %v1432
  %1908 = vmatmul.bf16.gmra.mxu0 %v518
  %v1909 = vpop.f32.mrf.mxu0
  %v1910 = vadd.f32 %v1896, %v1909
  %v1911 = vpop.f32.mrf.mxu0
  %v1912 = vadd.f32 %v1898, %v1911
  %1913 = vdwg.mxu0
  %1914 = vmatpush.bf16.msra.mxu0 %v1447
  %1915 = vmatpush.bf16.msra.mxu0 %v1446
  %1916 = vmatpush.bf16.msra.mxu0 %v1445
  %1917 = vmatpush.bf16.msra.mxu0 %v1444
  %1918 = vmatpush.bf16.msra.mxu0 %v1443
  %1919 = vmatpush.bf16.msra.mxu0 %v1442
  %1920 = vmatpush.bf16.msra.mxu0 %v1441
  %1921 = vmatpush.bf16.msra.mxu0 %v1440
  %1922 = vmatmul.bf16.gmra.mxu0 %v519
  %v1923 = vpop.f32.mrf.mxu0
  %v1924 = vadd.f32 %v1910, %v1923
  %v1925 = vpop.f32.mrf.mxu0
  %v1926 = vadd.f32 %v1912, %v1925
  %1927 = vdwg.mxu0
  %1928 = vmatpush.bf16.msra.mxu0 %v1455
  %1929 = vmatpush.bf16.msra.mxu0 %v1454
  %1930 = vmatpush.bf16.msra.mxu0 %v1453
  %1931 = vmatpush.bf16.msra.mxu0 %v1452
  %1932 = vmatpush.bf16.msra.mxu0 %v1451
  %1933 = vmatpush.bf16.msra.mxu0 %v1450
  %1934 = vmatpush.bf16.msra.mxu0 %v1449
  %1935 = vmatpush.bf16.msra.mxu0 %v1448
  %1936 = vmatmul.bf16.gmra.mxu0 %v520
  %v1937 = vpop.f32.mrf.mxu0
  %v1938 = vadd.f32 %v1924, %v1937
  %v1939 = vpop.f32.mrf.mxu0
  %v1940 = vadd.f32 %v1926, %v1939
  %1941 = vdwg.mxu0
  %1942 = vmatpush.bf16.msra.mxu0 %v1463
  %1943 = vmatpush.bf16.msra.mxu0 %v1462
  %1944 = vmatpush.bf16.msra.mxu0 %v1461
  %1945 = vmatpush.bf16.msra.mxu0 %v1460
  %1946 = vmatpush.bf16.msra.mxu0 %v1459
  %1947 = vmatpush.bf16.msra.mxu0 %v1458
  %1948 = vmatpush.bf16.msra.mxu0 %v1457
  %1949 = vmatpush.bf16.msra.mxu0 %v1456
  %1950 = vmatmul.bf16.gmra.mxu0 %v521
  %v1951 = vpop.f32.mrf.mxu0
  %v1952 = vadd.f32 %v1938, %v1951
  %v1953 = vpop.f32.mrf.mxu0
  %v1954 = vadd.f32 %v1940, %v1953
  %1955 = vdwg.mxu0
  %1956 = vmatpush.bf16.msra.mxu0 %v1471
  %1957 = vmatpush.bf16.msra.mxu0 %v1470
  %1958 = vmatpush.bf16.msra.mxu0 %v1469
  %1959 = vmatpush.bf16.msra.mxu0 %v1468
  %1960 = vmatpush.bf16.msra.mxu0 %v1467
  %1961 = vmatpush.bf16.msra.mxu0 %v1466
  %1962 = vmatpush.bf16.msra.mxu0 %v1465
  %1963 = vmatpush.bf16.msra.mxu0 %v1464
  %1964 = vmatmul.bf16.gmra.mxu0 %v522
  %v1965 = vpop.f32.mrf.mxu0
  %v1966 = vadd.f32 %v1952, %v1965
  %v1967 = vpop.f32.mrf.mxu0
  %v1968 = vadd.f32 %v1954, %v1967
  %1969 = vdwg.mxu0
  %1970 = vmatpush.bf16.msra.mxu0 %v1479
  %1971 = vmatpush.bf16.msra.mxu0 %v1478
  %1972 = vmatpush.bf16.msra.mxu0 %v1477
  %1973 = vmatpush.bf16.msra.mxu0 %v1476
  %1974 = vmatpush.bf16.msra.mxu0 %v1475
  %1975 = vmatpush.bf16.msra.mxu0 %v1474
  %1976 = vmatpush.bf16.msra.mxu0 %v1473
  %1977 = vmatpush.bf16.msra.mxu0 %v1472
  %1978 = vmatmul.bf16.gmra.mxu0 %v523
  %v1979 = vpop.f32.mrf.mxu0
  %v1980 = vadd.f32 %v1966, %v1979
  %v1981 = vpop.f32.mrf.mxu0
  %v1982 = vadd.f32 %v1968, %v1981
  %1983 = vdwg.mxu0
  %1984 = vmatpush.bf16.msra.mxu0 %v1487
  %1985 = vmatpush.bf16.msra.mxu0 %v1486
  %1986 = vmatpush.bf16.msra.mxu0 %v1485
  %1987 = vmatpush.bf16.msra.mxu0 %v1484
  %1988 = vmatpush.bf16.msra.mxu0 %v1483
  %1989 = vmatpush.bf16.msra.mxu0 %v1482
  %1990 = vmatpush.bf16.msra.mxu0 %v1481
  %1991 = vmatpush.bf16.msra.mxu0 %v1480
  %1992 = vmatmul.bf16.gmra.mxu0 %v524
  %v1993 = vpop.f32.mrf.mxu0
  %v1994 = vadd.f32 %v1980, %v1993
  %v1995 = vpop.f32.mrf.mxu0
  %v1996 = vadd.f32 %v1982, %v1995
  %1997 = vdwg.mxu0
  %1998 = vmatpush.bf16.msra.mxu0 %v1495
  %1999 = vmatpush.bf16.msra.mxu0 %v1494
  %2000 = vmatpush.bf16.msra.mxu0 %v1493
  %2001 = vmatpush.bf16.msra.mxu0 %v1492
  %2002 = vmatpush.bf16.msra.mxu0 %v1491
  %2003 = vmatpush.bf16.msra.mxu0 %v1490
  %2004 = vmatpush.bf16.msra.mxu0 %v1489
  %2005 = vmatpush.bf16.msra.mxu0 %v1488
  %2006 = vmatmul.bf16.gmra.mxu0 %v525
  %v2007 = vpop.f32.mrf.mxu0
  %v2008 = vadd.f32 %v1994, %v2007
  %v2009 = vpop.f32.mrf.mxu0
  %v2010 = vadd.f32 %v1996, %v2009
  %2011 = vdwg.mxu0
  %2012 = vmatpush.bf16.msra.mxu0 %v1503
  %2013 = vmatpush.bf16.msra.mxu0 %v1502
  %2014 = vmatpush.bf16.msra.mxu0 %v1501
  %2015 = vmatpush.bf16.msra.mxu0 %v1500
  %2016 = vmatpush.bf16.msra.mxu0 %v1499
  %2017 = vmatpush.bf16.msra.mxu0 %v1498
  %2018 = vmatpush.bf16.msra.mxu0 %v1497
  %2019 = vmatpush.bf16.msra.mxu0 %v1496
  %2020 = vmatmul.bf16.gmra.mxu0 %v526
  %v2021 = vpop.f32.mrf.mxu0
  %v2022 = vadd.f32 %v2008, %v2021
  %v2023 = vpop.f32.mrf.mxu0
  %v2024 = vadd.f32 %v2010, %v2023
  %2025 = vdwg.mxu0
  %2026 = vmatpush.bf16.msra.mxu0 %v1511
  %2027 = vmatpush.bf16.msra.mxu0 %v1510
  %2028 = vmatpush.bf16.msra.mxu0 %v1509
  %2029 = vmatpush.bf16.msra.mxu0 %v1508
  %2030 = vmatpush.bf16.msra.mxu0 %v1507
  %2031 = vmatpush.bf16.msra.mxu0 %v1506
  %2032 = vmatpush.bf16.msra.mxu0 %v1505
  %2033 = vmatpush.bf16.msra.mxu0 %v1504
  %2034 = vmatmul.bf16.gmra.mxu0 %v527
  %v2035 = vpop.f32.mrf.mxu0
  %v2036 = vadd.f32 %v2022, %v2035
  %v2037 = vpop.f32.mrf.mxu0
  %v2038 = vadd.f32 %v2024, %v2037
  %2039 = vdwg.mxu0
  %v2040 = vmax.f32 %v2036, 0.0
  %v2041 = vmax.f32 %v2038, 0.0
  %v2042 = vpack.c.bf16 %v2041, %v2040
  %v2043 = vld [vmem:[%s3] sm:$0xf]
  %v2044 = vld [vmem:[%s3 + $0x4] sm:$0xf]
  %v2045 = vld [vmem:[%s3 + $0x8] sm:$0xf]
  %v2046 = vld [vmem:[%s3 + $0xc] sm:$0xf]
  %v2047 = vld [vmem:[%s3 + $0x10] sm:$0xf]
  %v2048 = vld [vmem:[%s3 + $0x14] sm:$0xf]
  %v2049 = vld [vmem:[%s3 + $0x18] sm:$0xf]
  %v2050 = vld [vmem:[%s3 + $0x1c] sm:$0xf]
  %v2051 = vld [vmem:[%s3 + $0x20] sm:$0xf]
  %v2052 = vld [vmem:[%s3 + $0x24] sm:$0xf]
  %v2053 = vld [vmem:[%s3 + $0x28] sm:$0xf]
  %v2054 = vld [vmem:[%s3 + $0x2c] sm:$0xf]
  %v2055 = vld [vmem:[%s3 + $0x30] sm:$0xf]
  %v2056 = vld [vmem:[%s3 + $0x34] sm:$0xf]
  %v2057 = vld [vmem:[%s3 + $0x38] sm:$0xf]
  %v2058 = vld [vmem:[%s3 + $0x3c] sm:$0xf]
  %v2059 = vld [vmem:[%s4] sm:$0x1]
  %v2061 = vperm.slane %v2059, 0
  %v2079 = vunpack.c.l.b16 %v2043
  %v2080 = vunpack.c.l.b16 %v2044
  %v2081 = vunpack.c.l.b16 %v2045
  %v2082 = vunpack.c.l.b16 %v2046
  %v2083 = vunpack.c.l.b16 %v2047
  %v2084 = vunpack.c.l.b16 %v2048
  %v2085 = vunpack.c.l.b16 %v2049
  %v2086 = vunpack.c.l.b16 %v2050
  %v2087 = vunpack.c.l.b16 %v2051
  %v2088 = vunpack.c.l.b16 %v2052
  %v2089 = vunpack.c.l.b16 %v2053
  %v2090 = vunpack.c.l.b16 %v2054
  %v2091 = vunpack.c.l.b16 %v2055
  %v2092 = vunpack.c.l.b16 %v2056
  %v2093 = vunpack.c.l.b16 %v2057
  %v2094 = vunpack.c.l.b16 %v2058
  %v2095 = vpack.c.b16 %v2080, %v2079
  %v2096 = vpack.c.b16 %v2082, %v2081
  %v2097 = vpack.c.b16 %v2084, %v2083
  %v2098 = vpack.c.b16 %v2086, %v2085
  %v2099 = vpack.c.b16 %v2088, %v2087
  %v2100 = vpack.c.b16 %v2090, %v2089
  %v2101 = vpack.c.b16 %v2092, %v2091
  %v2102 = vpack.c.b16 %v2094, %v2093
  %2111 = vmatpush.bf16.msra.mxu0 %v2102
  %2112 = vmatpush.bf16.msra.mxu0 %v2101
  %2113 = vmatpush.bf16.msra.mxu0 %v2100
  %2114 = vmatpush.bf16.msra.mxu0 %v2099
  %2115 = vmatpush.bf16.msra.mxu0 %v2098
  %2116 = vmatpush.bf16.msra.mxu0 %v2097
  %2117 = vmatpush.bf16.msra.mxu0 %v2096
  %2118 = vmatpush.bf16.msra.mxu0 %v2095
  %2119 = vmatmul.bf16.gmra.mxu0 %v2042
  %v2120 = vpop.f32.mrf.mxu0
  %v2121 = vadd.f32 %v2061, %v2120
  %v2122 = vpop.f32.mrf.mxu0
  %v2123 = vadd.f32 %v2061, %v2122
  %2124 = vdwg.mxu0
  %2125 = vst [vmem:[%s5] sm:$0xff] %v2121
  %2126 = vst [vmem:[%s5 + $0x8] sm:$0xff] %v2123
  // Predicated region
  $region22: #{cotrain_forward.31} parent=0 // pred_check
    _
  $region23: #{cotrain_forward.31} parent=0 // pred_check_branch
    %2128 = sbr.rel (0) target = $region25
  $region24: #{cotrain_forward.31} parent=0 // pred_region
    _
  $region25: #{cotrain_forward.31} parent=0 // pred_fallthru
    _
  // Predicated region
  $region26: #{cotrain_forward.31} parent=0 // pred_check
    _
  $region27: #{cotrain_forward.31} parent=0 // pred_check_branch
    %2130 = sbr.rel (0) target = $region29
  $region28: #{cotrain_forward.31} parent=0 // pred_region
    _
  $region29: #{cotrain_forward.31} parent=0 // pred_fallthru
    _

</llo_original>
